<compile_context>
chip_gen: v7x
topology: tpu7x:2x2x1
jax: 0.10.0
libtpu: 0.0.40
codegen_flags: <defaults>
</compile_context>

<pallas_src>
import functools
import itertools
import math

import jax
import jax.numpy as jnp
import numpy as np
from jax.experimental import pallas as pl
from jax.experimental.pallas import tpu as pltpu

DIM = 128
KEY_DIM = 16
NUM_HEADS = 4
ATTN_RATIO = 2
D = ATTN_RATIO * KEY_DIM          # 32 == DIM // NUM_HEADS (cascade requirement)
RES = 7                           # window resolution -> N = 49 tokens
N_TOK = RES * RES                 # 49
DWT_RES = (RES + 1) // 2          # 4
N_DWT = DWT_RES * DWT_RES         # 16
BN_EPS = 1e-5
SCALE = KEY_DIM ** (-0.5)


# ----------------------------------------------------------------------------
# Fused Pallas kernel: full cascaded group attention + residual, one batch/step
# ----------------------------------------------------------------------------
def _fused_cga_kernel(x_ref, gates_ref, ab_ref, wq_ref, bq_ref,
                      wqkv_ref, bqkv_ref, wred_ref, bred_ref,
                      wdwt_ref, widwt_ref, sshift_ref, wfilt_ref, bfilt_ref,
                      wld_ref, wpc_ref, bpc_ref, wproj_ref, bproj_ref,
                      o_ref):
    f32 = jnp.float32
    x = x_ref[0]                                  # (49, 128) tokens x channels
    gates = gates_ref[0]                          # (2, 32): [sigmoid(chan); sigmoid(freq)]
    gate_c = gates[0:1, :]                        # (1, 32)
    gate_f = gates[1:2, :]

    # global query (shared by all heads)
    q = jnp.dot(x, wq_ref[...], preferred_element_type=f32) + bq_ref[...]   # (49, 16)

    def attention(tokens, w_kv, b_kv, gate, bias):
        kv = jnp.dot(tokens, w_kv, preferred_element_type=f32) + b_kv       # (49, 48)
        k = kv[:, :KEY_DIM]                                                  # (49, 16)
        v = kv[:, KEY_DIM:]                                                  # (49, 32)
        s = jnp.einsum("mk,nk->mn", q, k, preferred_element_type=f32)        # (49, 49)
        s = s * SCALE + bias
        s = s - jnp.max(s, axis=-1, keepdims=True)
        p = jnp.exp(s)
        p = p * pl.reciprocal(jnp.sum(p, axis=-1, keepdims=True), approx=True)
        return jnp.dot(p, gate * v, preferred_element_type=f32)              # (49, 32)

    heads = []
    feat = x[:, 0:D]
    for i in range(NUM_HEADS):
        if i > 0:
            feat = feat + x[:, i * D:(i + 1) * D]
        if i in (0, 2):
            feat = attention(feat, wqkv_ref[i], bqkv_ref[i], gate_c, ab_ref[i])
            heads.append(feat)
        else:
            j = 0 if i == 1 else 1
            # reduce 32->8 (folded BN) + ReLU
            red = jnp.dot(feat, wred_ref[j], preferred_element_type=f32) + bred_ref[j]
            red = jnp.maximum(red, 0.0)                                       # (49, 8)
            # Haar DWT (zero pad 7->8) as 4 constant (16,49) matmuls; channel
            # order [LL|LH|HL|HH] packed on lanes -> (16, 32)
            x_dwt = jnp.concatenate(
                [jnp.dot(wdwt_ref[s], red, preferred_element_type=f32)
                 for s in range(4)], axis=-1)
            # 3x3 conv (pad 1) on the 4x4 subband grid: 9 accumulating
            # (shift @ x) @ W_tap dots, all VMEM resident
            acc = jnp.zeros((N_DWT, D), f32)
            for t in range(9):
                shifted = jnp.dot(sshift_ref[t], x_dwt, preferred_element_type=f32)
                acc = acc + jnp.dot(shifted, wfilt_ref[j, t],
                                    preferred_element_type=f32)
            x_f = jnp.maximum(acc + bfilt_ref[j], 0.0)                        # (16, 32)
            # IDWT + F.interpolate(nearest, 8->7) == crop: 4 constant (49,16) dots
            feat_idwt = jnp.zeros((N_TOK, DIM // 16), f32)
            for s in range(4):
                feat_idwt = feat_idwt + jnp.dot(
                    widwt_ref[s], x_f[:, s * 8:(s + 1) * 8],
                    preferred_element_type=f32)                               # (49, 8)
            # linear_dwt: spatial 16 -> 49 per channel
            ld = jnp.dot(wld_ref[...], x_f, preferred_element_type=f32)       # (49, 32)
            feat = attention(ld, wqkv_ref[i], bqkv_ref[i], gate_f, ab_ref[i])
            # proj_concat == ReLU then 1x1 conv on [feat | feat_idwt]; split the
            # weight rows so no 40-lane concat is needed
            wpc = wpc_ref[j]                                                  # (40, 32)
            head_out = (jnp.dot(jnp.maximum(feat, 0.0), wpc[:D, :],
                                preferred_element_type=f32)
                        + jnp.dot(jnp.maximum(feat_idwt, 0.0), wpc[D:, :],
                                  preferred_element_type=f32)
                        + bpc_ref[j])
            heads.append(head_out)

    # pack heads into a lane-dense (49, 128) slab, proj, fused residual add
    hcat = jnp.concatenate(heads, axis=-1)                                    # (49, 128)
    proj = jnp.dot(jnp.maximum(hcat, 0.0), wproj_ref[...],
                   preferred_element_type=f32) + bproj_ref[...]
    o_ref[0] = x + proj


def _zero_map(ndim):
    return lambda b: (0,) * ndim


def fused_cga(params, x_slab, gates):
    b, n, c = x_slab.shape
    weights = [params["ab"], params["wq"], params["bq"], params["wqkv"],
               params["bqkv"], params["wred"], params["bred"], params["wdwt"],
               params["widwt"], params["sshift"], params["wfilt"], params["bfilt"],
               params["wld"], params["wpc"], params["bpc"], params["wproj"],
               params["bproj"]]
    in_specs = ([pl.BlockSpec((1, n, c), lambda i: (i, 0, 0)),
                 pl.BlockSpec((1, 2, D), lambda i: (i, 0, 0))]
                + [pl.BlockSpec(w.shape, _zero_map(w.ndim)) for w in weights])
    return pl.pallas_call(
        _fused_cga_kernel,
        out_shape=jax.ShapeDtypeStruct((b, n, c), jnp.float32),
        grid=(b,),
        in_specs=in_specs,
        out_specs=pl.BlockSpec((1, n, c), lambda i: (i, 0, 0)),
        compiler_params=pltpu.CompilerParams(
            dimension_semantics=("parallel",)),
    )(x_slab, gates, *weights)


# ----------------------------------------------------------------------------
# Forward pass (eval mode, drop == 0)
# ----------------------------------------------------------------------------
def residual_forward(params, x0, x1):
    # LocalWindowAttention with resolution == window_resolution (7) takes the
    # direct path; Residual in eval mode: x[0] <- x[0] + attn(x[0], x[1], x[0]).
    # TODO(synk): training-mode drop-path and the window-partition branch
    # (resolution > window_resolution) are not exercised / implemented.
    b = x0.shape[0]

    # ---- channel / frequency gates from x_c (tiny M=B matmuls: left to XLA) ----
    xc_cl = jnp.transpose(x1, (0, 2, 3, 1))                       # (B, 14, 14, 128)
    xt = jnp.maximum(xc_cl @ params["reduce_v_w"] + params["reduce_v_b"], 0.0)
    a, bb = xt[:, 0::2, 0::2], xt[:, 0::2, 1::2]
    cc, dd = xt[:, 1::2, 0::2], xt[:, 1::2, 1::2]
    ll, lh = (a + bb + cc + dd) * 0.5, (a + bb - cc - dd) * 0.5
    hl, hh = (a - bb + cc - dd) * 0.5, (a - bb - cc + dd) * 0.5
    v_dwt_cat = jnp.concatenate([ll, lh, hl, hh], axis=-1)        # (B, 7, 7, 128)
    pooled_f = jnp.mean(v_dwt_cat, axis=(1, 2))                   # (B, 128)
    pooled_c = jnp.mean(x1, axis=(2, 3))                          # (B, 128)
    g_f = jax.nn.sigmoid(jax.nn.gelu(
        pooled_f @ params["ci_fre_w"] + params["ci_fre_b"], approximate=False))
    g_c = jax.nn.sigmoid(jax.nn.gelu(
        pooled_c @ params["ci_w"] + params["ci_b"], approximate=False))
    gates = jnp.stack([g_c, g_f], axis=1)                         # (B, 2, 32)

    # ---- single NCHW -> (B, N, C) layout change, fused kernel, and back ----
    x_slab = jnp.transpose(x0.reshape(b, DIM, N_TOK), (0, 2, 1))  # (B, 49, 128)
    out_slab = fused_cga(params, x_slab, gates)                   # includes residual
    y0 = jnp.transpose(out_slab, (0, 2, 1)).reshape(b, DIM, RES, RES)
    return y0, x1


# ----------------------------------------------------------------------------
# Parameters (deterministic synthetic weights, eval-mode BN folded) + constants
# ----------------------------------------------------------------------------
def init_conv_bn_1x1(key, cin, cout, conv_bias=False):
    kw, kg, kb, kc = jax.random.split(key, 4)
    w = jax.random.normal(kw, (cout, cin), jnp.float32) / math.sqrt(cin)
    gamma = 1.0 + 0.1 * jax.random.normal(kg, (cout,), jnp.float32)
    beta = 0.1 * jax.random.normal(kb, (cout,), jnp.float32)
    cb = (0.1 * jax.random.normal(kc, (cout,), jnp.float32)
          if conv_bias else jnp.zeros((cout,), jnp.float32))
    s = gamma / jnp.sqrt(1.0 + BN_EPS)      # eval BN: running_mean=0, running_var=1
    return (w * s[:, None]).T, cb * s + beta            # (cin, cout), (cout,)


def init_conv_bn_3x3_taps(key, cin, cout):
    """Folded 3x3 Conv+BN as 9 per-offset (cin, cout) matrices, t = kh*3 + kw."""
    kw, kg, kb, kc = jax.random.split(key, 4)
    w = jax.random.normal(kw, (cout, cin, 3, 3), jnp.float32) / math.sqrt(9 * cin)
    gamma = 1.0 + 0.1 * jax.random.normal(kg, (cout,), jnp.float32)
    beta = 0.1 * jax.random.normal(kb, (cout,), jnp.float32)
    cb = 0.1 * jax.random.normal(kc, (cout,), jnp.float32)
    s = gamma / jnp.sqrt(1.0 + BN_EPS)
    w = w * s[:, None, None, None]
    taps = jnp.transpose(w, (2, 3, 1, 0)).reshape(9, cin, cout)
    return taps, cb * s + beta


def make_dense_attention_bias(key, res):
    points = list(itertools.product(range(res), range(res)))
    offsets, idxs = {}, []
    for p1 in points:
        for p2 in points:
            off = (abs(p1[0] - p2[0]), abs(p1[1] - p2[1]))
            if off not in offsets:
                offsets[off] = len(offsets)
            idxs.append(offsets[off])
    idxs = np.asarray(idxs, np.int32).reshape(len(points), len(points))
    biases = 0.02 * jax.random.normal(key, (NUM_HEADS, len(offsets)), jnp.float32)
    return biases[:, idxs]                     # dense (heads, N, N), eval-mode `ab`


def build_haar_token_mats(res):
    """Constant matrices turning the spatial Haar DWT / IDWT(+crop) into matmuls
    over the flattened token axis (orthonormal Haar, J=1, zero padding).
    TODO(synk): pytorch_wavelets DWT/IDWT filter conventions assumed == Haar/zero."""
    pad = res + (res % 2)
    h2 = pad // 2
    n_tok, n_sub = res * res, h2 * h2
    imp = np.zeros((n_tok, pad, pad), np.float32)
    imp[np.arange(n_tok), np.arange(n_tok) // res, np.arange(n_tok) % res] = 1.0
    a, b = imp[:, 0::2, 0::2], imp[:, 0::2, 1::2]
    c, d = imp[:, 1::2, 0::2], imp[:, 1::2, 1::2]
    subs = [(a + b + c + d), (a + b - c - d), (a - b + c - d), (a - b - c + d)]
    wdwt = np.stack([0.5 * s.reshape(n_tok, n_sub).T for s in subs])   # (4,16,49)

    widwt = np.zeros((4, n_tok, n_sub), np.float32)
    signs = {0: (1, 1, 1, 1), 1: (1, 1, -1, -1), 2: (1, -1, 1, -1), 3: (1, -1, -1, 1)}
    for s in range(4):
        sa, sb, sc, sd = signs[s]
        imp2 = np.eye(n_sub, dtype=np.float32).reshape(n_sub, h2, h2)
        out = np.zeros((n_sub, pad, pad), np.float32)
        out[:, 0::2, 0::2] = 0.5 * sa * imp2
        out[:, 0::2, 1::2] = 0.5 * sb * imp2
        out[:, 1::2, 0::2] = 0.5 * sc * imp2
        out[:, 1::2, 1::2] = 0.5 * sd * imp2
        # F.interpolate(nearest, 8->7) == [:7, :7] crop
        widwt[s] = out[:, :res, :res].reshape(n_sub, n_tok).T             # (49,16)
    return jnp.asarray(wdwt), jnp.asarray(widwt)


def build_shift_mats(hw):
    """0/1 matrices implementing the 9 padded shifts of a 3x3 conv on hw x hw."""
    mats = np.zeros((9, hw * hw, hw * hw), np.float32)
    for kh in range(3):
        for kw in range(3):
            t = kh * 3 + kw
            for p in range(hw):
                for q in range(hw):
                    sp, sq = p + kh - 1, q + kw - 1
                    if 0 <= sp < hw and 0 <= sq < hw:
                        mats[t, p * hw + q, sp * hw + sq] = 1.0
    return jnp.asarray(mats)


def make_params(key):
    ks = iter(jax.random.split(key, 24))
    p = {}
    w, b = init_conv_bn_1x1(next(ks), DIM, KEY_DIM)
    p["wq"], p["bq"] = w, b.reshape(1, KEY_DIM)

    wl, bl = [], []
    for _ in range(NUM_HEADS):
        w, b = init_conv_bn_1x1(next(ks), DIM // NUM_HEADS, KEY_DIM + D)
        wl.append(w); bl.append(b.reshape(1, KEY_DIM + D))
    p["wqkv"], p["bqkv"] = jnp.stack(wl), jnp.stack(bl)

    p["ci_w"], p["ci_b"] = init_conv_bn_1x1(next(ks), 128, D, conv_bias=True)
    p["ci_fre_w"], p["ci_fre_b"] = init_conv_bn_1x1(next(ks), 128, D, conv_bias=True)
    p["reduce_v_w"], p["reduce_v_b"] = init_conv_bn_1x1(next(ks), 128, 128 // 4,
                                                        conv_bias=True)

    wl, bl = [], []
    for _ in range(2):                                  # reduce, reduce_one
        w, b = init_conv_bn_1x1(next(ks), DIM // 4, DIM // 16, conv_bias=True)
        wl.append(w); bl.append(b.reshape(1, DIM // 16))
    p["wred"], p["bred"] = jnp.stack(wl), jnp.stack(bl)

    wl, bl = [], []
    for _ in range(2):                                  # filter, filter_one
        taps, b = init_conv_bn_3x3_taps(next(ks), DIM // 4, DIM // 4)
        wl.append(taps); bl.append(b.reshape(1, DIM // 4))
    p["wfilt"], p["bfilt"] = jnp.stack(wl), jnp.stack(bl)

    p["wld"] = jax.random.normal(next(ks), (N_TOK, N_DWT), jnp.float32) / 4.0

    wl, bl = [], []
    for _ in range(2):                                  # proj_concat, proj_concat_one
        w, b = init_conv_bn_1x1(next(ks), DIM // 4 + DIM // 16, DIM // 4)
        wl.append(w); bl.append(b.reshape(1, DIM // 4))
    p["wpc"], p["bpc"] = jnp.stack(wl), jnp.stack(bl)

    w, b = init_conv_bn_1x1(next(ks), D * NUM_HEADS, DIM)
    p["wproj"], p["bproj"] = w, b.reshape(1, DIM)

    p["ab"] = make_dense_attention_bias(next(ks), RES)        # (4, 49, 49)
    p["wdwt"], p["widwt"] = build_haar_token_mats(RES)        # (4,16,49), (4,49,16)
    p["sshift"] = build_shift_mats(DWT_RES)                   # (9, 16, 16)
    # TODO(synk): self.dws (5x5 depthwise Conv2d_BN) is defined in __init__ but
    # never used in the reference forward, so it is omitted here.
    return p


if __name__ == "__main__":
    key = jax.random.PRNGKey(0)
    pkey, k0, k1 = jax.random.split(key, 3)
    params = make_params(pkey)

    B = 2
    x0 = jax.random.normal(k0, (B, DIM, RES, RES), jnp.float32)          # x[0]
    x1 = jax.random.normal(k1, (B, 128, 2 * RES, 2 * RES), jnp.float32)  # x[1]

    fwd = jax.jit(functools.partial(residual_forward, params))
    y0, y1 = fwd(x0, x1)
    jax.block_until_ready((y0, y1))

    assert y0.shape == x0.shape and y1.shape == x1.shape
    assert bool(jnp.all(jnp.isfinite(y0))) and bool(jnp.all(jnp.isfinite(y1)))
    print("KERNEL_OK")
</pallas_src>

<mosaic_0001>
module attributes {stable_mosaic.version = 11 : i64} {
  func.func @_fused_cga_kernel(%arg0: i32, %arg1: memref<1x49x128xf32, #tpu.memory_space<vmem>>, %arg2: memref<1x2x32xf32, #tpu.memory_space<vmem>>, %arg3: memref<4x49x49xf32, #tpu.memory_space<vmem>>, %arg4: memref<128x16xf32, #tpu.memory_space<vmem>>, %arg5: memref<1x16xf32, #tpu.memory_space<vmem>>, %arg6: memref<4x32x48xf32, #tpu.memory_space<vmem>>, %arg7: memref<4x1x48xf32, #tpu.memory_space<vmem>>, %arg8: memref<2x32x8xf32, #tpu.memory_space<vmem>>, %arg9: memref<2x1x8xf32, #tpu.memory_space<vmem>>, %arg10: memref<4x16x49xf32, #tpu.memory_space<vmem>>, %arg11: memref<4x49x16xf32, #tpu.memory_space<vmem>>, %arg12: memref<9x16x16xf32, #tpu.memory_space<vmem>>, %arg13: memref<2x9x32x32xf32, #tpu.memory_space<vmem>>, %arg14: memref<2x1x32xf32, #tpu.memory_space<vmem>>, %arg15: memref<49x16xf32, #tpu.memory_space<vmem>>, %arg16: memref<2x40x32xf32, #tpu.memory_space<vmem>>, %arg17: memref<2x1x32xf32, #tpu.memory_space<vmem>>, %arg18: memref<128x128xf32, #tpu.memory_space<vmem>>, %arg19: memref<1x128xf32, #tpu.memory_space<vmem>>, %arg20: memref<1x49x128xf32, #tpu.memory_space<vmem>>) attributes {dimension_semantics = [#tpu.dimension_semantics<parallel>], iteration_bounds = array<i64: 2>, scalar_prefetch = 0 : i64, scratch_operands = 0 : i64, tpu.core_type = #tpu.core_type<tc>, window_params = [{transform_indices = @transform_0, window_bounds = array<i64: 1, 49, 128>}, {transform_indices = @transform_1, window_bounds = array<i64: 1, 2, 32>}, {pipeline_mode = #tpu.pipeline_mode<synchronous>, transform_indices = @transform_2, window_bounds = array<i64: 4, 49, 49>}, {pipeline_mode = #tpu.pipeline_mode<synchronous>, transform_indices = @transform_3, window_bounds = array<i64: 128, 16>}, {pipeline_mode = #tpu.pipeline_mode<synchronous>, transform_indices = @transform_4, window_bounds = array<i64: 1, 16>}, {pipeline_mode = #tpu.pipeline_mode<synchronous>, transform_indices = @transform_5, window_bounds = array<i64: 4, 32, 48>}, {pipeline_mode = #tpu.pipeline_mode<synchronous>, transform_indices = @transform_6, window_bounds = array<i64: 4, 1, 48>}, {pipeline_mode = #tpu.pipeline_mode<synchronous>, transform_indices = @transform_7, window_bounds = array<i64: 2, 32, 8>}, {pipeline_mode = #tpu.pipeline_mode<synchronous>, transform_indices = @transform_8, window_bounds = array<i64: 2, 1, 8>}, {pipeline_mode = #tpu.pipeline_mode<synchronous>, transform_indices = @transform_9, window_bounds = array<i64: 4, 16, 49>}, {pipeline_mode = #tpu.pipeline_mode<synchronous>, transform_indices = @transform_10, window_bounds = array<i64: 4, 49, 16>}, {pipeline_mode = #tpu.pipeline_mode<synchronous>, transform_indices = @transform_11, window_bounds = array<i64: 9, 16, 16>}, {pipeline_mode = #tpu.pipeline_mode<synchronous>, transform_indices = @transform_12, window_bounds = array<i64: 2, 9, 32, 32>}, {pipeline_mode = #tpu.pipeline_mode<synchronous>, transform_indices = @transform_13, window_bounds = array<i64: 2, 1, 32>}, {pipeline_mode = #tpu.pipeline_mode<synchronous>, transform_indices = @transform_14, window_bounds = array<i64: 49, 16>}, {pipeline_mode = #tpu.pipeline_mode<synchronous>, transform_indices = @transform_15, window_bounds = array<i64: 2, 40, 32>}, {pipeline_mode = #tpu.pipeline_mode<synchronous>, transform_indices = @transform_16, window_bounds = array<i64: 2, 1, 32>}, {pipeline_mode = #tpu.pipeline_mode<synchronous>, transform_indices = @transform_17, window_bounds = array<i64: 128, 128>}, {pipeline_mode = #tpu.pipeline_mode<synchronous>, transform_indices = @transform_18, window_bounds = array<i64: 1, 128>}, {transform_indices = @transform_19, window_bounds = array<i64: 1, 49, 128>}]} {
    %c0 = arith.constant 0 : index
    %c0_0 = arith.constant 0 : index
    %c0_1 = arith.constant 0 : index
    %0 = vector.load %arg1[%c0, %c0_0, %c0_1] : memref<1x49x128xf32, #tpu.memory_space<vmem>>, vector<1x49x128xf32>
    %1 = vector.shape_cast %0 : vector<1x49x128xf32> to vector<49x128xf32>
    %c0_2 = arith.constant 0 : index
    %c0_3 = arith.constant 0 : index
    %c0_4 = arith.constant 0 : index
    %2 = vector.load %arg2[%c0_2, %c0_3, %c0_4] : memref<1x2x32xf32, #tpu.memory_space<vmem>>, vector<1x2x32xf32>
    %3 = vector.shape_cast %2 : vector<1x2x32xf32> to vector<2x32xf32>
    %4 = vector.extract_strided_slice %3 {offsets = [0, 0], sizes = [1, 32], strides = [1, 1]} : vector<2x32xf32> to vector<1x32xf32>
    %5 = vector.extract_strided_slice %3 {offsets = [1, 0], sizes = [1, 32], strides = [1, 1]} : vector<2x32xf32> to vector<1x32xf32>
    %c0_5 = arith.constant 0 : index
    %c0_6 = arith.constant 0 : index
    %6 = vector.load %arg4[%c0_5, %c0_6] : memref<128x16xf32, #tpu.memory_space<vmem>>, vector<128x16xf32>
    %cst = arith.constant dense<0.000000e+00> : vector<49x16xf32>
    %7 = tpu.matmul %1, %6, %cst {dimension_numbers = #tpu.dot_dimension_numbers<[1], [0], [0], [1], [0, 0, 1, 1], [], []>} : vector<49x128xf32>, vector<128x16xf32>, vector<49x16xf32> -> vector<49x16xf32>
    %c0_7 = arith.constant 0 : index
    %c0_8 = arith.constant 0 : index
    %8 = vector.load %arg5[%c0_7, %c0_8] : memref<1x16xf32, #tpu.memory_space<vmem>>, vector<1x16xf32>
    %9 = vector.broadcast %8 : vector<1x16xf32> to vector<49x16xf32>
    %10 = arith.addf %7, %9 : vector<49x16xf32>
    %11 = vector.extract_strided_slice %1 {offsets = [0, 0], sizes = [49, 32], strides = [1, 1]} : vector<49x128xf32> to vector<49x32xf32>
    %c0_9 = arith.constant 0 : index
    %c0_10 = arith.constant 0 : index
    %c0_11 = arith.constant 0 : index
    %12 = vector.load %arg6[%c0_9, %c0_10, %c0_11] : memref<4x32x48xf32, #tpu.memory_space<vmem>>, vector<1x32x48xf32>
    %13 = vector.shape_cast %12 : vector<1x32x48xf32> to vector<32x48xf32>
    %c0_12 = arith.constant 0 : index
    %c0_13 = arith.constant 0 : index
    %c0_14 = arith.constant 0 : index
    %14 = vector.load %arg7[%c0_12, %c0_13, %c0_14] : memref<4x1x48xf32, #tpu.memory_space<vmem>>, vector<1x1x48xf32>
    %15 = vector.shape_cast %14 : vector<1x1x48xf32> to vector<1x48xf32>
    %c0_15 = arith.constant 0 : index
    %c0_16 = arith.constant 0 : index
    %c0_17 = arith.constant 0 : index
    %16 = vector.load %arg3[%c0_15, %c0_16, %c0_17] : memref<4x49x49xf32, #tpu.memory_space<vmem>>, vector<1x49x49xf32>
    %17 = vector.shape_cast %16 : vector<1x49x49xf32> to vector<49x49xf32>
    %cst_18 = arith.constant dense<0.000000e+00> : vector<49x48xf32>
    %18 = tpu.matmul %11, %13, %cst_18 {dimension_numbers = #tpu.dot_dimension_numbers<[1], [0], [0], [1], [0, 0, 1, 1], [], []>} : vector<49x32xf32>, vector<32x48xf32>, vector<49x48xf32> -> vector<49x48xf32>
    %19 = vector.broadcast %15 : vector<1x48xf32> to vector<49x48xf32>
    %20 = arith.addf %18, %19 : vector<49x48xf32>
    %21 = vector.extract_strided_slice %20 {offsets = [0, 0], sizes = [49, 16], strides = [1, 1]} : vector<49x48xf32> to vector<49x16xf32>
    %22 = vector.extract_strided_slice %20 {offsets = [0, 16], sizes = [49, 32], strides = [1, 1]} : vector<49x48xf32> to vector<49x32xf32>
    "tpu.trace_start"() <{level = 10 : i32, message = "mk,nk->mn"}> : () -> ()
    %cst_19 = arith.constant dense<0.000000e+00> : vector<49x49xf32>
    %23 = tpu.matmul %10, %21, %cst_19 {dimension_numbers = #tpu.dot_dimension_numbers<[1], [1], [0], [0], [0, 0, 1, 0], [], []>} : vector<49x16xf32>, vector<49x16xf32>, vector<49x49xf32> -> vector<49x49xf32>
    "tpu.trace_stop"() : () -> ()
    %cst_20 = arith.constant 2.500000e-01 : f32
    %24 = vector.broadcast %cst_20 : f32 to vector<49x49xf32>
    %25 = arith.mulf %23, %24 : vector<49x49xf32>
    %26 = arith.addf %25, %17 : vector<49x49xf32>
    %cst_21 = arith.constant dense<0xFF800000> : vector<49xf32>
    %27 = vector.multi_reduction <maximumf>, %26, %cst_21 [1] : vector<49x49xf32> to vector<49xf32>
    %28 = vector.shape_cast %27 : vector<49xf32> to vector<49x1xf32>
    %29 = vector.broadcast %28 : vector<49x1xf32> to vector<49x49xf32>
    %30 = arith.subf %26, %29 : vector<49x49xf32>
    %31 = math.exp %30 : vector<49x49xf32>
    %cst_22 = arith.constant dense<0.000000e+00> : vector<49xf32>
    %32 = vector.multi_reduction <add>, %31, %cst_22 [1] : vector<49x49xf32> to vector<49xf32>
    %33 = vector.shape_cast %32 : vector<49xf32> to vector<49x1xf32>
    %34 = tpu.reciprocal %33 {approx = true} : vector<49x1xf32> -> vector<49x1xf32>
    %35 = vector.broadcast %34 : vector<49x1xf32> to vector<49x49xf32>
    %36 = arith.mulf %31, %35 : vector<49x49xf32>
    %37 = vector.broadcast %4 : vector<1x32xf32> to vector<49x32xf32>
    %38 = arith.mulf %37, %22 : vector<49x32xf32>
    %cst_23 = arith.constant dense<0.000000e+00> : vector<49x32xf32>
    %39 = tpu.matmul %36, %38, %cst_23 {dimension_numbers = #tpu.dot_dimension_numbers<[1], [0], [0], [1], [0, 0, 1, 1], [], []>} : vector<49x49xf32>, vector<49x32xf32>, vector<49x32xf32> -> vector<49x32xf32>
    %40 = vector.extract_strided_slice %1 {offsets = [0, 32], sizes = [49, 32], strides = [1, 1]} : vector<49x128xf32> to vector<49x32xf32>
    %41 = arith.addf %39, %40 : vector<49x32xf32>
    %c0_24 = arith.constant 0 : index
    %c0_25 = arith.constant 0 : index
    %c0_26 = arith.constant 0 : index
    %42 = vector.load %arg8[%c0_24, %c0_25, %c0_26] : memref<2x32x8xf32, #tpu.memory_space<vmem>>, vector<1x32x8xf32>
    %43 = vector.shape_cast %42 : vector<1x32x8xf32> to vector<32x8xf32>
    %cst_27 = arith.constant dense<0.000000e+00> : vector<49x8xf32>
    %44 = tpu.matmul %41, %43, %cst_27 {dimension_numbers = #tpu.dot_dimension_numbers<[1], [0], [0], [1], [0, 0, 1, 1], [], []>} : vector<49x32xf32>, vector<32x8xf32>, vector<49x8xf32> -> vector<49x8xf32>
    %c0_28 = arith.constant 0 : index
    %c0_29 = arith.constant 0 : index
    %c0_30 = arith.constant 0 : index
    %45 = vector.load %arg9[%c0_28, %c0_29, %c0_30] : memref<2x1x8xf32, #tpu.memory_space<vmem>>, vector<1x1x8xf32>
    %46 = vector.shape_cast %45 : vector<1x1x8xf32> to vector<1x8xf32>
    %47 = vector.broadcast %46 : vector<1x8xf32> to vector<49x8xf32>
    %48 = arith.addf %44, %47 : vector<49x8xf32>
    %cst_31 = arith.constant 0.000000e+00 : f32
    %49 = vector.broadcast %cst_31 : f32 to vector<49x8xf32>
    %50 = arith.maximumf %48, %49 : vector<49x8xf32>
    %c0_32 = arith.constant 0 : index
    %c0_33 = arith.constant 0 : index
    %c0_34 = arith.constant 0 : index
    %51 = vector.load %arg10[%c0_32, %c0_33, %c0_34] : memref<4x16x49xf32, #tpu.memory_space<vmem>>, vector<1x16x49xf32>
    %52 = vector.shape_cast %51 : vector<1x16x49xf32> to vector<16x49xf32>
    %cst_35 = arith.constant dense<0.000000e+00> : vector<16x8xf32>
    %53 = tpu.matmul %52, %50, %cst_35 {dimension_numbers = #tpu.dot_dimension_numbers<[1], [0], [0], [1], [0, 0, 1, 1], [], []>} : vector<16x49xf32>, vector<49x8xf32>, vector<16x8xf32> -> vector<16x8xf32>
    %c1 = arith.constant 1 : index
    %c0_36 = arith.constant 0 : index
    %c0_37 = arith.constant 0 : index
    %54 = vector.load %arg10[%c1, %c0_36, %c0_37] : memref<4x16x49xf32, #tpu.memory_space<vmem>>, vector<1x16x49xf32>
    %55 = vector.shape_cast %54 : vector<1x16x49xf32> to vector<16x49xf32>
    %cst_38 = arith.constant dense<0.000000e+00> : vector<16x8xf32>
    %56 = tpu.matmul %55, %50, %cst_38 {dimension_numbers = #tpu.dot_dimension_numbers<[1], [0], [0], [1], [0, 0, 1, 1], [], []>} : vector<16x49xf32>, vector<49x8xf32>, vector<16x8xf32> -> vector<16x8xf32>
    %c2 = arith.constant 2 : index
    %c0_39 = arith.constant 0 : index
    %c0_40 = arith.constant 0 : index
    %57 = vector.load %arg10[%c2, %c0_39, %c0_40] : memref<4x16x49xf32, #tpu.memory_space<vmem>>, vector<1x16x49xf32>
    %58 = vector.shape_cast %57 : vector<1x16x49xf32> to vector<16x49xf32>
    %cst_41 = arith.constant dense<0.000000e+00> : vector<16x8xf32>
    %59 = tpu.matmul %58, %50, %cst_41 {dimension_numbers = #tpu.dot_dimension_numbers<[1], [0], [0], [1], [0, 0, 1, 1], [], []>} : vector<16x49xf32>, vector<49x8xf32>, vector<16x8xf32> -> vector<16x8xf32>
    %c3 = arith.constant 3 : index
    %c0_42 = arith.constant 0 : index
    %c0_43 = arith.constant 0 : index
    %60 = vector.load %arg10[%c3, %c0_42, %c0_43] : memref<4x16x49xf32, #tpu.memory_space<vmem>>, vector<1x16x49xf32>
    %61 = vector.shape_cast %60 : vector<1x16x49xf32> to vector<16x49xf32>
    %cst_44 = arith.constant dense<0.000000e+00> : vector<16x8xf32>
    %62 = tpu.matmul %61, %50, %cst_44 {dimension_numbers = #tpu.dot_dimension_numbers<[1], [0], [0], [1], [0, 0, 1, 1], [], []>} : vector<16x49xf32>, vector<49x8xf32>, vector<16x8xf32> -> vector<16x8xf32>
    %63 = tpu.concatenate %53, %56, %59, %62 in 1 : vector<16x8xf32>, vector<16x8xf32>, vector<16x8xf32>, vector<16x8xf32> -> vector<16x32xf32>
    %cst_45 = arith.constant 0.000000e+00 : f32
    %64 = vector.broadcast %cst_45 : f32 to vector<16x32xf32>
    %c0_46 = arith.constant 0 : index
    %c0_47 = arith.constant 0 : index
    %c0_48 = arith.constant 0 : index
    %65 = vector.load %arg12[%c0_46, %c0_47, %c0_48] : memref<9x16x16xf32, #tpu.memory_space<vmem>>, vector<1x16x16xf32>
    %66 = vector.shape_cast %65 : vector<1x16x16xf32> to vector<16x16xf32>
    %cst_49 = arith.constant dense<0.000000e+00> : vector<16x32xf32>
    %67 = tpu.matmul %66, %63, %cst_49 {dimension_numbers = #tpu.dot_dimension_numbers<[1], [0], [0], [1], [0, 0, 1, 1], [], []>} : vector<16x16xf32>, vector<16x32xf32>, vector<16x32xf32> -> vector<16x32xf32>
    %c0_50 = arith.constant 0 : index
    %c0_51 = arith.constant 0 : index
    %c0_52 = arith.constant 0 : index
    %c0_53 = arith.constant 0 : index
    %68 = vector.load %arg13[%c0_50, %c0_51, %c0_52, %c0_53] : memref<2x9x32x32xf32, #tpu.memory_space<vmem>>, vector<1x1x32x32xf32>
    %69 = vector.shape_cast %68 : vector<1x1x32x32xf32> to vector<32x32xf32>
    %cst_54 = arith.constant dense<0.000000e+00> : vector<16x32xf32>
    %70 = tpu.matmul %67, %69, %cst_54 {dimension_numbers = #tpu.dot_dimension_numbers<[1], [0], [0], [1], [0, 0, 1, 1], [], []>} : vector<16x32xf32>, vector<32x32xf32>, vector<16x32xf32> -> vector<16x32xf32>
    %71 = arith.addf %64, %70 : vector<16x32xf32>
    %c1_55 = arith.constant 1 : index
    %c0_56 = arith.constant 0 : index
    %c0_57 = arith.constant 0 : index
    %72 = vector.load %arg12[%c1_55, %c0_56, %c0_57] : memref<9x16x16xf32, #tpu.memory_space<vmem>>, vector<1x16x16xf32>
    %73 = vector.shape_cast %72 : vector<1x16x16xf32> to vector<16x16xf32>
    %cst_58 = arith.constant dense<0.000000e+00> : vector<16x32xf32>
    %74 = tpu.matmul %73, %63, %cst_58 {dimension_numbers = #tpu.dot_dimension_numbers<[1], [0], [0], [1], [0, 0, 1, 1], [], []>} : vector<16x16xf32>, vector<16x32xf32>, vector<16x32xf32> -> vector<16x32xf32>
    %c0_59 = arith.constant 0 : index
    %c1_60 = arith.constant 1 : index
    %c0_61 = arith.constant 0 : index
    %c0_62 = arith.constant 0 : index
    %75 = vector.load %arg13[%c0_59, %c1_60, %c0_61, %c0_62] : memref<2x9x32x32xf32, #tpu.memory_space<vmem>>, vector<1x1x32x32xf32>
    %76 = vector.shape_cast %75 : vector<1x1x32x32xf32> to vector<32x32xf32>
    %cst_63 = arith.constant dense<0.000000e+00> : vector<16x32xf32>
    %77 = tpu.matmul %74, %76, %cst_63 {dimension_numbers = #tpu.dot_dimension_numbers<[1], [0], [0], [1], [0, 0, 1, 1], [], []>} : vector<16x32xf32>, vector<32x32xf32>, vector<16x32xf32> -> vector<16x32xf32>
    %78 = arith.addf %71, %77 : vector<16x32xf32>
    %c2_64 = arith.constant 2 : index
    %c0_65 = arith.constant 0 : index
    %c0_66 = arith.constant 0 : index
    %79 = vector.load %arg12[%c2_64, %c0_65, %c0_66] : memref<9x16x16xf32, #tpu.memory_space<vmem>>, vector<1x16x16xf32>
    %80 = vector.shape_cast %79 : vector<1x16x16xf32> to vector<16x16xf32>
    %cst_67 = arith.constant dense<0.000000e+00> : vector<16x32xf32>
    %81 = tpu.matmul %80, %63, %cst_67 {dimension_numbers = #tpu.dot_dimension_numbers<[1], [0], [0], [1], [0, 0, 1, 1], [], []>} : vector<16x16xf32>, vector<16x32xf32>, vector<16x32xf32> -> vector<16x32xf32>
    %c0_68 = arith.constant 0 : index
    %c2_69 = arith.constant 2 : index
    %c0_70 = arith.constant 0 : index
    %c0_71 = arith.constant 0 : index
    %82 = vector.load %arg13[%c0_68, %c2_69, %c0_70, %c0_71] : memref<2x9x32x32xf32, #tpu.memory_space<vmem>>, vector<1x1x32x32xf32>
    %83 = vector.shape_cast %82 : vector<1x1x32x32xf32> to vector<32x32xf32>
    %cst_72 = arith.constant dense<0.000000e+00> : vector<16x32xf32>
    %84 = tpu.matmul %81, %83, %cst_72 {dimension_numbers = #tpu.dot_dimension_numbers<[1], [0], [0], [1], [0, 0, 1, 1], [], []>} : vector<16x32xf32>, vector<32x32xf32>, vector<16x32xf32> -> vector<16x32xf32>
    %85 = arith.addf %78, %84 : vector<16x32xf32>
    %c3_73 = arith.constant 3 : index
    %c0_74 = arith.constant 0 : index
    %c0_75 = arith.constant 0 : index
    %86 = vector.load %arg12[%c3_73, %c0_74, %c0_75] : memref<9x16x16xf32, #tpu.memory_space<vmem>>, vector<1x16x16xf32>
    %87 = vector.shape_cast %86 : vector<1x16x16xf32> to vector<16x16xf32>
    %cst_76 = arith.constant dense<0.000000e+00> : vector<16x32xf32>
    %88 = tpu.matmul %87, %63, %cst_76 {dimension_numbers = #tpu.dot_dimension_numbers<[1], [0], [0], [1], [0, 0, 1, 1], [], []>} : vector<16x16xf32>, vector<16x32xf32>, vector<16x32xf32> -> vector<16x32xf32>
    %c0_77 = arith.constant 0 : index
    %c3_78 = arith.constant 3 : index
    %c0_79 = arith.constant 0 : index
    %c0_80 = arith.constant 0 : index
    %89 = vector.load %arg13[%c0_77, %c3_78, %c0_79, %c0_80] : memref<2x9x32x32xf32, #tpu.memory_space<vmem>>, vector<1x1x32x32xf32>
    %90 = vector.shape_cast %89 : vector<1x1x32x32xf32> to vector<32x32xf32>
    %cst_81 = arith.constant dense<0.000000e+00> : vector<16x32xf32>
    %91 = tpu.matmul %88, %90, %cst_81 {dimension_numbers = #tpu.dot_dimension_numbers<[1], [0], [0], [1], [0, 0, 1, 1], [], []>} : vector<16x32xf32>, vector<32x32xf32>, vector<16x32xf32> -> vector<16x32xf32>
    %92 = arith.addf %85, %91 : vector<16x32xf32>
    %c4 = arith.constant 4 : index
    %c0_82 = arith.constant 0 : index
    %c0_83 = arith.constant 0 : index
    %93 = vector.load %arg12[%c4, %c0_82, %c0_83] : memref<9x16x16xf32, #tpu.memory_space<vmem>>, vector<1x16x16xf32>
    %94 = vector.shape_cast %93 : vector<1x16x16xf32> to vector<16x16xf32>
    %cst_84 = arith.constant dense<0.000000e+00> : vector<16x32xf32>
    %95 = tpu.matmul %94, %63, %cst_84 {dimension_numbers = #tpu.dot_dimension_numbers<[1], [0], [0], [1], [0, 0, 1, 1], [], []>} : vector<16x16xf32>, vector<16x32xf32>, vector<16x32xf32> -> vector<16x32xf32>
    %c0_85 = arith.constant 0 : index
    %c4_86 = arith.constant 4 : index
    %c0_87 = arith.constant 0 : index
    %c0_88 = arith.constant 0 : index
    %96 = vector.load %arg13[%c0_85, %c4_86, %c0_87, %c0_88] : memref<2x9x32x32xf32, #tpu.memory_space<vmem>>, vector<1x1x32x32xf32>
    %97 = vector.shape_cast %96 : vector<1x1x32x32xf32> to vector<32x32xf32>
    %cst_89 = arith.constant dense<0.000000e+00> : vector<16x32xf32>
    %98 = tpu.matmul %95, %97, %cst_89 {dimension_numbers = #tpu.dot_dimension_numbers<[1], [0], [0], [1], [0, 0, 1, 1], [], []>} : vector<16x32xf32>, vector<32x32xf32>, vector<16x32xf32> -> vector<16x32xf32>
    %99 = arith.addf %92, %98 : vector<16x32xf32>
    %c5 = arith.constant 5 : index
    %c0_90 = arith.constant 0 : index
    %c0_91 = arith.constant 0 : index
    %100 = vector.load %arg12[%c5, %c0_90, %c0_91] : memref<9x16x16xf32, #tpu.memory_space<vmem>>, vector<1x16x16xf32>
    %101 = vector.shape_cast %100 : vector<1x16x16xf32> to vector<16x16xf32>
    %cst_92 = arith.constant dense<0.000000e+00> : vector<16x32xf32>
    %102 = tpu.matmul %101, %63, %cst_92 {dimension_numbers = #tpu.dot_dimension_numbers<[1], [0], [0], [1], [0, 0, 1, 1], [], []>} : vector<16x16xf32>, vector<16x32xf32>, vector<16x32xf32> -> vector<16x32xf32>
    %c0_93 = arith.constant 0 : index
    %c5_94 = arith.constant 5 : index
    %c0_95 = arith.constant 0 : index
    %c0_96 = arith.constant 0 : index
    %103 = vector.load %arg13[%c0_93, %c5_94, %c0_95, %c0_96] : memref<2x9x32x32xf32, #tpu.memory_space<vmem>>, vector<1x1x32x32xf32>
    %104 = vector.shape_cast %103 : vector<1x1x32x32xf32> to vector<32x32xf32>
    %cst_97 = arith.constant dense<0.000000e+00> : vector<16x32xf32>
    %105 = tpu.matmul %102, %104, %cst_97 {dimension_numbers = #tpu.dot_dimension_numbers<[1], [0], [0], [1], [0, 0, 1, 1], [], []>} : vector<16x32xf32>, vector<32x32xf32>, vector<16x32xf32> -> vector<16x32xf32>
    %106 = arith.addf %99, %105 : vector<16x32xf32>
    %c6 = arith.constant 6 : index
    %c0_98 = arith.constant 0 : index
    %c0_99 = arith.constant 0 : index
    %107 = vector.load %arg12[%c6, %c0_98, %c0_99] : memref<9x16x16xf32, #tpu.memory_space<vmem>>, vector<1x16x16xf32>
    %108 = vector.shape_cast %107 : vector<1x16x16xf32> to vector<16x16xf32>
    %cst_100 = arith.constant dense<0.000000e+00> : vector<16x32xf32>
    %109 = tpu.matmul %108, %63, %cst_100 {dimension_numbers = #tpu.dot_dimension_numbers<[1], [0], [0], [1], [0, 0, 1, 1], [], []>} : vector<16x16xf32>, vector<16x32xf32>, vector<16x32xf32> -> vector<16x32xf32>
    %c0_101 = arith.constant 0 : index
    %c6_102 = arith.constant 6 : index
    %c0_103 = arith.constant 0 : index
    %c0_104 = arith.constant 0 : index
    %110 = vector.load %arg13[%c0_101, %c6_102, %c0_103, %c0_104] : memref<2x9x32x32xf32, #tpu.memory_space<vmem>>, vector<1x1x32x32xf32>
    %111 = vector.shape_cast %110 : vector<1x1x32x32xf32> to vector<32x32xf32>
    %cst_105 = arith.constant dense<0.000000e+00> : vector<16x32xf32>
    %112 = tpu.matmul %109, %111, %cst_105 {dimension_numbers = #tpu.dot_dimension_numbers<[1], [0], [0], [1], [0, 0, 1, 1], [], []>} : vector<16x32xf32>, vector<32x32xf32>, vector<16x32xf32> -> vector<16x32xf32>
    %113 = arith.addf %106, %112 : vector<16x32xf32>
    %c7 = arith.constant 7 : index
    %c0_106 = arith.constant 0 : index
    %c0_107 = arith.constant 0 : index
    %114 = vector.load %arg12[%c7, %c0_106, %c0_107] : memref<9x16x16xf32, #tpu.memory_space<vmem>>, vector<1x16x16xf32>
    %115 = vector.shape_cast %114 : vector<1x16x16xf32> to vector<16x16xf32>
    %cst_108 = arith.constant dense<0.000000e+00> : vector<16x32xf32>
    %116 = tpu.matmul %115, %63, %cst_108 {dimension_numbers = #tpu.dot_dimension_numbers<[1], [0], [0], [1], [0, 0, 1, 1], [], []>} : vector<16x16xf32>, vector<16x32xf32>, vector<16x32xf32> -> vector<16x32xf32>
    %c0_109 = arith.constant 0 : index
    %c7_110 = arith.constant 7 : index
    %c0_111 = arith.constant 0 : index
    %c0_112 = arith.constant 0 : index
    %117 = vector.load %arg13[%c0_109, %c7_110, %c0_111, %c0_112] : memref<2x9x32x32xf32, #tpu.memory_space<vmem>>, vector<1x1x32x32xf32>
    %118 = vector.shape_cast %117 : vector<1x1x32x32xf32> to vector<32x32xf32>
    %cst_113 = arith.constant dense<0.000000e+00> : vector<16x32xf32>
    %119 = tpu.matmul %116, %118, %cst_113 {dimension_numbers = #tpu.dot_dimension_numbers<[1], [0], [0], [1], [0, 0, 1, 1], [], []>} : vector<16x32xf32>, vector<32x32xf32>, vector<16x32xf32> -> vector<16x32xf32>
    %120 = arith.addf %113, %119 : vector<16x32xf32>
    %c8 = arith.constant 8 : index
    %c0_114 = arith.constant 0 : index
    %c0_115 = arith.constant 0 : index
    %121 = vector.load %arg12[%c8, %c0_114, %c0_115] : memref<9x16x16xf32, #tpu.memory_space<vmem>>, vector<1x16x16xf32>
    %122 = vector.shape_cast %121 : vector<1x16x16xf32> to vector<16x16xf32>
    %cst_116 = arith.constant dense<0.000000e+00> : vector<16x32xf32>
    %123 = tpu.matmul %122, %63, %cst_116 {dimension_numbers = #tpu.dot_dimension_numbers<[1], [0], [0], [1], [0, 0, 1, 1], [], []>} : vector<16x16xf32>, vector<16x32xf32>, vector<16x32xf32> -> vector<16x32xf32>
    %c0_117 = arith.constant 0 : index
    %c8_118 = arith.constant 8 : index
    %c0_119 = arith.constant 0 : index
    %c0_120 = arith.constant 0 : index
    %124 = vector.load %arg13[%c0_117, %c8_118, %c0_119, %c0_120] : memref<2x9x32x32xf32, #tpu.memory_space<vmem>>, vector<1x1x32x32xf32>
    %125 = vector.shape_cast %124 : vector<1x1x32x32xf32> to vector<32x32xf32>
    %cst_121 = arith.constant dense<0.000000e+00> : vector<16x32xf32>
    %126 = tpu.matmul %123, %125, %cst_121 {dimension_numbers = #tpu.dot_dimension_numbers<[1], [0], [0], [1], [0, 0, 1, 1], [], []>} : vector<16x32xf32>, vector<32x32xf32>, vector<16x32xf32> -> vector<16x32xf32>
    %127 = arith.addf %120, %126 : vector<16x32xf32>
    %c0_122 = arith.constant 0 : index
    %c0_123 = arith.constant 0 : index
    %c0_124 = arith.constant 0 : index
    %128 = vector.load %arg14[%c0_122, %c0_123, %c0_124] : memref<2x1x32xf32, #tpu.memory_space<vmem>>, vector<1x1x32xf32>
    %129 = vector.shape_cast %128 : vector<1x1x32xf32> to vector<1x32xf32>
    %130 = vector.broadcast %129 : vector<1x32xf32> to vector<16x32xf32>
    %131 = arith.addf %127, %130 : vector<16x32xf32>
    %cst_125 = arith.constant 0.000000e+00 : f32
    %132 = vector.broadcast %cst_125 : f32 to vector<16x32xf32>
    %133 = arith.maximumf %131, %132 : vector<16x32xf32>
    %cst_126 = arith.constant 0.000000e+00 : f32
    %134 = vector.broadcast %cst_126 : f32 to vector<49x8xf32>
    %c0_127 = arith.constant 0 : index
    %c0_128 = arith.constant 0 : index
    %c0_129 = arith.constant 0 : index
    %135 = vector.load %arg11[%c0_127, %c0_128, %c0_129] : memref<4x49x16xf32, #tpu.memory_space<vmem>>, vector<1x49x16xf32>
    %136 = vector.shape_cast %135 : vector<1x49x16xf32> to vector<49x16xf32>
    %137 = vector.extract_strided_slice %133 {offsets = [0, 0], sizes = [16, 8], strides = [1, 1]} : vector<16x32xf32> to vector<16x8xf32>
    %cst_130 = arith.constant dense<0.000000e+00> : vector<49x8xf32>
    %138 = tpu.matmul %136, %137, %cst_130 {dimension_numbers = #tpu.dot_dimension_numbers<[1], [0], [0], [1], [0, 0, 1, 1], [], []>} : vector<49x16xf32>, vector<16x8xf32>, vector<49x8xf32> -> vector<49x8xf32>
    %139 = arith.addf %134, %138 : vector<49x8xf32>
    %c1_131 = arith.constant 1 : index
    %c0_132 = arith.constant 0 : index
    %c0_133 = arith.constant 0 : index
    %140 = vector.load %arg11[%c1_131, %c0_132, %c0_133] : memref<4x49x16xf32, #tpu.memory_space<vmem>>, vector<1x49x16xf32>
    %141 = vector.shape_cast %140 : vector<1x49x16xf32> to vector<49x16xf32>
    %142 = vector.extract_strided_slice %133 {offsets = [0, 8], sizes = [16, 8], strides = [1, 1]} : vector<16x32xf32> to vector<16x8xf32>
    %cst_134 = arith.constant dense<0.000000e+00> : vector<49x8xf32>
    %143 = tpu.matmul %141, %142, %cst_134 {dimension_numbers = #tpu.dot_dimension_numbers<[1], [0], [0], [1], [0, 0, 1, 1], [], []>} : vector<49x16xf32>, vector<16x8xf32>, vector<49x8xf32> -> vector<49x8xf32>
    %144 = arith.addf %139, %143 : vector<49x8xf32>
    %c2_135 = arith.constant 2 : index
    %c0_136 = arith.constant 0 : index
    %c0_137 = arith.constant 0 : index
    %145 = vector.load %arg11[%c2_135, %c0_136, %c0_137] : memref<4x49x16xf32, #tpu.memory_space<vmem>>, vector<1x49x16xf32>
    %146 = vector.shape_cast %145 : vector<1x49x16xf32> to vector<49x16xf32>
    %147 = vector.extract_strided_slice %133 {offsets = [0, 16], sizes = [16, 8], strides = [1, 1]} : vector<16x32xf32> to vector<16x8xf32>
    %cst_138 = arith.constant dense<0.000000e+00> : vector<49x8xf32>
    %148 = tpu.matmul %146, %147, %cst_138 {dimension_numbers = #tpu.dot_dimension_numbers<[1], [0], [0], [1], [0, 0, 1, 1], [], []>} : vector<49x16xf32>, vector<16x8xf32>, vector<49x8xf32> -> vector<49x8xf32>
    %149 = arith.addf %144, %148 : vector<49x8xf32>
    %c3_139 = arith.constant 3 : index
    %c0_140 = arith.constant 0 : index
    %c0_141 = arith.constant 0 : index
    %150 = vector.load %arg11[%c3_139, %c0_140, %c0_141] : memref<4x49x16xf32, #tpu.memory_space<vmem>>, vector<1x49x16xf32>
    %151 = vector.shape_cast %150 : vector<1x49x16xf32> to vector<49x16xf32>
    %152 = vector.extract_strided_slice %133 {offsets = [0, 24], sizes = [16, 8], strides = [1, 1]} : vector<16x32xf32> to vector<16x8xf32>
    %cst_142 = arith.constant dense<0.000000e+00> : vector<49x8xf32>
    %153 = tpu.matmul %151, %152, %cst_142 {dimension_numbers = #tpu.dot_dimension_numbers<[1], [0], [0], [1], [0, 0, 1, 1], [], []>} : vector<49x16xf32>, vector<16x8xf32>, vector<49x8xf32> -> vector<49x8xf32>
    %154 = arith.addf %149, %153 : vector<49x8xf32>
    %c0_143 = arith.constant 0 : index
    %c0_144 = arith.constant 0 : index
    %155 = vector.load %arg15[%c0_143, %c0_144] : memref<49x16xf32, #tpu.memory_space<vmem>>, vector<49x16xf32>
    %cst_145 = arith.constant dense<0.000000e+00> : vector<49x32xf32>
    %156 = tpu.matmul %155, %133, %cst_145 {dimension_numbers = #tpu.dot_dimension_numbers<[1], [0], [0], [1], [0, 0, 1, 1], [], []>} : vector<49x16xf32>, vector<16x32xf32>, vector<49x32xf32> -> vector<49x32xf32>
    %c1_146 = arith.constant 1 : index
    %c0_147 = arith.constant 0 : index
    %c0_148 = arith.constant 0 : index
    %157 = vector.load %arg6[%c1_146, %c0_147, %c0_148] : memref<4x32x48xf32, #tpu.memory_space<vmem>>, vector<1x32x48xf32>
    %158 = vector.shape_cast %157 : vector<1x32x48xf32> to vector<32x48xf32>
    %c1_149 = arith.constant 1 : index
    %c0_150 = arith.constant 0 : index
    %c0_151 = arith.constant 0 : index
    %159 = vector.load %arg7[%c1_149, %c0_150, %c0_151] : memref<4x1x48xf32, #tpu.memory_space<vmem>>, vector<1x1x48xf32>
    %160 = vector.shape_cast %159 : vector<1x1x48xf32> to vector<1x48xf32>
    %c1_152 = arith.constant 1 : index
    %c0_153 = arith.constant 0 : index
    %c0_154 = arith.constant 0 : index
    %161 = vector.load %arg3[%c1_152, %c0_153, %c0_154] : memref<4x49x49xf32, #tpu.memory_space<vmem>>, vector<1x49x49xf32>
    %162 = vector.shape_cast %161 : vector<1x49x49xf32> to vector<49x49xf32>
    %cst_155 = arith.constant dense<0.000000e+00> : vector<49x48xf32>
    %163 = tpu.matmul %156, %158, %cst_155 {dimension_numbers = #tpu.dot_dimension_numbers<[1], [0], [0], [1], [0, 0, 1, 1], [], []>} : vector<49x32xf32>, vector<32x48xf32>, vector<49x48xf32> -> vector<49x48xf32>
    %164 = vector.broadcast %160 : vector<1x48xf32> to vector<49x48xf32>
    %165 = arith.addf %163, %164 : vector<49x48xf32>
    %166 = vector.extract_strided_slice %165 {offsets = [0, 0], sizes = [49, 16], strides = [1, 1]} : vector<49x48xf32> to vector<49x16xf32>
    %167 = vector.extract_strided_slice %165 {offsets = [0, 16], sizes = [49, 32], strides = [1, 1]} : vector<49x48xf32> to vector<49x32xf32>
    "tpu.trace_start"() <{level = 10 : i32, message = "mk,nk->mn"}> : () -> ()
    %cst_156 = arith.constant dense<0.000000e+00> : vector<49x49xf32>
    %168 = tpu.matmul %10, %166, %cst_156 {dimension_numbers = #tpu.dot_dimension_numbers<[1], [1], [0], [0], [0, 0, 1, 0], [], []>} : vector<49x16xf32>, vector<49x16xf32>, vector<49x49xf32> -> vector<49x49xf32>
    "tpu.trace_stop"() : () -> ()
    %cst_157 = arith.constant 2.500000e-01 : f32
    %169 = vector.broadcast %cst_157 : f32 to vector<49x49xf32>
    %170 = arith.mulf %168, %169 : vector<49x49xf32>
    %171 = arith.addf %170, %162 : vector<49x49xf32>
    %cst_158 = arith.constant dense<0xFF800000> : vector<49xf32>
    %172 = vector.multi_reduction <maximumf>, %171, %cst_158 [1] : vector<49x49xf32> to vector<49xf32>
    %173 = vector.shape_cast %172 : vector<49xf32> to vector<49x1xf32>
    %174 = vector.broadcast %173 : vector<49x1xf32> to vector<49x49xf32>
    %175 = arith.subf %171, %174 : vector<49x49xf32>
    %176 = math.exp %175 : vector<49x49xf32>
    %cst_159 = arith.constant dense<0.000000e+00> : vector<49xf32>
    %177 = vector.multi_reduction <add>, %176, %cst_159 [1] : vector<49x49xf32> to vector<49xf32>
    %178 = vector.shape_cast %177 : vector<49xf32> to vector<49x1xf32>
    %179 = tpu.reciprocal %178 {approx = true} : vector<49x1xf32> -> vector<49x1xf32>
    %180 = vector.broadcast %179 : vector<49x1xf32> to vector<49x49xf32>
    %181 = arith.mulf %176, %180 : vector<49x49xf32>
    %182 = vector.broadcast %5 : vector<1x32xf32> to vector<49x32xf32>
    %183 = arith.mulf %182, %167 : vector<49x32xf32>
    %cst_160 = arith.constant dense<0.000000e+00> : vector<49x32xf32>
    %184 = tpu.matmul %181, %183, %cst_160 {dimension_numbers = #tpu.dot_dimension_numbers<[1], [0], [0], [1], [0, 0, 1, 1], [], []>} : vector<49x49xf32>, vector<49x32xf32>, vector<49x32xf32> -> vector<49x32xf32>
    %c0_161 = arith.constant 0 : index
    %c0_162 = arith.constant 0 : index
    %c0_163 = arith.constant 0 : index
    %185 = vector.load %arg16[%c0_161, %c0_162, %c0_163] : memref<2x40x32xf32, #tpu.memory_space<vmem>>, vector<1x40x32xf32>
    %186 = vector.shape_cast %185 : vector<1x40x32xf32> to vector<40x32xf32>
    %cst_164 = arith.constant 0.000000e+00 : f32
    %187 = vector.broadcast %cst_164 : f32 to vector<49x32xf32>
    %188 = arith.maximumf %184, %187 : vector<49x32xf32>
    %189 = vector.extract_strided_slice %186 {offsets = [0, 0], sizes = [32, 32], strides = [1, 1]} : vector<40x32xf32> to vector<32x32xf32>
    %cst_165 = arith.constant dense<0.000000e+00> : vector<49x32xf32>
    %190 = tpu.matmul %188, %189, %cst_165 {dimension_numbers = #tpu.dot_dimension_numbers<[1], [0], [0], [1], [0, 0, 1, 1], [], []>} : vector<49x32xf32>, vector<32x32xf32>, vector<49x32xf32> -> vector<49x32xf32>
    %cst_166 = arith.constant 0.000000e+00 : f32
    %191 = vector.broadcast %cst_166 : f32 to vector<49x8xf32>
    %192 = arith.maximumf %154, %191 : vector<49x8xf32>
    %193 = vector.extract_strided_slice %186 {offsets = [32, 0], sizes = [8, 32], strides = [1, 1]} : vector<40x32xf32> to vector<8x32xf32>
    %cst_167 = arith.constant dense<0.000000e+00> : vector<49x32xf32>
    %194 = tpu.matmul %192, %193, %cst_167 {dimension_numbers = #tpu.dot_dimension_numbers<[1], [0], [0], [1], [0, 0, 1, 1], [], []>} : vector<49x8xf32>, vector<8x32xf32>, vector<49x32xf32> -> vector<49x32xf32>
    %195 = arith.addf %190, %194 : vector<49x32xf32>
    %c0_168 = arith.constant 0 : index
    %c0_169 = arith.constant 0 : index
    %c0_170 = arith.constant 0 : index
    %196 = vector.load %arg17[%c0_168, %c0_169, %c0_170] : memref<2x1x32xf32, #tpu.memory_space<vmem>>, vector<1x1x32xf32>
    %197 = vector.shape_cast %196 : vector<1x1x32xf32> to vector<1x32xf32>
    %198 = vector.broadcast %197 : vector<1x32xf32> to vector<49x32xf32>
    %199 = arith.addf %195, %198 : vector<49x32xf32>
    %200 = vector.extract_strided_slice %1 {offsets = [0, 64], sizes = [49, 32], strides = [1, 1]} : vector<49x128xf32> to vector<49x32xf32>
    %201 = arith.addf %184, %200 : vector<49x32xf32>
    %c2_171 = arith.constant 2 : index
    %c0_172 = arith.constant 0 : index
    %c0_173 = arith.constant 0 : index
    %202 = vector.load %arg6[%c2_171, %c0_172, %c0_173] : memref<4x32x48xf32, #tpu.memory_space<vmem>>, vector<1x32x48xf32>
    %203 = vector.shape_cast %202 : vector<1x32x48xf32> to vector<32x48xf32>
    %c2_174 = arith.constant 2 : index
    %c0_175 = arith.constant 0 : index
    %c0_176 = arith.constant 0 : index
    %204 = vector.load %arg7[%c2_174, %c0_175, %c0_176] : memref<4x1x48xf32, #tpu.memory_space<vmem>>, vector<1x1x48xf32>
    %205 = vector.shape_cast %204 : vector<1x1x48xf32> to vector<1x48xf32>
    %c2_177 = arith.constant 2 : index
    %c0_178 = arith.constant 0 : index
    %c0_179 = arith.constant 0 : index
    %206 = vector.load %arg3[%c2_177, %c0_178, %c0_179] : memref<4x49x49xf32, #tpu.memory_space<vmem>>, vector<1x49x49xf32>
    %207 = vector.shape_cast %206 : vector<1x49x49xf32> to vector<49x49xf32>
    %cst_180 = arith.constant dense<0.000000e+00> : vector<49x48xf32>
    %208 = tpu.matmul %201, %203, %cst_180 {dimension_numbers = #tpu.dot_dimension_numbers<[1], [0], [0], [1], [0, 0, 1, 1], [], []>} : vector<49x32xf32>, vector<32x48xf32>, vector<49x48xf32> -> vector<49x48xf32>
    %209 = vector.broadcast %205 : vector<1x48xf32> to vector<49x48xf32>
    %210 = arith.addf %208, %209 : vector<49x48xf32>
    %211 = vector.extract_strided_slice %210 {offsets = [0, 0], sizes = [49, 16], strides = [1, 1]} : vector<49x48xf32> to vector<49x16xf32>
    %212 = vector.extract_strided_slice %210 {offsets = [0, 16], sizes = [49, 32], strides = [1, 1]} : vector<49x48xf32> to vector<49x32xf32>
    "tpu.trace_start"() <{level = 10 : i32, message = "mk,nk->mn"}> : () -> ()
    %cst_181 = arith.constant dense<0.000000e+00> : vector<49x49xf32>
    %213 = tpu.matmul %10, %211, %cst_181 {dimension_numbers = #tpu.dot_dimension_numbers<[1], [1], [0], [0], [0, 0, 1, 0], [], []>} : vector<49x16xf32>, vector<49x16xf32>, vector<49x49xf32> -> vector<49x49xf32>
    "tpu.trace_stop"() : () -> ()
    %cst_182 = arith.constant 2.500000e-01 : f32
    %214 = vector.broadcast %cst_182 : f32 to vector<49x49xf32>
    %215 = arith.mulf %213, %214 : vector<49x49xf32>
    %216 = arith.addf %215, %207 : vector<49x49xf32>
    %cst_183 = arith.constant dense<0xFF800000> : vector<49xf32>
    %217 = vector.multi_reduction <maximumf>, %216, %cst_183 [1] : vector<49x49xf32> to vector<49xf32>
    %218 = vector.shape_cast %217 : vector<49xf32> to vector<49x1xf32>
    %219 = vector.broadcast %218 : vector<49x1xf32> to vector<49x49xf32>
    %220 = arith.subf %216, %219 : vector<49x49xf32>
    %221 = math.exp %220 : vector<49x49xf32>
    %cst_184 = arith.constant dense<0.000000e+00> : vector<49xf32>
    %222 = vector.multi_reduction <add>, %221, %cst_184 [1] : vector<49x49xf32> to vector<49xf32>
    %223 = vector.shape_cast %222 : vector<49xf32> to vector<49x1xf32>
    %224 = tpu.reciprocal %223 {approx = true} : vector<49x1xf32> -> vector<49x1xf32>
    %225 = vector.broadcast %224 : vector<49x1xf32> to vector<49x49xf32>
    %226 = arith.mulf %221, %225 : vector<49x49xf32>
    %227 = vector.broadcast %4 : vector<1x32xf32> to vector<49x32xf32>
    %228 = arith.mulf %227, %212 : vector<49x32xf32>
    %cst_185 = arith.constant dense<0.000000e+00> : vector<49x32xf32>
    %229 = tpu.matmul %226, %228, %cst_185 {dimension_numbers = #tpu.dot_dimension_numbers<[1], [0], [0], [1], [0, 0, 1, 1], [], []>} : vector<49x49xf32>, vector<49x32xf32>, vector<49x32xf32> -> vector<49x32xf32>
    %230 = vector.extract_strided_slice %1 {offsets = [0, 96], sizes = [49, 32], strides = [1, 1]} : vector<49x128xf32> to vector<49x32xf32>
    %231 = arith.addf %229, %230 : vector<49x32xf32>
    %c1_186 = arith.constant 1 : index
    %c0_187 = arith.constant 0 : index
    %c0_188 = arith.constant 0 : index
    %232 = vector.load %arg8[%c1_186, %c0_187, %c0_188] : memref<2x32x8xf32, #tpu.memory_space<vmem>>, vector<1x32x8xf32>
    %233 = vector.shape_cast %232 : vector<1x32x8xf32> to vector<32x8xf32>
    %cst_189 = arith.constant dense<0.000000e+00> : vector<49x8xf32>
    %234 = tpu.matmul %231, %233, %cst_189 {dimension_numbers = #tpu.dot_dimension_numbers<[1], [0], [0], [1], [0, 0, 1, 1], [], []>} : vector<49x32xf32>, vector<32x8xf32>, vector<49x8xf32> -> vector<49x8xf32>
    %c1_190 = arith.constant 1 : index
    %c0_191 = arith.constant 0 : index
    %c0_192 = arith.constant 0 : index
    %235 = vector.load %arg9[%c1_190, %c0_191, %c0_192] : memref<2x1x8xf32, #tpu.memory_space<vmem>>, vector<1x1x8xf32>
    %236 = vector.shape_cast %235 : vector<1x1x8xf32> to vector<1x8xf32>
    %237 = vector.broadcast %236 : vector<1x8xf32> to vector<49x8xf32>
    %238 = arith.addf %234, %237 : vector<49x8xf32>
    %cst_193 = arith.constant 0.000000e+00 : f32
    %239 = vector.broadcast %cst_193 : f32 to vector<49x8xf32>
    %240 = arith.maximumf %238, %239 : vector<49x8xf32>
    %c0_194 = arith.constant 0 : index
    %c0_195 = arith.constant 0 : index
    %c0_196 = arith.constant 0 : index
    %241 = vector.load %arg10[%c0_194, %c0_195, %c0_196] : memref<4x16x49xf32, #tpu.memory_space<vmem>>, vector<1x16x49xf32>
    %242 = vector.shape_cast %241 : vector<1x16x49xf32> to vector<16x49xf32>
    %cst_197 = arith.constant dense<0.000000e+00> : vector<16x8xf32>
    %243 = tpu.matmul %242, %240, %cst_197 {dimension_numbers = #tpu.dot_dimension_numbers<[1], [0], [0], [1], [0, 0, 1, 1], [], []>} : vector<16x49xf32>, vector<49x8xf32>, vector<16x8xf32> -> vector<16x8xf32>
    %c1_198 = arith.constant 1 : index
    %c0_199 = arith.constant 0 : index
    %c0_200 = arith.constant 0 : index
    %244 = vector.load %arg10[%c1_198, %c0_199, %c0_200] : memref<4x16x49xf32, #tpu.memory_space<vmem>>, vector<1x16x49xf32>
    %245 = vector.shape_cast %244 : vector<1x16x49xf32> to vector<16x49xf32>
    %cst_201 = arith.constant dense<0.000000e+00> : vector<16x8xf32>
    %246 = tpu.matmul %245, %240, %cst_201 {dimension_numbers = #tpu.dot_dimension_numbers<[1], [0], [0], [1], [0, 0, 1, 1], [], []>} : vector<16x49xf32>, vector<49x8xf32>, vector<16x8xf32> -> vector<16x8xf32>
    %c2_202 = arith.constant 2 : index
    %c0_203 = arith.constant 0 : index
    %c0_204 = arith.constant 0 : index
    %247 = vector.load %arg10[%c2_202, %c0_203, %c0_204] : memref<4x16x49xf32, #tpu.memory_space<vmem>>, vector<1x16x49xf32>
    %248 = vector.shape_cast %247 : vector<1x16x49xf32> to vector<16x49xf32>
    %cst_205 = arith.constant dense<0.000000e+00> : vector<16x8xf32>
    %249 = tpu.matmul %248, %240, %cst_205 {dimension_numbers = #tpu.dot_dimension_numbers<[1], [0], [0], [1], [0, 0, 1, 1], [], []>} : vector<16x49xf32>, vector<49x8xf32>, vector<16x8xf32> -> vector<16x8xf32>
    %c3_206 = arith.constant 3 : index
    %c0_207 = arith.constant 0 : index
    %c0_208 = arith.constant 0 : index
    %250 = vector.load %arg10[%c3_206, %c0_207, %c0_208] : memref<4x16x49xf32, #tpu.memory_space<vmem>>, vector<1x16x49xf32>
    %251 = vector.shape_cast %250 : vector<1x16x49xf32> to vector<16x49xf32>
    %cst_209 = arith.constant dense<0.000000e+00> : vector<16x8xf32>
    %252 = tpu.matmul %251, %240, %cst_209 {dimension_numbers = #tpu.dot_dimension_numbers<[1], [0], [0], [1], [0, 0, 1, 1], [], []>} : vector<16x49xf32>, vector<49x8xf32>, vector<16x8xf32> -> vector<16x8xf32>
    %253 = tpu.concatenate %243, %246, %249, %252 in 1 : vector<16x8xf32>, vector<16x8xf32>, vector<16x8xf32>, vector<16x8xf32> -> vector<16x32xf32>
    %cst_210 = arith.constant 0.000000e+00 : f32
    %254 = vector.broadcast %cst_210 : f32 to vector<16x32xf32>
    %c0_211 = arith.constant 0 : index
    %c0_212 = arith.constant 0 : index
    %c0_213 = arith.constant 0 : index
    %255 = vector.load %arg12[%c0_211, %c0_212, %c0_213] : memref<9x16x16xf32, #tpu.memory_space<vmem>>, vector<1x16x16xf32>
    %256 = vector.shape_cast %255 : vector<1x16x16xf32> to vector<16x16xf32>
    %cst_214 = arith.constant dense<0.000000e+00> : vector<16x32xf32>
    %257 = tpu.matmul %256, %253, %cst_214 {dimension_numbers = #tpu.dot_dimension_numbers<[1], [0], [0], [1], [0, 0, 1, 1], [], []>} : vector<16x16xf32>, vector<16x32xf32>, vector<16x32xf32> -> vector<16x32xf32>
    %c1_215 = arith.constant 1 : index
    %c0_216 = arith.constant 0 : index
    %c0_217 = arith.constant 0 : index
    %c0_218 = arith.constant 0 : index
    %258 = vector.load %arg13[%c1_215, %c0_216, %c0_217, %c0_218] : memref<2x9x32x32xf32, #tpu.memory_space<vmem>>, vector<1x1x32x32xf32>
    %259 = vector.shape_cast %258 : vector<1x1x32x32xf32> to vector<32x32xf32>
    %cst_219 = arith.constant dense<0.000000e+00> : vector<16x32xf32>
    %260 = tpu.matmul %257, %259, %cst_219 {dimension_numbers = #tpu.dot_dimension_numbers<[1], [0], [0], [1], [0, 0, 1, 1], [], []>} : vector<16x32xf32>, vector<32x32xf32>, vector<16x32xf32> -> vector<16x32xf32>
    %261 = arith.addf %254, %260 : vector<16x32xf32>
    %c1_220 = arith.constant 1 : index
    %c0_221 = arith.constant 0 : index
    %c0_222 = arith.constant 0 : index
    %262 = vector.load %arg12[%c1_220, %c0_221, %c0_222] : memref<9x16x16xf32, #tpu.memory_space<vmem>>, vector<1x16x16xf32>
    %263 = vector.shape_cast %262 : vector<1x16x16xf32> to vector<16x16xf32>
    %cst_223 = arith.constant dense<0.000000e+00> : vector<16x32xf32>
    %264 = tpu.matmul %263, %253, %cst_223 {dimension_numbers = #tpu.dot_dimension_numbers<[1], [0], [0], [1], [0, 0, 1, 1], [], []>} : vector<16x16xf32>, vector<16x32xf32>, vector<16x32xf32> -> vector<16x32xf32>
    %c1_224 = arith.constant 1 : index
    %c1_225 = arith.constant 1 : index
    %c0_226 = arith.constant 0 : index
    %c0_227 = arith.constant 0 : index
    %265 = vector.load %arg13[%c1_224, %c1_225, %c0_226, %c0_227] : memref<2x9x32x32xf32, #tpu.memory_space<vmem>>, vector<1x1x32x32xf32>
    %266 = vector.shape_cast %265 : vector<1x1x32x32xf32> to vector<32x32xf32>
    %cst_228 = arith.constant dense<0.000000e+00> : vector<16x32xf32>
    %267 = tpu.matmul %264, %266, %cst_228 {dimension_numbers = #tpu.dot_dimension_numbers<[1], [0], [0], [1], [0, 0, 1, 1], [], []>} : vector<16x32xf32>, vector<32x32xf32>, vector<16x32xf32> -> vector<16x32xf32>
    %268 = arith.addf %261, %267 : vector<16x32xf32>
    %c2_229 = arith.constant 2 : index
    %c0_230 = arith.constant 0 : index
    %c0_231 = arith.constant 0 : index
    %269 = vector.load %arg12[%c2_229, %c0_230, %c0_231] : memref<9x16x16xf32, #tpu.memory_space<vmem>>, vector<1x16x16xf32>
    %270 = vector.shape_cast %269 : vector<1x16x16xf32> to vector<16x16xf32>
    %cst_232 = arith.constant dense<0.000000e+00> : vector<16x32xf32>
    %271 = tpu.matmul %270, %253, %cst_232 {dimension_numbers = #tpu.dot_dimension_numbers<[1], [0], [0], [1], [0, 0, 1, 1], [], []>} : vector<16x16xf32>, vector<16x32xf32>, vector<16x32xf32> -> vector<16x32xf32>
    %c1_233 = arith.constant 1 : index
    %c2_234 = arith.constant 2 : index
    %c0_235 = arith.constant 0 : index
    %c0_236 = arith.constant 0 : index
    %272 = vector.load %arg13[%c1_233, %c2_234, %c0_235, %c0_236] : memref<2x9x32x32xf32, #tpu.memory_space<vmem>>, vector<1x1x32x32xf32>
    %273 = vector.shape_cast %272 : vector<1x1x32x32xf32> to vector<32x32xf32>
    %cst_237 = arith.constant dense<0.000000e+00> : vector<16x32xf32>
    %274 = tpu.matmul %271, %273, %cst_237 {dimension_numbers = #tpu.dot_dimension_numbers<[1], [0], [0], [1], [0, 0, 1, 1], [], []>} : vector<16x32xf32>, vector<32x32xf32>, vector<16x32xf32> -> vector<16x32xf32>
    %275 = arith.addf %268, %274 : vector<16x32xf32>
    %c3_238 = arith.constant 3 : index
    %c0_239 = arith.constant 0 : index
    %c0_240 = arith.constant 0 : index
    %276 = vector.load %arg12[%c3_238, %c0_239, %c0_240] : memref<9x16x16xf32, #tpu.memory_space<vmem>>, vector<1x16x16xf32>
    %277 = vector.shape_cast %276 : vector<1x16x16xf32> to vector<16x16xf32>
    %cst_241 = arith.constant dense<0.000000e+00> : vector<16x32xf32>
    %278 = tpu.matmul %277, %253, %cst_241 {dimension_numbers = #tpu.dot_dimension_numbers<[1], [0], [0], [1], [0, 0, 1, 1], [], []>} : vector<16x16xf32>, vector<16x32xf32>, vector<16x32xf32> -> vector<16x32xf32>
    %c1_242 = arith.constant 1 : index
    %c3_243 = arith.constant 3 : index
    %c0_244 = arith.constant 0 : index
    %c0_245 = arith.constant 0 : index
    %279 = vector.load %arg13[%c1_242, %c3_243, %c0_244, %c0_245] : memref<2x9x32x32xf32, #tpu.memory_space<vmem>>, vector<1x1x32x32xf32>
    %280 = vector.shape_cast %279 : vector<1x1x32x32xf32> to vector<32x32xf32>
    %cst_246 = arith.constant dense<0.000000e+00> : vector<16x32xf32>
    %281 = tpu.matmul %278, %280, %cst_246 {dimension_numbers = #tpu.dot_dimension_numbers<[1], [0], [0], [1], [0, 0, 1, 1], [], []>} : vector<16x32xf32>, vector<32x32xf32>, vector<16x32xf32> -> vector<16x32xf32>
    %282 = arith.addf %275, %281 : vector<16x32xf32>
    %c4_247 = arith.constant 4 : index
    %c0_248 = arith.constant 0 : index
    %c0_249 = arith.constant 0 : index
    %283 = vector.load %arg12[%c4_247, %c0_248, %c0_249] : memref<9x16x16xf32, #tpu.memory_space<vmem>>, vector<1x16x16xf32>
    %284 = vector.shape_cast %283 : vector<1x16x16xf32> to vector<16x16xf32>
    %cst_250 = arith.constant dense<0.000000e+00> : vector<16x32xf32>
    %285 = tpu.matmul %284, %253, %cst_250 {dimension_numbers = #tpu.dot_dimension_numbers<[1], [0], [0], [1], [0, 0, 1, 1], [], []>} : vector<16x16xf32>, vector<16x32xf32>, vector<16x32xf32> -> vector<16x32xf32>
    %c1_251 = arith.constant 1 : index
    %c4_252 = arith.constant 4 : index
    %c0_253 = arith.constant 0 : index
    %c0_254 = arith.constant 0 : index
    %286 = vector.load %arg13[%c1_251, %c4_252, %c0_253, %c0_254] : memref<2x9x32x32xf32, #tpu.memory_space<vmem>>, vector<1x1x32x32xf32>
    %287 = vector.shape_cast %286 : vector<1x1x32x32xf32> to vector<32x32xf32>
    %cst_255 = arith.constant dense<0.000000e+00> : vector<16x32xf32>
    %288 = tpu.matmul %285, %287, %cst_255 {dimension_numbers = #tpu.dot_dimension_numbers<[1], [0], [0], [1], [0, 0, 1, 1], [], []>} : vector<16x32xf32>, vector<32x32xf32>, vector<16x32xf32> -> vector<16x32xf32>
    %289 = arith.addf %282, %288 : vector<16x32xf32>
    %c5_256 = arith.constant 5 : index
    %c0_257 = arith.constant 0 : index
    %c0_258 = arith.constant 0 : index
    %290 = vector.load %arg12[%c5_256, %c0_257, %c0_258] : memref<9x16x16xf32, #tpu.memory_space<vmem>>, vector<1x16x16xf32>
    %291 = vector.shape_cast %290 : vector<1x16x16xf32> to vector<16x16xf32>
    %cst_259 = arith.constant dense<0.000000e+00> : vector<16x32xf32>
    %292 = tpu.matmul %291, %253, %cst_259 {dimension_numbers = #tpu.dot_dimension_numbers<[1], [0], [0], [1], [0, 0, 1, 1], [], []>} : vector<16x16xf32>, vector<16x32xf32>, vector<16x32xf32> -> vector<16x32xf32>
    %c1_260 = arith.constant 1 : index
    %c5_261 = arith.constant 5 : index
    %c0_262 = arith.constant 0 : index
    %c0_263 = arith.constant 0 : index
    %293 = vector.load %arg13[%c1_260, %c5_261, %c0_262, %c0_263] : memref<2x9x32x32xf32, #tpu.memory_space<vmem>>, vector<1x1x32x32xf32>
    %294 = vector.shape_cast %293 : vector<1x1x32x32xf32> to vector<32x32xf32>
    %cst_264 = arith.constant dense<0.000000e+00> : vector<16x32xf32>
    %295 = tpu.matmul %292, %294, %cst_264 {dimension_numbers = #tpu.dot_dimension_numbers<[1], [0], [0], [1], [0, 0, 1, 1], [], []>} : vector<16x32xf32>, vector<32x32xf32>, vector<16x32xf32> -> vector<16x32xf32>
    %296 = arith.addf %289, %295 : vector<16x32xf32>
    %c6_265 = arith.constant 6 : index
    %c0_266 = arith.constant 0 : index
    %c0_267 = arith.constant 0 : index
    %297 = vector.load %arg12[%c6_265, %c0_266, %c0_267] : memref<9x16x16xf32, #tpu.memory_space<vmem>>, vector<1x16x16xf32>
    %298 = vector.shape_cast %297 : vector<1x16x16xf32> to vector<16x16xf32>
    %cst_268 = arith.constant dense<0.000000e+00> : vector<16x32xf32>
    %299 = tpu.matmul %298, %253, %cst_268 {dimension_numbers = #tpu.dot_dimension_numbers<[1], [0], [0], [1], [0, 0, 1, 1], [], []>} : vector<16x16xf32>, vector<16x32xf32>, vector<16x32xf32> -> vector<16x32xf32>
    %c1_269 = arith.constant 1 : index
    %c6_270 = arith.constant 6 : index
    %c0_271 = arith.constant 0 : index
    %c0_272 = arith.constant 0 : index
    %300 = vector.load %arg13[%c1_269, %c6_270, %c0_271, %c0_272] : memref<2x9x32x32xf32, #tpu.memory_space<vmem>>, vector<1x1x32x32xf32>
    %301 = vector.shape_cast %300 : vector<1x1x32x32xf32> to vector<32x32xf32>
    %cst_273 = arith.constant dense<0.000000e+00> : vector<16x32xf32>
    %302 = tpu.matmul %299, %301, %cst_273 {dimension_numbers = #tpu.dot_dimension_numbers<[1], [0], [0], [1], [0, 0, 1, 1], [], []>} : vector<16x32xf32>, vector<32x32xf32>, vector<16x32xf32> -> vector<16x32xf32>
    %303 = arith.addf %296, %302 : vector<16x32xf32>
    %c7_274 = arith.constant 7 : index
    %c0_275 = arith.constant 0 : index
    %c0_276 = arith.constant 0 : index
    %304 = vector.load %arg12[%c7_274, %c0_275, %c0_276] : memref<9x16x16xf32, #tpu.memory_space<vmem>>, vector<1x16x16xf32>
    %305 = vector.shape_cast %304 : vector<1x16x16xf32> to vector<16x16xf32>
    %cst_277 = arith.constant dense<0.000000e+00> : vector<16x32xf32>
    %306 = tpu.matmul %305, %253, %cst_277 {dimension_numbers = #tpu.dot_dimension_numbers<[1], [0], [0], [1], [0, 0, 1, 1], [], []>} : vector<16x16xf32>, vector<16x32xf32>, vector<16x32xf32> -> vector<16x32xf32>
    %c1_278 = arith.constant 1 : index
    %c7_279 = arith.constant 7 : index
    %c0_280 = arith.constant 0 : index
    %c0_281 = arith.constant 0 : index
    %307 = vector.load %arg13[%c1_278, %c7_279, %c0_280, %c0_281] : memref<2x9x32x32xf32, #tpu.memory_space<vmem>>, vector<1x1x32x32xf32>
    %308 = vector.shape_cast %307 : vector<1x1x32x32xf32> to vector<32x32xf32>
    %cst_282 = arith.constant dense<0.000000e+00> : vector<16x32xf32>
    %309 = tpu.matmul %306, %308, %cst_282 {dimension_numbers = #tpu.dot_dimension_numbers<[1], [0], [0], [1], [0, 0, 1, 1], [], []>} : vector<16x32xf32>, vector<32x32xf32>, vector<16x32xf32> -> vector<16x32xf32>
    %310 = arith.addf %303, %309 : vector<16x32xf32>
    %c8_283 = arith.constant 8 : index
    %c0_284 = arith.constant 0 : index
    %c0_285 = arith.constant 0 : index
    %311 = vector.load %arg12[%c8_283, %c0_284, %c0_285] : memref<9x16x16xf32, #tpu.memory_space<vmem>>, vector<1x16x16xf32>
    %312 = vector.shape_cast %311 : vector<1x16x16xf32> to vector<16x16xf32>
    %cst_286 = arith.constant dense<0.000000e+00> : vector<16x32xf32>
    %313 = tpu.matmul %312, %253, %cst_286 {dimension_numbers = #tpu.dot_dimension_numbers<[1], [0], [0], [1], [0, 0, 1, 1], [], []>} : vector<16x16xf32>, vector<16x32xf32>, vector<16x32xf32> -> vector<16x32xf32>
    %c1_287 = arith.constant 1 : index
    %c8_288 = arith.constant 8 : index
    %c0_289 = arith.constant 0 : index
    %c0_290 = arith.constant 0 : index
    %314 = vector.load %arg13[%c1_287, %c8_288, %c0_289, %c0_290] : memref<2x9x32x32xf32, #tpu.memory_space<vmem>>, vector<1x1x32x32xf32>
    %315 = vector.shape_cast %314 : vector<1x1x32x32xf32> to vector<32x32xf32>
    %cst_291 = arith.constant dense<0.000000e+00> : vector<16x32xf32>
    %316 = tpu.matmul %313, %315, %cst_291 {dimension_numbers = #tpu.dot_dimension_numbers<[1], [0], [0], [1], [0, 0, 1, 1], [], []>} : vector<16x32xf32>, vector<32x32xf32>, vector<16x32xf32> -> vector<16x32xf32>
    %317 = arith.addf %310, %316 : vector<16x32xf32>
    %c1_292 = arith.constant 1 : index
    %c0_293 = arith.constant 0 : index
    %c0_294 = arith.constant 0 : index
    %318 = vector.load %arg14[%c1_292, %c0_293, %c0_294] : memref<2x1x32xf32, #tpu.memory_space<vmem>>, vector<1x1x32xf32>
    %319 = vector.shape_cast %318 : vector<1x1x32xf32> to vector<1x32xf32>
    %320 = vector.broadcast %319 : vector<1x32xf32> to vector<16x32xf32>
    %321 = arith.addf %317, %320 : vector<16x32xf32>
    %cst_295 = arith.constant 0.000000e+00 : f32
    %322 = vector.broadcast %cst_295 : f32 to vector<16x32xf32>
    %323 = arith.maximumf %321, %322 : vector<16x32xf32>
    %cst_296 = arith.constant 0.000000e+00 : f32
    %324 = vector.broadcast %cst_296 : f32 to vector<49x8xf32>
    %c0_297 = arith.constant 0 : index
    %c0_298 = arith.constant 0 : index
    %c0_299 = arith.constant 0 : index
    %325 = vector.load %arg11[%c0_297, %c0_298, %c0_299] : memref<4x49x16xf32, #tpu.memory_space<vmem>>, vector<1x49x16xf32>
    %326 = vector.shape_cast %325 : vector<1x49x16xf32> to vector<49x16xf32>
    %327 = vector.extract_strided_slice %323 {offsets = [0, 0], sizes = [16, 8], strides = [1, 1]} : vector<16x32xf32> to vector<16x8xf32>
    %cst_300 = arith.constant dense<0.000000e+00> : vector<49x8xf32>
    %328 = tpu.matmul %326, %327, %cst_300 {dimension_numbers = #tpu.dot_dimension_numbers<[1], [0], [0], [1], [0, 0, 1, 1], [], []>} : vector<49x16xf32>, vector<16x8xf32>, vector<49x8xf32> -> vector<49x8xf32>
    %329 = arith.addf %324, %328 : vector<49x8xf32>
    %c1_301 = arith.constant 1 : index
    %c0_302 = arith.constant 0 : index
    %c0_303 = arith.constant 0 : index
    %330 = vector.load %arg11[%c1_301, %c0_302, %c0_303] : memref<4x49x16xf32, #tpu.memory_space<vmem>>, vector<1x49x16xf32>
    %331 = vector.shape_cast %330 : vector<1x49x16xf32> to vector<49x16xf32>
    %332 = vector.extract_strided_slice %323 {offsets = [0, 8], sizes = [16, 8], strides = [1, 1]} : vector<16x32xf32> to vector<16x8xf32>
    %cst_304 = arith.constant dense<0.000000e+00> : vector<49x8xf32>
    %333 = tpu.matmul %331, %332, %cst_304 {dimension_numbers = #tpu.dot_dimension_numbers<[1], [0], [0], [1], [0, 0, 1, 1], [], []>} : vector<49x16xf32>, vector<16x8xf32>, vector<49x8xf32> -> vector<49x8xf32>
    %334 = arith.addf %329, %333 : vector<49x8xf32>
    %c2_305 = arith.constant 2 : index
    %c0_306 = arith.constant 0 : index
    %c0_307 = arith.constant 0 : index
    %335 = vector.load %arg11[%c2_305, %c0_306, %c0_307] : memref<4x49x16xf32, #tpu.memory_space<vmem>>, vector<1x49x16xf32>
    %336 = vector.shape_cast %335 : vector<1x49x16xf32> to vector<49x16xf32>
    %337 = vector.extract_strided_slice %323 {offsets = [0, 16], sizes = [16, 8], strides = [1, 1]} : vector<16x32xf32> to vector<16x8xf32>
    %cst_308 = arith.constant dense<0.000000e+00> : vector<49x8xf32>
    %338 = tpu.matmul %336, %337, %cst_308 {dimension_numbers = #tpu.dot_dimension_numbers<[1], [0], [0], [1], [0, 0, 1, 1], [], []>} : vector<49x16xf32>, vector<16x8xf32>, vector<49x8xf32> -> vector<49x8xf32>
    %339 = arith.addf %334, %338 : vector<49x8xf32>
    %c3_309 = arith.constant 3 : index
    %c0_310 = arith.constant 0 : index
    %c0_311 = arith.constant 0 : index
    %340 = vector.load %arg11[%c3_309, %c0_310, %c0_311] : memref<4x49x16xf32, #tpu.memory_space<vmem>>, vector<1x49x16xf32>
    %341 = vector.shape_cast %340 : vector<1x49x16xf32> to vector<49x16xf32>
    %342 = vector.extract_strided_slice %323 {offsets = [0, 24], sizes = [16, 8], strides = [1, 1]} : vector<16x32xf32> to vector<16x8xf32>
    %cst_312 = arith.constant dense<0.000000e+00> : vector<49x8xf32>
    %343 = tpu.matmul %341, %342, %cst_312 {dimension_numbers = #tpu.dot_dimension_numbers<[1], [0], [0], [1], [0, 0, 1, 1], [], []>} : vector<49x16xf32>, vector<16x8xf32>, vector<49x8xf32> -> vector<49x8xf32>
    %344 = arith.addf %339, %343 : vector<49x8xf32>
    %c0_313 = arith.constant 0 : index
    %c0_314 = arith.constant 0 : index
    %345 = vector.load %arg15[%c0_313, %c0_314] : memref<49x16xf32, #tpu.memory_space<vmem>>, vector<49x16xf32>
    %cst_315 = arith.constant dense<0.000000e+00> : vector<49x32xf32>
    %346 = tpu.matmul %345, %323, %cst_315 {dimension_numbers = #tpu.dot_dimension_numbers<[1], [0], [0], [1], [0, 0, 1, 1], [], []>} : vector<49x16xf32>, vector<16x32xf32>, vector<49x32xf32> -> vector<49x32xf32>
    %c3_316 = arith.constant 3 : index
    %c0_317 = arith.constant 0 : index
    %c0_318 = arith.constant 0 : index
    %347 = vector.load %arg6[%c3_316, %c0_317, %c0_318] : memref<4x32x48xf32, #tpu.memory_space<vmem>>, vector<1x32x48xf32>
    %348 = vector.shape_cast %347 : vector<1x32x48xf32> to vector<32x48xf32>
    %c3_319 = arith.constant 3 : index
    %c0_320 = arith.constant 0 : index
    %c0_321 = arith.constant 0 : index
    %349 = vector.load %arg7[%c3_319, %c0_320, %c0_321] : memref<4x1x48xf32, #tpu.memory_space<vmem>>, vector<1x1x48xf32>
    %350 = vector.shape_cast %349 : vector<1x1x48xf32> to vector<1x48xf32>
    %c3_322 = arith.constant 3 : index
    %c0_323 = arith.constant 0 : index
    %c0_324 = arith.constant 0 : index
    %351 = vector.load %arg3[%c3_322, %c0_323, %c0_324] : memref<4x49x49xf32, #tpu.memory_space<vmem>>, vector<1x49x49xf32>
    %352 = vector.shape_cast %351 : vector<1x49x49xf32> to vector<49x49xf32>
    %cst_325 = arith.constant dense<0.000000e+00> : vector<49x48xf32>
    %353 = tpu.matmul %346, %348, %cst_325 {dimension_numbers = #tpu.dot_dimension_numbers<[1], [0], [0], [1], [0, 0, 1, 1], [], []>} : vector<49x32xf32>, vector<32x48xf32>, vector<49x48xf32> -> vector<49x48xf32>
    %354 = vector.broadcast %350 : vector<1x48xf32> to vector<49x48xf32>
    %355 = arith.addf %353, %354 : vector<49x48xf32>
    %356 = vector.extract_strided_slice %355 {offsets = [0, 0], sizes = [49, 16], strides = [1, 1]} : vector<49x48xf32> to vector<49x16xf32>
    %357 = vector.extract_strided_slice %355 {offsets = [0, 16], sizes = [49, 32], strides = [1, 1]} : vector<49x48xf32> to vector<49x32xf32>
    "tpu.trace_start"() <{level = 10 : i32, message = "mk,nk->mn"}> : () -> ()
    %cst_326 = arith.constant dense<0.000000e+00> : vector<49x49xf32>
    %358 = tpu.matmul %10, %356, %cst_326 {dimension_numbers = #tpu.dot_dimension_numbers<[1], [1], [0], [0], [0, 0, 1, 0], [], []>} : vector<49x16xf32>, vector<49x16xf32>, vector<49x49xf32> -> vector<49x49xf32>
    "tpu.trace_stop"() : () -> ()
    %cst_327 = arith.constant 2.500000e-01 : f32
    %359 = vector.broadcast %cst_327 : f32 to vector<49x49xf32>
    %360 = arith.mulf %358, %359 : vector<49x49xf32>
    %361 = arith.addf %360, %352 : vector<49x49xf32>
    %cst_328 = arith.constant dense<0xFF800000> : vector<49xf32>
    %362 = vector.multi_reduction <maximumf>, %361, %cst_328 [1] : vector<49x49xf32> to vector<49xf32>
    %363 = vector.shape_cast %362 : vector<49xf32> to vector<49x1xf32>
    %364 = vector.broadcast %363 : vector<49x1xf32> to vector<49x49xf32>
    %365 = arith.subf %361, %364 : vector<49x49xf32>
    %366 = math.exp %365 : vector<49x49xf32>
    %cst_329 = arith.constant dense<0.000000e+00> : vector<49xf32>
    %367 = vector.multi_reduction <add>, %366, %cst_329 [1] : vector<49x49xf32> to vector<49xf32>
    %368 = vector.shape_cast %367 : vector<49xf32> to vector<49x1xf32>
    %369 = tpu.reciprocal %368 {approx = true} : vector<49x1xf32> -> vector<49x1xf32>
    %370 = vector.broadcast %369 : vector<49x1xf32> to vector<49x49xf32>
    %371 = arith.mulf %366, %370 : vector<49x49xf32>
    %372 = vector.broadcast %5 : vector<1x32xf32> to vector<49x32xf32>
    %373 = arith.mulf %372, %357 : vector<49x32xf32>
    %cst_330 = arith.constant dense<0.000000e+00> : vector<49x32xf32>
    %374 = tpu.matmul %371, %373, %cst_330 {dimension_numbers = #tpu.dot_dimension_numbers<[1], [0], [0], [1], [0, 0, 1, 1], [], []>} : vector<49x49xf32>, vector<49x32xf32>, vector<49x32xf32> -> vector<49x32xf32>
    %c1_331 = arith.constant 1 : index
    %c0_332 = arith.constant 0 : index
    %c0_333 = arith.constant 0 : index
    %375 = vector.load %arg16[%c1_331, %c0_332, %c0_333] : memref<2x40x32xf32, #tpu.memory_space<vmem>>, vector<1x40x32xf32>
    %376 = vector.shape_cast %375 : vector<1x40x32xf32> to vector<40x32xf32>
    %cst_334 = arith.constant 0.000000e+00 : f32
    %377 = vector.broadcast %cst_334 : f32 to vector<49x32xf32>
    %378 = arith.maximumf %374, %377 : vector<49x32xf32>
    %379 = vector.extract_strided_slice %376 {offsets = [0, 0], sizes = [32, 32], strides = [1, 1]} : vector<40x32xf32> to vector<32x32xf32>
    %cst_335 = arith.constant dense<0.000000e+00> : vector<49x32xf32>
    %380 = tpu.matmul %378, %379, %cst_335 {dimension_numbers = #tpu.dot_dimension_numbers<[1], [0], [0], [1], [0, 0, 1, 1], [], []>} : vector<49x32xf32>, vector<32x32xf32>, vector<49x32xf32> -> vector<49x32xf32>
    %cst_336 = arith.constant 0.000000e+00 : f32
    %381 = vector.broadcast %cst_336 : f32 to vector<49x8xf32>
    %382 = arith.maximumf %344, %381 : vector<49x8xf32>
    %383 = vector.extract_strided_slice %376 {offsets = [32, 0], sizes = [8, 32], strides = [1, 1]} : vector<40x32xf32> to vector<8x32xf32>
    %cst_337 = arith.constant dense<0.000000e+00> : vector<49x32xf32>
    %384 = tpu.matmul %382, %383, %cst_337 {dimension_numbers = #tpu.dot_dimension_numbers<[1], [0], [0], [1], [0, 0, 1, 1], [], []>} : vector<49x8xf32>, vector<8x32xf32>, vector<49x32xf32> -> vector<49x32xf32>
    %385 = arith.addf %380, %384 : vector<49x32xf32>
    %c1_338 = arith.constant 1 : index
    %c0_339 = arith.constant 0 : index
    %c0_340 = arith.constant 0 : index
    %386 = vector.load %arg17[%c1_338, %c0_339, %c0_340] : memref<2x1x32xf32, #tpu.memory_space<vmem>>, vector<1x1x32xf32>
    %387 = vector.shape_cast %386 : vector<1x1x32xf32> to vector<1x32xf32>
    %388 = vector.broadcast %387 : vector<1x32xf32> to vector<49x32xf32>
    %389 = arith.addf %385, %388 : vector<49x32xf32>
    %390 = tpu.concatenate %39, %199, %229, %389 in 1 : vector<49x32xf32>, vector<49x32xf32>, vector<49x32xf32>, vector<49x32xf32> -> vector<49x128xf32>
    %cst_341 = arith.constant 0.000000e+00 : f32
    %391 = vector.broadcast %cst_341 : f32 to vector<49x128xf32>
    %392 = arith.maximumf %390, %391 : vector<49x128xf32>
    %c0_342 = arith.constant 0 : index
    %c0_343 = arith.constant 0 : index
    %393 = vector.load %arg18[%c0_342, %c0_343] : memref<128x128xf32, #tpu.memory_space<vmem>>, vector<128x128xf32>
    %cst_344 = arith.constant dense<0.000000e+00> : vector<49x128xf32>
    %394 = tpu.matmul %392, %393, %cst_344 {dimension_numbers = #tpu.dot_dimension_numbers<[1], [0], [0], [1], [0, 0, 1, 1], [], []>} : vector<49x128xf32>, vector<128x128xf32>, vector<49x128xf32> -> vector<49x128xf32>
    %c0_345 = arith.constant 0 : index
    %c0_346 = arith.constant 0 : index
    %395 = vector.load %arg19[%c0_345, %c0_346] : memref<1x128xf32, #tpu.memory_space<vmem>>, vector<1x128xf32>
    %396 = vector.broadcast %395 : vector<1x128xf32> to vector<49x128xf32>
    %397 = arith.addf %394, %396 : vector<49x128xf32>
    %398 = arith.addf %1, %397 : vector<49x128xf32>
    %c0_347 = arith.constant 0 : index
    %c0_348 = arith.constant 0 : index
    %c0_349 = arith.constant 0 : index
    %399 = vector.load %arg20[%c0_347, %c0_348, %c0_349] : memref<1x49x128xf32, #tpu.memory_space<vmem>>, vector<1x49x128xf32>
    %400 = vector.shape_cast %399 : vector<1x49x128xf32> to vector<49x128xf32>
    %401 = vector.shape_cast %398 : vector<49x128xf32> to vector<1x49x128xf32>
    tpu.vector_store %arg20[%c0_347, %c0_348, %c0_349], %401 {strides = array<i32>} : memref<1x49x128xf32, #tpu.memory_space<vmem>>, vector<1x49x128xf32>,
    return
  }
  func.func @transform_0(%arg0: i32) -> (i32, i32, i32) {
    %c0_i32 = arith.constant 0 : i32
    %c0_i32_0 = arith.constant 0 : i32
    %c0_i32_1 = arith.constant 0 : i32
    return %arg0, %c0_i32, %c0_i32_0 : i32, i32, i32
  }
  func.func @transform_1(%arg0: i32) -> (i32, i32, i32) {
    %c0_i32 = arith.constant 0 : i32
    %c0_i32_0 = arith.constant 0 : i32
    %c0_i32_1 = arith.constant 0 : i32
    return %arg0, %c0_i32, %c0_i32_0 : i32, i32, i32
  }
  func.func @transform_2(%arg0: i32) -> (i32, i32, i32) {
    %c0_i32 = arith.constant 0 : i32
    %c0_i32_0 = arith.constant 0 : i32
    %c0_i32_1 = arith.constant 0 : i32
    %c0_i32_2 = arith.constant 0 : i32
    return %c0_i32, %c0_i32_0, %c0_i32_1 : i32, i32, i32
  }
  func.func @transform_3(%arg0: i32) -> (i32, i32) {
    %c0_i32 = arith.constant 0 : i32
    %c0_i32_0 = arith.constant 0 : i32
    %c0_i32_1 = arith.constant 0 : i32
    return %c0_i32, %c0_i32_0 : i32, i32
  }
  func.func @transform_4(%arg0: i32) -> (i32, i32) {
    %c0_i32 = arith.constant 0 : i32
    %c0_i32_0 = arith.constant 0 : i32
    %c0_i32_1 = arith.constant 0 : i32
    return %c0_i32, %c0_i32_0 : i32, i32
  }
  func.func @transform_5(%arg0: i32) -> (i32, i32, i32) {
    %c0_i32 = arith.constant 0 : i32
    %c0_i32_0 = arith.constant 0 : i32
    %c0_i32_1 = arith.constant 0 : i32
    %c0_i32_2 = arith.constant 0 : i32
    return %c0_i32, %c0_i32_0, %c0_i32_1 : i32, i32, i32
  }
  func.func @transform_6(%arg0: i32) -> (i32, i32, i32) {
    %c0_i32 = arith.constant 0 : i32
    %c0_i32_0 = arith.constant 0 : i32
    %c0_i32_1 = arith.constant 0 : i32
    %c0_i32_2 = arith.constant 0 : i32
    return %c0_i32, %c0_i32_0, %c0_i32_1 : i32, i32, i32
  }
  func.func @transform_7(%arg0: i32) -> (i32, i32, i32) {
    %c0_i32 = arith.constant 0 : i32
    %c0_i32_0 = arith.constant 0 : i32
    %c0_i32_1 = arith.constant 0 : i32
    %c0_i32_2 = arith.constant 0 : i32
    return %c0_i32, %c0_i32_0, %c0_i32_1 : i32, i32, i32
  }
  func.func @transform_8(%arg0: i32) -> (i32, i32, i32) {
    %c0_i32 = arith.constant 0 : i32
    %c0_i32_0 = arith.constant 0 : i32
    %c0_i32_1 = arith.constant 0 : i32
    %c0_i32_2 = arith.constant 0 : i32
    return %c0_i32, %c0_i32_0, %c0_i32_1 : i32, i32, i32
  }
  func.func @transform_9(%arg0: i32) -> (i32, i32, i32) {
    %c0_i32 = arith.constant 0 : i32
    %c0_i32_0 = arith.constant 0 : i32
    %c0_i32_1 = arith.constant 0 : i32
    %c0_i32_2 = arith.constant 0 : i32
    return %c0_i32, %c0_i32_0, %c0_i32_1 : i32, i32, i32
  }
  func.func @transform_10(%arg0: i32) -> (i32, i32, i32) {
    %c0_i32 = arith.constant 0 : i32
    %c0_i32_0 = arith.constant 0 : i32
    %c0_i32_1 = arith.constant 0 : i32
    %c0_i32_2 = arith.constant 0 : i32
    return %c0_i32, %c0_i32_0, %c0_i32_1 : i32, i32, i32
  }
  func.func @transform_11(%arg0: i32) -> (i32, i32, i32) {
    %c0_i32 = arith.constant 0 : i32
    %c0_i32_0 = arith.constant 0 : i32
    %c0_i32_1 = arith.constant 0 : i32
    %c0_i32_2 = arith.constant 0 : i32
    return %c0_i32, %c0_i32_0, %c0_i32_1 : i32, i32, i32
  }
  func.func @transform_12(%arg0: i32) -> (i32, i32, i32, i32) {
    %c0_i32 = arith.constant 0 : i32
    %c0_i32_0 = arith.constant 0 : i32
    %c0_i32_1 = arith.constant 0 : i32
    %c0_i32_2 = arith.constant 0 : i32
    %c0_i32_3 = arith.constant 0 : i32
    return %c0_i32, %c0_i32_0, %c0_i32_1, %c0_i32_2 : i32, i32, i32, i32
  }
  func.func @transform_13(%arg0: i32) -> (i32, i32, i32) {
    %c0_i32 = arith.constant 0 : i32
    %c0_i32_0 = arith.constant 0 : i32
    %c0_i32_1 = arith.constant 0 : i32
    %c0_i32_2 = arith.constant 0 : i32
    return %c0_i32, %c0_i32_0, %c0_i32_1 : i32, i32, i32
  }
  func.func @transform_14(%arg0: i32) -> (i32, i32) {
    %c0_i32 = arith.constant 0 : i32
    %c0_i32_0 = arith.constant 0 : i32
    %c0_i32_1 = arith.constant 0 : i32
    return %c0_i32, %c0_i32_0 : i32, i32
  }
  func.func @transform_15(%arg0: i32) -> (i32, i32, i32) {
    %c0_i32 = arith.constant 0 : i32
    %c0_i32_0 = arith.constant 0 : i32
    %c0_i32_1 = arith.constant 0 : i32
    %c0_i32_2 = arith.constant 0 : i32
    return %c0_i32, %c0_i32_0, %c0_i32_1 : i32, i32, i32
  }
  func.func @transform_16(%arg0: i32) -> (i32, i32, i32) {
    %c0_i32 = arith.constant 0 : i32
    %c0_i32_0 = arith.constant 0 : i32
    %c0_i32_1 = arith.constant 0 : i32
    %c0_i32_2 = arith.constant 0 : i32
    return %c0_i32, %c0_i32_0, %c0_i32_1 : i32, i32, i32
  }
  func.func @transform_17(%arg0: i32) -> (i32, i32) {
    %c0_i32 = arith.constant 0 : i32
    %c0_i32_0 = arith.constant 0 : i32
    %c0_i32_1 = arith.constant 0 : i32
    return %c0_i32, %c0_i32_0 : i32, i32
  }
  func.func @transform_18(%arg0: i32) -> (i32, i32) {
    %c0_i32 = arith.constant 0 : i32
    %c0_i32_0 = arith.constant 0 : i32
    %c0_i32_1 = arith.constant 0 : i32
    return %c0_i32, %c0_i32_0 : i32, i32
  }
  func.func @transform_19(%arg0: i32) -> (i32, i32, i32) {
    %c0_i32 = arith.constant 0 : i32
    %c0_i32_0 = arith.constant 0 : i32
    %c0_i32_1 = arith.constant 0 : i32
    return %arg0, %c0_i32, %c0_i32_0 : i32, i32, i32
  }
}

</mosaic_0001>

<llo_original>
// kernel: residual_forward.1
$region0: #{residual_forward.1}
  #allocation0 [shape = 'u32[]', space=smem, size = 0x4, offset = 0x4, fixed_abs, tag = 'smem constant byte address 0x4 - core index']
  #allocation1 [shape = 'u32[144,128]{1,0:T(1,128)}', space=vmem, size = 0x12000, scoped, tag = 'internal scratch']
  %s0 = inlined_call_operand.vmem [shape: f32[2,49,128], index: 0, kind: input, shape index: {}]
  %s1 = inlined_call_operand.vmem [shape: f32[2,2,32], index: 1, kind: input, shape index: {}]
  %s2 = inlined_call_operand.vmem [shape: f32[4,49,49], index: 2, kind: input, shape index: {}]
  %s3 = inlined_call_operand.vmem [shape: f32[128,16], index: 3, kind: input, shape index: {}]
  %s4 = inlined_call_operand.vmem [shape: f32[1,16], index: 4, kind: input, shape index: {}]
  %s5 = inlined_call_operand.vmem [shape: f32[4,32,48], index: 5, kind: input, shape index: {}]
  %s6 = inlined_call_operand.vmem [shape: f32[4,1,48], index: 6, kind: input, shape index: {}]
  %s7 = inlined_call_operand.vmem [shape: f32[2,32,8], index: 7, kind: input, shape index: {}]
  %s8 = inlined_call_operand.vmem [shape: f32[2,1,8], index: 8, kind: input, shape index: {}]
  %s9 = inlined_call_operand.vmem [shape: f32[4,16,49], index: 9, kind: input, shape index: {}]
  %s10 = inlined_call_operand.vmem [shape: f32[4,49,16], index: 10, kind: input, shape index: {}]
  %s11 = inlined_call_operand.vmem [shape: f32[9,16,16], index: 11, kind: input, shape index: {}]
  %s12 = inlined_call_operand.vmem [shape: f32[2,9,32,32], index: 12, kind: input, shape index: {}]
  %s13 = inlined_call_operand.vmem [shape: f32[2,1,32], index: 13, kind: input, shape index: {}]
  %s14 = inlined_call_operand.vmem [shape: f32[49,16], index: 14, kind: input, shape index: {}]
  %s15 = inlined_call_operand.vmem [shape: f32[2,40,32], index: 15, kind: input, shape index: {}]
  %s16 = inlined_call_operand.vmem [shape: f32[2,1,32], index: 16, kind: input, shape index: {}]
  %s17 = inlined_call_operand.vmem [shape: f32[128,128], index: 17, kind: input, shape index: {}]
  %s18 = inlined_call_operand.vmem [shape: f32[1,128], index: 18, kind: input, shape index: {}]
  %s19 = inlined_call_operand.vmem [shape: f32[2,49,128], index: 19, kind: output, shape index: {}]
  %s20 = sld [smem:[#allocation0]]
  $region109: #{residual_forward.1} parent=0
    _
  %s22 = ssub.s32 1, %s20
  %s23 = scalar_select 0, %s22, %s20
  loop: start=0, step=1, limit=4
  $region2: #{residual_forward.1} parent=0 // loop_pre_header
    _
  $region3: #{residual_forward.1} parent=0 // loop_header
    %s25 = sphi 0, %s29
    %p26 = scmp.ge.s32.totalorder %s25, 4
    %s35 = sphi 0, %s37
    %s38 = sphi 0, %s35
    %s39 = sphi 0, %s38
    %s55 = sphi 0, %s39
    %s61 = sphi 0, %s63
    %s64 = sphi 0, %s61
    %s65 = sphi 0, %s64
    %s81 = sphi 0, %s65
    %s85 = sphi 0, %s85
    %s87 = sphi 0, %s85
    %s88 = sphi 0, %s87
    %s102 = sphi 0, %s88
    %s106 = sphi 0, %s106
    %s108 = sphi 0, %s106
    %s109 = sphi 0, %s108
    %s123 = sphi 0, %s109
    %s127 = sphi 0, %s127
    %s129 = sphi 0, %s127
    %s130 = sphi 0, %s129
    %s144 = sphi 0, %s130
    %s148 = sphi 0, %s148
    %s150 = sphi 0, %s148
    %s151 = sphi 0, %s150
    %s165 = sphi 0, %s151
    %s169 = sphi 0, %s169
    %s171 = sphi 0, %s169
    %s172 = sphi 0, %s171
    %s186 = sphi 0, %s172
    %s190 = sphi 0, %s190
    %s192 = sphi 0, %s190
    %s193 = sphi 0, %s192
    %s207 = sphi 0, %s193
    %s211 = sphi 0, %s211
    %s213 = sphi 0, %s211
    %s214 = sphi 0, %s213
    %s228 = sphi 0, %s214
    %s232 = sphi 0, %s232
    %s234 = sphi 0, %s232
    %s235 = sphi 0, %s234
    %s249 = sphi 0, %s235
    %s253 = sphi 0, %s253
    %s255 = sphi 0, %s253
    %s256 = sphi 0, %s255
    %s270 = sphi 0, %s256
    %s274 = sphi 0, %s274
    %s276 = sphi 0, %s274
    %s277 = sphi 0, %s276
    %s291 = sphi 0, %s277
    %s295 = sphi 0, %s295
    %s297 = sphi 0, %s295
    %s298 = sphi 0, %s297
    %s312 = sphi 0, %s298
    %s316 = sphi 0, %s316
    %s318 = sphi 0, %s316
    %s319 = sphi 0, %s318
    %s333 = sphi 0, %s319
    %s337 = sphi 0, %s337
    %s339 = sphi 0, %s337
    %s340 = sphi 0, %s339
    %s354 = sphi 0, %s340
    %s358 = sphi 0, %s358
    %s360 = sphi 0, %s358
    %s361 = sphi 0, %s360
    %s375 = sphi 0, %s361
    %s379 = sphi 0, %s379
    %s381 = sphi 0, %s379
    %s382 = sphi 0, %s381
    %s396 = sphi 0, %s382
    %s400 = sphi 0, %s400
    %s402 = sphi 0, %s400
    %s403 = sphi 0, %s402
    %s417 = sphi 0, %s403
    %s421 = sphi 0, %s421
    %s423 = sphi 0, %s421
    %s424 = sphi 0, %s423
    %s438 = sphi 0, %s424
    %s444 = sphi 0, %s446
    %s447 = sphi 0, %s444
    %s448 = sphi 0, %s447
    %s464 = sphi 0, %s448
  $region4: #{residual_forward.1} parent=0 // loop_header_branch
    %28 = sbr.rel (%p26) target = $region8
  $region5: #{residual_forward.1} parent=0 // loop_body
    %s30 = ssub.s32 %s25, 1
    %s31 = ssub.s32 %s25, 2
    %s32 = sadd.s32 %s25, 1
    %s33 = ssub.s32 %s25, %s32
    %p34 = scmp.eq.s32.totalorder %s33, 0
    %s36 = sadd.s32 %s35, 1
    %s37 = scalar_select %p34, %s35, %s36
    %p40 = pneg %p34
    %p41 = scmp.eq.s32.totalorder %s25, 1
    %p42 = por %p40, %p41
    %p43 = scmp.ne.s32.totalorder %s35, %s38
    %p44 = scmp.eq.s32.totalorder %s25, 0
    %p45 = por %p43, %p44
    %p46 = scmp.ne.s32.totalorder %s35, %s38
    %p47 = scmp.eq.s32.totalorder %s30, 1
    %p48 = por %p46, %p47
    %p49 = scmp.ne.s32.totalorder %s38, %s39
    %p50 = scmp.eq.s32.totalorder %s30, 0
    %p51 = por %p49, %p50
    %p52 = scmp.ne.s32.totalorder %s38, %s39
    %p53 = scmp.eq.s32.totalorder %s31, 1
    %p54 = por %p52, %p53
    %p56 = scmp.ne.s32.totalorder %s39, %s55
    %p57 = scmp.eq.s32.totalorder %s31, 0
    %p58 = por %p56, %p57
    %s59 = ssub.s32 %s25, %s32
    %p60 = scmp.eq.s32.totalorder %s59, 0
    %s62 = sadd.s32 %s61, 1
    %s63 = scalar_select %p60, %s61, %s62
    %p66 = pneg %p60
    %p67 = scmp.eq.s32.totalorder %s25, 1
    %p68 = por %p66, %p67
    %p69 = scmp.ne.s32.totalorder %s61, %s64
    %p70 = scmp.eq.s32.totalorder %s25, 0
    %p71 = por %p69, %p70
    %p72 = scmp.ne.s32.totalorder %s61, %s64
    %p73 = scmp.eq.s32.totalorder %s30, 1
    %p74 = por %p72, %p73
    %p75 = scmp.ne.s32.totalorder %s64, %s65
    %p76 = scmp.eq.s32.totalorder %s30, 0
    %p77 = por %p75, %p76
    %p78 = scmp.ne.s32.totalorder %s64, %s65
    %p79 = scmp.eq.s32.totalorder %s31, 1
    %p80 = por %p78, %p79
    %p82 = scmp.ne.s32.totalorder %s65, %s81
    %p83 = scmp.eq.s32.totalorder %s31, 0
    %p84 = por %p82, %p83
    %s86 = sadd.s32 %s85, 1
    %p89 = scmp.eq.s32.totalorder %s25, 1
    %p90 = scmp.ne.s32.totalorder %s85, %s87
    %p91 = scmp.eq.s32.totalorder %s25, 0
    %p92 = por %p90, %p91
    %p93 = scmp.ne.s32.totalorder %s85, %s87
    %p94 = scmp.eq.s32.totalorder %s30, 1
    %p95 = por %p93, %p94
    %p96 = scmp.ne.s32.totalorder %s87, %s88
    %p97 = scmp.eq.s32.totalorder %s30, 0
    %p98 = por %p96, %p97
    %p99 = scmp.ne.s32.totalorder %s87, %s88
    %p100 = scmp.eq.s32.totalorder %s31, 1
    %p101 = por %p99, %p100
    %p103 = scmp.ne.s32.totalorder %s88, %s102
    %p104 = scmp.eq.s32.totalorder %s31, 0
    %p105 = por %p103, %p104
    %s107 = sadd.s32 %s106, 1
    %p110 = scmp.eq.s32.totalorder %s25, 1
    %p111 = scmp.ne.s32.totalorder %s106, %s108
    %p112 = scmp.eq.s32.totalorder %s25, 0
    %p113 = por %p111, %p112
    %p114 = scmp.ne.s32.totalorder %s106, %s108
    %p115 = scmp.eq.s32.totalorder %s30, 1
    %p116 = por %p114, %p115
    %p117 = scmp.ne.s32.totalorder %s108, %s109
    %p118 = scmp.eq.s32.totalorder %s30, 0
    %p119 = por %p117, %p118
    %p120 = scmp.ne.s32.totalorder %s108, %s109
    %p121 = scmp.eq.s32.totalorder %s31, 1
    %p122 = por %p120, %p121
    %p124 = scmp.ne.s32.totalorder %s109, %s123
    %p125 = scmp.eq.s32.totalorder %s31, 0
    %p126 = por %p124, %p125
    %s128 = sadd.s32 %s127, 1
    %p131 = scmp.eq.s32.totalorder %s25, 1
    %p132 = scmp.ne.s32.totalorder %s127, %s129
    %p133 = scmp.eq.s32.totalorder %s25, 0
    %p134 = por %p132, %p133
    %p135 = scmp.ne.s32.totalorder %s127, %s129
    %p136 = scmp.eq.s32.totalorder %s30, 1
    %p137 = por %p135, %p136
    %p138 = scmp.ne.s32.totalorder %s129, %s130
    %p139 = scmp.eq.s32.totalorder %s30, 0
    %p140 = por %p138, %p139
    %p141 = scmp.ne.s32.totalorder %s129, %s130
    %p142 = scmp.eq.s32.totalorder %s31, 1
    %p143 = por %p141, %p142
    %p145 = scmp.ne.s32.totalorder %s130, %s144
    %p146 = scmp.eq.s32.totalorder %s31, 0
    %p147 = por %p145, %p146
    %s149 = sadd.s32 %s148, 1
    %p152 = scmp.eq.s32.totalorder %s25, 1
    %p153 = scmp.ne.s32.totalorder %s148, %s150
    %p154 = scmp.eq.s32.totalorder %s25, 0
    %p155 = por %p153, %p154
    %p156 = scmp.ne.s32.totalorder %s148, %s150
    %p157 = scmp.eq.s32.totalorder %s30, 1
    %p158 = por %p156, %p157
    %p159 = scmp.ne.s32.totalorder %s150, %s151
    %p160 = scmp.eq.s32.totalorder %s30, 0
    %p161 = por %p159, %p160
    %p162 = scmp.ne.s32.totalorder %s150, %s151
    %p163 = scmp.eq.s32.totalorder %s31, 1
    %p164 = por %p162, %p163
    %p166 = scmp.ne.s32.totalorder %s151, %s165
    %p167 = scmp.eq.s32.totalorder %s31, 0
    %p168 = por %p166, %p167
    %s170 = sadd.s32 %s169, 1
    %p173 = scmp.eq.s32.totalorder %s25, 1
    %p174 = scmp.ne.s32.totalorder %s169, %s171
    %p175 = scmp.eq.s32.totalorder %s25, 0
    %p176 = por %p174, %p175
    %p177 = scmp.ne.s32.totalorder %s169, %s171
    %p178 = scmp.eq.s32.totalorder %s30, 1
    %p179 = por %p177, %p178
    %p180 = scmp.ne.s32.totalorder %s171, %s172
    %p181 = scmp.eq.s32.totalorder %s30, 0
    %p182 = por %p180, %p181
    %p183 = scmp.ne.s32.totalorder %s171, %s172
    %p184 = scmp.eq.s32.totalorder %s31, 1
    %p185 = por %p183, %p184
    %p187 = scmp.ne.s32.totalorder %s172, %s186
    %p188 = scmp.eq.s32.totalorder %s31, 0
    %p189 = por %p187, %p188
    %s191 = sadd.s32 %s190, 1
    %p194 = scmp.eq.s32.totalorder %s25, 1
    %p195 = scmp.ne.s32.totalorder %s190, %s192
    %p196 = scmp.eq.s32.totalorder %s25, 0
    %p197 = por %p195, %p196
    %p198 = scmp.ne.s32.totalorder %s190, %s192
    %p199 = scmp.eq.s32.totalorder %s30, 1
    %p200 = por %p198, %p199
    %p201 = scmp.ne.s32.totalorder %s192, %s193
    %p202 = scmp.eq.s32.totalorder %s30, 0
    %p203 = por %p201, %p202
    %p204 = scmp.ne.s32.totalorder %s192, %s193
    %p205 = scmp.eq.s32.totalorder %s31, 1
    %p206 = por %p204, %p205
    %p208 = scmp.ne.s32.totalorder %s193, %s207
    %p209 = scmp.eq.s32.totalorder %s31, 0
    %p210 = por %p208, %p209
    %s212 = sadd.s32 %s211, 1
    %p215 = scmp.eq.s32.totalorder %s25, 1
    %p216 = scmp.ne.s32.totalorder %s211, %s213
    %p217 = scmp.eq.s32.totalorder %s25, 0
    %p218 = por %p216, %p217
    %p219 = scmp.ne.s32.totalorder %s211, %s213
    %p220 = scmp.eq.s32.totalorder %s30, 1
    %p221 = por %p219, %p220
    %p222 = scmp.ne.s32.totalorder %s213, %s214
    %p223 = scmp.eq.s32.totalorder %s30, 0
    %p224 = por %p222, %p223
    %p225 = scmp.ne.s32.totalorder %s213, %s214
    %p226 = scmp.eq.s32.totalorder %s31, 1
    %p227 = por %p225, %p226
    %p229 = scmp.ne.s32.totalorder %s214, %s228
    %p230 = scmp.eq.s32.totalorder %s31, 0
    %p231 = por %p229, %p230
    %s233 = sadd.s32 %s232, 1
    %p236 = scmp.eq.s32.totalorder %s25, 1
    %p237 = scmp.ne.s32.totalorder %s232, %s234
    %p238 = scmp.eq.s32.totalorder %s25, 0
    %p239 = por %p237, %p238
    %p240 = scmp.ne.s32.totalorder %s232, %s234
    %p241 = scmp.eq.s32.totalorder %s30, 1
    %p242 = por %p240, %p241
    %p243 = scmp.ne.s32.totalorder %s234, %s235
    %p244 = scmp.eq.s32.totalorder %s30, 0
    %p245 = por %p243, %p244
    %p246 = scmp.ne.s32.totalorder %s234, %s235
    %p247 = scmp.eq.s32.totalorder %s31, 1
    %p248 = por %p246, %p247
    %p250 = scmp.ne.s32.totalorder %s235, %s249
    %p251 = scmp.eq.s32.totalorder %s31, 0
    %p252 = por %p250, %p251
    %s254 = sadd.s32 %s253, 1
    %p257 = scmp.eq.s32.totalorder %s25, 1
    %p258 = scmp.ne.s32.totalorder %s253, %s255
    %p259 = scmp.eq.s32.totalorder %s25, 0
    %p260 = por %p258, %p259
    %p261 = scmp.ne.s32.totalorder %s253, %s255
    %p262 = scmp.eq.s32.totalorder %s30, 1
    %p263 = por %p261, %p262
    %p264 = scmp.ne.s32.totalorder %s255, %s256
    %p265 = scmp.eq.s32.totalorder %s30, 0
    %p266 = por %p264, %p265
    %p267 = scmp.ne.s32.totalorder %s255, %s256
    %p268 = scmp.eq.s32.totalorder %s31, 1
    %p269 = por %p267, %p268
    %p271 = scmp.ne.s32.totalorder %s256, %s270
    %p272 = scmp.eq.s32.totalorder %s31, 0
    %p273 = por %p271, %p272
    %s275 = sadd.s32 %s274, 1
    %p278 = scmp.eq.s32.totalorder %s25, 1
    %p279 = scmp.ne.s32.totalorder %s274, %s276
    %p280 = scmp.eq.s32.totalorder %s25, 0
    %p281 = por %p279, %p280
    %p282 = scmp.ne.s32.totalorder %s274, %s276
    %p283 = scmp.eq.s32.totalorder %s30, 1
    %p284 = por %p282, %p283
    %p285 = scmp.ne.s32.totalorder %s276, %s277
    %p286 = scmp.eq.s32.totalorder %s30, 0
    %p287 = por %p285, %p286
    %p288 = scmp.ne.s32.totalorder %s276, %s277
    %p289 = scmp.eq.s32.totalorder %s31, 1
    %p290 = por %p288, %p289
    %p292 = scmp.ne.s32.totalorder %s277, %s291
    %p293 = scmp.eq.s32.totalorder %s31, 0
    %p294 = por %p292, %p293
    %s296 = sadd.s32 %s295, 1
    %p299 = scmp.eq.s32.totalorder %s25, 1
    %p300 = scmp.ne.s32.totalorder %s295, %s297
    %p301 = scmp.eq.s32.totalorder %s25, 0
    %p302 = por %p300, %p301
    %p303 = scmp.ne.s32.totalorder %s295, %s297
    %p304 = scmp.eq.s32.totalorder %s30, 1
    %p305 = por %p303, %p304
    %p306 = scmp.ne.s32.totalorder %s297, %s298
    %p307 = scmp.eq.s32.totalorder %s30, 0
    %p308 = por %p306, %p307
    %p309 = scmp.ne.s32.totalorder %s297, %s298
    %p310 = scmp.eq.s32.totalorder %s31, 1
    %p311 = por %p309, %p310
    %p313 = scmp.ne.s32.totalorder %s298, %s312
    %p314 = scmp.eq.s32.totalorder %s31, 0
    %p315 = por %p313, %p314
    %s317 = sadd.s32 %s316, 1
    %p320 = scmp.eq.s32.totalorder %s25, 1
    %p321 = scmp.ne.s32.totalorder %s316, %s318
    %p322 = scmp.eq.s32.totalorder %s25, 0
    %p323 = por %p321, %p322
    %p324 = scmp.ne.s32.totalorder %s316, %s318
    %p325 = scmp.eq.s32.totalorder %s30, 1
    %p326 = por %p324, %p325
    %p327 = scmp.ne.s32.totalorder %s318, %s319
    %p328 = scmp.eq.s32.totalorder %s30, 0
    %p329 = por %p327, %p328
    %p330 = scmp.ne.s32.totalorder %s318, %s319
    %p331 = scmp.eq.s32.totalorder %s31, 1
    %p332 = por %p330, %p331
    %p334 = scmp.ne.s32.totalorder %s319, %s333
    %p335 = scmp.eq.s32.totalorder %s31, 0
    %p336 = por %p334, %p335
    %s338 = sadd.s32 %s337, 1
    %p341 = scmp.eq.s32.totalorder %s25, 1
    %p342 = scmp.ne.s32.totalorder %s337, %s339
    %p343 = scmp.eq.s32.totalorder %s25, 0
    %p344 = por %p342, %p343
    %p345 = scmp.ne.s32.totalorder %s337, %s339
    %p346 = scmp.eq.s32.totalorder %s30, 1
    %p347 = por %p345, %p346
    %p348 = scmp.ne.s32.totalorder %s339, %s340
    %p349 = scmp.eq.s32.totalorder %s30, 0
    %p350 = por %p348, %p349
    %p351 = scmp.ne.s32.totalorder %s339, %s340
    %p352 = scmp.eq.s32.totalorder %s31, 1
    %p353 = por %p351, %p352
    %p355 = scmp.ne.s32.totalorder %s340, %s354
    %p356 = scmp.eq.s32.totalorder %s31, 0
    %p357 = por %p355, %p356
    %s359 = sadd.s32 %s358, 1
    %p362 = scmp.eq.s32.totalorder %s25, 1
    %p363 = scmp.ne.s32.totalorder %s358, %s360
    %p364 = scmp.eq.s32.totalorder %s25, 0
    %p365 = por %p363, %p364
    %p366 = scmp.ne.s32.totalorder %s358, %s360
    %p367 = scmp.eq.s32.totalorder %s30, 1
    %p368 = por %p366, %p367
    %p369 = scmp.ne.s32.totalorder %s360, %s361
    %p370 = scmp.eq.s32.totalorder %s30, 0
    %p371 = por %p369, %p370
    %p372 = scmp.ne.s32.totalorder %s360, %s361
    %p373 = scmp.eq.s32.totalorder %s31, 1
    %p374 = por %p372, %p373
    %p376 = scmp.ne.s32.totalorder %s361, %s375
    %p377 = scmp.eq.s32.totalorder %s31, 0
    %p378 = por %p376, %p377
    %s380 = sadd.s32 %s379, 1
    %p383 = scmp.eq.s32.totalorder %s25, 1
    %p384 = scmp.ne.s32.totalorder %s379, %s381
    %p385 = scmp.eq.s32.totalorder %s25, 0
    %p386 = por %p384, %p385
    %p387 = scmp.ne.s32.totalorder %s379, %s381
    %p388 = scmp.eq.s32.totalorder %s30, 1
    %p389 = por %p387, %p388
    %p390 = scmp.ne.s32.totalorder %s381, %s382
    %p391 = scmp.eq.s32.totalorder %s30, 0
    %p392 = por %p390, %p391
    %p393 = scmp.ne.s32.totalorder %s381, %s382
    %p394 = scmp.eq.s32.totalorder %s31, 1
    %p395 = por %p393, %p394
    %p397 = scmp.ne.s32.totalorder %s382, %s396
    %p398 = scmp.eq.s32.totalorder %s31, 0
    %p399 = por %p397, %p398
    %s401 = sadd.s32 %s400, 1
    %p404 = scmp.eq.s32.totalorder %s25, 1
    %p405 = scmp.ne.s32.totalorder %s400, %s402
    %p406 = scmp.eq.s32.totalorder %s25, 0
    %p407 = por %p405, %p406
    %p408 = scmp.ne.s32.totalorder %s400, %s402
    %p409 = scmp.eq.s32.totalorder %s30, 1
    %p410 = por %p408, %p409
    %p411 = scmp.ne.s32.totalorder %s402, %s403
    %p412 = scmp.eq.s32.totalorder %s30, 0
    %p413 = por %p411, %p412
    %p414 = scmp.ne.s32.totalorder %s402, %s403
    %p415 = scmp.eq.s32.totalorder %s31, 1
    %p416 = por %p414, %p415
    %p418 = scmp.ne.s32.totalorder %s403, %s417
    %p419 = scmp.eq.s32.totalorder %s31, 0
    %p420 = por %p418, %p419
    %s422 = sadd.s32 %s421, 1
    %p425 = scmp.eq.s32.totalorder %s25, 1
    %p426 = scmp.ne.s32.totalorder %s421, %s423
    %p427 = scmp.eq.s32.totalorder %s25, 0
    %p428 = por %p426, %p427
    %p429 = scmp.ne.s32.totalorder %s421, %s423
    %p430 = scmp.eq.s32.totalorder %s30, 1
    %p431 = por %p429, %p430
    %p432 = scmp.ne.s32.totalorder %s423, %s424
    %p433 = scmp.eq.s32.totalorder %s30, 0
    %p434 = por %p432, %p433
    %p435 = scmp.ne.s32.totalorder %s423, %s424
    %p436 = scmp.eq.s32.totalorder %s31, 1
    %p437 = por %p435, %p436
    %p439 = scmp.ne.s32.totalorder %s424, %s438
    %p440 = scmp.eq.s32.totalorder %s31, 0
    %p441 = por %p439, %p440
    %s442 = ssub.s32 %s25, %s32
    %p443 = scmp.eq.s32.totalorder %s442, 0
    %s445 = sadd.s32 %s444, 1
    %s446 = scalar_select %p443, %s444, %s445
    %p449 = pneg %p443
    %p450 = scmp.eq.s32.totalorder %s25, 1
    %p451 = por %p449, %p450
    %p452 = scmp.ne.s32.totalorder %s444, %s447
    %p453 = scmp.eq.s32.totalorder %s25, 0
    %p454 = por %p452, %p453
    %p455 = scmp.ne.s32.totalorder %s444, %s447
    %p456 = scmp.eq.s32.totalorder %s30, 1
    %p457 = por %p455, %p456
    %p458 = scmp.ne.s32.totalorder %s447, %s448
    %p459 = scmp.eq.s32.totalorder %s30, 0
    %p460 = por %p458, %p459
    %p461 = scmp.ne.s32.totalorder %s447, %s448
    %p462 = scmp.eq.s32.totalorder %s31, 1
    %p463 = por %p461, %p462
    %p465 = scmp.ne.s32.totalorder %s448, %s464
    %p466 = scmp.eq.s32.totalorder %s31, 0
    %p467 = por %p465, %p466
    %p468 = scmp.le.s32.totalorder 1, %s25
    %p469 = scmp.lt.s32.totalorder %s25, 3
    %p470 = pnand %p468, %p469
    %p471 = pneg %p470
    // Predicated region
    $region9: #{residual_forward.1} parent=5 // pred_check
      _
    $region10: #{residual_forward.1} parent=5 // pred_check_branch
      %473 = sbr.rel (%p470) target = $region12
    $region11: #{residual_forward.1} parent=5 // pred_region
      %s474 = ssub.s32 %s25, 1
      // Predicated region
      $region13: #{residual_forward.1} parent=11 // pred_check
        %p475 = pneg %p98
      $region14: #{residual_forward.1} parent=11 // pred_check_branch
        %477 = sbr.rel (%p475) target = $region16
      $region15: #{residual_forward.1} parent=11 // pred_region
        _
      $region16: #{residual_forward.1} parent=11 // pred_fallthru
        _
      // Predicated region
      $region17: #{residual_forward.1} parent=11 // pred_check
        %p478 = pneg %p119
      $region18: #{residual_forward.1} parent=11 // pred_check_branch
        %480 = sbr.rel (%p478) target = $region20
      $region19: #{residual_forward.1} parent=11 // pred_region
        _
      $region20: #{residual_forward.1} parent=11 // pred_fallthru
        _
      // Predicated region
      $region21: #{residual_forward.1} parent=11 // pred_check
        %p481 = pneg %p140
      $region22: #{residual_forward.1} parent=11 // pred_check_branch
        %483 = sbr.rel (%p481) target = $region24
      $region23: #{residual_forward.1} parent=11 // pred_region
        _
      $region24: #{residual_forward.1} parent=11 // pred_fallthru
        _
      // Predicated region
      $region25: #{residual_forward.1} parent=11 // pred_check
        %p484 = pneg %p161
      $region26: #{residual_forward.1} parent=11 // pred_check_branch
        %486 = sbr.rel (%p484) target = $region28
      $region27: #{residual_forward.1} parent=11 // pred_region
        _
      $region28: #{residual_forward.1} parent=11 // pred_fallthru
        _
      // Predicated region
      $region29: #{residual_forward.1} parent=11 // pred_check
        %p487 = pneg %p182
      $region30: #{residual_forward.1} parent=11 // pred_check_branch
        %489 = sbr.rel (%p487) target = $region32
      $region31: #{residual_forward.1} parent=11 // pred_region
        _
      $region32: #{residual_forward.1} parent=11 // pred_fallthru
        _
      // Predicated region
      $region33: #{residual_forward.1} parent=11 // pred_check
        %p490 = pneg %p203
      $region34: #{residual_forward.1} parent=11 // pred_check_branch
        %492 = sbr.rel (%p490) target = $region36
      $region35: #{residual_forward.1} parent=11 // pred_region
        _
      $region36: #{residual_forward.1} parent=11 // pred_fallthru
        _
      // Predicated region
      $region37: #{residual_forward.1} parent=11 // pred_check
        %p493 = pneg %p224
      $region38: #{residual_forward.1} parent=11 // pred_check_branch
        %495 = sbr.rel (%p493) target = $region40
      $region39: #{residual_forward.1} parent=11 // pred_region
        _
      $region40: #{residual_forward.1} parent=11 // pred_fallthru
        _
      // Predicated region
      $region41: #{residual_forward.1} parent=11 // pred_check
        %p496 = pneg %p245
      $region42: #{residual_forward.1} parent=11 // pred_check_branch
        %498 = sbr.rel (%p496) target = $region44
      $region43: #{residual_forward.1} parent=11 // pred_region
        _
      $region44: #{residual_forward.1} parent=11 // pred_fallthru
        _
      // Predicated region
      $region45: #{residual_forward.1} parent=11 // pred_check
        %p499 = pneg %p266
      $region46: #{residual_forward.1} parent=11 // pred_check_branch
        %501 = sbr.rel (%p499) target = $region48
      $region47: #{residual_forward.1} parent=11 // pred_region
        _
      $region48: #{residual_forward.1} parent=11 // pred_fallthru
        _
      // Predicated region
      $region49: #{residual_forward.1} parent=11 // pred_check
        %p502 = pneg %p287
      $region50: #{residual_forward.1} parent=11 // pred_check_branch
        %504 = sbr.rel (%p502) target = $region52
      $region51: #{residual_forward.1} parent=11 // pred_region
        _
      $region52: #{residual_forward.1} parent=11 // pred_fallthru
        _
      // Predicated region
      $region53: #{residual_forward.1} parent=11 // pred_check
        %p505 = pneg %p308
      $region54: #{residual_forward.1} parent=11 // pred_check_branch
        %507 = sbr.rel (%p505) target = $region56
      $region55: #{residual_forward.1} parent=11 // pred_region
        _
      $region56: #{residual_forward.1} parent=11 // pred_fallthru
        _
      // Predicated region
      $region57: #{residual_forward.1} parent=11 // pred_check
        %p508 = pneg %p329
      $region58: #{residual_forward.1} parent=11 // pred_check_branch
        %510 = sbr.rel (%p508) target = $region60
      $region59: #{residual_forward.1} parent=11 // pred_region
        _
      $region60: #{residual_forward.1} parent=11 // pred_fallthru
        _
      // Predicated region
      $region61: #{residual_forward.1} parent=11 // pred_check
        %p511 = pneg %p350
      $region62: #{residual_forward.1} parent=11 // pred_check_branch
        %513 = sbr.rel (%p511) target = $region64
      $region63: #{residual_forward.1} parent=11 // pred_region
        _
      $region64: #{residual_forward.1} parent=11 // pred_fallthru
        _
      // Predicated region
      $region65: #{residual_forward.1} parent=11 // pred_check
        %p514 = pneg %p371
      $region66: #{residual_forward.1} parent=11 // pred_check_branch
        %516 = sbr.rel (%p514) target = $region68
      $region67: #{residual_forward.1} parent=11 // pred_region
        _
      $region68: #{residual_forward.1} parent=11 // pred_fallthru
        _
      // Predicated region
      $region69: #{residual_forward.1} parent=11 // pred_check
        %p517 = pneg %p392
      $region70: #{residual_forward.1} parent=11 // pred_check_branch
        %519 = sbr.rel (%p517) target = $region72
      $region71: #{residual_forward.1} parent=11 // pred_region
        _
      $region72: #{residual_forward.1} parent=11 // pred_fallthru
        _
      // Predicated region
      $region73: #{residual_forward.1} parent=11 // pred_check
        %p520 = pneg %p413
      $region74: #{residual_forward.1} parent=11 // pred_check_branch
        %522 = sbr.rel (%p520) target = $region76
      $region75: #{residual_forward.1} parent=11 // pred_region
        _
      $region76: #{residual_forward.1} parent=11 // pred_fallthru
        _
      // Predicated region
      $region77: #{residual_forward.1} parent=11 // pred_check
        %p523 = pneg %p434
      $region78: #{residual_forward.1} parent=11 // pred_check_branch
        %525 = sbr.rel (%p523) target = $region80
      $region79: #{residual_forward.1} parent=11 // pred_region
        _
      $region80: #{residual_forward.1} parent=11 // pred_fallthru
        _
    $region12: #{residual_forward.1} parent=5 // pred_fallthru
      _
    %p526 = scmp.lt.s32.totalorder %s25, 2
    // Predicated region
    $region81: #{residual_forward.1} parent=5 // pred_check
      %p527 = pneg %p526
    $region82: #{residual_forward.1} parent=5 // pred_check_branch
      %529 = sbr.rel (%p527) target = $region84
    $region83: #{residual_forward.1} parent=5 // pred_region
      // Predicated region
      $region85: #{residual_forward.1} parent=83 // pred_check
        %p530 = pneg %p45
      $region86: #{residual_forward.1} parent=83 // pred_check_branch
        %532 = sbr.rel (%p530) target = $region88
      $region87: #{residual_forward.1} parent=83 // pred_region
        %p533 = scmp.lt.s32.totalorder %s25, 1
        %s534 = scalar_select %p533, %s25, 1
        %s535 = smul.addr %s534, 7
        %s536 = smul.addr %s535, 8
        %s537 = scalar_lea.vmem %s0, %s536
      $region88: #{residual_forward.1} parent=83 // pred_fallthru
        _
      // Predicated region
      $region89: #{residual_forward.1} parent=83 // pred_check
        %p538 = pneg %p71
      $region90: #{residual_forward.1} parent=83 // pred_check_branch
        %540 = sbr.rel (%p538) target = $region92
      $region91: #{residual_forward.1} parent=83 // pred_region
        %p541 = scmp.lt.s32.totalorder %s25, 1
        %s542 = scalar_select %p541, %s25, 1
        %s543 = smul.addr %s542, 2
        %s544 = scalar_lea.vmem %s1, %s543
      $region92: #{residual_forward.1} parent=83 // pred_fallthru
        _
    $region84: #{residual_forward.1} parent=5 // pred_fallthru
      _
    %p545 = scmp.le.s32.totalorder 1, %s25
    %p546 = scmp.lt.s32.totalorder %s25, 3
    %p547 = pnand %p545, %p546
    %p548 = pneg %p547
    // Predicated region
    $region93: #{residual_forward.1} parent=5 // pred_check
      _
    $region94: #{residual_forward.1} parent=5 // pred_check_branch
      %550 = sbr.rel (%p547) target = $region96
    $region95: #{residual_forward.1} parent=5 // pred_region
      %s551 = ssub.s32 %s25, 1
      %p552 = scmp.lt.s32.totalorder %s30, 1
      %s553 = scalar_select %p552, %s30, 1
      %s554 = smul.addr %s553, 7
      %s555 = smul.addr %s554, 8
      %s556 = scalar_lea.vmem %s0, %s555
      %p557 = pneg %p51
      %p558 = pneg %p48
      %p559 = scmp.lt.s32.totalorder %s30, 1
      %s560 = scalar_select %p559, %s30, 1
      %s561 = smul.addr %s560, 2
      %s562 = scalar_lea.vmem %s1, %s561
      %p563 = pneg %p77
      %p564 = pneg %p74
      %p565 = pneg %p98
      %p566 = pneg %p95
      %p567 = pneg %p119
      %p568 = pneg %p116
      %p569 = pneg %p140
      %p570 = pneg %p137
      %p571 = pneg %p161
      %p572 = pneg %p158
      %p573 = pneg %p182
      %p574 = pneg %p179
      %p575 = pneg %p203
      %p576 = pneg %p200
      %p577 = pneg %p224
      %p578 = pneg %p221
      %p579 = pneg %p245
      %p580 = pneg %p242
      %p581 = pneg %p266
      %p582 = pneg %p263
      %p583 = pneg %p287
      %p584 = pneg %p284
      %p585 = pneg %p308
      %p586 = pneg %p305
      %p587 = pneg %p329
      %p588 = pneg %p326
      %p589 = pneg %p350
      %p590 = pneg %p347
      %p591 = pneg %p371
      %p592 = pneg %p368
      %p593 = pneg %p392
      %p594 = pneg %p389
      %p595 = pneg %p413
      %p596 = pneg %p410
      %p597 = pneg %p434
      %p598 = pneg %p431
      %p599 = pneg %p460
      %p600 = pneg %p457
      %p601 = scmp.lt.s32.totalorder %s30, 1
      %s602 = scalar_select %p601, %s30, 1
      %s603 = smul.addr %s602, 7
      %s604 = smul.addr %s603, 8
      %s605 = scalar_lea.vmem %s19, %s604
      %p606 = scmp.lt.s32.totalorder %s30, 1
      %s607 = scalar_select %p606, %s30, 1
      %s608 = smul.addr %s607, 7
      %s609 = smul.addr %s608, 8
      %s610 = scalar_lea.vmem %s0, %s609
      %p611 = scmp.lt.s32.totalorder %s30, 1
      %s612 = scalar_select %p611, %s30, 1
      %s613 = smul.addr %s612, 2
      %s614 = scalar_lea.vmem %s1, %s613
      %p615 = scmp.lt.s32.totalorder %s30, 1
      %s616 = scalar_select %p615, %s30, 1
      %s617 = smul.addr %s616, 7
      %s618 = smul.addr %s617, 8
      %s619 = scalar_lea.vmem %s19, %s618
      %v620 = vld [vmem:[%s610] sm:$0xff]
      %v621 = vld [vmem:[%s610 + $0x8] sm:$0xff]
      %v622 = vld [vmem:[%s610 + $0x10] sm:$0xff]
      %v623 = vld [vmem:[%s610 + $0x18] sm:$0xff]
      %v624 = vld [vmem:[%s610 + $0x20] sm:$0xff]
      %v625 = vld [vmem:[%s610 + $0x28] sm:$0xff]
      %v626 = vld [vmem:[%s610 + $0x30] sm:$0x1]
      %v627 = vld [vmem:[%s614] sm:$0x3]
      %v628 = vld [vmem:[%s3] sm:$0xff]
      %v629 = vld [vmem:[%s3 + $0x8] sm:$0xff]
      %v630 = vld [vmem:[%s3 + $0x10] sm:$0xff]
      %v631 = vld [vmem:[%s3 + $0x18] sm:$0xff]
      %v632 = vld [vmem:[%s3 + $0x20] sm:$0xff]
      %v633 = vld [vmem:[%s3 + $0x28] sm:$0xff]
      %v634 = vld [vmem:[%s3 + $0x30] sm:$0xff]
      %v635 = vld [vmem:[%s3 + $0x38] sm:$0xff]
      %v636 = vld [vmem:[%s3 + $0x40] sm:$0xff]
      %v637 = vld [vmem:[%s3 + $0x48] sm:$0xff]
      %v638 = vld [vmem:[%s3 + $0x50] sm:$0xff]
      %v639 = vld [vmem:[%s3 + $0x58] sm:$0xff]
      %v640 = vld [vmem:[%s3 + $0x60] sm:$0xff]
      %v641 = vld [vmem:[%s3 + $0x68] sm:$0xff]
      %v642 = vld [vmem:[%s3 + $0x70] sm:$0xff]
      %v643 = vld [vmem:[%s3 + $0x78] sm:$0xff]
      %v644 = vld [vmem:[%s4] sm:$0x1]
      %v646 = vlaneseq
      %v647 = vshrl.u32 %v646, 7
      %v648 = vsub.s32 0, %v647
      %v649 = vrot.slane %v644, %v648
      %651 = vmatprep.subr.mxu0 0.0
      %652 = vmatpush1.msra.mxu0 %v628
      %653 = vmatprep.subr.mxu0 0.0
      %654 = vmatpush1.msra.mxu0 %v629
      %655 = vmatprep.subr.mxu0 0.0
      %656 = vmatpush1.msra.mxu0 %v630
      %657 = vmatprep.subr.mxu0 0.0
      %658 = vmatpush1.msra.mxu0 %v631
      %659 = vmatprep.subr.mxu0 0.0
      %660 = vmatpush1.msra.mxu0 %v632
      %661 = vmatprep.subr.mxu0 0.0
      %662 = vmatpush1.msra.mxu0 %v633
      %663 = vmatprep.subr.mxu0 0.0
      %664 = vmatpush1.msra.mxu0 %v634
      %665 = vmatprep.subr.mxu0 0.0
      %666 = vmatpush1.msra.mxu0 %v635
      %667 = vmatprep.subr.mxu0 0.0
      %668 = vmatpush1.msra.mxu0 %v636
      %669 = vmatprep.subr.mxu0 0.0
      %670 = vmatpush1.msra.mxu0 %v637
      %671 = vmatprep.subr.mxu0 0.0
      %672 = vmatpush1.msra.mxu0 %v638
      %673 = vmatprep.subr.mxu0 0.0
      %674 = vmatpush1.msra.mxu0 %v639
      %675 = vmatprep.subr.mxu0 0.0
      %676 = vmatpush1.msra.mxu0 %v640
      %677 = vmatprep.subr.mxu0 0.0
      %678 = vmatpush1.msra.mxu0 %v641
      %679 = vmatprep.subr.mxu0 0.0
      %680 = vmatpush1.msra.mxu0 %v642
      %681 = vmatprep.subr.mxu0 0.0
      %682 = vmatpush1.msra.mxu0 %v643
      %683 = vmatprep.subr.mxu0 0.0
      %684 = vmatpush1.msra.mxu0 0.0
      %685 = vmatprep.subr.mxu0 0.0
      %686 = vmatpush1.msra.mxu0 0.0
      %687 = vmatprep.subr.mxu0 0.0
      %688 = vmatpush1.msra.mxu0 0.0
      %689 = vmatprep.subr.mxu0 0.0
      %690 = vmatpush1.msra.mxu0 0.0
      %691 = vmatprep.subr.mxu0 0.0
      %692 = vmatpush1.msra.mxu0 0.0
      %693 = vmatprep.subr.mxu0 0.0
      %694 = vmatpush1.msra.mxu0 0.0
      %695 = vmatprep.subr.mxu0 0.0
      %696 = vmatpush1.msra.mxu0 0.0
      %697 = vmatprep.subr.mxu0 0.0
      %698 = vmatpush1.msra.mxu0 0.0
      %699 = vmatprep.subr.mxu0 0.0
      %700 = vmatpush1.msra.mxu0 0.0
      %701 = vmatprep.subr.mxu0 0.0
      %702 = vmatpush1.msra.mxu0 0.0
      %703 = vmatprep.subr.mxu0 0.0
      %704 = vmatpush1.msra.mxu0 0.0
      %705 = vmatprep.subr.mxu0 0.0
      %706 = vmatpush1.msra.mxu0 0.0
      %707 = vmatprep.subr.mxu0 0.0
      %708 = vmatpush1.msra.mxu0 0.0
      %709 = vmatprep.subr.mxu0 0.0
      %710 = vmatpush1.msra.mxu0 0.0
      %711 = vmatprep.subr.mxu0 0.0
      %712 = vmatpush1.msra.mxu0 0.0
      %713 = vmatprep.subr.mxu0 0.0
      %714 = vmatpush1.msra.mxu0 0.0
      %715 = vmatprep.mubr.f32.mxu0 0.0
      %716 = vmatmul.mubr.f32.gmra.mrb[0].mxu0 %v620
      %v717 = vpop.f32.mrb[0].mxu0
      %v718 = vadd.f32 %v649, %v717
      %v719 = vpop.f32.mrb[0].mxu0
      %720 = vmatprep.mubr.f32.mxu0 0.0
      %721 = vmatmul.mubr.f32.gmra.mrb[0].mxu0 %v621
      %v722 = vpop.f32.mrb[0].mxu0
      %v723 = vadd.f32 %v649, %v722
      %v724 = vpop.f32.mrb[0].mxu0
      %725 = vmatprep.mubr.f32.mxu0 0.0
      %726 = vmatmul.mubr.f32.gmra.mrb[0].mxu0 %v622
      %v727 = vpop.f32.mrb[0].mxu0
      %v728 = vadd.f32 %v649, %v727
      %v729 = vpop.f32.mrb[0].mxu0
      %730 = vmatprep.mubr.f32.mxu0 0.0
      %731 = vmatmul.mubr.f32.gmra.mrb[0].mxu0 %v623
      %v732 = vpop.f32.mrb[0].mxu0
      %v733 = vadd.f32 %v649, %v732
      %v734 = vpop.f32.mrb[0].mxu0
      %735 = vmatprep.mubr.f32.mxu0 0.0
      %736 = vmatmul.mubr.f32.gmra.mrb[0].mxu0 %v624
      %v737 = vpop.f32.mrb[0].mxu0
      %v738 = vadd.f32 %v649, %v737
      %v739 = vpop.f32.mrb[0].mxu0
      %740 = vmatprep.mubr.f32.mxu0 0.0
      %741 = vmatmul.mubr.f32.gmra.mrb[0].mxu0 %v625
      %v742 = vpop.f32.mrb[0].mxu0
      %v743 = vadd.f32 %v649, %v742
      %v744 = vpop.f32.mrb[0].mxu0
      %745 = vmatprep.mubr.f32.mxu0 0.0
      %746 = vmatmul.mubr.f32.gmra.mrb[0].mxu0 %v626
      %v747 = vpop.f32.mrb[0].mxu0
      %v748 = vadd.f32 %v649, %v747
      %v749 = vpop.f32.mrb[0].mxu0
      %750 = vdwg.mxu0
      %v751 = vld [vmem:[%s5] sm:$0xff]
      %v752 = vld [vmem:[%s5 + $0x8] sm:$0xff]
      %v753 = vld [vmem:[%s5 + $0x10] sm:$0xff]
      %v754 = vld [vmem:[%s5 + $0x18] sm:$0xff]
      %v755 = vld [vmem:[%s6] sm:$0x1]
      %v756 = vld [vmem:[%s2] sm:$0xff]
      %v757 = vld [vmem:[%s2 + $0x8] sm:$0xff]
      %v758 = vld [vmem:[%s2 + $0x10] sm:$0xff]
      %v759 = vld [vmem:[%s2 + $0x18] sm:$0xff]
      %v760 = vld [vmem:[%s2 + $0x20] sm:$0xff]
      %v761 = vld [vmem:[%s2 + $0x28] sm:$0xff]
      %v762 = vld [vmem:[%s2 + $0x30] sm:$0x1]
      %v764 = vlaneseq
      %v765 = vshrl.u32 %v764, 7
      %v766 = vsub.s32 0, %v765
      %v767 = vrot.slane %v755, %v766
      %vm769 = vcmask 261120
      %v771 = vsel %vm769, %v620, 0
      %v774 = vsel %vm769, %v621, 0
      %v777 = vsel %vm769, %v622, 0
      %v780 = vsel %vm769, %v623, 0
      %v783 = vsel %vm769, %v624, 0
      %v786 = vsel %vm769, %v625, 0
      %v789 = vsel %vm769, %v626, 0
      %791 = vmatprep.subr.mxu0 0.0
      %792 = vmatpush1.msra.mxu0 %v751
      %793 = vmatprep.subr.mxu0 0.0
      %794 = vmatpush1.msra.mxu0 %v752
      %795 = vmatprep.subr.mxu0 0.0
      %796 = vmatpush1.msra.mxu0 %v753
      %797 = vmatprep.subr.mxu0 0.0
      %798 = vmatpush1.msra.mxu0 %v754
      %799 = vmatprep.subr.mxu0 0.0
      %800 = vmatpush1.msra.mxu0 0.0
      %801 = vmatprep.subr.mxu0 0.0
      %802 = vmatpush1.msra.mxu0 0.0
      %803 = vmatprep.subr.mxu0 0.0
      %804 = vmatpush1.msra.mxu0 0.0
      %805 = vmatprep.subr.mxu0 0.0
      %806 = vmatpush1.msra.mxu0 0.0
      %807 = vmatprep.subr.mxu0 0.0
      %808 = vmatpush1.msra.mxu0 0.0
      %809 = vmatprep.subr.mxu0 0.0
      %810 = vmatpush1.msra.mxu0 0.0
      %811 = vmatprep.subr.mxu0 0.0
      %812 = vmatpush1.msra.mxu0 0.0
      %813 = vmatprep.subr.mxu0 0.0
      %814 = vmatpush1.msra.mxu0 0.0
      %815 = vmatprep.subr.mxu0 0.0
      %816 = vmatpush1.msra.mxu0 0.0
      %817 = vmatprep.subr.mxu0 0.0
      %818 = vmatpush1.msra.mxu0 0.0
      %819 = vmatprep.subr.mxu0 0.0
      %820 = vmatpush1.msra.mxu0 0.0
      %821 = vmatprep.subr.mxu0 0.0
      %822 = vmatpush1.msra.mxu0 0.0
      %823 = vmatprep.subr.mxu0 0.0
      %824 = vmatpush1.msra.mxu0 0.0
      %825 = vmatprep.subr.mxu0 0.0
      %826 = vmatpush1.msra.mxu0 0.0
      %827 = vmatprep.subr.mxu0 0.0
      %828 = vmatpush1.msra.mxu0 0.0
      %829 = vmatprep.subr.mxu0 0.0
      %830 = vmatpush1.msra.mxu0 0.0
      %831 = vmatprep.subr.mxu0 0.0
      %832 = vmatpush1.msra.mxu0 0.0
      %833 = vmatprep.subr.mxu0 0.0
      %834 = vmatpush1.msra.mxu0 0.0
      %835 = vmatprep.subr.mxu0 0.0
      %836 = vmatpush1.msra.mxu0 0.0
      %837 = vmatprep.subr.mxu0 0.0
      %838 = vmatpush1.msra.mxu0 0.0
      %839 = vmatprep.subr.mxu0 0.0
      %840 = vmatpush1.msra.mxu0 0.0
      %841 = vmatprep.subr.mxu0 0.0
      %842 = vmatpush1.msra.mxu0 0.0
      %843 = vmatprep.subr.mxu0 0.0
      %844 = vmatpush1.msra.mxu0 0.0
      %845 = vmatprep.subr.mxu0 0.0
      %846 = vmatpush1.msra.mxu0 0.0
      %847 = vmatprep.subr.mxu0 0.0
      %848 = vmatpush1.msra.mxu0 0.0
      %849 = vmatprep.subr.mxu0 0.0
      %850 = vmatpush1.msra.mxu0 0.0
      %851 = vmatprep.subr.mxu0 0.0
      %852 = vmatpush1.msra.mxu0 0.0
      %853 = vmatprep.subr.mxu0 0.0
      %854 = vmatpush1.msra.mxu0 0.0
      %855 = vmatprep.mubr.f32.mxu0 0.0
      %856 = vmatmul.mubr.f32.gmra.mrb[0].mxu0 %v771
      %v857 = vpop.f32.mrb[0].mxu0
      %v858 = vadd.f32 %v767, %v857
      %v859 = vpop.f32.mrb[0].mxu0
      %860 = vmatprep.mubr.f32.mxu0 0.0
      %861 = vmatmul.mubr.f32.gmra.mrb[0].mxu0 %v774
      %v862 = vpop.f32.mrb[0].mxu0
      %v863 = vadd.f32 %v767, %v862
      %v864 = vpop.f32.mrb[0].mxu0
      %865 = vmatprep.mubr.f32.mxu0 0.0
      %866 = vmatmul.mubr.f32.gmra.mrb[0].mxu0 %v777
      %v867 = vpop.f32.mrb[0].mxu0
      %v868 = vadd.f32 %v767, %v867
      %v869 = vpop.f32.mrb[0].mxu0
      %870 = vmatprep.mubr.f32.mxu0 0.0
      %871 = vmatmul.mubr.f32.gmra.mrb[0].mxu0 %v780
      %v872 = vpop.f32.mrb[0].mxu0
      %v873 = vadd.f32 %v767, %v872
      %v874 = vpop.f32.mrb[0].mxu0
      %875 = vmatprep.mubr.f32.mxu0 0.0
      %876 = vmatmul.mubr.f32.gmra.mrb[0].mxu0 %v783
      %v877 = vpop.f32.mrb[0].mxu0
      %v878 = vadd.f32 %v767, %v877
      %v879 = vpop.f32.mrb[0].mxu0
      %880 = vmatprep.mubr.f32.mxu0 0.0
      %881 = vmatmul.mubr.f32.gmra.mrb[0].mxu0 %v786
      %v882 = vpop.f32.mrb[0].mxu0
      %v883 = vadd.f32 %v767, %v882
      %v884 = vpop.f32.mrb[0].mxu0
      %885 = vmatprep.mubr.f32.mxu0 0.0
      %886 = vmatmul.mubr.f32.gmra.mrb[0].mxu0 %v789
      %v887 = vpop.f32.mrb[0].mxu0
      %v888 = vadd.f32 %v767, %v887
      %v889 = vpop.f32.mrb[0].mxu0
      %890 = vdwg.mxu0
      %vm891 = vcmask 130048
      %v893 = vsel %vm891, %v718, 0
      %v896 = vsel %vm891, %v723, 0
      %v899 = vsel %vm891, %v728, 0
      %v902 = vsel %vm891, %v733, 0
      %v905 = vsel %vm891, %v738, 0
      %v908 = vsel %vm891, %v743, 0
      %v911 = vsel %vm891, %v748, 0
      %v914 = vsel %vm891, %v858, 0
      %v917 = vsel %vm891, %v863, 0
      %v920 = vsel %vm891, %v868, 0
      %v923 = vsel %vm891, %v873, 0
      %v926 = vsel %vm891, %v878, 0
      %v929 = vsel %vm891, %v883, 0
      %v932 = vsel %vm891, %v888, 0
      %934 = vmatprep.subr.mxu0 0.0
      %935 = vmatpush1.xpose.msra.mxu0 %v914
      %936 = vmatprep.subr.mxu0 0.0
      %937 = vmatpush1.xpose.msra.mxu0 %v917
      %938 = vmatprep.subr.mxu0 0.0
      %939 = vmatpush1.xpose.msra.mxu0 %v920
      %940 = vmatprep.subr.mxu0 0.0
      %941 = vmatpush1.xpose.msra.mxu0 %v923
      %942 = vmatprep.subr.mxu0 0.0
      %943 = vmatpush1.xpose.msra.mxu0 %v926
      %944 = vmatprep.subr.mxu0 0.0
      %945 = vmatpush1.xpose.msra.mxu0 %v929
      %946 = vmatprep.subr.mxu0 0.0
      %947 = vmatpush1.xpose.msra.mxu0 %v932
      %948 = vmatprep.subr.mxu0 0.0
      %949 = vmatpush1.xpose.msra.mxu0 0.0
      %950 = vmatprep.subr.mxu0 0.0
      %951 = vmatpush1.xpose.msra.mxu0 0.0
      %952 = vmatprep.subr.mxu0 0.0
      %953 = vmatpush1.xpose.msra.mxu0 0.0
      %954 = vmatprep.subr.mxu0 0.0
      %955 = vmatpush1.xpose.msra.mxu0 0.0
      %956 = vmatprep.subr.mxu0 0.0
      %957 = vmatpush1.xpose.msra.mxu0 0.0
      %958 = vmatprep.subr.mxu0 0.0
      %959 = vmatpush1.xpose.msra.mxu0 0.0
      %960 = vmatprep.subr.mxu0 0.0
      %961 = vmatpush1.xpose.msra.mxu0 0.0
      %962 = vmatprep.subr.mxu0 0.0
      %963 = vmatpush1.xpose.msra.mxu0 0.0
      %964 = vmatprep.subr.mxu0 0.0
      %965 = vmatpush1.xpose.msra.mxu0 0.0
      %966 = vmatprep.subr.mxu0 0.0
      %967 = vmatpush1.xpose.msra.mxu0 0.0
      %968 = vmatprep.subr.mxu0 0.0
      %969 = vmatpush1.xpose.msra.mxu0 0.0
      %970 = vmatprep.subr.mxu0 0.0
      %971 = vmatpush1.xpose.msra.mxu0 0.0
      %972 = vmatprep.subr.mxu0 0.0
      %973 = vmatpush1.xpose.msra.mxu0 0.0
      %974 = vmatprep.subr.mxu0 0.0
      %975 = vmatpush1.xpose.msra.mxu0 0.0
      %976 = vmatprep.subr.mxu0 0.0
      %977 = vmatpush1.xpose.msra.mxu0 0.0
      %978 = vmatprep.subr.mxu0 0.0
      %979 = vmatpush1.xpose.msra.mxu0 0.0
      %980 = vmatprep.subr.mxu0 0.0
      %981 = vmatpush1.xpose.msra.mxu0 0.0
      %982 = vmatprep.subr.mxu0 0.0
      %983 = vmatpush1.xpose.msra.mxu0 0.0
      %984 = vmatprep.subr.mxu0 0.0
      %985 = vmatpush1.xpose.msra.mxu0 0.0
      %986 = vmatprep.subr.mxu0 0.0
      %987 = vmatpush1.xpose.msra.mxu0 0.0
      %988 = vmatprep.subr.mxu0 0.0
      %989 = vmatpush1.xpose.msra.mxu0 0.0
      %990 = vmatprep.subr.mxu0 0.0
      %991 = vmatpush1.xpose.msra.mxu0 0.0
      %992 = vmatprep.subr.mxu0 0.0
      %993 = vmatpush1.xpose.msra.mxu0 0.0
      %994 = vmatprep.subr.mxu0 0.0
      %995 = vmatpush1.xpose.msra.mxu0 0.0
      %996 = vmatprep.subr.mxu0 0.0
      %997 = vmatpush1.xpose.msra.mxu0 0.0
      %998 = vmatprep.mubr.f32.mxu0 0.0
      %999 = vmatmul.mubr.f32.gmra.mrb[0].mxu0 %v893
      %v1000 = vpop.f32.mrb[0].mxu0
      %v1001 = vadd.f32 0.0, %v1000
      %v1002 = vpop.f32.mrb[0].mxu0
      %1003 = vmatprep.mubr.f32.mxu0 0.0
      %1004 = vmatmul.mubr.f32.gmra.mrb[0].mxu0 %v896
      %v1005 = vpop.f32.mrb[0].mxu0
      %v1006 = vadd.f32 0.0, %v1005
      %v1007 = vpop.f32.mrb[0].mxu0
      %1008 = vmatprep.mubr.f32.mxu0 0.0
      %1009 = vmatmul.mubr.f32.gmra.mrb[0].mxu0 %v899
      %v1010 = vpop.f32.mrb[0].mxu0
      %v1011 = vadd.f32 0.0, %v1010
      %v1012 = vpop.f32.mrb[0].mxu0
      %1013 = vmatprep.mubr.f32.mxu0 0.0
      %1014 = vmatmul.mubr.f32.gmra.mrb[0].mxu0 %v902
      %v1015 = vpop.f32.mrb[0].mxu0
      %v1016 = vadd.f32 0.0, %v1015
      %v1017 = vpop.f32.mrb[0].mxu0
      %1018 = vmatprep.mubr.f32.mxu0 0.0
      %1019 = vmatmul.mubr.f32.gmra.mrb[0].mxu0 %v905
      %v1020 = vpop.f32.mrb[0].mxu0
      %v1021 = vadd.f32 0.0, %v1020
      %v1022 = vpop.f32.mrb[0].mxu0
      %1023 = vmatprep.mubr.f32.mxu0 0.0
      %1024 = vmatmul.mubr.f32.gmra.mrb[0].mxu0 %v908
      %v1025 = vpop.f32.mrb[0].mxu0
      %v1026 = vadd.f32 0.0, %v1025
      %v1027 = vpop.f32.mrb[0].mxu0
      %1028 = vmatprep.mubr.f32.mxu0 0.0
      %1029 = vmatmul.mubr.f32.gmra.mrb[0].mxu0 %v911
      %v1030 = vpop.f32.mrb[0].mxu0
      %v1031 = vadd.f32 0.0, %v1030
      %v1032 = vpop.f32.mrb[0].mxu0
      %1033 = vdwg.mxu0
      %v1034 = vmul.f32 %v1001, 0.25
      %v1035 = vmul.f32 %v1006, 0.25
      %v1036 = vmul.f32 %v1011, 0.25
      %v1037 = vmul.f32 %v1016, 0.25
      %v1038 = vmul.f32 %v1021, 0.25
      %v1039 = vmul.f32 %v1026, 0.25
      %v1040 = vmul.f32 %v1031, 0.25
      %v1041 = vadd.f32 %v1034, %v756
      %v1042 = vadd.f32 %v1035, %v757
      %v1043 = vadd.f32 %v1036, %v758
      %v1044 = vadd.f32 %v1037, %v759
      %v1045 = vadd.f32 %v1038, %v760
      %v1046 = vadd.f32 %v1039, %v761
      %v1047 = vadd.f32 %v1040, %v762
      %vm1048 = vcmask 400384
      %v1049 = vsel %vm1048, %v1041, -inf
      %1050 = vmax.xlane.f32.xlu0 %v1049
      %v1051 = vpop.xlane.xlu0 %1050
      %v1052 = vsel %vm1048, %v1042, -inf
      %1053 = vmax.xlane.f32.xlu0 %v1052
      %v1054 = vpop.xlane.xlu0 %1053
      %v1055 = vsel %vm1048, %v1043, -inf
      %1056 = vmax.xlane.f32.xlu0 %v1055
      %v1057 = vpop.xlane.xlu0 %1056
      %v1058 = vsel %vm1048, %v1044, -inf
      %1059 = vmax.xlane.f32.xlu0 %v1058
      %v1060 = vpop.xlane.xlu0 %1059
      %v1061 = vsel %vm1048, %v1045, -inf
      %1062 = vmax.xlane.f32.xlu0 %v1061
      %v1063 = vpop.xlane.xlu0 %1062
      %v1064 = vsel %vm1048, %v1046, -inf
      %1065 = vmax.xlane.f32.xlu0 %v1064
      %v1066 = vpop.xlane.xlu0 %1065
      %vm1067 = vcmask 393216
      %v1068 = vsel %vm1067, %v1047, -inf
      %1069 = vmax.xlane.f32.xlu0 %v1068
      %v1070 = vpop.xlane.xlu0 %1069
      %v1071 = vsub.f32 %v1041, %v1051
      %v1072 = vsub.f32 %v1042, %v1054
      %v1073 = vsub.f32 %v1043, %v1057
      %v1074 = vsub.f32 %v1044, %v1060
      %v1075 = vsub.f32 %v1045, %v1063
      %v1076 = vsub.f32 %v1046, %v1066
      %v1077 = vsub.f32 %v1047, %v1070
      %v1078 = vmul.f32 %v1071, 1.442695
      %v1079 = vpow.pop %v1078
      %v1080 = vmul.f32 %v1072, 1.442695
      %v1081 = vpow.pop %v1080
      %v1082 = vmul.f32 %v1073, 1.442695
      %v1083 = vpow.pop %v1082
      %v1084 = vmul.f32 %v1074, 1.442695
      %v1085 = vpow.pop %v1084
      %v1086 = vmul.f32 %v1075, 1.442695
      %v1087 = vpow.pop %v1086
      %v1088 = vmul.f32 %v1076, 1.442695
      %v1089 = vpow.pop %v1088
      %v1090 = vmul.f32 %v1077, 1.442695
      %v1091 = vpow.pop %v1090
      %v1092 = vsel %vm1048, %v1079, 0.0
      %1093 = vadd.xlane.f32.xlu0 %v1092
      %v1094 = vpop.xlane.xlu0 %1093
      %v1095 = vsel %vm1048, %v1081, 0.0
      %1096 = vadd.xlane.f32.xlu0 %v1095
      %v1097 = vpop.xlane.xlu0 %1096
      %v1098 = vsel %vm1048, %v1083, 0.0
      %1099 = vadd.xlane.f32.xlu0 %v1098
      %v1100 = vpop.xlane.xlu0 %1099
      %v1101 = vsel %vm1048, %v1085, 0.0
      %1102 = vadd.xlane.f32.xlu0 %v1101
      %v1103 = vpop.xlane.xlu0 %1102
      %v1104 = vsel %vm1048, %v1087, 0.0
      %1105 = vadd.xlane.f32.xlu0 %v1104
      %v1106 = vpop.xlane.xlu0 %1105
      %v1107 = vsel %vm1048, %v1089, 0.0
      %1108 = vadd.xlane.f32.xlu0 %v1107
      %v1109 = vpop.xlane.xlu0 %1108
      %v1110 = vsel %vm1067, %v1091, 0.0
      %1111 = vadd.xlane.f32.xlu0 %v1110
      %v1112 = vpop.xlane.xlu0 %1111
      %v1113 = vrcp.pop %v1094
      %v1114 = vrcp.pop %v1097
      %v1115 = vrcp.pop %v1100
      %v1116 = vrcp.pop %v1103
      %v1117 = vrcp.pop %v1106
      %v1118 = vrcp.pop %v1109
      %v1119 = vrcp.pop %v1112
      %v1120 = vmul.f32 %v1079, %v1113
      %v1121 = vmul.f32 %v1081, %v1114
      %v1122 = vmul.f32 %v1083, %v1115
      %v1123 = vmul.f32 %v1085, %v1116
      %v1124 = vmul.f32 %v1087, %v1117
      %v1125 = vmul.f32 %v1089, %v1118
      %v1126 = vmul.f32 %v1091, %v1119
      %v1127 = vlaneseq
      %v1128 = vshrl.u32 %v1127, 7
      %v1129 = vsub.s32 0, %v1128
      %v1130 = vrot.slane %v627, %v1129
      %1131 = vrot.lane.b32.xlu0 %v858, 112
      %v1132 = vpop.permute.xlu0 %1131
      %1133 = vrot.lane.b32.xlu0 %v863, 112
      %v1134 = vpop.permute.xlu0 %1133
      %1135 = vrot.lane.b32.xlu0 %v868, 112
      %v1136 = vpop.permute.xlu0 %1135
      %1137 = vrot.lane.b32.xlu0 %v873, 112
      %v1138 = vpop.permute.xlu0 %1137
      %1139 = vrot.lane.b32.xlu0 %v878, 112
      %v1140 = vpop.permute.xlu0 %1139
      %1141 = vrot.lane.b32.xlu0 %v883, 112
      %v1142 = vpop.permute.xlu0 %1141
      %1143 = vrot.lane.b32.xlu0 %v888, 112
      %v1144 = vpop.permute.xlu0 %1143
      %v1152 = vmul.f32 %v1130, %v1132
      %v1153 = vmul.f32 %v1130, %v1134
      %v1154 = vmul.f32 %v1130, %v1136
      %v1155 = vmul.f32 %v1130, %v1138
      %v1156 = vmul.f32 %v1130, %v1140
      %v1157 = vmul.f32 %v1130, %v1142
      %v1158 = vmul.f32 %v1130, %v1144
      %v1160 = vsel %vm1048, %v1120, 0
      %v1163 = vsel %vm1048, %v1121, 0
      %v1166 = vsel %vm1048, %v1122, 0
      %v1169 = vsel %vm1048, %v1123, 0
      %v1172 = vsel %vm1048, %v1124, 0
      %v1175 = vsel %vm1048, %v1125, 0
      %v1178 = vsel %vm1048, %v1126, 0
      %vm1180 = vcmask 1040384
      %v1182 = vsel %vm1180, %v1158, 0
      %1184 = vmatprep.subr.mxu0 0.0
      %1185 = vmatpush1.msra.mxu0 %v1152
      %1186 = vmatprep.subr.mxu0 0.0
      %1187 = vmatpush1.msra.mxu0 %v1153
      %1188 = vmatprep.subr.mxu0 0.0
      %1189 = vmatpush1.msra.mxu0 %v1154
      %1190 = vmatprep.subr.mxu0 0.0
      %1191 = vmatpush1.msra.mxu0 %v1155
      %1192 = vmatprep.subr.mxu0 0.0
      %1193 = vmatpush1.msra.mxu0 %v1156
      %1194 = vmatprep.subr.mxu0 0.0
      %1195 = vmatpush1.msra.mxu0 %v1157
      %1196 = vmatprep.subr.mxu0 0.0
      %1197 = vmatpush1.msra.mxu0 %v1182
      %1198 = vmatprep.subr.mxu0 0.0
      %1199 = vmatpush1.msra.mxu0 0.0
      %1200 = vmatprep.subr.mxu0 0.0
      %1201 = vmatpush1.msra.mxu0 0.0
      %1202 = vmatprep.subr.mxu0 0.0
      %1203 = vmatpush1.msra.mxu0 0.0
      %1204 = vmatprep.subr.mxu0 0.0
      %1205 = vmatpush1.msra.mxu0 0.0
      %1206 = vmatprep.subr.mxu0 0.0
      %1207 = vmatpush1.msra.mxu0 0.0
      %1208 = vmatprep.subr.mxu0 0.0
      %1209 = vmatpush1.msra.mxu0 0.0
      %1210 = vmatprep.subr.mxu0 0.0
      %1211 = vmatpush1.msra.mxu0 0.0
      %1212 = vmatprep.subr.mxu0 0.0
      %1213 = vmatpush1.msra.mxu0 0.0
      %1214 = vmatprep.subr.mxu0 0.0
      %1215 = vmatpush1.msra.mxu0 0.0
      %1216 = vmatprep.subr.mxu0 0.0
      %1217 = vmatpush1.msra.mxu0 0.0
      %1218 = vmatprep.subr.mxu0 0.0
      %1219 = vmatpush1.msra.mxu0 0.0
      %1220 = vmatprep.subr.mxu0 0.0
      %1221 = vmatpush1.msra.mxu0 0.0
      %1222 = vmatprep.subr.mxu0 0.0
      %1223 = vmatpush1.msra.mxu0 0.0
      %1224 = vmatprep.subr.mxu0 0.0
      %1225 = vmatpush1.msra.mxu0 0.0
      %1226 = vmatprep.subr.mxu0 0.0
      %1227 = vmatpush1.msra.mxu0 0.0
      %1228 = vmatprep.subr.mxu0 0.0
      %1229 = vmatpush1.msra.mxu0 0.0
      %1230 = vmatprep.subr.mxu0 0.0
      %1231 = vmatpush1.msra.mxu0 0.0
      %1232 = vmatprep.subr.mxu0 0.0
      %1233 = vmatpush1.msra.mxu0 0.0
      %1234 = vmatprep.subr.mxu0 0.0
      %1235 = vmatpush1.msra.mxu0 0.0
      %1236 = vmatprep.subr.mxu0 0.0
      %1237 = vmatpush1.msra.mxu0 0.0
      %1238 = vmatprep.subr.mxu0 0.0
      %1239 = vmatpush1.msra.mxu0 0.0
      %1240 = vmatprep.subr.mxu0 0.0
      %1241 = vmatpush1.msra.mxu0 0.0
      %1242 = vmatprep.subr.mxu0 0.0
      %1243 = vmatpush1.msra.mxu0 0.0
      %1244 = vmatprep.subr.mxu0 0.0
      %1245 = vmatpush1.msra.mxu0 0.0
      %1246 = vmatprep.subr.mxu0 0.0
      %1247 = vmatpush1.msra.mxu0 0.0
      %1248 = vmatprep.mubr.f32.mxu0 0.0
      %1249 = vmatmul.mubr.f32.gmra.mrb[0].mxu0 %v1160
      %v1250 = vpop.f32.mrb[0].mxu0
      %v1251 = vadd.f32 0.0, %v1250
      %v1252 = vpop.f32.mrb[0].mxu0
      %1253 = vmatprep.mubr.f32.mxu0 0.0
      %1254 = vmatmul.mubr.f32.gmra.mrb[0].mxu0 %v1163
      %v1255 = vpop.f32.mrb[0].mxu0
      %v1256 = vadd.f32 0.0, %v1255
      %v1257 = vpop.f32.mrb[0].mxu0
      %1258 = vmatprep.mubr.f32.mxu0 0.0
      %1259 = vmatmul.mubr.f32.gmra.mrb[0].mxu0 %v1166
      %v1260 = vpop.f32.mrb[0].mxu0
      %v1261 = vadd.f32 0.0, %v1260
      %v1262 = vpop.f32.mrb[0].mxu0
      %1263 = vmatprep.mubr.f32.mxu0 0.0
      %1264 = vmatmul.mubr.f32.gmra.mrb[0].mxu0 %v1169
      %v1265 = vpop.f32.mrb[0].mxu0
      %v1266 = vadd.f32 0.0, %v1265
      %v1267 = vpop.f32.mrb[0].mxu0
      %1268 = vmatprep.mubr.f32.mxu0 0.0
      %1269 = vmatmul.mubr.f32.gmra.mrb[0].mxu0 %v1172
      %v1270 = vpop.f32.mrb[0].mxu0
      %v1271 = vadd.f32 0.0, %v1270
      %v1272 = vpop.f32.mrb[0].mxu0
      %1273 = vmatprep.mubr.f32.mxu0 0.0
      %1274 = vmatmul.mubr.f32.gmra.mrb[0].mxu0 %v1175
      %v1275 = vpop.f32.mrb[0].mxu0
      %v1276 = vadd.f32 0.0, %v1275
      %v1277 = vpop.f32.mrb[0].mxu0
      %1278 = vmatprep.mubr.f32.mxu0 0.0
      %1279 = vmatmul.mubr.f32.gmra.mrb[0].mxu0 %v1178
      %v1280 = vpop.f32.mrb[0].mxu0
      %v1281 = vadd.f32 0.0, %v1280
      %v1282 = vpop.f32.mrb[0].mxu0
      %1283 = vdwg.mxu0
      %1284 = vrot.lane.b32.xlu0 %v620, 96
      %v1285 = vpop.permute.xlu0 %1284
      %1286 = vrot.lane.b32.xlu0 %v621, 96
      %v1287 = vpop.permute.xlu0 %1286
      %1288 = vrot.lane.b32.xlu0 %v622, 96
      %v1289 = vpop.permute.xlu0 %1288
      %1290 = vrot.lane.b32.xlu0 %v623, 96
      %v1291 = vpop.permute.xlu0 %1290
      %1292 = vrot.lane.b32.xlu0 %v624, 96
      %v1293 = vpop.permute.xlu0 %1292
      %1294 = vrot.lane.b32.xlu0 %v625, 96
      %v1295 = vpop.permute.xlu0 %1294
      %1296 = vrot.lane.b32.xlu0 %v626, 96
      %v1297 = vpop.permute.xlu0 %1296
      %v1305 = vadd.f32 %v1251, %v1285
      %v1306 = vadd.f32 %v1256, %v1287
      %v1307 = vadd.f32 %v1261, %v1289
      %v1308 = vadd.f32 %v1266, %v1291
      %v1309 = vadd.f32 %v1271, %v1293
      %v1310 = vadd.f32 %v1276, %v1295
      %v1311 = vadd.f32 %v1281, %v1297
      %v1312 = vld [vmem:[%s7] sm:$0xff]
      %v1313 = vld [vmem:[%s7 + $0x8] sm:$0xff]
      %v1314 = vld [vmem:[%s7 + $0x10] sm:$0xff]
      %v1315 = vld [vmem:[%s7 + $0x18] sm:$0xff]
      %v1316 = vld [vmem:[%s8] sm:$0x1]
      %v1318 = vlaneseq
      %v1319 = vshrl.u32 %v1318, 7
      %v1320 = vsub.s32 0, %v1319
      %v1321 = vrot.slane %v1316, %v1320
      %v1324 = vsel %vm769, %v1305, 0
      %v1327 = vsel %vm769, %v1306, 0
      %v1330 = vsel %vm769, %v1307, 0
      %v1333 = vsel %vm769, %v1308, 0
      %v1336 = vsel %vm769, %v1309, 0
      %v1339 = vsel %vm769, %v1310, 0
      %v1342 = vsel %vm769, %v1311, 0
      %1344 = vmatprep.subr.mxu0 0.0
      %1345 = vmatpush1.msra.mxu0 %v1312
      %1346 = vmatprep.subr.mxu0 0.0
      %1347 = vmatpush1.msra.mxu0 %v1313
      %1348 = vmatprep.subr.mxu0 0.0
      %1349 = vmatpush1.msra.mxu0 %v1314
      %1350 = vmatprep.subr.mxu0 0.0
      %1351 = vmatpush1.msra.mxu0 %v1315
      %1352 = vmatprep.subr.mxu0 0.0
      %1353 = vmatpush1.msra.mxu0 0.0
      %1354 = vmatprep.subr.mxu0 0.0
      %1355 = vmatpush1.msra.mxu0 0.0
      %1356 = vmatprep.subr.mxu0 0.0
      %1357 = vmatpush1.msra.mxu0 0.0
      %1358 = vmatprep.subr.mxu0 0.0
      %1359 = vmatpush1.msra.mxu0 0.0
      %1360 = vmatprep.subr.mxu0 0.0
      %1361 = vmatpush1.msra.mxu0 0.0
      %1362 = vmatprep.subr.mxu0 0.0
      %1363 = vmatpush1.msra.mxu0 0.0
      %1364 = vmatprep.subr.mxu0 0.0
      %1365 = vmatpush1.msra.mxu0 0.0
      %1366 = vmatprep.subr.mxu0 0.0
      %1367 = vmatpush1.msra.mxu0 0.0
      %1368 = vmatprep.subr.mxu0 0.0
      %1369 = vmatpush1.msra.mxu0 0.0
      %1370 = vmatprep.subr.mxu0 0.0
      %1371 = vmatpush1.msra.mxu0 0.0
      %1372 = vmatprep.subr.mxu0 0.0
      %1373 = vmatpush1.msra.mxu0 0.0
      %1374 = vmatprep.subr.mxu0 0.0
      %1375 = vmatpush1.msra.mxu0 0.0
      %1376 = vmatprep.subr.mxu0 0.0
      %1377 = vmatpush1.msra.mxu0 0.0
      %1378 = vmatprep.subr.mxu0 0.0
      %1379 = vmatpush1.msra.mxu0 0.0
      %1380 = vmatprep.subr.mxu0 0.0
      %1381 = vmatpush1.msra.mxu0 0.0
      %1382 = vmatprep.subr.mxu0 0.0
      %1383 = vmatpush1.msra.mxu0 0.0
      %1384 = vmatprep.subr.mxu0 0.0
      %1385 = vmatpush1.msra.mxu0 0.0
      %1386 = vmatprep.subr.mxu0 0.0
      %1387 = vmatpush1.msra.mxu0 0.0
      %1388 = vmatprep.subr.mxu0 0.0
      %1389 = vmatpush1.msra.mxu0 0.0
      %1390 = vmatprep.subr.mxu0 0.0
      %1391 = vmatpush1.msra.mxu0 0.0
      %1392 = vmatprep.subr.mxu0 0.0
      %1393 = vmatpush1.msra.mxu0 0.0
      %1394 = vmatprep.subr.mxu0 0.0
      %1395 = vmatpush1.msra.mxu0 0.0
      %1396 = vmatprep.subr.mxu0 0.0
      %1397 = vmatpush1.msra.mxu0 0.0
      %1398 = vmatprep.subr.mxu0 0.0
      %1399 = vmatpush1.msra.mxu0 0.0
      %1400 = vmatprep.subr.mxu0 0.0
      %1401 = vmatpush1.msra.mxu0 0.0
      %1402 = vmatprep.subr.mxu0 0.0
      %1403 = vmatpush1.msra.mxu0 0.0
      %1404 = vmatprep.subr.mxu0 0.0
      %1405 = vmatpush1.msra.mxu0 0.0
      %1406 = vmatprep.subr.mxu0 0.0
      %1407 = vmatpush1.msra.mxu0 0.0
      %1408 = vmatprep.mubr.f32.mxu0 0.0
      %1409 = vmatmul.mubr.f32.gmra.mrb[0].mxu0 %v1324
      %v1410 = vpop.f32.mrb[0].mxu0
      %v1411 = vadd.f32 %v1321, %v1410
      %v1412 = vpop.f32.mrb[0].mxu0
      %1413 = vmatprep.mubr.f32.mxu0 0.0
      %1414 = vmatmul.mubr.f32.gmra.mrb[0].mxu0 %v1327
      %v1415 = vpop.f32.mrb[0].mxu0
      %v1416 = vadd.f32 %v1321, %v1415
      %v1417 = vpop.f32.mrb[0].mxu0
      %1418 = vmatprep.mubr.f32.mxu0 0.0
      %1419 = vmatmul.mubr.f32.gmra.mrb[0].mxu0 %v1330
      %v1420 = vpop.f32.mrb[0].mxu0
      %v1421 = vadd.f32 %v1321, %v1420
      %v1422 = vpop.f32.mrb[0].mxu0
      %1423 = vmatprep.mubr.f32.mxu0 0.0
      %1424 = vmatmul.mubr.f32.gmra.mrb[0].mxu0 %v1333
      %v1425 = vpop.f32.mrb[0].mxu0
      %v1426 = vadd.f32 %v1321, %v1425
      %v1427 = vpop.f32.mrb[0].mxu0
      %1428 = vmatprep.mubr.f32.mxu0 0.0
      %1429 = vmatmul.mubr.f32.gmra.mrb[0].mxu0 %v1336
      %v1430 = vpop.f32.mrb[0].mxu0
      %v1431 = vadd.f32 %v1321, %v1430
      %v1432 = vpop.f32.mrb[0].mxu0
      %1433 = vmatprep.mubr.f32.mxu0 0.0
      %1434 = vmatmul.mubr.f32.gmra.mrb[0].mxu0 %v1339
      %v1435 = vpop.f32.mrb[0].mxu0
      %v1436 = vadd.f32 %v1321, %v1435
      %v1437 = vpop.f32.mrb[0].mxu0
      %1438 = vmatprep.mubr.f32.mxu0 0.0
      %1439 = vmatmul.mubr.f32.gmra.mrb[0].mxu0 %v1342
      %v1440 = vpop.f32.mrb[0].mxu0
      %v1441 = vadd.f32 %v1321, %v1440
      %v1442 = vpop.f32.mrb[0].mxu0
      %1443 = vdwg.mxu0
      %v1444 = vmax.f32 %v1411, 0.0
      %v1445 = vmax.f32 %v1416, 0.0
      %v1446 = vmax.f32 %v1421, 0.0
      %v1447 = vmax.f32 %v1426, 0.0
      %v1448 = vmax.f32 %v1431, 0.0
      %v1449 = vmax.f32 %v1436, 0.0
      %v1450 = vmax.f32 %v1441, 0.0
      %v1451 = vld [vmem:[%s9] sm:$0xff]
      %v1452 = vld [vmem:[%s9 + $0x8] sm:$0xff]
      %v1454 = vsel %vm1048, %v1451, 0
      %v1457 = vsel %vm1048, %v1452, 0
      %v1460 = vsel %vm1180, %v1450, 0
      %1462 = vmatprep.subr.mxu0 0.0
      %1463 = vmatpush1.msra.mxu0 %v1444
      %1464 = vmatprep.subr.mxu0 0.0
      %1465 = vmatpush1.msra.mxu0 %v1445
      %1466 = vmatprep.subr.mxu0 0.0
      %1467 = vmatpush1.msra.mxu0 %v1446
      %1468 = vmatprep.subr.mxu0 0.0
      %1469 = vmatpush1.msra.mxu0 %v1447
      %1470 = vmatprep.subr.mxu0 0.0
      %1471 = vmatpush1.msra.mxu0 %v1448
      %1472 = vmatprep.subr.mxu0 0.0
      %1473 = vmatpush1.msra.mxu0 %v1449
      %1474 = vmatprep.subr.mxu0 0.0
      %1475 = vmatpush1.msra.mxu0 %v1460
      %1476 = vmatprep.subr.mxu0 0.0
      %1477 = vmatpush1.msra.mxu0 0.0
      %1478 = vmatprep.subr.mxu0 0.0
      %1479 = vmatpush1.msra.mxu0 0.0
      %1480 = vmatprep.subr.mxu0 0.0
      %1481 = vmatpush1.msra.mxu0 0.0
      %1482 = vmatprep.subr.mxu0 0.0
      %1483 = vmatpush1.msra.mxu0 0.0
      %1484 = vmatprep.subr.mxu0 0.0
      %1485 = vmatpush1.msra.mxu0 0.0
      %1486 = vmatprep.subr.mxu0 0.0
      %1487 = vmatpush1.msra.mxu0 0.0
      %1488 = vmatprep.subr.mxu0 0.0
      %1489 = vmatpush1.msra.mxu0 0.0
      %1490 = vmatprep.subr.mxu0 0.0
      %1491 = vmatpush1.msra.mxu0 0.0
      %1492 = vmatprep.subr.mxu0 0.0
      %1493 = vmatpush1.msra.mxu0 0.0
      %1494 = vmatprep.subr.mxu0 0.0
      %1495 = vmatpush1.msra.mxu0 0.0
      %1496 = vmatprep.subr.mxu0 0.0
      %1497 = vmatpush1.msra.mxu0 0.0
      %1498 = vmatprep.subr.mxu0 0.0
      %1499 = vmatpush1.msra.mxu0 0.0
      %1500 = vmatprep.subr.mxu0 0.0
      %1501 = vmatpush1.msra.mxu0 0.0
      %1502 = vmatprep.subr.mxu0 0.0
      %1503 = vmatpush1.msra.mxu0 0.0
      %1504 = vmatprep.subr.mxu0 0.0
      %1505 = vmatpush1.msra.mxu0 0.0
      %1506 = vmatprep.subr.mxu0 0.0
      %1507 = vmatpush1.msra.mxu0 0.0
      %1508 = vmatprep.subr.mxu0 0.0
      %1509 = vmatpush1.msra.mxu0 0.0
      %1510 = vmatprep.subr.mxu0 0.0
      %1511 = vmatpush1.msra.mxu0 0.0
      %1512 = vmatprep.subr.mxu0 0.0
      %1513 = vmatpush1.msra.mxu0 0.0
      %1514 = vmatprep.subr.mxu0 0.0
      %1515 = vmatpush1.msra.mxu0 0.0
      %1516 = vmatprep.subr.mxu0 0.0
      %1517 = vmatpush1.msra.mxu0 0.0
      %1518 = vmatprep.subr.mxu0 0.0
      %1519 = vmatpush1.msra.mxu0 0.0
      %1520 = vmatprep.subr.mxu0 0.0
      %1521 = vmatpush1.msra.mxu0 0.0
      %1522 = vmatprep.subr.mxu0 0.0
      %1523 = vmatpush1.msra.mxu0 0.0
      %1524 = vmatprep.subr.mxu0 0.0
      %1525 = vmatpush1.msra.mxu0 0.0
      %1526 = vmatprep.mubr.f32.mxu0 0.0
      %1527 = vmatmul.mubr.f32.gmra.mrb[0].mxu0 %v1454
      %v1528 = vpop.f32.mrb[0].mxu0
      %v1529 = vadd.f32 0.0, %v1528
      %v1530 = vpop.f32.mrb[0].mxu0
      %1531 = vmatprep.mubr.f32.mxu0 0.0
      %1532 = vmatmul.mubr.f32.gmra.mrb[0].mxu0 %v1457
      %v1533 = vpop.f32.mrb[0].mxu0
      %v1534 = vadd.f32 0.0, %v1533
      %v1535 = vpop.f32.mrb[0].mxu0
      %1536 = vdwg.mxu0
      %s1537 = scalar_lea.vmem %s9, 16
      %v1538 = vld [vmem:[%s1537] sm:$0xff]
      %v1539 = vld [vmem:[%s1537 + $0x8] sm:$0xff]
      %v1541 = vsel %vm1048, %v1538, 0
      %v1544 = vsel %vm1048, %v1539, 0
      %1546 = vmatprep.subr.mxu0 0.0
      %1547 = vmatpush1.msra.mxu0 %v1444
      %1548 = vmatprep.subr.mxu0 0.0
      %1549 = vmatpush1.msra.mxu0 %v1445
      %1550 = vmatprep.subr.mxu0 0.0
      %1551 = vmatpush1.msra.mxu0 %v1446
      %1552 = vmatprep.subr.mxu0 0.0
      %1553 = vmatpush1.msra.mxu0 %v1447
      %1554 = vmatprep.subr.mxu0 0.0
      %1555 = vmatpush1.msra.mxu0 %v1448
      %1556 = vmatprep.subr.mxu0 0.0
      %1557 = vmatpush1.msra.mxu0 %v1449
      %1558 = vmatprep.subr.mxu0 0.0
      %1559 = vmatpush1.msra.mxu0 %v1460
      %1560 = vmatprep.subr.mxu0 0.0
      %1561 = vmatpush1.msra.mxu0 0.0
      %1562 = vmatprep.subr.mxu0 0.0
      %1563 = vmatpush1.msra.mxu0 0.0
      %1564 = vmatprep.subr.mxu0 0.0
      %1565 = vmatpush1.msra.mxu0 0.0
      %1566 = vmatprep.subr.mxu0 0.0
      %1567 = vmatpush1.msra.mxu0 0.0
      %1568 = vmatprep.subr.mxu0 0.0
      %1569 = vmatpush1.msra.mxu0 0.0
      %1570 = vmatprep.subr.mxu0 0.0
      %1571 = vmatpush1.msra.mxu0 0.0
      %1572 = vmatprep.subr.mxu0 0.0
      %1573 = vmatpush1.msra.mxu0 0.0
      %1574 = vmatprep.subr.mxu0 0.0
      %1575 = vmatpush1.msra.mxu0 0.0
      %1576 = vmatprep.subr.mxu0 0.0
      %1577 = vmatpush1.msra.mxu0 0.0
      %1578 = vmatprep.subr.mxu0 0.0
      %1579 = vmatpush1.msra.mxu0 0.0
      %1580 = vmatprep.subr.mxu0 0.0
      %1581 = vmatpush1.msra.mxu0 0.0
      %1582 = vmatprep.subr.mxu0 0.0
      %1583 = vmatpush1.msra.mxu0 0.0
      %1584 = vmatprep.subr.mxu0 0.0
      %1585 = vmatpush1.msra.mxu0 0.0
      %1586 = vmatprep.subr.mxu0 0.0
      %1587 = vmatpush1.msra.mxu0 0.0
      %1588 = vmatprep.subr.mxu0 0.0
      %1589 = vmatpush1.msra.mxu0 0.0
      %1590 = vmatprep.subr.mxu0 0.0
      %1591 = vmatpush1.msra.mxu0 0.0
      %1592 = vmatprep.subr.mxu0 0.0
      %1593 = vmatpush1.msra.mxu0 0.0
      %1594 = vmatprep.subr.mxu0 0.0
      %1595 = vmatpush1.msra.mxu0 0.0
      %1596 = vmatprep.subr.mxu0 0.0
      %1597 = vmatpush1.msra.mxu0 0.0
      %1598 = vmatprep.subr.mxu0 0.0
      %1599 = vmatpush1.msra.mxu0 0.0
      %1600 = vmatprep.subr.mxu0 0.0
      %1601 = vmatpush1.msra.mxu0 0.0
      %1602 = vmatprep.subr.mxu0 0.0
      %1603 = vmatpush1.msra.mxu0 0.0
      %1604 = vmatprep.subr.mxu0 0.0
      %1605 = vmatpush1.msra.mxu0 0.0
      %1606 = vmatprep.subr.mxu0 0.0
      %1607 = vmatpush1.msra.mxu0 0.0
      %1608 = vmatprep.subr.mxu0 0.0
      %1609 = vmatpush1.msra.mxu0 0.0
      %1610 = vmatprep.mubr.f32.mxu0 0.0
      %1611 = vmatmul.mubr.f32.gmra.mrb[0].mxu0 %v1541
      %v1612 = vpop.f32.mrb[0].mxu0
      %v1613 = vadd.f32 0.0, %v1612
      %v1614 = vpop.f32.mrb[0].mxu0
      %1615 = vmatprep.mubr.f32.mxu0 0.0
      %1616 = vmatmul.mubr.f32.gmra.mrb[0].mxu0 %v1544
      %v1617 = vpop.f32.mrb[0].mxu0
      %v1618 = vadd.f32 0.0, %v1617
      %v1619 = vpop.f32.mrb[0].mxu0
      %1620 = vdwg.mxu0
      %s1621 = scalar_lea.vmem %s9, 32
      %v1622 = vld [vmem:[%s1621] sm:$0xff]
      %v1623 = vld [vmem:[%s1621 + $0x8] sm:$0xff]
      %v1625 = vsel %vm1048, %v1622, 0
      %v1628 = vsel %vm1048, %v1623, 0
      %1630 = vmatprep.subr.mxu0 0.0
      %1631 = vmatpush1.msra.mxu0 %v1444
      %1632 = vmatprep.subr.mxu0 0.0
      %1633 = vmatpush1.msra.mxu0 %v1445
      %1634 = vmatprep.subr.mxu0 0.0
      %1635 = vmatpush1.msra.mxu0 %v1446
      %1636 = vmatprep.subr.mxu0 0.0
      %1637 = vmatpush1.msra.mxu0 %v1447
      %1638 = vmatprep.subr.mxu0 0.0
      %1639 = vmatpush1.msra.mxu0 %v1448
      %1640 = vmatprep.subr.mxu0 0.0
      %1641 = vmatpush1.msra.mxu0 %v1449
      %1642 = vmatprep.subr.mxu0 0.0
      %1643 = vmatpush1.msra.mxu0 %v1460
      %1644 = vmatprep.subr.mxu0 0.0
      %1645 = vmatpush1.msra.mxu0 0.0
      %1646 = vmatprep.subr.mxu0 0.0
      %1647 = vmatpush1.msra.mxu0 0.0
      %1648 = vmatprep.subr.mxu0 0.0
      %1649 = vmatpush1.msra.mxu0 0.0
      %1650 = vmatprep.subr.mxu0 0.0
      %1651 = vmatpush1.msra.mxu0 0.0
      %1652 = vmatprep.subr.mxu0 0.0
      %1653 = vmatpush1.msra.mxu0 0.0
      %1654 = vmatprep.subr.mxu0 0.0
      %1655 = vmatpush1.msra.mxu0 0.0
      %1656 = vmatprep.subr.mxu0 0.0
      %1657 = vmatpush1.msra.mxu0 0.0
      %1658 = vmatprep.subr.mxu0 0.0
      %1659 = vmatpush1.msra.mxu0 0.0
      %1660 = vmatprep.subr.mxu0 0.0
      %1661 = vmatpush1.msra.mxu0 0.0
      %1662 = vmatprep.subr.mxu0 0.0
      %1663 = vmatpush1.msra.mxu0 0.0
      %1664 = vmatprep.subr.mxu0 0.0
      %1665 = vmatpush1.msra.mxu0 0.0
      %1666 = vmatprep.subr.mxu0 0.0
      %1667 = vmatpush1.msra.mxu0 0.0
      %1668 = vmatprep.subr.mxu0 0.0
      %1669 = vmatpush1.msra.mxu0 0.0
      %1670 = vmatprep.subr.mxu0 0.0
      %1671 = vmatpush1.msra.mxu0 0.0
      %1672 = vmatprep.subr.mxu0 0.0
      %1673 = vmatpush1.msra.mxu0 0.0
      %1674 = vmatprep.subr.mxu0 0.0
      %1675 = vmatpush1.msra.mxu0 0.0
      %1676 = vmatprep.subr.mxu0 0.0
      %1677 = vmatpush1.msra.mxu0 0.0
      %1678 = vmatprep.subr.mxu0 0.0
      %1679 = vmatpush1.msra.mxu0 0.0
      %1680 = vmatprep.subr.mxu0 0.0
      %1681 = vmatpush1.msra.mxu0 0.0
      %1682 = vmatprep.subr.mxu0 0.0
      %1683 = vmatpush1.msra.mxu0 0.0
      %1684 = vmatprep.subr.mxu0 0.0
      %1685 = vmatpush1.msra.mxu0 0.0
      %1686 = vmatprep.subr.mxu0 0.0
      %1687 = vmatpush1.msra.mxu0 0.0
      %1688 = vmatprep.subr.mxu0 0.0
      %1689 = vmatpush1.msra.mxu0 0.0
      %1690 = vmatprep.subr.mxu0 0.0
      %1691 = vmatpush1.msra.mxu0 0.0
      %1692 = vmatprep.subr.mxu0 0.0
      %1693 = vmatpush1.msra.mxu0 0.0
      %1694 = vmatprep.mubr.f32.mxu0 0.0
      %1695 = vmatmul.mubr.f32.gmra.mrb[0].mxu0 %v1625
      %v1696 = vpop.f32.mrb[0].mxu0
      %v1697 = vadd.f32 0.0, %v1696
      %v1698 = vpop.f32.mrb[0].mxu0
      %1699 = vmatprep.mubr.f32.mxu0 0.0
      %1700 = vmatmul.mubr.f32.gmra.mrb[0].mxu0 %v1628
      %v1701 = vpop.f32.mrb[0].mxu0
      %v1702 = vadd.f32 0.0, %v1701
      %v1703 = vpop.f32.mrb[0].mxu0
      %1704 = vdwg.mxu0
      %s1705 = scalar_lea.vmem %s9, 48
      %v1706 = vld [vmem:[%s1705] sm:$0xff]
      %v1707 = vld [vmem:[%s1705 + $0x8] sm:$0xff]
      %v1709 = vsel %vm1048, %v1706, 0
      %v1712 = vsel %vm1048, %v1707, 0
      %1714 = vmatprep.subr.mxu0 0.0
      %1715 = vmatpush1.msra.mxu0 %v1444
      %1716 = vmatprep.subr.mxu0 0.0
      %1717 = vmatpush1.msra.mxu0 %v1445
      %1718 = vmatprep.subr.mxu0 0.0
      %1719 = vmatpush1.msra.mxu0 %v1446
      %1720 = vmatprep.subr.mxu0 0.0
      %1721 = vmatpush1.msra.mxu0 %v1447
      %1722 = vmatprep.subr.mxu0 0.0
      %1723 = vmatpush1.msra.mxu0 %v1448
      %1724 = vmatprep.subr.mxu0 0.0
      %1725 = vmatpush1.msra.mxu0 %v1449
      %1726 = vmatprep.subr.mxu0 0.0
      %1727 = vmatpush1.msra.mxu0 %v1460
      %1728 = vmatprep.subr.mxu0 0.0
      %1729 = vmatpush1.msra.mxu0 0.0
      %1730 = vmatprep.subr.mxu0 0.0
      %1731 = vmatpush1.msra.mxu0 0.0
      %1732 = vmatprep.subr.mxu0 0.0
      %1733 = vmatpush1.msra.mxu0 0.0
      %1734 = vmatprep.subr.mxu0 0.0
      %1735 = vmatpush1.msra.mxu0 0.0
      %1736 = vmatprep.subr.mxu0 0.0
      %1737 = vmatpush1.msra.mxu0 0.0
      %1738 = vmatprep.subr.mxu0 0.0
      %1739 = vmatpush1.msra.mxu0 0.0
      %1740 = vmatprep.subr.mxu0 0.0
      %1741 = vmatpush1.msra.mxu0 0.0
      %1742 = vmatprep.subr.mxu0 0.0
      %1743 = vmatpush1.msra.mxu0 0.0
      %1744 = vmatprep.subr.mxu0 0.0
      %1745 = vmatpush1.msra.mxu0 0.0
      %1746 = vmatprep.subr.mxu0 0.0
      %1747 = vmatpush1.msra.mxu0 0.0
      %1748 = vmatprep.subr.mxu0 0.0
      %1749 = vmatpush1.msra.mxu0 0.0
      %1750 = vmatprep.subr.mxu0 0.0
      %1751 = vmatpush1.msra.mxu0 0.0
      %1752 = vmatprep.subr.mxu0 0.0
      %1753 = vmatpush1.msra.mxu0 0.0
      %1754 = vmatprep.subr.mxu0 0.0
      %1755 = vmatpush1.msra.mxu0 0.0
      %1756 = vmatprep.subr.mxu0 0.0
      %1757 = vmatpush1.msra.mxu0 0.0
      %1758 = vmatprep.subr.mxu0 0.0
      %1759 = vmatpush1.msra.mxu0 0.0
      %1760 = vmatprep.subr.mxu0 0.0
      %1761 = vmatpush1.msra.mxu0 0.0
      %1762 = vmatprep.subr.mxu0 0.0
      %1763 = vmatpush1.msra.mxu0 0.0
      %1764 = vmatprep.subr.mxu0 0.0
      %1765 = vmatpush1.msra.mxu0 0.0
      %1766 = vmatprep.subr.mxu0 0.0
      %1767 = vmatpush1.msra.mxu0 0.0
      %1768 = vmatprep.subr.mxu0 0.0
      %1769 = vmatpush1.msra.mxu0 0.0
      %1770 = vmatprep.subr.mxu0 0.0
      %1771 = vmatpush1.msra.mxu0 0.0
      %1772 = vmatprep.subr.mxu0 0.0
      %1773 = vmatpush1.msra.mxu0 0.0
      %1774 = vmatprep.subr.mxu0 0.0
      %1775 = vmatpush1.msra.mxu0 0.0
      %1776 = vmatprep.subr.mxu0 0.0
      %1777 = vmatpush1.msra.mxu0 0.0
      %1778 = vmatprep.mubr.f32.mxu0 0.0
      %1779 = vmatmul.mubr.f32.gmra.mrb[0].mxu0 %v1709
      %v1780 = vpop.f32.mrb[0].mxu0
      %v1781 = vadd.f32 0.0, %v1780
      %v1782 = vpop.f32.mrb[0].mxu0
      %1783 = vmatprep.mubr.f32.mxu0 0.0
      %1784 = vmatmul.mubr.f32.gmra.mrb[0].mxu0 %v1712
      %v1785 = vpop.f32.mrb[0].mxu0
      %v1786 = vadd.f32 0.0, %v1785
      %v1787 = vpop.f32.mrb[0].mxu0
      %1788 = vdwg.mxu0
      %1791 = vrot.lane.b32.xlu0 %v1613, 8
      %v1792 = vpop.permute.xlu0 %1791
      %1793 = vrot.lane.b32.xlu0 %v1618, 8
      %v1794 = vpop.permute.xlu0 %1793
      %1799 = vrot.lane.b32.xlu0 %v1697, 16
      %v1800 = vpop.permute.xlu0 %1799
      %1801 = vrot.lane.b32.xlu0 %v1702, 16
      %v1802 = vpop.permute.xlu0 %1801
      %1807 = vrot.lane.b32.xlu0 %v1781, 24
      %v1808 = vpop.permute.xlu0 %1807
      %1809 = vrot.lane.b32.xlu0 %v1786, 24
      %v1810 = vpop.permute.xlu0 %1809
      %vm1813 = vcmask 64512
      %v1814 = vsel %vm1813, %v1529, %v1792
      %v1815 = vsel %vm1813, %v1534, %v1794
      %v1816 = vsel %vm891, %v1814, %v1800
      %v1817 = vsel %vm891, %v1815, %v1802
      %vm1818 = vcmask 195584
      %v1819 = vsel %vm1818, %v1816, %v1808
      %v1820 = vsel %vm1818, %v1817, %v1810
      %v1821 = vld [vmem:[%s11] sm:$0xff]
      %v1822 = vld [vmem:[%s11 + $0x8] sm:$0xff]
      %v1824 = vsel %vm891, %v1821, 0
      %v1827 = vsel %vm891, %v1822, 0
      %1829 = vmatprep.subr.mxu0 0.0
      %1830 = vmatpush1.msra.mxu0 %v1819
      %1831 = vmatprep.subr.mxu0 0.0
      %1832 = vmatpush1.msra.mxu0 %v1820
      %1833 = vmatprep.subr.mxu0 0.0
      %1834 = vmatpush1.msra.mxu0 0.0
      %1835 = vmatprep.subr.mxu0 0.0
      %1836 = vmatpush1.msra.mxu0 0.0
      %1837 = vmatprep.subr.mxu0 0.0
      %1838 = vmatpush1.msra.mxu0 0.0
      %1839 = vmatprep.subr.mxu0 0.0
      %1840 = vmatpush1.msra.mxu0 0.0
      %1841 = vmatprep.subr.mxu0 0.0
      %1842 = vmatpush1.msra.mxu0 0.0
      %1843 = vmatprep.subr.mxu0 0.0
      %1844 = vmatpush1.msra.mxu0 0.0
      %1845 = vmatprep.subr.mxu0 0.0
      %1846 = vmatpush1.msra.mxu0 0.0
      %1847 = vmatprep.subr.mxu0 0.0
      %1848 = vmatpush1.msra.mxu0 0.0
      %1849 = vmatprep.subr.mxu0 0.0
      %1850 = vmatpush1.msra.mxu0 0.0
      %1851 = vmatprep.subr.mxu0 0.0
      %1852 = vmatpush1.msra.mxu0 0.0
      %1853 = vmatprep.subr.mxu0 0.0
      %1854 = vmatpush1.msra.mxu0 0.0
      %1855 = vmatprep.subr.mxu0 0.0
      %1856 = vmatpush1.msra.mxu0 0.0
      %1857 = vmatprep.subr.mxu0 0.0
      %1858 = vmatpush1.msra.mxu0 0.0
      %1859 = vmatprep.subr.mxu0 0.0
      %1860 = vmatpush1.msra.mxu0 0.0
      %1861 = vmatprep.subr.mxu0 0.0
      %1862 = vmatpush1.msra.mxu0 0.0
      %1863 = vmatprep.subr.mxu0 0.0
      %1864 = vmatpush1.msra.mxu0 0.0
      %1865 = vmatprep.subr.mxu0 0.0
      %1866 = vmatpush1.msra.mxu0 0.0
      %1867 = vmatprep.subr.mxu0 0.0
      %1868 = vmatpush1.msra.mxu0 0.0
      %1869 = vmatprep.subr.mxu0 0.0
      %1870 = vmatpush1.msra.mxu0 0.0
      %1871 = vmatprep.subr.mxu0 0.0
      %1872 = vmatpush1.msra.mxu0 0.0
      %1873 = vmatprep.subr.mxu0 0.0
      %1874 = vmatpush1.msra.mxu0 0.0
      %1875 = vmatprep.subr.mxu0 0.0
      %1876 = vmatpush1.msra.mxu0 0.0
      %1877 = vmatprep.subr.mxu0 0.0
      %1878 = vmatpush1.msra.mxu0 0.0
      %1879 = vmatprep.subr.mxu0 0.0
      %1880 = vmatpush1.msra.mxu0 0.0
      %1881 = vmatprep.subr.mxu0 0.0
      %1882 = vmatpush1.msra.mxu0 0.0
      %1883 = vmatprep.subr.mxu0 0.0
      %1884 = vmatpush1.msra.mxu0 0.0
      %1885 = vmatprep.subr.mxu0 0.0
      %1886 = vmatpush1.msra.mxu0 0.0
      %1887 = vmatprep.subr.mxu0 0.0
      %1888 = vmatpush1.msra.mxu0 0.0
      %1889 = vmatprep.subr.mxu0 0.0
      %1890 = vmatpush1.msra.mxu0 0.0
      %1891 = vmatprep.subr.mxu0 0.0
      %1892 = vmatpush1.msra.mxu0 0.0
      %1893 = vmatprep.mubr.f32.mxu0 0.0
      %1894 = vmatmul.mubr.f32.gmra.mrb[0].mxu0 %v1824
      %v1895 = vpop.f32.mrb[0].mxu0
      %v1896 = vadd.f32 0.0, %v1895
      %v1897 = vpop.f32.mrb[0].mxu0
      %1898 = vmatprep.mubr.f32.mxu0 0.0
      %1899 = vmatmul.mubr.f32.gmra.mrb[0].mxu0 %v1827
      %v1900 = vpop.f32.mrb[0].mxu0
      %v1901 = vadd.f32 0.0, %v1900
      %v1902 = vpop.f32.mrb[0].mxu0
      %1903 = vdwg.mxu0
      %v1904 = vld [vmem:[%s12] sm:$0xff]
      %v1905 = vld [vmem:[%s12 + $0x8] sm:$0xff]
      %v1906 = vld [vmem:[%s12 + $0x10] sm:$0xff]
      %v1907 = vld [vmem:[%s12 + $0x18] sm:$0xff]
      %s1908 = scalar_lea.vmem %s11, 16
      %v1909 = vld [vmem:[%s1908] sm:$0xff]
      %v1910 = vld [vmem:[%s1908 + $0x8] sm:$0xff]
      %v1912 = vsel %vm891, %v1909, 0
      %v1915 = vsel %vm891, %v1910, 0
      %1917 = vmatprep.subr.mxu0 0.0
      %1918 = vmatpush1.msra.mxu0 %v1819
      %1919 = vmatprep.subr.mxu0 0.0
      %1920 = vmatpush1.msra.mxu0 %v1820
      %1921 = vmatprep.subr.mxu0 0.0
      %1922 = vmatpush1.msra.mxu0 0.0
      %1923 = vmatprep.subr.mxu0 0.0
      %1924 = vmatpush1.msra.mxu0 0.0
      %1925 = vmatprep.subr.mxu0 0.0
      %1926 = vmatpush1.msra.mxu0 0.0
      %1927 = vmatprep.subr.mxu0 0.0
      %1928 = vmatpush1.msra.mxu0 0.0
      %1929 = vmatprep.subr.mxu0 0.0
      %1930 = vmatpush1.msra.mxu0 0.0
      %1931 = vmatprep.subr.mxu0 0.0
      %1932 = vmatpush1.msra.mxu0 0.0
      %1933 = vmatprep.subr.mxu0 0.0
      %1934 = vmatpush1.msra.mxu0 0.0
      %1935 = vmatprep.subr.mxu0 0.0
      %1936 = vmatpush1.msra.mxu0 0.0
      %1937 = vmatprep.subr.mxu0 0.0
      %1938 = vmatpush1.msra.mxu0 0.0
      %1939 = vmatprep.subr.mxu0 0.0
      %1940 = vmatpush1.msra.mxu0 0.0
      %1941 = vmatprep.subr.mxu0 0.0
      %1942 = vmatpush1.msra.mxu0 0.0
      %1943 = vmatprep.subr.mxu0 0.0
      %1944 = vmatpush1.msra.mxu0 0.0
      %1945 = vmatprep.subr.mxu0 0.0
      %1946 = vmatpush1.msra.mxu0 0.0
      %1947 = vmatprep.subr.mxu0 0.0
      %1948 = vmatpush1.msra.mxu0 0.0
      %1949 = vmatprep.subr.mxu0 0.0
      %1950 = vmatpush1.msra.mxu0 0.0
      %1951 = vmatprep.subr.mxu0 0.0
      %1952 = vmatpush1.msra.mxu0 0.0
      %1953 = vmatprep.subr.mxu0 0.0
      %1954 = vmatpush1.msra.mxu0 0.0
      %1955 = vmatprep.subr.mxu0 0.0
      %1956 = vmatpush1.msra.mxu0 0.0
      %1957 = vmatprep.subr.mxu0 0.0
      %1958 = vmatpush1.msra.mxu0 0.0
      %1959 = vmatprep.subr.mxu0 0.0
      %1960 = vmatpush1.msra.mxu0 0.0
      %1961 = vmatprep.subr.mxu0 0.0
      %1962 = vmatpush1.msra.mxu0 0.0
      %1963 = vmatprep.subr.mxu0 0.0
      %1964 = vmatpush1.msra.mxu0 0.0
      %1965 = vmatprep.subr.mxu0 0.0
      %1966 = vmatpush1.msra.mxu0 0.0
      %1967 = vmatprep.subr.mxu0 0.0
      %1968 = vmatpush1.msra.mxu0 0.0
      %1969 = vmatprep.subr.mxu0 0.0
      %1970 = vmatpush1.msra.mxu0 0.0
      %1971 = vmatprep.subr.mxu0 0.0
      %1972 = vmatpush1.msra.mxu0 0.0
      %1973 = vmatprep.subr.mxu0 0.0
      %1974 = vmatpush1.msra.mxu0 0.0
      %1975 = vmatprep.subr.mxu0 0.0
      %1976 = vmatpush1.msra.mxu0 0.0
      %1977 = vmatprep.subr.mxu0 0.0
      %1978 = vmatpush1.msra.mxu0 0.0
      %1979 = vmatprep.subr.mxu0 0.0
      %1980 = vmatpush1.msra.mxu0 0.0
      %1981 = vmatprep.mubr.f32.mxu0 0.0
      %1982 = vmatmul.mubr.f32.gmra.mrb[0].mxu0 %v1912
      %v1983 = vpop.f32.mrb[0].mxu0
      %v1984 = vadd.f32 0.0, %v1983
      %v1985 = vpop.f32.mrb[0].mxu0
      %1986 = vmatprep.mubr.f32.mxu0 0.0
      %1987 = vmatmul.mubr.f32.gmra.mrb[0].mxu0 %v1915
      %v1988 = vpop.f32.mrb[0].mxu0
      %v1989 = vadd.f32 0.0, %v1988
      %v1990 = vpop.f32.mrb[0].mxu0
      %1991 = vdwg.mxu0
      %s1992 = scalar_lea.vmem %s12, 32
      %v1993 = vld [vmem:[%s1992] sm:$0xff]
      %v1994 = vld [vmem:[%s1992 + $0x8] sm:$0xff]
      %v1995 = vld [vmem:[%s1992 + $0x10] sm:$0xff]
      %v1996 = vld [vmem:[%s1992 + $0x18] sm:$0xff]
      %v1998 = vsel %vm769, %v1984, 0
      %v2001 = vsel %vm769, %v1989, 0
      %2003 = vmatprep.subr.mxu0 0.0
      %2004 = vmatpush1.msra.mxu0 %v1993
      %2005 = vmatprep.subr.mxu0 0.0
      %2006 = vmatpush1.msra.mxu0 %v1994
      %2007 = vmatprep.subr.mxu0 0.0
      %2008 = vmatpush1.msra.mxu0 %v1995
      %2009 = vmatprep.subr.mxu0 0.0
      %2010 = vmatpush1.msra.mxu0 %v1996
      %2011 = vmatprep.subr.mxu0 0.0
      %2012 = vmatpush1.msra.mxu0 0.0
      %2013 = vmatprep.subr.mxu0 0.0
      %2014 = vmatpush1.msra.mxu0 0.0
      %2015 = vmatprep.subr.mxu0 0.0
      %2016 = vmatpush1.msra.mxu0 0.0
      %2017 = vmatprep.subr.mxu0 0.0
      %2018 = vmatpush1.msra.mxu0 0.0
      %2019 = vmatprep.subr.mxu0 0.0
      %2020 = vmatpush1.msra.mxu0 0.0
      %2021 = vmatprep.subr.mxu0 0.0
      %2022 = vmatpush1.msra.mxu0 0.0
      %2023 = vmatprep.subr.mxu0 0.0
      %2024 = vmatpush1.msra.mxu0 0.0
      %2025 = vmatprep.subr.mxu0 0.0
      %2026 = vmatpush1.msra.mxu0 0.0
      %2027 = vmatprep.subr.mxu0 0.0
      %2028 = vmatpush1.msra.mxu0 0.0
      %2029 = vmatprep.subr.mxu0 0.0
      %2030 = vmatpush1.msra.mxu0 0.0
      %2031 = vmatprep.subr.mxu0 0.0
      %2032 = vmatpush1.msra.mxu0 0.0
      %2033 = vmatprep.subr.mxu0 0.0
      %2034 = vmatpush1.msra.mxu0 0.0
      %2035 = vmatprep.subr.mxu0 0.0
      %2036 = vmatpush1.msra.mxu0 0.0
      %2037 = vmatprep.subr.mxu0 0.0
      %2038 = vmatpush1.msra.mxu0 0.0
      %2039 = vmatprep.subr.mxu0 0.0
      %2040 = vmatpush1.msra.mxu0 0.0
      %2041 = vmatprep.subr.mxu0 0.0
      %2042 = vmatpush1.msra.mxu0 0.0
      %2043 = vmatprep.subr.mxu0 0.0
      %2044 = vmatpush1.msra.mxu0 0.0
      %2045 = vmatprep.subr.mxu0 0.0
      %2046 = vmatpush1.msra.mxu0 0.0
      %2047 = vmatprep.subr.mxu0 0.0
      %2048 = vmatpush1.msra.mxu0 0.0
      %2049 = vmatprep.subr.mxu0 0.0
      %2050 = vmatpush1.msra.mxu0 0.0
      %2051 = vmatprep.subr.mxu0 0.0
      %2052 = vmatpush1.msra.mxu0 0.0
      %2053 = vmatprep.subr.mxu0 0.0
      %2054 = vmatpush1.msra.mxu0 0.0
      %2055 = vmatprep.subr.mxu0 0.0
      %2056 = vmatpush1.msra.mxu0 0.0
      %2057 = vmatprep.subr.mxu0 0.0
      %2058 = vmatpush1.msra.mxu0 0.0
      %2059 = vmatprep.subr.mxu0 0.0
      %2060 = vmatpush1.msra.mxu0 0.0
      %2061 = vmatprep.subr.mxu0 0.0
      %2062 = vmatpush1.msra.mxu0 0.0
      %2063 = vmatprep.subr.mxu0 0.0
      %2064 = vmatpush1.msra.mxu0 0.0
      %2065 = vmatprep.subr.mxu0 0.0
      %2066 = vmatpush1.msra.mxu0 0.0
      %2067 = vmatprep.mubr.f32.mxu0 0.0
      %2068 = vmatmul.mubr.f32.gmra.mrb[0].mxu0 %v1998
      %v2069 = vpop.f32.mrb[0].mxu0
      %v2070 = vadd.f32 0.0, %v2069
      %v2071 = vpop.f32.mrb[0].mxu0
      %2072 = vmatprep.mubr.f32.mxu0 0.0
      %2073 = vmatmul.mubr.f32.gmra.mrb[0].mxu0 %v2001
      %v2074 = vpop.f32.mrb[0].mxu0
      %v2075 = vadd.f32 0.0, %v2074
      %v2076 = vpop.f32.mrb[0].mxu0
      %2077 = vdwg.mxu0
      %v2079 = vsel %vm769, %v1896, 0
      %v2082 = vsel %vm769, %v1901, 0
      %2084 = vmatprep.subr.mxu0 0.0
      %2085 = vmatpush1.msra.mxu0 %v1904
      %2086 = vmatprep.subr.mxu0 0.0
      %2087 = vmatpush1.msra.mxu0 %v1905
      %2088 = vmatprep.subr.mxu0 0.0
      %2089 = vmatpush1.msra.mxu0 %v1906
      %2090 = vmatprep.subr.mxu0 0.0
      %2091 = vmatpush1.msra.mxu0 %v1907
      %2092 = vmatprep.subr.mxu0 0.0
      %2093 = vmatpush1.msra.mxu0 0.0
      %2094 = vmatprep.subr.mxu0 0.0
      %2095 = vmatpush1.msra.mxu0 0.0
      %2096 = vmatprep.subr.mxu0 0.0
      %2097 = vmatpush1.msra.mxu0 0.0
      %2098 = vmatprep.subr.mxu0 0.0
      %2099 = vmatpush1.msra.mxu0 0.0
      %2100 = vmatprep.subr.mxu0 0.0
      %2101 = vmatpush1.msra.mxu0 0.0
      %2102 = vmatprep.subr.mxu0 0.0
      %2103 = vmatpush1.msra.mxu0 0.0
      %2104 = vmatprep.subr.mxu0 0.0
      %2105 = vmatpush1.msra.mxu0 0.0
      %2106 = vmatprep.subr.mxu0 0.0
      %2107 = vmatpush1.msra.mxu0 0.0
      %2108 = vmatprep.subr.mxu0 0.0
      %2109 = vmatpush1.msra.mxu0 0.0
      %2110 = vmatprep.subr.mxu0 0.0
      %2111 = vmatpush1.msra.mxu0 0.0
      %2112 = vmatprep.subr.mxu0 0.0
      %2113 = vmatpush1.msra.mxu0 0.0
      %2114 = vmatprep.subr.mxu0 0.0
      %2115 = vmatpush1.msra.mxu0 0.0
      %2116 = vmatprep.subr.mxu0 0.0
      %2117 = vmatpush1.msra.mxu0 0.0
      %2118 = vmatprep.subr.mxu0 0.0
      %2119 = vmatpush1.msra.mxu0 0.0
      %2120 = vmatprep.subr.mxu0 0.0
      %2121 = vmatpush1.msra.mxu0 0.0
      %2122 = vmatprep.subr.mxu0 0.0
      %2123 = vmatpush1.msra.mxu0 0.0
      %2124 = vmatprep.subr.mxu0 0.0
      %2125 = vmatpush1.msra.mxu0 0.0
      %2126 = vmatprep.subr.mxu0 0.0
      %2127 = vmatpush1.msra.mxu0 0.0
      %2128 = vmatprep.subr.mxu0 0.0
      %2129 = vmatpush1.msra.mxu0 0.0
      %2130 = vmatprep.subr.mxu0 0.0
      %2131 = vmatpush1.msra.mxu0 0.0
      %2132 = vmatprep.subr.mxu0 0.0
      %2133 = vmatpush1.msra.mxu0 0.0
      %2134 = vmatprep.subr.mxu0 0.0
      %2135 = vmatpush1.msra.mxu0 0.0
      %2136 = vmatprep.subr.mxu0 0.0
      %2137 = vmatpush1.msra.mxu0 0.0
      %2138 = vmatprep.subr.mxu0 0.0
      %2139 = vmatpush1.msra.mxu0 0.0
      %2140 = vmatprep.subr.mxu0 0.0
      %2141 = vmatpush1.msra.mxu0 0.0
      %2142 = vmatprep.subr.mxu0 0.0
      %2143 = vmatpush1.msra.mxu0 0.0
      %2144 = vmatprep.subr.mxu0 0.0
      %2145 = vmatpush1.msra.mxu0 0.0
      %2146 = vmatprep.subr.mxu0 0.0
      %2147 = vmatpush1.msra.mxu0 0.0
      %2148 = vmatprep.mubr.f32.mxu0 0.0
      %2149 = vmatmul.mubr.f32.gmra.mrb[0].mxu0 %v2079
      %v2150 = vpop.f32.mrb[0].mxu0
      %v2151 = vadd.f32 %v2070, %v2150
      %v2152 = vpop.f32.mrb[0].mxu0
      %2153 = vmatprep.mubr.f32.mxu0 0.0
      %2154 = vmatmul.mubr.f32.gmra.mrb[0].mxu0 %v2082
      %v2155 = vpop.f32.mrb[0].mxu0
      %v2156 = vadd.f32 %v2075, %v2155
      %v2157 = vpop.f32.mrb[0].mxu0
      %2158 = vdwg.mxu0
      %s2159 = scalar_lea.vmem %s11, 32
      %v2160 = vld [vmem:[%s2159] sm:$0xff]
      %v2161 = vld [vmem:[%s2159 + $0x8] sm:$0xff]
      %v2163 = vsel %vm891, %v2160, 0
      %v2166 = vsel %vm891, %v2161, 0
      %2168 = vmatprep.subr.mxu0 0.0
      %2169 = vmatpush1.msra.mxu0 %v1819
      %2170 = vmatprep.subr.mxu0 0.0
      %2171 = vmatpush1.msra.mxu0 %v1820
      %2172 = vmatprep.subr.mxu0 0.0
      %2173 = vmatpush1.msra.mxu0 0.0
      %2174 = vmatprep.subr.mxu0 0.0
      %2175 = vmatpush1.msra.mxu0 0.0
      %2176 = vmatprep.subr.mxu0 0.0
      %2177 = vmatpush1.msra.mxu0 0.0
      %2178 = vmatprep.subr.mxu0 0.0
      %2179 = vmatpush1.msra.mxu0 0.0
      %2180 = vmatprep.subr.mxu0 0.0
      %2181 = vmatpush1.msra.mxu0 0.0
      %2182 = vmatprep.subr.mxu0 0.0
      %2183 = vmatpush1.msra.mxu0 0.0
      %2184 = vmatprep.subr.mxu0 0.0
      %2185 = vmatpush1.msra.mxu0 0.0
      %2186 = vmatprep.subr.mxu0 0.0
      %2187 = vmatpush1.msra.mxu0 0.0
      %2188 = vmatprep.subr.mxu0 0.0
      %2189 = vmatpush1.msra.mxu0 0.0
      %2190 = vmatprep.subr.mxu0 0.0
      %2191 = vmatpush1.msra.mxu0 0.0
      %2192 = vmatprep.subr.mxu0 0.0
      %2193 = vmatpush1.msra.mxu0 0.0
      %2194 = vmatprep.subr.mxu0 0.0
      %2195 = vmatpush1.msra.mxu0 0.0
      %2196 = vmatprep.subr.mxu0 0.0
      %2197 = vmatpush1.msra.mxu0 0.0
      %2198 = vmatprep.subr.mxu0 0.0
      %2199 = vmatpush1.msra.mxu0 0.0
      %2200 = vmatprep.subr.mxu0 0.0
      %2201 = vmatpush1.msra.mxu0 0.0
      %2202 = vmatprep.subr.mxu0 0.0
      %2203 = vmatpush1.msra.mxu0 0.0
      %2204 = vmatprep.subr.mxu0 0.0
      %2205 = vmatpush1.msra.mxu0 0.0
      %2206 = vmatprep.subr.mxu0 0.0
      %2207 = vmatpush1.msra.mxu0 0.0
      %2208 = vmatprep.subr.mxu0 0.0
      %2209 = vmatpush1.msra.mxu0 0.0
      %2210 = vmatprep.subr.mxu0 0.0
      %2211 = vmatpush1.msra.mxu0 0.0
      %2212 = vmatprep.subr.mxu0 0.0
      %2213 = vmatpush1.msra.mxu0 0.0
      %2214 = vmatprep.subr.mxu0 0.0
      %2215 = vmatpush1.msra.mxu0 0.0
      %2216 = vmatprep.subr.mxu0 0.0
      %2217 = vmatpush1.msra.mxu0 0.0
      %2218 = vmatprep.subr.mxu0 0.0
      %2219 = vmatpush1.msra.mxu0 0.0
      %2220 = vmatprep.subr.mxu0 0.0
      %2221 = vmatpush1.msra.mxu0 0.0
      %2222 = vmatprep.subr.mxu0 0.0
      %2223 = vmatpush1.msra.mxu0 0.0
      %2224 = vmatprep.subr.mxu0 0.0
      %2225 = vmatpush1.msra.mxu0 0.0
      %2226 = vmatprep.subr.mxu0 0.0
      %2227 = vmatpush1.msra.mxu0 0.0
      %2228 = vmatprep.subr.mxu0 0.0
      %2229 = vmatpush1.msra.mxu0 0.0
      %2230 = vmatprep.subr.mxu0 0.0
      %2231 = vmatpush1.msra.mxu0 0.0
      %2232 = vmatprep.mubr.f32.mxu0 0.0
      %2233 = vmatmul.mubr.f32.gmra.mrb[0].mxu0 %v2163
      %v2234 = vpop.f32.mrb[0].mxu0
      %v2235 = vadd.f32 0.0, %v2234
      %v2236 = vpop.f32.mrb[0].mxu0
      %2237 = vmatprep.mubr.f32.mxu0 0.0
      %2238 = vmatmul.mubr.f32.gmra.mrb[0].mxu0 %v2166
      %v2239 = vpop.f32.mrb[0].mxu0
      %v2240 = vadd.f32 0.0, %v2239
      %v2241 = vpop.f32.mrb[0].mxu0
      %2242 = vdwg.mxu0
      %s2243 = scalar_lea.vmem %s12, 64
      %v2244 = vld [vmem:[%s2243] sm:$0xff]
      %v2245 = vld [vmem:[%s2243 + $0x8] sm:$0xff]
      %v2246 = vld [vmem:[%s2243 + $0x10] sm:$0xff]
      %v2247 = vld [vmem:[%s2243 + $0x18] sm:$0xff]
      %v2249 = vsel %vm769, %v2235, 0
      %v2252 = vsel %vm769, %v2240, 0
      %2254 = vmatprep.subr.mxu0 0.0
      %2255 = vmatpush1.msra.mxu0 %v2244
      %2256 = vmatprep.subr.mxu0 0.0
      %2257 = vmatpush1.msra.mxu0 %v2245
      %2258 = vmatprep.subr.mxu0 0.0
      %2259 = vmatpush1.msra.mxu0 %v2246
      %2260 = vmatprep.subr.mxu0 0.0
      %2261 = vmatpush1.msra.mxu0 %v2247
      %2262 = vmatprep.subr.mxu0 0.0
      %2263 = vmatpush1.msra.mxu0 0.0
      %2264 = vmatprep.subr.mxu0 0.0
      %2265 = vmatpush1.msra.mxu0 0.0
      %2266 = vmatprep.subr.mxu0 0.0
      %2267 = vmatpush1.msra.mxu0 0.0
      %2268 = vmatprep.subr.mxu0 0.0
      %2269 = vmatpush1.msra.mxu0 0.0
      %2270 = vmatprep.subr.mxu0 0.0
      %2271 = vmatpush1.msra.mxu0 0.0
      %2272 = vmatprep.subr.mxu0 0.0
      %2273 = vmatpush1.msra.mxu0 0.0
      %2274 = vmatprep.subr.mxu0 0.0
      %2275 = vmatpush1.msra.mxu0 0.0
      %2276 = vmatprep.subr.mxu0 0.0
      %2277 = vmatpush1.msra.mxu0 0.0
      %2278 = vmatprep.subr.mxu0 0.0
      %2279 = vmatpush1.msra.mxu0 0.0
      %2280 = vmatprep.subr.mxu0 0.0
      %2281 = vmatpush1.msra.mxu0 0.0
      %2282 = vmatprep.subr.mxu0 0.0
      %2283 = vmatpush1.msra.mxu0 0.0
      %2284 = vmatprep.subr.mxu0 0.0
      %2285 = vmatpush1.msra.mxu0 0.0
      %2286 = vmatprep.subr.mxu0 0.0
      %2287 = vmatpush1.msra.mxu0 0.0
      %2288 = vmatprep.subr.mxu0 0.0
      %2289 = vmatpush1.msra.mxu0 0.0
      %2290 = vmatprep.subr.mxu0 0.0
      %2291 = vmatpush1.msra.mxu0 0.0
      %2292 = vmatprep.subr.mxu0 0.0
      %2293 = vmatpush1.msra.mxu0 0.0
      %2294 = vmatprep.subr.mxu0 0.0
      %2295 = vmatpush1.msra.mxu0 0.0
      %2296 = vmatprep.subr.mxu0 0.0
      %2297 = vmatpush1.msra.mxu0 0.0
      %2298 = vmatprep.subr.mxu0 0.0
      %2299 = vmatpush1.msra.mxu0 0.0
      %2300 = vmatprep.subr.mxu0 0.0
      %2301 = vmatpush1.msra.mxu0 0.0
      %2302 = vmatprep.subr.mxu0 0.0
      %2303 = vmatpush1.msra.mxu0 0.0
      %2304 = vmatprep.subr.mxu0 0.0
      %2305 = vmatpush1.msra.mxu0 0.0
      %2306 = vmatprep.subr.mxu0 0.0
      %2307 = vmatpush1.msra.mxu0 0.0
      %2308 = vmatprep.subr.mxu0 0.0
      %2309 = vmatpush1.msra.mxu0 0.0
      %2310 = vmatprep.subr.mxu0 0.0
      %2311 = vmatpush1.msra.mxu0 0.0
      %2312 = vmatprep.subr.mxu0 0.0
      %2313 = vmatpush1.msra.mxu0 0.0
      %2314 = vmatprep.subr.mxu0 0.0
      %2315 = vmatpush1.msra.mxu0 0.0
      %2316 = vmatprep.subr.mxu0 0.0
      %2317 = vmatpush1.msra.mxu0 0.0
      %2318 = vmatprep.mubr.f32.mxu0 0.0
      %2319 = vmatmul.mubr.f32.gmra.mrb[0].mxu0 %v2249
      %v2320 = vpop.f32.mrb[0].mxu0
      %v2321 = vadd.f32 0.0, %v2320
      %v2322 = vpop.f32.mrb[0].mxu0
      %2323 = vmatprep.mubr.f32.mxu0 0.0
      %2324 = vmatmul.mubr.f32.gmra.mrb[0].mxu0 %v2252
      %v2325 = vpop.f32.mrb[0].mxu0
      %v2326 = vadd.f32 0.0, %v2325
      %v2327 = vpop.f32.mrb[0].mxu0
      %2328 = vdwg.mxu0
      %v2329 = vadd.f32 %v2151, %v2321
      %v2330 = vadd.f32 %v2156, %v2326
      %s2331 = scalar_lea.vmem %s11, 48
      %v2332 = vld [vmem:[%s2331] sm:$0xff]
      %v2333 = vld [vmem:[%s2331 + $0x8] sm:$0xff]
      %v2335 = vsel %vm891, %v2332, 0
      %v2338 = vsel %vm891, %v2333, 0
      %2340 = vmatprep.subr.mxu0 0.0
      %2341 = vmatpush1.msra.mxu0 %v1819
      %2342 = vmatprep.subr.mxu0 0.0
      %2343 = vmatpush1.msra.mxu0 %v1820
      %2344 = vmatprep.subr.mxu0 0.0
      %2345 = vmatpush1.msra.mxu0 0.0
      %2346 = vmatprep.subr.mxu0 0.0
      %2347 = vmatpush1.msra.mxu0 0.0
      %2348 = vmatprep.subr.mxu0 0.0
      %2349 = vmatpush1.msra.mxu0 0.0
      %2350 = vmatprep.subr.mxu0 0.0
      %2351 = vmatpush1.msra.mxu0 0.0
      %2352 = vmatprep.subr.mxu0 0.0
      %2353 = vmatpush1.msra.mxu0 0.0
      %2354 = vmatprep.subr.mxu0 0.0
      %2355 = vmatpush1.msra.mxu0 0.0
      %2356 = vmatprep.subr.mxu0 0.0
      %2357 = vmatpush1.msra.mxu0 0.0
      %2358 = vmatprep.subr.mxu0 0.0
      %2359 = vmatpush1.msra.mxu0 0.0
      %2360 = vmatprep.subr.mxu0 0.0
      %2361 = vmatpush1.msra.mxu0 0.0
      %2362 = vmatprep.subr.mxu0 0.0
      %2363 = vmatpush1.msra.mxu0 0.0
      %2364 = vmatprep.subr.mxu0 0.0
      %2365 = vmatpush1.msra.mxu0 0.0
      %2366 = vmatprep.subr.mxu0 0.0
      %2367 = vmatpush1.msra.mxu0 0.0
      %2368 = vmatprep.subr.mxu0 0.0
      %2369 = vmatpush1.msra.mxu0 0.0
      %2370 = vmatprep.subr.mxu0 0.0
      %2371 = vmatpush1.msra.mxu0 0.0
      %2372 = vmatprep.subr.mxu0 0.0
      %2373 = vmatpush1.msra.mxu0 0.0
      %2374 = vmatprep.subr.mxu0 0.0
      %2375 = vmatpush1.msra.mxu0 0.0
      %2376 = vmatprep.subr.mxu0 0.0
      %2377 = vmatpush1.msra.mxu0 0.0
      %2378 = vmatprep.subr.mxu0 0.0
      %2379 = vmatpush1.msra.mxu0 0.0
      %2380 = vmatprep.subr.mxu0 0.0
      %2381 = vmatpush1.msra.mxu0 0.0
      %2382 = vmatprep.subr.mxu0 0.0
      %2383 = vmatpush1.msra.mxu0 0.0
      %2384 = vmatprep.subr.mxu0 0.0
      %2385 = vmatpush1.msra.mxu0 0.0
      %2386 = vmatprep.subr.mxu0 0.0
      %2387 = vmatpush1.msra.mxu0 0.0
      %2388 = vmatprep.subr.mxu0 0.0
      %2389 = vmatpush1.msra.mxu0 0.0
      %2390 = vmatprep.subr.mxu0 0.0
      %2391 = vmatpush1.msra.mxu0 0.0
      %2392 = vmatprep.subr.mxu0 0.0
      %2393 = vmatpush1.msra.mxu0 0.0
      %2394 = vmatprep.subr.mxu0 0.0
      %2395 = vmatpush1.msra.mxu0 0.0
      %2396 = vmatprep.subr.mxu0 0.0
      %2397 = vmatpush1.msra.mxu0 0.0
      %2398 = vmatprep.subr.mxu0 0.0
      %2399 = vmatpush1.msra.mxu0 0.0
      %2400 = vmatprep.subr.mxu0 0.0
      %2401 = vmatpush1.msra.mxu0 0.0
      %2402 = vmatprep.subr.mxu0 0.0
      %2403 = vmatpush1.msra.mxu0 0.0
      %2404 = vmatprep.mubr.f32.mxu0 0.0
      %2405 = vmatmul.mubr.f32.gmra.mrb[0].mxu0 %v2335
      %v2406 = vpop.f32.mrb[0].mxu0
      %v2407 = vadd.f32 0.0, %v2406
      %v2408 = vpop.f32.mrb[0].mxu0
      %2409 = vmatprep.mubr.f32.mxu0 0.0
      %2410 = vmatmul.mubr.f32.gmra.mrb[0].mxu0 %v2338
      %v2411 = vpop.f32.mrb[0].mxu0
      %v2412 = vadd.f32 0.0, %v2411
      %v2413 = vpop.f32.mrb[0].mxu0
      %2414 = vdwg.mxu0
      %s2415 = scalar_lea.vmem %s12, 96
      %v2416 = vld [vmem:[%s2415] sm:$0xff]
      %v2417 = vld [vmem:[%s2415 + $0x8] sm:$0xff]
      %v2418 = vld [vmem:[%s2415 + $0x10] sm:$0xff]
      %v2419 = vld [vmem:[%s2415 + $0x18] sm:$0xff]
      %v2421 = vsel %vm769, %v2407, 0
      %v2424 = vsel %vm769, %v2412, 0
      %2426 = vmatprep.subr.mxu0 0.0
      %2427 = vmatpush1.msra.mxu0 %v2416
      %2428 = vmatprep.subr.mxu0 0.0
      %2429 = vmatpush1.msra.mxu0 %v2417
      %2430 = vmatprep.subr.mxu0 0.0
      %2431 = vmatpush1.msra.mxu0 %v2418
      %2432 = vmatprep.subr.mxu0 0.0
      %2433 = vmatpush1.msra.mxu0 %v2419
      %2434 = vmatprep.subr.mxu0 0.0
      %2435 = vmatpush1.msra.mxu0 0.0
      %2436 = vmatprep.subr.mxu0 0.0
      %2437 = vmatpush1.msra.mxu0 0.0
      %2438 = vmatprep.subr.mxu0 0.0
      %2439 = vmatpush1.msra.mxu0 0.0
      %2440 = vmatprep.subr.mxu0 0.0
      %2441 = vmatpush1.msra.mxu0 0.0
      %2442 = vmatprep.subr.mxu0 0.0
      %2443 = vmatpush1.msra.mxu0 0.0
      %2444 = vmatprep.subr.mxu0 0.0
      %2445 = vmatpush1.msra.mxu0 0.0
      %2446 = vmatprep.subr.mxu0 0.0
      %2447 = vmatpush1.msra.mxu0 0.0
      %2448 = vmatprep.subr.mxu0 0.0
      %2449 = vmatpush1.msra.mxu0 0.0
      %2450 = vmatprep.subr.mxu0 0.0
      %2451 = vmatpush1.msra.mxu0 0.0
      %2452 = vmatprep.subr.mxu0 0.0
      %2453 = vmatpush1.msra.mxu0 0.0
      %2454 = vmatprep.subr.mxu0 0.0
      %2455 = vmatpush1.msra.mxu0 0.0
      %2456 = vmatprep.subr.mxu0 0.0
      %2457 = vmatpush1.msra.mxu0 0.0
      %2458 = vmatprep.subr.mxu0 0.0
      %2459 = vmatpush1.msra.mxu0 0.0
      %2460 = vmatprep.subr.mxu0 0.0
      %2461 = vmatpush1.msra.mxu0 0.0
      %2462 = vmatprep.subr.mxu0 0.0
      %2463 = vmatpush1.msra.mxu0 0.0
      %2464 = vmatprep.subr.mxu0 0.0
      %2465 = vmatpush1.msra.mxu0 0.0
      %2466 = vmatprep.subr.mxu0 0.0
      %2467 = vmatpush1.msra.mxu0 0.0
      %2468 = vmatprep.subr.mxu0 0.0
      %2469 = vmatpush1.msra.mxu0 0.0
      %2470 = vmatprep.subr.mxu0 0.0
      %2471 = vmatpush1.msra.mxu0 0.0
      %2472 = vmatprep.subr.mxu0 0.0
      %2473 = vmatpush1.msra.mxu0 0.0
      %2474 = vmatprep.subr.mxu0 0.0
      %2475 = vmatpush1.msra.mxu0 0.0
      %2476 = vmatprep.subr.mxu0 0.0
      %2477 = vmatpush1.msra.mxu0 0.0
      %2478 = vmatprep.subr.mxu0 0.0
      %2479 = vmatpush1.msra.mxu0 0.0
      %2480 = vmatprep.subr.mxu0 0.0
      %2481 = vmatpush1.msra.mxu0 0.0
      %2482 = vmatprep.subr.mxu0 0.0
      %2483 = vmatpush1.msra.mxu0 0.0
      %2484 = vmatprep.subr.mxu0 0.0
      %2485 = vmatpush1.msra.mxu0 0.0
      %2486 = vmatprep.subr.mxu0 0.0
      %2487 = vmatpush1.msra.mxu0 0.0
      %2488 = vmatprep.subr.mxu0 0.0
      %2489 = vmatpush1.msra.mxu0 0.0
      %2490 = vmatprep.mubr.f32.mxu0 0.0
      %2491 = vmatmul.mubr.f32.gmra.mrb[0].mxu0 %v2421
      %v2492 = vpop.f32.mrb[0].mxu0
      %v2493 = vadd.f32 0.0, %v2492
      %v2494 = vpop.f32.mrb[0].mxu0
      %2495 = vmatprep.mubr.f32.mxu0 0.0
      %2496 = vmatmul.mubr.f32.gmra.mrb[0].mxu0 %v2424
      %v2497 = vpop.f32.mrb[0].mxu0
      %v2498 = vadd.f32 0.0, %v2497
      %v2499 = vpop.f32.mrb[0].mxu0
      %2500 = vdwg.mxu0
      %v2501 = vadd.f32 %v2329, %v2493
      %v2502 = vadd.f32 %v2330, %v2498
      %s2503 = scalar_lea.vmem %s11, 64
      %v2504 = vld [vmem:[%s2503] sm:$0xff]
      %v2505 = vld [vmem:[%s2503 + $0x8] sm:$0xff]
      %v2507 = vsel %vm891, %v2504, 0
      %v2510 = vsel %vm891, %v2505, 0
      %2512 = vmatprep.subr.mxu0 0.0
      %2513 = vmatpush1.msra.mxu0 %v1819
      %2514 = vmatprep.subr.mxu0 0.0
      %2515 = vmatpush1.msra.mxu0 %v1820
      %2516 = vmatprep.subr.mxu0 0.0
      %2517 = vmatpush1.msra.mxu0 0.0
      %2518 = vmatprep.subr.mxu0 0.0
      %2519 = vmatpush1.msra.mxu0 0.0
      %2520 = vmatprep.subr.mxu0 0.0
      %2521 = vmatpush1.msra.mxu0 0.0
      %2522 = vmatprep.subr.mxu0 0.0
      %2523 = vmatpush1.msra.mxu0 0.0
      %2524 = vmatprep.subr.mxu0 0.0
      %2525 = vmatpush1.msra.mxu0 0.0
      %2526 = vmatprep.subr.mxu0 0.0
      %2527 = vmatpush1.msra.mxu0 0.0
      %2528 = vmatprep.subr.mxu0 0.0
      %2529 = vmatpush1.msra.mxu0 0.0
      %2530 = vmatprep.subr.mxu0 0.0
      %2531 = vmatpush1.msra.mxu0 0.0
      %2532 = vmatprep.subr.mxu0 0.0
      %2533 = vmatpush1.msra.mxu0 0.0
      %2534 = vmatprep.subr.mxu0 0.0
      %2535 = vmatpush1.msra.mxu0 0.0
      %2536 = vmatprep.subr.mxu0 0.0
      %2537 = vmatpush1.msra.mxu0 0.0
      %2538 = vmatprep.subr.mxu0 0.0
      %2539 = vmatpush1.msra.mxu0 0.0
      %2540 = vmatprep.subr.mxu0 0.0
      %2541 = vmatpush1.msra.mxu0 0.0
      %2542 = vmatprep.subr.mxu0 0.0
      %2543 = vmatpush1.msra.mxu0 0.0
      %2544 = vmatprep.subr.mxu0 0.0
      %2545 = vmatpush1.msra.mxu0 0.0
      %2546 = vmatprep.subr.mxu0 0.0
      %2547 = vmatpush1.msra.mxu0 0.0
      %2548 = vmatprep.subr.mxu0 0.0
      %2549 = vmatpush1.msra.mxu0 0.0
      %2550 = vmatprep.subr.mxu0 0.0
      %2551 = vmatpush1.msra.mxu0 0.0
      %2552 = vmatprep.subr.mxu0 0.0
      %2553 = vmatpush1.msra.mxu0 0.0
      %2554 = vmatprep.subr.mxu0 0.0
      %2555 = vmatpush1.msra.mxu0 0.0
      %2556 = vmatprep.subr.mxu0 0.0
      %2557 = vmatpush1.msra.mxu0 0.0
      %2558 = vmatprep.subr.mxu0 0.0
      %2559 = vmatpush1.msra.mxu0 0.0
      %2560 = vmatprep.subr.mxu0 0.0
      %2561 = vmatpush1.msra.mxu0 0.0
      %2562 = vmatprep.subr.mxu0 0.0
      %2563 = vmatpush1.msra.mxu0 0.0
      %2564 = vmatprep.subr.mxu0 0.0
      %2565 = vmatpush1.msra.mxu0 0.0
      %2566 = vmatprep.subr.mxu0 0.0
      %2567 = vmatpush1.msra.mxu0 0.0
      %2568 = vmatprep.subr.mxu0 0.0
      %2569 = vmatpush1.msra.mxu0 0.0
      %2570 = vmatprep.subr.mxu0 0.0
      %2571 = vmatpush1.msra.mxu0 0.0
      %2572 = vmatprep.subr.mxu0 0.0
      %2573 = vmatpush1.msra.mxu0 0.0
      %2574 = vmatprep.subr.mxu0 0.0
      %2575 = vmatpush1.msra.mxu0 0.0
      %2576 = vmatprep.mubr.f32.mxu0 0.0
      %2577 = vmatmul.mubr.f32.gmra.mrb[0].mxu0 %v2507
      %v2578 = vpop.f32.mrb[0].mxu0
      %v2579 = vadd.f32 0.0, %v2578
      %v2580 = vpop.f32.mrb[0].mxu0
      %2581 = vmatprep.mubr.f32.mxu0 0.0
      %2582 = vmatmul.mubr.f32.gmra.mrb[0].mxu0 %v2510
      %v2583 = vpop.f32.mrb[0].mxu0
      %v2584 = vadd.f32 0.0, %v2583
      %v2585 = vpop.f32.mrb[0].mxu0
      %2586 = vdwg.mxu0
      %s2587 = scalar_lea.vmem %s12, 128
      %v2588 = vld [vmem:[%s2587] sm:$0xff]
      %v2589 = vld [vmem:[%s2587 + $0x8] sm:$0xff]
      %v2590 = vld [vmem:[%s2587 + $0x10] sm:$0xff]
      %v2591 = vld [vmem:[%s2587 + $0x18] sm:$0xff]
      %v2593 = vsel %vm769, %v2579, 0
      %v2596 = vsel %vm769, %v2584, 0
      %2598 = vmatprep.subr.mxu0 0.0
      %2599 = vmatpush1.msra.mxu0 %v2588
      %2600 = vmatprep.subr.mxu0 0.0
      %2601 = vmatpush1.msra.mxu0 %v2589
      %2602 = vmatprep.subr.mxu0 0.0
      %2603 = vmatpush1.msra.mxu0 %v2590
      %2604 = vmatprep.subr.mxu0 0.0
      %2605 = vmatpush1.msra.mxu0 %v2591
      %2606 = vmatprep.subr.mxu0 0.0
      %2607 = vmatpush1.msra.mxu0 0.0
      %2608 = vmatprep.subr.mxu0 0.0
      %2609 = vmatpush1.msra.mxu0 0.0
      %2610 = vmatprep.subr.mxu0 0.0
      %2611 = vmatpush1.msra.mxu0 0.0
      %2612 = vmatprep.subr.mxu0 0.0
      %2613 = vmatpush1.msra.mxu0 0.0
      %2614 = vmatprep.subr.mxu0 0.0
      %2615 = vmatpush1.msra.mxu0 0.0
      %2616 = vmatprep.subr.mxu0 0.0
      %2617 = vmatpush1.msra.mxu0 0.0
      %2618 = vmatprep.subr.mxu0 0.0
      %2619 = vmatpush1.msra.mxu0 0.0
      %2620 = vmatprep.subr.mxu0 0.0
      %2621 = vmatpush1.msra.mxu0 0.0
      %2622 = vmatprep.subr.mxu0 0.0
      %2623 = vmatpush1.msra.mxu0 0.0
      %2624 = vmatprep.subr.mxu0 0.0
      %2625 = vmatpush1.msra.mxu0 0.0
      %2626 = vmatprep.subr.mxu0 0.0
      %2627 = vmatpush1.msra.mxu0 0.0
      %2628 = vmatprep.subr.mxu0 0.0
      %2629 = vmatpush1.msra.mxu0 0.0
      %2630 = vmatprep.subr.mxu0 0.0
      %2631 = vmatpush1.msra.mxu0 0.0
      %2632 = vmatprep.subr.mxu0 0.0
      %2633 = vmatpush1.msra.mxu0 0.0
      %2634 = vmatprep.subr.mxu0 0.0
      %2635 = vmatpush1.msra.mxu0 0.0
      %2636 = vmatprep.subr.mxu0 0.0
      %2637 = vmatpush1.msra.mxu0 0.0
      %2638 = vmatprep.subr.mxu0 0.0
      %2639 = vmatpush1.msra.mxu0 0.0
      %2640 = vmatprep.subr.mxu0 0.0
      %2641 = vmatpush1.msra.mxu0 0.0
      %2642 = vmatprep.subr.mxu0 0.0
      %2643 = vmatpush1.msra.mxu0 0.0
      %2644 = vmatprep.subr.mxu0 0.0
      %2645 = vmatpush1.msra.mxu0 0.0
      %2646 = vmatprep.subr.mxu0 0.0
      %2647 = vmatpush1.msra.mxu0 0.0
      %2648 = vmatprep.subr.mxu0 0.0
      %2649 = vmatpush1.msra.mxu0 0.0
      %2650 = vmatprep.subr.mxu0 0.0
      %2651 = vmatpush1.msra.mxu0 0.0
      %2652 = vmatprep.subr.mxu0 0.0
      %2653 = vmatpush1.msra.mxu0 0.0
      %2654 = vmatprep.subr.mxu0 0.0
      %2655 = vmatpush1.msra.mxu0 0.0
      %2656 = vmatprep.subr.mxu0 0.0
      %2657 = vmatpush1.msra.mxu0 0.0
      %2658 = vmatprep.subr.mxu0 0.0
      %2659 = vmatpush1.msra.mxu0 0.0
      %2660 = vmatprep.subr.mxu0 0.0
      %2661 = vmatpush1.msra.mxu0 0.0
      %2662 = vmatprep.mubr.f32.mxu0 0.0
      %2663 = vmatmul.mubr.f32.gmra.mrb[0].mxu0 %v2593
      %v2664 = vpop.f32.mrb[0].mxu0
      %v2665 = vadd.f32 0.0, %v2664
      %v2666 = vpop.f32.mrb[0].mxu0
      %2667 = vmatprep.mubr.f32.mxu0 0.0
      %2668 = vmatmul.mubr.f32.gmra.mrb[0].mxu0 %v2596
      %v2669 = vpop.f32.mrb[0].mxu0
      %v2670 = vadd.f32 0.0, %v2669
      %v2671 = vpop.f32.mrb[0].mxu0
      %2672 = vdwg.mxu0
      %v2673 = vadd.f32 %v2501, %v2665
      %v2674 = vadd.f32 %v2502, %v2670
      %s2675 = scalar_lea.vmem %s11, 80
      %v2676 = vld [vmem:[%s2675] sm:$0xff]
      %v2677 = vld [vmem:[%s2675 + $0x8] sm:$0xff]
      %v2679 = vsel %vm891, %v2676, 0
      %v2682 = vsel %vm891, %v2677, 0
      %2684 = vmatprep.subr.mxu0 0.0
      %2685 = vmatpush1.msra.mxu0 %v1819
      %2686 = vmatprep.subr.mxu0 0.0
      %2687 = vmatpush1.msra.mxu0 %v1820
      %2688 = vmatprep.subr.mxu0 0.0
      %2689 = vmatpush1.msra.mxu0 0.0
      %2690 = vmatprep.subr.mxu0 0.0
      %2691 = vmatpush1.msra.mxu0 0.0
      %2692 = vmatprep.subr.mxu0 0.0
      %2693 = vmatpush1.msra.mxu0 0.0
      %2694 = vmatprep.subr.mxu0 0.0
      %2695 = vmatpush1.msra.mxu0 0.0
      %2696 = vmatprep.subr.mxu0 0.0
      %2697 = vmatpush1.msra.mxu0 0.0
      %2698 = vmatprep.subr.mxu0 0.0
      %2699 = vmatpush1.msra.mxu0 0.0
      %2700 = vmatprep.subr.mxu0 0.0
      %2701 = vmatpush1.msra.mxu0 0.0
      %2702 = vmatprep.subr.mxu0 0.0
      %2703 = vmatpush1.msra.mxu0 0.0
      %2704 = vmatprep.subr.mxu0 0.0
      %2705 = vmatpush1.msra.mxu0 0.0
      %2706 = vmatprep.subr.mxu0 0.0
      %2707 = vmatpush1.msra.mxu0 0.0
      %2708 = vmatprep.subr.mxu0 0.0
      %2709 = vmatpush1.msra.mxu0 0.0
      %2710 = vmatprep.subr.mxu0 0.0
      %2711 = vmatpush1.msra.mxu0 0.0
      %2712 = vmatprep.subr.mxu0 0.0
      %2713 = vmatpush1.msra.mxu0 0.0
      %2714 = vmatprep.subr.mxu0 0.0
      %2715 = vmatpush1.msra.mxu0 0.0
      %2716 = vmatprep.subr.mxu0 0.0
      %2717 = vmatpush1.msra.mxu0 0.0
      %2718 = vmatprep.subr.mxu0 0.0
      %2719 = vmatpush1.msra.mxu0 0.0
      %2720 = vmatprep.subr.mxu0 0.0
      %2721 = vmatpush1.msra.mxu0 0.0
      %2722 = vmatprep.subr.mxu0 0.0
      %2723 = vmatpush1.msra.mxu0 0.0
      %2724 = vmatprep.subr.mxu0 0.0
      %2725 = vmatpush1.msra.mxu0 0.0
      %2726 = vmatprep.subr.mxu0 0.0
      %2727 = vmatpush1.msra.mxu0 0.0
      %2728 = vmatprep.subr.mxu0 0.0
      %2729 = vmatpush1.msra.mxu0 0.0
      %2730 = vmatprep.subr.mxu0 0.0
      %2731 = vmatpush1.msra.mxu0 0.0
      %2732 = vmatprep.subr.mxu0 0.0
      %2733 = vmatpush1.msra.mxu0 0.0
      %2734 = vmatprep.subr.mxu0 0.0
      %2735 = vmatpush1.msra.mxu0 0.0
      %2736 = vmatprep.subr.mxu0 0.0
      %2737 = vmatpush1.msra.mxu0 0.0
      %2738 = vmatprep.subr.mxu0 0.0
      %2739 = vmatpush1.msra.mxu0 0.0
      %2740 = vmatprep.subr.mxu0 0.0
      %2741 = vmatpush1.msra.mxu0 0.0
      %2742 = vmatprep.subr.mxu0 0.0
      %2743 = vmatpush1.msra.mxu0 0.0
      %2744 = vmatprep.subr.mxu0 0.0
      %2745 = vmatpush1.msra.mxu0 0.0
      %2746 = vmatprep.subr.mxu0 0.0
      %2747 = vmatpush1.msra.mxu0 0.0
      %2748 = vmatprep.mubr.f32.mxu0 0.0
      %2749 = vmatmul.mubr.f32.gmra.mrb[0].mxu0 %v2679
      %v2750 = vpop.f32.mrb[0].mxu0
      %v2751 = vadd.f32 0.0, %v2750
      %v2752 = vpop.f32.mrb[0].mxu0
      %2753 = vmatprep.mubr.f32.mxu0 0.0
      %2754 = vmatmul.mubr.f32.gmra.mrb[0].mxu0 %v2682
      %v2755 = vpop.f32.mrb[0].mxu0
      %v2756 = vadd.f32 0.0, %v2755
      %v2757 = vpop.f32.mrb[0].mxu0
      %2758 = vdwg.mxu0
      %s2759 = scalar_lea.vmem %s12, 160
      %v2760 = vld [vmem:[%s2759] sm:$0xff]
      %v2761 = vld [vmem:[%s2759 + $0x8] sm:$0xff]
      %v2762 = vld [vmem:[%s2759 + $0x10] sm:$0xff]
      %v2763 = vld [vmem:[%s2759 + $0x18] sm:$0xff]
      %v2765 = vsel %vm769, %v2751, 0
      %v2768 = vsel %vm769, %v2756, 0
      %2770 = vmatprep.subr.mxu0 0.0
      %2771 = vmatpush1.msra.mxu0 %v2760
      %2772 = vmatprep.subr.mxu0 0.0
      %2773 = vmatpush1.msra.mxu0 %v2761
      %2774 = vmatprep.subr.mxu0 0.0
      %2775 = vmatpush1.msra.mxu0 %v2762
      %2776 = vmatprep.subr.mxu0 0.0
      %2777 = vmatpush1.msra.mxu0 %v2763
      %2778 = vmatprep.subr.mxu0 0.0
      %2779 = vmatpush1.msra.mxu0 0.0
      %2780 = vmatprep.subr.mxu0 0.0
      %2781 = vmatpush1.msra.mxu0 0.0
      %2782 = vmatprep.subr.mxu0 0.0
      %2783 = vmatpush1.msra.mxu0 0.0
      %2784 = vmatprep.subr.mxu0 0.0
      %2785 = vmatpush1.msra.mxu0 0.0
      %2786 = vmatprep.subr.mxu0 0.0
      %2787 = vmatpush1.msra.mxu0 0.0
      %2788 = vmatprep.subr.mxu0 0.0
      %2789 = vmatpush1.msra.mxu0 0.0
      %2790 = vmatprep.subr.mxu0 0.0
      %2791 = vmatpush1.msra.mxu0 0.0
      %2792 = vmatprep.subr.mxu0 0.0
      %2793 = vmatpush1.msra.mxu0 0.0
      %2794 = vmatprep.subr.mxu0 0.0
      %2795 = vmatpush1.msra.mxu0 0.0
      %2796 = vmatprep.subr.mxu0 0.0
      %2797 = vmatpush1.msra.mxu0 0.0
      %2798 = vmatprep.subr.mxu0 0.0
      %2799 = vmatpush1.msra.mxu0 0.0
      %2800 = vmatprep.subr.mxu0 0.0
      %2801 = vmatpush1.msra.mxu0 0.0
      %2802 = vmatprep.subr.mxu0 0.0
      %2803 = vmatpush1.msra.mxu0 0.0
      %2804 = vmatprep.subr.mxu0 0.0
      %2805 = vmatpush1.msra.mxu0 0.0
      %2806 = vmatprep.subr.mxu0 0.0
      %2807 = vmatpush1.msra.mxu0 0.0
      %2808 = vmatprep.subr.mxu0 0.0
      %2809 = vmatpush1.msra.mxu0 0.0
      %2810 = vmatprep.subr.mxu0 0.0
      %2811 = vmatpush1.msra.mxu0 0.0
      %2812 = vmatprep.subr.mxu0 0.0
      %2813 = vmatpush1.msra.mxu0 0.0
      %2814 = vmatprep.subr.mxu0 0.0
      %2815 = vmatpush1.msra.mxu0 0.0
      %2816 = vmatprep.subr.mxu0 0.0
      %2817 = vmatpush1.msra.mxu0 0.0
      %2818 = vmatprep.subr.mxu0 0.0
      %2819 = vmatpush1.msra.mxu0 0.0
      %2820 = vmatprep.subr.mxu0 0.0
      %2821 = vmatpush1.msra.mxu0 0.0
      %2822 = vmatprep.subr.mxu0 0.0
      %2823 = vmatpush1.msra.mxu0 0.0
      %2824 = vmatprep.subr.mxu0 0.0
      %2825 = vmatpush1.msra.mxu0 0.0
      %2826 = vmatprep.subr.mxu0 0.0
      %2827 = vmatpush1.msra.mxu0 0.0
      %2828 = vmatprep.subr.mxu0 0.0
      %2829 = vmatpush1.msra.mxu0 0.0
      %2830 = vmatprep.subr.mxu0 0.0
      %2831 = vmatpush1.msra.mxu0 0.0
      %2832 = vmatprep.subr.mxu0 0.0
      %2833 = vmatpush1.msra.mxu0 0.0
      %2834 = vmatprep.mubr.f32.mxu0 0.0
      %2835 = vmatmul.mubr.f32.gmra.mrb[0].mxu0 %v2765
      %v2836 = vpop.f32.mrb[0].mxu0
      %v2837 = vadd.f32 0.0, %v2836
      %v2838 = vpop.f32.mrb[0].mxu0
      %2839 = vmatprep.mubr.f32.mxu0 0.0
      %2840 = vmatmul.mubr.f32.gmra.mrb[0].mxu0 %v2768
      %v2841 = vpop.f32.mrb[0].mxu0
      %v2842 = vadd.f32 0.0, %v2841
      %v2843 = vpop.f32.mrb[0].mxu0
      %2844 = vdwg.mxu0
      %v2845 = vadd.f32 %v2673, %v2837
      %v2846 = vadd.f32 %v2674, %v2842
      %s2847 = scalar_lea.vmem %s11, 96
      %v2848 = vld [vmem:[%s2847] sm:$0xff]
      %v2849 = vld [vmem:[%s2847 + $0x8] sm:$0xff]
      %v2851 = vsel %vm891, %v2848, 0
      %v2854 = vsel %vm891, %v2849, 0
      %2856 = vmatprep.subr.mxu0 0.0
      %2857 = vmatpush1.msra.mxu0 %v1819
      %2858 = vmatprep.subr.mxu0 0.0
      %2859 = vmatpush1.msra.mxu0 %v1820
      %2860 = vmatprep.subr.mxu0 0.0
      %2861 = vmatpush1.msra.mxu0 0.0
      %2862 = vmatprep.subr.mxu0 0.0
      %2863 = vmatpush1.msra.mxu0 0.0
      %2864 = vmatprep.subr.mxu0 0.0
      %2865 = vmatpush1.msra.mxu0 0.0
      %2866 = vmatprep.subr.mxu0 0.0
      %2867 = vmatpush1.msra.mxu0 0.0
      %2868 = vmatprep.subr.mxu0 0.0
      %2869 = vmatpush1.msra.mxu0 0.0
      %2870 = vmatprep.subr.mxu0 0.0
      %2871 = vmatpush1.msra.mxu0 0.0
      %2872 = vmatprep.subr.mxu0 0.0
      %2873 = vmatpush1.msra.mxu0 0.0
      %2874 = vmatprep.subr.mxu0 0.0
      %2875 = vmatpush1.msra.mxu0 0.0
      %2876 = vmatprep.subr.mxu0 0.0
      %2877 = vmatpush1.msra.mxu0 0.0
      %2878 = vmatprep.subr.mxu0 0.0
      %2879 = vmatpush1.msra.mxu0 0.0
      %2880 = vmatprep.subr.mxu0 0.0
      %2881 = vmatpush1.msra.mxu0 0.0
      %2882 = vmatprep.subr.mxu0 0.0
      %2883 = vmatpush1.msra.mxu0 0.0
      %2884 = vmatprep.subr.mxu0 0.0
      %2885 = vmatpush1.msra.mxu0 0.0
      %2886 = vmatprep.subr.mxu0 0.0
      %2887 = vmatpush1.msra.mxu0 0.0
      %2888 = vmatprep.subr.mxu0 0.0
      %2889 = vmatpush1.msra.mxu0 0.0
      %2890 = vmatprep.subr.mxu0 0.0
      %2891 = vmatpush1.msra.mxu0 0.0
      %2892 = vmatprep.subr.mxu0 0.0
      %2893 = vmatpush1.msra.mxu0 0.0
      %2894 = vmatprep.subr.mxu0 0.0
      %2895 = vmatpush1.msra.mxu0 0.0
      %2896 = vmatprep.subr.mxu0 0.0
      %2897 = vmatpush1.msra.mxu0 0.0
      %2898 = vmatprep.subr.mxu0 0.0
      %2899 = vmatpush1.msra.mxu0 0.0
      %2900 = vmatprep.subr.mxu0 0.0
      %2901 = vmatpush1.msra.mxu0 0.0
      %2902 = vmatprep.subr.mxu0 0.0
      %2903 = vmatpush1.msra.mxu0 0.0
      %2904 = vmatprep.subr.mxu0 0.0
      %2905 = vmatpush1.msra.mxu0 0.0
      %2906 = vmatprep.subr.mxu0 0.0
      %2907 = vmatpush1.msra.mxu0 0.0
      %2908 = vmatprep.subr.mxu0 0.0
      %2909 = vmatpush1.msra.mxu0 0.0
      %2910 = vmatprep.subr.mxu0 0.0
      %2911 = vmatpush1.msra.mxu0 0.0
      %2912 = vmatprep.subr.mxu0 0.0
      %2913 = vmatpush1.msra.mxu0 0.0
      %2914 = vmatprep.subr.mxu0 0.0
      %2915 = vmatpush1.msra.mxu0 0.0
      %2916 = vmatprep.subr.mxu0 0.0
      %2917 = vmatpush1.msra.mxu0 0.0
      %2918 = vmatprep.subr.mxu0 0.0
      %2919 = vmatpush1.msra.mxu0 0.0
      %2920 = vmatprep.mubr.f32.mxu0 0.0
      %2921 = vmatmul.mubr.f32.gmra.mrb[0].mxu0 %v2851
      %v2922 = vpop.f32.mrb[0].mxu0
      %v2923 = vadd.f32 0.0, %v2922
      %v2924 = vpop.f32.mrb[0].mxu0
      %2925 = vmatprep.mubr.f32.mxu0 0.0
      %2926 = vmatmul.mubr.f32.gmra.mrb[0].mxu0 %v2854
      %v2927 = vpop.f32.mrb[0].mxu0
      %v2928 = vadd.f32 0.0, %v2927
      %v2929 = vpop.f32.mrb[0].mxu0
      %2930 = vdwg.mxu0
      %s2931 = scalar_lea.vmem %s12, 192
      %v2932 = vld [vmem:[%s2931] sm:$0xff]
      %v2933 = vld [vmem:[%s2931 + $0x8] sm:$0xff]
      %v2934 = vld [vmem:[%s2931 + $0x10] sm:$0xff]
      %v2935 = vld [vmem:[%s2931 + $0x18] sm:$0xff]
      %v2937 = vsel %vm769, %v2923, 0
      %v2940 = vsel %vm769, %v2928, 0
      %2942 = vmatprep.subr.mxu0 0.0
      %2943 = vmatpush1.msra.mxu0 %v2932
      %2944 = vmatprep.subr.mxu0 0.0
      %2945 = vmatpush1.msra.mxu0 %v2933
      %2946 = vmatprep.subr.mxu0 0.0
      %2947 = vmatpush1.msra.mxu0 %v2934
      %2948 = vmatprep.subr.mxu0 0.0
      %2949 = vmatpush1.msra.mxu0 %v2935
      %2950 = vmatprep.subr.mxu0 0.0
      %2951 = vmatpush1.msra.mxu0 0.0
      %2952 = vmatprep.subr.mxu0 0.0
      %2953 = vmatpush1.msra.mxu0 0.0
      %2954 = vmatprep.subr.mxu0 0.0
      %2955 = vmatpush1.msra.mxu0 0.0
      %2956 = vmatprep.subr.mxu0 0.0
      %2957 = vmatpush1.msra.mxu0 0.0
      %2958 = vmatprep.subr.mxu0 0.0
      %2959 = vmatpush1.msra.mxu0 0.0
      %2960 = vmatprep.subr.mxu0 0.0
      %2961 = vmatpush1.msra.mxu0 0.0
      %2962 = vmatprep.subr.mxu0 0.0
      %2963 = vmatpush1.msra.mxu0 0.0
      %2964 = vmatprep.subr.mxu0 0.0
      %2965 = vmatpush1.msra.mxu0 0.0
      %2966 = vmatprep.subr.mxu0 0.0
      %2967 = vmatpush1.msra.mxu0 0.0
      %2968 = vmatprep.subr.mxu0 0.0
      %2969 = vmatpush1.msra.mxu0 0.0
      %2970 = vmatprep.subr.mxu0 0.0
      %2971 = vmatpush1.msra.mxu0 0.0
      %2972 = vmatprep.subr.mxu0 0.0
      %2973 = vmatpush1.msra.mxu0 0.0
      %2974 = vmatprep.subr.mxu0 0.0
      %2975 = vmatpush1.msra.mxu0 0.0
      %2976 = vmatprep.subr.mxu0 0.0
      %2977 = vmatpush1.msra.mxu0 0.0
      %2978 = vmatprep.subr.mxu0 0.0
      %2979 = vmatpush1.msra.mxu0 0.0
      %2980 = vmatprep.subr.mxu0 0.0
      %2981 = vmatpush1.msra.mxu0 0.0
      %2982 = vmatprep.subr.mxu0 0.0
      %2983 = vmatpush1.msra.mxu0 0.0
      %2984 = vmatprep.subr.mxu0 0.0
      %2985 = vmatpush1.msra.mxu0 0.0
      %2986 = vmatprep.subr.mxu0 0.0
      %2987 = vmatpush1.msra.mxu0 0.0
      %2988 = vmatprep.subr.mxu0 0.0
      %2989 = vmatpush1.msra.mxu0 0.0
      %2990 = vmatprep.subr.mxu0 0.0
      %2991 = vmatpush1.msra.mxu0 0.0
      %2992 = vmatprep.subr.mxu0 0.0
      %2993 = vmatpush1.msra.mxu0 0.0
      %2994 = vmatprep.subr.mxu0 0.0
      %2995 = vmatpush1.msra.mxu0 0.0
      %2996 = vmatprep.subr.mxu0 0.0
      %2997 = vmatpush1.msra.mxu0 0.0
      %2998 = vmatprep.subr.mxu0 0.0
      %2999 = vmatpush1.msra.mxu0 0.0
      %3000 = vmatprep.subr.mxu0 0.0
      %3001 = vmatpush1.msra.mxu0 0.0
      %3002 = vmatprep.subr.mxu0 0.0
      %3003 = vmatpush1.msra.mxu0 0.0
      %3004 = vmatprep.subr.mxu0 0.0
      %3005 = vmatpush1.msra.mxu0 0.0
      %3006 = vmatprep.mubr.f32.mxu0 0.0
      %3007 = vmatmul.mubr.f32.gmra.mrb[0].mxu0 %v2937
      %v3008 = vpop.f32.mrb[0].mxu0
      %v3009 = vadd.f32 0.0, %v3008
      %v3010 = vpop.f32.mrb[0].mxu0
      %3011 = vmatprep.mubr.f32.mxu0 0.0
      %3012 = vmatmul.mubr.f32.gmra.mrb[0].mxu0 %v2940
      %v3013 = vpop.f32.mrb[0].mxu0
      %v3014 = vadd.f32 0.0, %v3013
      %v3015 = vpop.f32.mrb[0].mxu0
      %3016 = vdwg.mxu0
      %v3017 = vadd.f32 %v2845, %v3009
      %v3018 = vadd.f32 %v2846, %v3014
      %s3019 = scalar_lea.vmem %s11, 112
      %v3020 = vld [vmem:[%s3019] sm:$0xff]
      %v3021 = vld [vmem:[%s3019 + $0x8] sm:$0xff]
      %v3023 = vsel %vm891, %v3020, 0
      %v3026 = vsel %vm891, %v3021, 0
      %3028 = vmatprep.subr.mxu0 0.0
      %3029 = vmatpush1.msra.mxu0 %v1819
      %3030 = vmatprep.subr.mxu0 0.0
      %3031 = vmatpush1.msra.mxu0 %v1820
      %3032 = vmatprep.subr.mxu0 0.0
      %3033 = vmatpush1.msra.mxu0 0.0
      %3034 = vmatprep.subr.mxu0 0.0
      %3035 = vmatpush1.msra.mxu0 0.0
      %3036 = vmatprep.subr.mxu0 0.0
      %3037 = vmatpush1.msra.mxu0 0.0
      %3038 = vmatprep.subr.mxu0 0.0
      %3039 = vmatpush1.msra.mxu0 0.0
      %3040 = vmatprep.subr.mxu0 0.0
      %3041 = vmatpush1.msra.mxu0 0.0
      %3042 = vmatprep.subr.mxu0 0.0
      %3043 = vmatpush1.msra.mxu0 0.0
      %3044 = vmatprep.subr.mxu0 0.0
      %3045 = vmatpush1.msra.mxu0 0.0
      %3046 = vmatprep.subr.mxu0 0.0
      %3047 = vmatpush1.msra.mxu0 0.0
      %3048 = vmatprep.subr.mxu0 0.0
      %3049 = vmatpush1.msra.mxu0 0.0
      %3050 = vmatprep.subr.mxu0 0.0
      %3051 = vmatpush1.msra.mxu0 0.0
      %3052 = vmatprep.subr.mxu0 0.0
      %3053 = vmatpush1.msra.mxu0 0.0
      %3054 = vmatprep.subr.mxu0 0.0
      %3055 = vmatpush1.msra.mxu0 0.0
      %3056 = vmatprep.subr.mxu0 0.0
      %3057 = vmatpush1.msra.mxu0 0.0
      %3058 = vmatprep.subr.mxu0 0.0
      %3059 = vmatpush1.msra.mxu0 0.0
      %3060 = vmatprep.subr.mxu0 0.0
      %3061 = vmatpush1.msra.mxu0 0.0
      %3062 = vmatprep.subr.mxu0 0.0
      %3063 = vmatpush1.msra.mxu0 0.0
      %3064 = vmatprep.subr.mxu0 0.0
      %3065 = vmatpush1.msra.mxu0 0.0
      %3066 = vmatprep.subr.mxu0 0.0
      %3067 = vmatpush1.msra.mxu0 0.0
      %3068 = vmatprep.subr.mxu0 0.0
      %3069 = vmatpush1.msra.mxu0 0.0
      %3070 = vmatprep.subr.mxu0 0.0
      %3071 = vmatpush1.msra.mxu0 0.0
      %3072 = vmatprep.subr.mxu0 0.0
      %3073 = vmatpush1.msra.mxu0 0.0
      %3074 = vmatprep.subr.mxu0 0.0
      %3075 = vmatpush1.msra.mxu0 0.0
      %3076 = vmatprep.subr.mxu0 0.0
      %3077 = vmatpush1.msra.mxu0 0.0
      %3078 = vmatprep.subr.mxu0 0.0
      %3079 = vmatpush1.msra.mxu0 0.0
      %3080 = vmatprep.subr.mxu0 0.0
      %3081 = vmatpush1.msra.mxu0 0.0
      %3082 = vmatprep.subr.mxu0 0.0
      %3083 = vmatpush1.msra.mxu0 0.0
      %3084 = vmatprep.subr.mxu0 0.0
      %3085 = vmatpush1.msra.mxu0 0.0
      %3086 = vmatprep.subr.mxu0 0.0
      %3087 = vmatpush1.msra.mxu0 0.0
      %3088 = vmatprep.subr.mxu0 0.0
      %3089 = vmatpush1.msra.mxu0 0.0
      %3090 = vmatprep.subr.mxu0 0.0
      %3091 = vmatpush1.msra.mxu0 0.0
      %3092 = vmatprep.mubr.f32.mxu0 0.0
      %3093 = vmatmul.mubr.f32.gmra.mrb[0].mxu0 %v3023
      %v3094 = vpop.f32.mrb[0].mxu0
      %v3095 = vadd.f32 0.0, %v3094
      %v3096 = vpop.f32.mrb[0].mxu0
      %3097 = vmatprep.mubr.f32.mxu0 0.0
      %3098 = vmatmul.mubr.f32.gmra.mrb[0].mxu0 %v3026
      %v3099 = vpop.f32.mrb[0].mxu0
      %v3100 = vadd.f32 0.0, %v3099
      %v3101 = vpop.f32.mrb[0].mxu0
      %3102 = vdwg.mxu0
      %s3103 = scalar_lea.vmem %s12, 224
      %v3104 = vld [vmem:[%s3103] sm:$0xff]
      %v3105 = vld [vmem:[%s3103 + $0x8] sm:$0xff]
      %v3106 = vld [vmem:[%s3103 + $0x10] sm:$0xff]
      %v3107 = vld [vmem:[%s3103 + $0x18] sm:$0xff]
      %v3109 = vsel %vm769, %v3095, 0
      %v3112 = vsel %vm769, %v3100, 0
      %3114 = vmatprep.subr.mxu0 0.0
      %3115 = vmatpush1.msra.mxu0 %v3104
      %3116 = vmatprep.subr.mxu0 0.0
      %3117 = vmatpush1.msra.mxu0 %v3105
      %3118 = vmatprep.subr.mxu0 0.0
      %3119 = vmatpush1.msra.mxu0 %v3106
      %3120 = vmatprep.subr.mxu0 0.0
      %3121 = vmatpush1.msra.mxu0 %v3107
      %3122 = vmatprep.subr.mxu0 0.0
      %3123 = vmatpush1.msra.mxu0 0.0
      %3124 = vmatprep.subr.mxu0 0.0
      %3125 = vmatpush1.msra.mxu0 0.0
      %3126 = vmatprep.subr.mxu0 0.0
      %3127 = vmatpush1.msra.mxu0 0.0
      %3128 = vmatprep.subr.mxu0 0.0
      %3129 = vmatpush1.msra.mxu0 0.0
      %3130 = vmatprep.subr.mxu0 0.0
      %3131 = vmatpush1.msra.mxu0 0.0
      %3132 = vmatprep.subr.mxu0 0.0
      %3133 = vmatpush1.msra.mxu0 0.0
      %3134 = vmatprep.subr.mxu0 0.0
      %3135 = vmatpush1.msra.mxu0 0.0
      %3136 = vmatprep.subr.mxu0 0.0
      %3137 = vmatpush1.msra.mxu0 0.0
      %3138 = vmatprep.subr.mxu0 0.0
      %3139 = vmatpush1.msra.mxu0 0.0
      %3140 = vmatprep.subr.mxu0 0.0
      %3141 = vmatpush1.msra.mxu0 0.0
      %3142 = vmatprep.subr.mxu0 0.0
      %3143 = vmatpush1.msra.mxu0 0.0
      %3144 = vmatprep.subr.mxu0 0.0
      %3145 = vmatpush1.msra.mxu0 0.0
      %3146 = vmatprep.subr.mxu0 0.0
      %3147 = vmatpush1.msra.mxu0 0.0
      %3148 = vmatprep.subr.mxu0 0.0
      %3149 = vmatpush1.msra.mxu0 0.0
      %3150 = vmatprep.subr.mxu0 0.0
      %3151 = vmatpush1.msra.mxu0 0.0
      %3152 = vmatprep.subr.mxu0 0.0
      %3153 = vmatpush1.msra.mxu0 0.0
      %3154 = vmatprep.subr.mxu0 0.0
      %3155 = vmatpush1.msra.mxu0 0.0
      %3156 = vmatprep.subr.mxu0 0.0
      %3157 = vmatpush1.msra.mxu0 0.0
      %3158 = vmatprep.subr.mxu0 0.0
      %3159 = vmatpush1.msra.mxu0 0.0
      %3160 = vmatprep.subr.mxu0 0.0
      %3161 = vmatpush1.msra.mxu0 0.0
      %3162 = vmatprep.subr.mxu0 0.0
      %3163 = vmatpush1.msra.mxu0 0.0
      %3164 = vmatprep.subr.mxu0 0.0
      %3165 = vmatpush1.msra.mxu0 0.0
      %3166 = vmatprep.subr.mxu0 0.0
      %3167 = vmatpush1.msra.mxu0 0.0
      %3168 = vmatprep.subr.mxu0 0.0
      %3169 = vmatpush1.msra.mxu0 0.0
      %3170 = vmatprep.subr.mxu0 0.0
      %3171 = vmatpush1.msra.mxu0 0.0
      %3172 = vmatprep.subr.mxu0 0.0
      %3173 = vmatpush1.msra.mxu0 0.0
      %3174 = vmatprep.subr.mxu0 0.0
      %3175 = vmatpush1.msra.mxu0 0.0
      %3176 = vmatprep.subr.mxu0 0.0
      %3177 = vmatpush1.msra.mxu0 0.0
      %3178 = vmatprep.mubr.f32.mxu0 0.0
      %3179 = vmatmul.mubr.f32.gmra.mrb[0].mxu0 %v3109
      %v3180 = vpop.f32.mrb[0].mxu0
      %v3181 = vadd.f32 0.0, %v3180
      %v3182 = vpop.f32.mrb[0].mxu0
      %3183 = vmatprep.mubr.f32.mxu0 0.0
      %3184 = vmatmul.mubr.f32.gmra.mrb[0].mxu0 %v3112
      %v3185 = vpop.f32.mrb[0].mxu0
      %v3186 = vadd.f32 0.0, %v3185
      %v3187 = vpop.f32.mrb[0].mxu0
      %3188 = vdwg.mxu0
      %v3189 = vadd.f32 %v3017, %v3181
      %v3190 = vadd.f32 %v3018, %v3186
      %s3191 = scalar_lea.vmem %s11, 128
      %v3192 = vld [vmem:[%s3191] sm:$0xff]
      %v3193 = vld [vmem:[%s3191 + $0x8] sm:$0xff]
      %v3195 = vsel %vm891, %v3192, 0
      %v3198 = vsel %vm891, %v3193, 0
      %3200 = vmatprep.subr.mxu0 0.0
      %3201 = vmatpush1.msra.mxu0 %v1819
      %3202 = vmatprep.subr.mxu0 0.0
      %3203 = vmatpush1.msra.mxu0 %v1820
      %3204 = vmatprep.subr.mxu0 0.0
      %3205 = vmatpush1.msra.mxu0 0.0
      %3206 = vmatprep.subr.mxu0 0.0
      %3207 = vmatpush1.msra.mxu0 0.0
      %3208 = vmatprep.subr.mxu0 0.0
      %3209 = vmatpush1.msra.mxu0 0.0
      %3210 = vmatprep.subr.mxu0 0.0
      %3211 = vmatpush1.msra.mxu0 0.0
      %3212 = vmatprep.subr.mxu0 0.0
      %3213 = vmatpush1.msra.mxu0 0.0
      %3214 = vmatprep.subr.mxu0 0.0
      %3215 = vmatpush1.msra.mxu0 0.0
      %3216 = vmatprep.subr.mxu0 0.0
      %3217 = vmatpush1.msra.mxu0 0.0
      %3218 = vmatprep.subr.mxu0 0.0
      %3219 = vmatpush1.msra.mxu0 0.0
      %3220 = vmatprep.subr.mxu0 0.0
      %3221 = vmatpush1.msra.mxu0 0.0
      %3222 = vmatprep.subr.mxu0 0.0
      %3223 = vmatpush1.msra.mxu0 0.0
      %3224 = vmatprep.subr.mxu0 0.0
      %3225 = vmatpush1.msra.mxu0 0.0
      %3226 = vmatprep.subr.mxu0 0.0
      %3227 = vmatpush1.msra.mxu0 0.0
      %3228 = vmatprep.subr.mxu0 0.0
      %3229 = vmatpush1.msra.mxu0 0.0
      %3230 = vmatprep.subr.mxu0 0.0
      %3231 = vmatpush1.msra.mxu0 0.0
      %3232 = vmatprep.subr.mxu0 0.0
      %3233 = vmatpush1.msra.mxu0 0.0
      %3234 = vmatprep.subr.mxu0 0.0
      %3235 = vmatpush1.msra.mxu0 0.0
      %3236 = vmatprep.subr.mxu0 0.0
      %3237 = vmatpush1.msra.mxu0 0.0
      %3238 = vmatprep.subr.mxu0 0.0
      %3239 = vmatpush1.msra.mxu0 0.0
      %3240 = vmatprep.subr.mxu0 0.0
      %3241 = vmatpush1.msra.mxu0 0.0
      %3242 = vmatprep.subr.mxu0 0.0
      %3243 = vmatpush1.msra.mxu0 0.0
      %3244 = vmatprep.subr.mxu0 0.0
      %3245 = vmatpush1.msra.mxu0 0.0
      %3246 = vmatprep.subr.mxu0 0.0
      %3247 = vmatpush1.msra.mxu0 0.0
      %3248 = vmatprep.subr.mxu0 0.0
      %3249 = vmatpush1.msra.mxu0 0.0
      %3250 = vmatprep.subr.mxu0 0.0
      %3251 = vmatpush1.msra.mxu0 0.0
      %3252 = vmatprep.subr.mxu0 0.0
      %3253 = vmatpush1.msra.mxu0 0.0
      %3254 = vmatprep.subr.mxu0 0.0
      %3255 = vmatpush1.msra.mxu0 0.0
      %3256 = vmatprep.subr.mxu0 0.0
      %3257 = vmatpush1.msra.mxu0 0.0
      %3258 = vmatprep.subr.mxu0 0.0
      %3259 = vmatpush1.msra.mxu0 0.0
      %3260 = vmatprep.subr.mxu0 0.0
      %3261 = vmatpush1.msra.mxu0 0.0
      %3262 = vmatprep.subr.mxu0 0.0
      %3263 = vmatpush1.msra.mxu0 0.0
      %3264 = vmatprep.mubr.f32.mxu0 0.0
      %3265 = vmatmul.mubr.f32.gmra.mrb[0].mxu0 %v3195
      %v3266 = vpop.f32.mrb[0].mxu0
      %v3267 = vadd.f32 0.0, %v3266
      %v3268 = vpop.f32.mrb[0].mxu0
      %3269 = vmatprep.mubr.f32.mxu0 0.0
      %3270 = vmatmul.mubr.f32.gmra.mrb[0].mxu0 %v3198
      %v3271 = vpop.f32.mrb[0].mxu0
      %v3272 = vadd.f32 0.0, %v3271
      %v3273 = vpop.f32.mrb[0].mxu0
      %3274 = vdwg.mxu0
      %s3275 = scalar_lea.vmem %s12, 256
      %v3276 = vld [vmem:[%s3275] sm:$0xff]
      %v3277 = vld [vmem:[%s3275 + $0x8] sm:$0xff]
      %v3278 = vld [vmem:[%s3275 + $0x10] sm:$0xff]
      %v3279 = vld [vmem:[%s3275 + $0x18] sm:$0xff]
      %v3281 = vsel %vm769, %v3267, 0
      %v3284 = vsel %vm769, %v3272, 0
      %3286 = vmatprep.subr.mxu0 0.0
      %3287 = vmatpush1.msra.mxu0 %v3276
      %3288 = vmatprep.subr.mxu0 0.0
      %3289 = vmatpush1.msra.mxu0 %v3277
      %3290 = vmatprep.subr.mxu0 0.0
      %3291 = vmatpush1.msra.mxu0 %v3278
      %3292 = vmatprep.subr.mxu0 0.0
      %3293 = vmatpush1.msra.mxu0 %v3279
      %3294 = vmatprep.subr.mxu0 0.0
      %3295 = vmatpush1.msra.mxu0 0.0
      %3296 = vmatprep.subr.mxu0 0.0
      %3297 = vmatpush1.msra.mxu0 0.0
      %3298 = vmatprep.subr.mxu0 0.0
      %3299 = vmatpush1.msra.mxu0 0.0
      %3300 = vmatprep.subr.mxu0 0.0
      %3301 = vmatpush1.msra.mxu0 0.0
      %3302 = vmatprep.subr.mxu0 0.0
      %3303 = vmatpush1.msra.mxu0 0.0
      %3304 = vmatprep.subr.mxu0 0.0
      %3305 = vmatpush1.msra.mxu0 0.0
      %3306 = vmatprep.subr.mxu0 0.0
      %3307 = vmatpush1.msra.mxu0 0.0
      %3308 = vmatprep.subr.mxu0 0.0
      %3309 = vmatpush1.msra.mxu0 0.0
      %3310 = vmatprep.subr.mxu0 0.0
      %3311 = vmatpush1.msra.mxu0 0.0
      %3312 = vmatprep.subr.mxu0 0.0
      %3313 = vmatpush1.msra.mxu0 0.0
      %3314 = vmatprep.subr.mxu0 0.0
      %3315 = vmatpush1.msra.mxu0 0.0
      %3316 = vmatprep.subr.mxu0 0.0
      %3317 = vmatpush1.msra.mxu0 0.0
      %3318 = vmatprep.subr.mxu0 0.0
      %3319 = vmatpush1.msra.mxu0 0.0
      %3320 = vmatprep.subr.mxu0 0.0
      %3321 = vmatpush1.msra.mxu0 0.0
      %3322 = vmatprep.subr.mxu0 0.0
      %3323 = vmatpush1.msra.mxu0 0.0
      %3324 = vmatprep.subr.mxu0 0.0
      %3325 = vmatpush1.msra.mxu0 0.0
      %3326 = vmatprep.subr.mxu0 0.0
      %3327 = vmatpush1.msra.mxu0 0.0
      %3328 = vmatprep.subr.mxu0 0.0
      %3329 = vmatpush1.msra.mxu0 0.0
      %3330 = vmatprep.subr.mxu0 0.0
      %3331 = vmatpush1.msra.mxu0 0.0
      %3332 = vmatprep.subr.mxu0 0.0
      %3333 = vmatpush1.msra.mxu0 0.0
      %3334 = vmatprep.subr.mxu0 0.0
      %3335 = vmatpush1.msra.mxu0 0.0
      %3336 = vmatprep.subr.mxu0 0.0
      %3337 = vmatpush1.msra.mxu0 0.0
      %3338 = vmatprep.subr.mxu0 0.0
      %3339 = vmatpush1.msra.mxu0 0.0
      %3340 = vmatprep.subr.mxu0 0.0
      %3341 = vmatpush1.msra.mxu0 0.0
      %3342 = vmatprep.subr.mxu0 0.0
      %3343 = vmatpush1.msra.mxu0 0.0
      %3344 = vmatprep.subr.mxu0 0.0
      %3345 = vmatpush1.msra.mxu0 0.0
      %3346 = vmatprep.subr.mxu0 0.0
      %3347 = vmatpush1.msra.mxu0 0.0
      %3348 = vmatprep.subr.mxu0 0.0
      %3349 = vmatpush1.msra.mxu0 0.0
      %3350 = vmatprep.mubr.f32.mxu0 0.0
      %3351 = vmatmul.mubr.f32.gmra.mrb[0].mxu0 %v3281
      %v3352 = vpop.f32.mrb[0].mxu0
      %v3353 = vadd.f32 0.0, %v3352
      %v3354 = vpop.f32.mrb[0].mxu0
      %3355 = vmatprep.mubr.f32.mxu0 0.0
      %3356 = vmatmul.mubr.f32.gmra.mrb[0].mxu0 %v3284
      %v3357 = vpop.f32.mrb[0].mxu0
      %v3358 = vadd.f32 0.0, %v3357
      %v3359 = vpop.f32.mrb[0].mxu0
      %3360 = vdwg.mxu0
      %v3361 = vadd.f32 %v3189, %v3353
      %v3362 = vadd.f32 %v3190, %v3358
      %v3363 = vld [vmem:[%s13] sm:$0x1]
      %v3365 = vlaneseq
      %v3366 = vshrl.u32 %v3365, 7
      %v3367 = vsub.s32 0, %v3366
      %v3368 = vrot.slane %v3363, %v3367
      %v3370 = vadd.f32 %v3361, %v3368
      %v3371 = vadd.f32 %v3362, %v3368
      %v3372 = vmax.f32 %v3370, 0.0
      %v3373 = vmax.f32 %v3371, 0.0
      %v3374 = vld [vmem:[%s10] sm:$0xff]
      %v3375 = vld [vmem:[%s10 + $0x8] sm:$0xff]
      %v3376 = vld [vmem:[%s10 + $0x10] sm:$0xff]
      %v3377 = vld [vmem:[%s10 + $0x18] sm:$0xff]
      %v3378 = vld [vmem:[%s10 + $0x20] sm:$0xff]
      %v3379 = vld [vmem:[%s10 + $0x28] sm:$0xff]
      %v3380 = vld [vmem:[%s10 + $0x30] sm:$0x1]
      %s3381 = scalar_lea.vmem %s10, 56
      %v3382 = vld [vmem:[%s3381] sm:$0xff]
      %v3383 = vld [vmem:[%s3381 + $0x8] sm:$0xff]
      %v3384 = vld [vmem:[%s3381 + $0x10] sm:$0xff]
      %v3385 = vld [vmem:[%s3381 + $0x18] sm:$0xff]
      %v3386 = vld [vmem:[%s3381 + $0x20] sm:$0xff]
      %v3387 = vld [vmem:[%s3381 + $0x28] sm:$0xff]
      %v3388 = vld [vmem:[%s3381 + $0x30] sm:$0x1]
      %3391 = vrot.lane.b32.xlu0 %v3372, 120
      %v3392 = vpop.permute.xlu0 %3391
      %3393 = vrot.lane.b32.xlu0 %v3373, 120
      %v3394 = vpop.permute.xlu0 %3393
      %v3398 = vsel %vm891, %v3382, 0
      %v3401 = vsel %vm891, %v3383, 0
      %v3404 = vsel %vm891, %v3384, 0
      %v3407 = vsel %vm891, %v3385, 0
      %v3410 = vsel %vm891, %v3386, 0
      %v3413 = vsel %vm891, %v3387, 0
      %v3416 = vsel %vm891, %v3388, 0
      %3418 = vmatprep.subr.mxu0 0.0
      %3419 = vmatpush1.msra.mxu0 %v3392
      %3420 = vmatprep.subr.mxu0 0.0
      %3421 = vmatpush1.msra.mxu0 %v3394
      %3422 = vmatprep.subr.mxu0 0.0
      %3423 = vmatpush1.msra.mxu0 0.0
      %3424 = vmatprep.subr.mxu0 0.0
      %3425 = vmatpush1.msra.mxu0 0.0
      %3426 = vmatprep.subr.mxu0 0.0
      %3427 = vmatpush1.msra.mxu0 0.0
      %3428 = vmatprep.subr.mxu0 0.0
      %3429 = vmatpush1.msra.mxu0 0.0
      %3430 = vmatprep.subr.mxu0 0.0
      %3431 = vmatpush1.msra.mxu0 0.0
      %3432 = vmatprep.subr.mxu0 0.0
      %3433 = vmatpush1.msra.mxu0 0.0
      %3434 = vmatprep.subr.mxu0 0.0
      %3435 = vmatpush1.msra.mxu0 0.0
      %3436 = vmatprep.subr.mxu0 0.0
      %3437 = vmatpush1.msra.mxu0 0.0
      %3438 = vmatprep.subr.mxu0 0.0
      %3439 = vmatpush1.msra.mxu0 0.0
      %3440 = vmatprep.subr.mxu0 0.0
      %3441 = vmatpush1.msra.mxu0 0.0
      %3442 = vmatprep.subr.mxu0 0.0
      %3443 = vmatpush1.msra.mxu0 0.0
      %3444 = vmatprep.subr.mxu0 0.0
      %3445 = vmatpush1.msra.mxu0 0.0
      %3446 = vmatprep.subr.mxu0 0.0
      %3447 = vmatpush1.msra.mxu0 0.0
      %3448 = vmatprep.subr.mxu0 0.0
      %3449 = vmatpush1.msra.mxu0 0.0
      %3450 = vmatprep.subr.mxu0 0.0
      %3451 = vmatpush1.msra.mxu0 0.0
      %3452 = vmatprep.subr.mxu0 0.0
      %3453 = vmatpush1.msra.mxu0 0.0
      %3454 = vmatprep.subr.mxu0 0.0
      %3455 = vmatpush1.msra.mxu0 0.0
      %3456 = vmatprep.subr.mxu0 0.0
      %3457 = vmatpush1.msra.mxu0 0.0
      %3458 = vmatprep.subr.mxu0 0.0
      %3459 = vmatpush1.msra.mxu0 0.0
      %3460 = vmatprep.subr.mxu0 0.0
      %3461 = vmatpush1.msra.mxu0 0.0
      %3462 = vmatprep.subr.mxu0 0.0
      %3463 = vmatpush1.msra.mxu0 0.0
      %3464 = vmatprep.subr.mxu0 0.0
      %3465 = vmatpush1.msra.mxu0 0.0
      %3466 = vmatprep.subr.mxu0 0.0
      %3467 = vmatpush1.msra.mxu0 0.0
      %3468 = vmatprep.subr.mxu0 0.0
      %3469 = vmatpush1.msra.mxu0 0.0
      %3470 = vmatprep.subr.mxu0 0.0
      %3471 = vmatpush1.msra.mxu0 0.0
      %3472 = vmatprep.subr.mxu0 0.0
      %3473 = vmatpush1.msra.mxu0 0.0
      %3474 = vmatprep.subr.mxu0 0.0
      %3475 = vmatpush1.msra.mxu0 0.0
      %3476 = vmatprep.subr.mxu0 0.0
      %3477 = vmatpush1.msra.mxu0 0.0
      %3478 = vmatprep.subr.mxu0 0.0
      %3479 = vmatpush1.msra.mxu0 0.0
      %3480 = vmatprep.subr.mxu0 0.0
      %3481 = vmatpush1.msra.mxu0 0.0
      %3482 = vmatprep.mubr.f32.mxu0 0.0
      %3483 = vmatmul.mubr.f32.gmra.mrb[0].mxu0 %v3398
      %v3484 = vpop.f32.mrb[0].mxu0
      %v3485 = vadd.f32 0.0, %v3484
      %v3486 = vpop.f32.mrb[0].mxu0
      %3487 = vmatprep.mubr.f32.mxu0 0.0
      %3488 = vmatmul.mubr.f32.gmra.mrb[0].mxu0 %v3401
      %v3489 = vpop.f32.mrb[0].mxu0
      %v3490 = vadd.f32 0.0, %v3489
      %v3491 = vpop.f32.mrb[0].mxu0
      %3492 = vmatprep.mubr.f32.mxu0 0.0
      %3493 = vmatmul.mubr.f32.gmra.mrb[0].mxu0 %v3404
      %v3494 = vpop.f32.mrb[0].mxu0
      %v3495 = vadd.f32 0.0, %v3494
      %v3496 = vpop.f32.mrb[0].mxu0
      %3497 = vmatprep.mubr.f32.mxu0 0.0
      %3498 = vmatmul.mubr.f32.gmra.mrb[0].mxu0 %v3407
      %v3499 = vpop.f32.mrb[0].mxu0
      %v3500 = vadd.f32 0.0, %v3499
      %v3501 = vpop.f32.mrb[0].mxu0
      %3502 = vmatprep.mubr.f32.mxu0 0.0
      %3503 = vmatmul.mubr.f32.gmra.mrb[0].mxu0 %v3410
      %v3504 = vpop.f32.mrb[0].mxu0
      %v3505 = vadd.f32 0.0, %v3504
      %v3506 = vpop.f32.mrb[0].mxu0
      %3507 = vmatprep.mubr.f32.mxu0 0.0
      %3508 = vmatmul.mubr.f32.gmra.mrb[0].mxu0 %v3413
      %v3509 = vpop.f32.mrb[0].mxu0
      %v3510 = vadd.f32 0.0, %v3509
      %v3511 = vpop.f32.mrb[0].mxu0
      %3512 = vmatprep.mubr.f32.mxu0 0.0
      %3513 = vmatmul.mubr.f32.gmra.mrb[0].mxu0 %v3416
      %v3514 = vpop.f32.mrb[0].mxu0
      %v3515 = vadd.f32 0.0, %v3514
      %v3516 = vpop.f32.mrb[0].mxu0
      %3517 = vdwg.mxu0
      %v3519 = vsel %vm891, %v3374, 0
      %v3522 = vsel %vm891, %v3375, 0
      %v3525 = vsel %vm891, %v3376, 0
      %v3528 = vsel %vm891, %v3377, 0
      %v3531 = vsel %vm891, %v3378, 0
      %v3534 = vsel %vm891, %v3379, 0
      %v3537 = vsel %vm891, %v3380, 0
      %3539 = vmatprep.subr.mxu0 0.0
      %3540 = vmatpush1.msra.mxu0 %v3372
      %3541 = vmatprep.subr.mxu0 0.0
      %3542 = vmatpush1.msra.mxu0 %v3373
      %3543 = vmatprep.subr.mxu0 0.0
      %3544 = vmatpush1.msra.mxu0 0.0
      %3545 = vmatprep.subr.mxu0 0.0
      %3546 = vmatpush1.msra.mxu0 0.0
      %3547 = vmatprep.subr.mxu0 0.0
      %3548 = vmatpush1.msra.mxu0 0.0
      %3549 = vmatprep.subr.mxu0 0.0
      %3550 = vmatpush1.msra.mxu0 0.0
      %3551 = vmatprep.subr.mxu0 0.0
      %3552 = vmatpush1.msra.mxu0 0.0
      %3553 = vmatprep.subr.mxu0 0.0
      %3554 = vmatpush1.msra.mxu0 0.0
      %3555 = vmatprep.subr.mxu0 0.0
      %3556 = vmatpush1.msra.mxu0 0.0
      %3557 = vmatprep.subr.mxu0 0.0
      %3558 = vmatpush1.msra.mxu0 0.0
      %3559 = vmatprep.subr.mxu0 0.0
      %3560 = vmatpush1.msra.mxu0 0.0
      %3561 = vmatprep.subr.mxu0 0.0
      %3562 = vmatpush1.msra.mxu0 0.0
      %3563 = vmatprep.subr.mxu0 0.0
      %3564 = vmatpush1.msra.mxu0 0.0
      %3565 = vmatprep.subr.mxu0 0.0
      %3566 = vmatpush1.msra.mxu0 0.0
      %3567 = vmatprep.subr.mxu0 0.0
      %3568 = vmatpush1.msra.mxu0 0.0
      %3569 = vmatprep.subr.mxu0 0.0
      %3570 = vmatpush1.msra.mxu0 0.0
      %3571 = vmatprep.subr.mxu0 0.0
      %3572 = vmatpush1.msra.mxu0 0.0
      %3573 = vmatprep.subr.mxu0 0.0
      %3574 = vmatpush1.msra.mxu0 0.0
      %3575 = vmatprep.subr.mxu0 0.0
      %3576 = vmatpush1.msra.mxu0 0.0
      %3577 = vmatprep.subr.mxu0 0.0
      %3578 = vmatpush1.msra.mxu0 0.0
      %3579 = vmatprep.subr.mxu0 0.0
      %3580 = vmatpush1.msra.mxu0 0.0
      %3581 = vmatprep.subr.mxu0 0.0
      %3582 = vmatpush1.msra.mxu0 0.0
      %3583 = vmatprep.subr.mxu0 0.0
      %3584 = vmatpush1.msra.mxu0 0.0
      %3585 = vmatprep.subr.mxu0 0.0
      %3586 = vmatpush1.msra.mxu0 0.0
      %3587 = vmatprep.subr.mxu0 0.0
      %3588 = vmatpush1.msra.mxu0 0.0
      %3589 = vmatprep.subr.mxu0 0.0
      %3590 = vmatpush1.msra.mxu0 0.0
      %3591 = vmatprep.subr.mxu0 0.0
      %3592 = vmatpush1.msra.mxu0 0.0
      %3593 = vmatprep.subr.mxu0 0.0
      %3594 = vmatpush1.msra.mxu0 0.0
      %3595 = vmatprep.subr.mxu0 0.0
      %3596 = vmatpush1.msra.mxu0 0.0
      %3597 = vmatprep.subr.mxu0 0.0
      %3598 = vmatpush1.msra.mxu0 0.0
      %3599 = vmatprep.subr.mxu0 0.0
      %3600 = vmatpush1.msra.mxu0 0.0
      %3601 = vmatprep.subr.mxu0 0.0
      %3602 = vmatpush1.msra.mxu0 0.0
      %3603 = vmatprep.mubr.f32.mxu0 0.0
      %3604 = vmatmul.mubr.f32.gmra.mrb[0].mxu0 %v3519
      %v3605 = vpop.f32.mrb[0].mxu0
      %v3606 = vadd.f32 %v3485, %v3605
      %v3607 = vpop.f32.mrb[0].mxu0
      %3608 = vmatprep.mubr.f32.mxu0 0.0
      %3609 = vmatmul.mubr.f32.gmra.mrb[0].mxu0 %v3522
      %v3610 = vpop.f32.mrb[0].mxu0
      %v3611 = vadd.f32 %v3490, %v3610
      %v3612 = vpop.f32.mrb[0].mxu0
      %3613 = vmatprep.mubr.f32.mxu0 0.0
      %3614 = vmatmul.mubr.f32.gmra.mrb[0].mxu0 %v3525
      %v3615 = vpop.f32.mrb[0].mxu0
      %v3616 = vadd.f32 %v3495, %v3615
      %v3617 = vpop.f32.mrb[0].mxu0
      %3618 = vmatprep.mubr.f32.mxu0 0.0
      %3619 = vmatmul.mubr.f32.gmra.mrb[0].mxu0 %v3528
      %v3620 = vpop.f32.mrb[0].mxu0
      %v3621 = vadd.f32 %v3500, %v3620
      %v3622 = vpop.f32.mrb[0].mxu0
      %3623 = vmatprep.mubr.f32.mxu0 0.0
      %3624 = vmatmul.mubr.f32.gmra.mrb[0].mxu0 %v3531
      %v3625 = vpop.f32.mrb[0].mxu0
      %v3626 = vadd.f32 %v3505, %v3625
      %v3627 = vpop.f32.mrb[0].mxu0
      %3628 = vmatprep.mubr.f32.mxu0 0.0
      %3629 = vmatmul.mubr.f32.gmra.mrb[0].mxu0 %v3534
      %v3630 = vpop.f32.mrb[0].mxu0
      %v3631 = vadd.f32 %v3510, %v3630
      %v3632 = vpop.f32.mrb[0].mxu0
      %3633 = vmatprep.mubr.f32.mxu0 0.0
      %3634 = vmatmul.mubr.f32.gmra.mrb[0].mxu0 %v3537
      %v3635 = vpop.f32.mrb[0].mxu0
      %v3636 = vadd.f32 %v3515, %v3635
      %v3637 = vpop.f32.mrb[0].mxu0
      %3638 = vdwg.mxu0
      %s3639 = scalar_lea.vmem %s10, 112
      %v3640 = vld [vmem:[%s3639] sm:$0xff]
      %v3641 = vld [vmem:[%s3639 + $0x8] sm:$0xff]
      %v3642 = vld [vmem:[%s3639 + $0x10] sm:$0xff]
      %v3643 = vld [vmem:[%s3639 + $0x18] sm:$0xff]
      %v3644 = vld [vmem:[%s3639 + $0x20] sm:$0xff]
      %v3645 = vld [vmem:[%s3639 + $0x28] sm:$0xff]
      %v3646 = vld [vmem:[%s3639 + $0x30] sm:$0x1]
      %3647 = vrot.lane.b32.xlu0 %v3372, 112
      %v3648 = vpop.permute.xlu0 %3647
      %3649 = vrot.lane.b32.xlu0 %v3373, 112
      %v3650 = vpop.permute.xlu0 %3649
      %v3654 = vsel %vm891, %v3640, 0
      %v3657 = vsel %vm891, %v3641, 0
      %v3660 = vsel %vm891, %v3642, 0
      %v3663 = vsel %vm891, %v3643, 0
      %v3666 = vsel %vm891, %v3644, 0
      %v3669 = vsel %vm891, %v3645, 0
      %v3672 = vsel %vm891, %v3646, 0
      %3674 = vmatprep.subr.mxu0 0.0
      %3675 = vmatpush1.msra.mxu0 %v3648
      %3676 = vmatprep.subr.mxu0 0.0
      %3677 = vmatpush1.msra.mxu0 %v3650
      %3678 = vmatprep.subr.mxu0 0.0
      %3679 = vmatpush1.msra.mxu0 0.0
      %3680 = vmatprep.subr.mxu0 0.0
      %3681 = vmatpush1.msra.mxu0 0.0
      %3682 = vmatprep.subr.mxu0 0.0
      %3683 = vmatpush1.msra.mxu0 0.0
      %3684 = vmatprep.subr.mxu0 0.0
      %3685 = vmatpush1.msra.mxu0 0.0
      %3686 = vmatprep.subr.mxu0 0.0
      %3687 = vmatpush1.msra.mxu0 0.0
      %3688 = vmatprep.subr.mxu0 0.0
      %3689 = vmatpush1.msra.mxu0 0.0
      %3690 = vmatprep.subr.mxu0 0.0
      %3691 = vmatpush1.msra.mxu0 0.0
      %3692 = vmatprep.subr.mxu0 0.0
      %3693 = vmatpush1.msra.mxu0 0.0
      %3694 = vmatprep.subr.mxu0 0.0
      %3695 = vmatpush1.msra.mxu0 0.0
      %3696 = vmatprep.subr.mxu0 0.0
      %3697 = vmatpush1.msra.mxu0 0.0
      %3698 = vmatprep.subr.mxu0 0.0
      %3699 = vmatpush1.msra.mxu0 0.0
      %3700 = vmatprep.subr.mxu0 0.0
      %3701 = vmatpush1.msra.mxu0 0.0
      %3702 = vmatprep.subr.mxu0 0.0
      %3703 = vmatpush1.msra.mxu0 0.0
      %3704 = vmatprep.subr.mxu0 0.0
      %3705 = vmatpush1.msra.mxu0 0.0
      %3706 = vmatprep.subr.mxu0 0.0
      %3707 = vmatpush1.msra.mxu0 0.0
      %3708 = vmatprep.subr.mxu0 0.0
      %3709 = vmatpush1.msra.mxu0 0.0
      %3710 = vmatprep.subr.mxu0 0.0
      %3711 = vmatpush1.msra.mxu0 0.0
      %3712 = vmatprep.subr.mxu0 0.0
      %3713 = vmatpush1.msra.mxu0 0.0
      %3714 = vmatprep.subr.mxu0 0.0
      %3715 = vmatpush1.msra.mxu0 0.0
      %3716 = vmatprep.subr.mxu0 0.0
      %3717 = vmatpush1.msra.mxu0 0.0
      %3718 = vmatprep.subr.mxu0 0.0
      %3719 = vmatpush1.msra.mxu0 0.0
      %3720 = vmatprep.subr.mxu0 0.0
      %3721 = vmatpush1.msra.mxu0 0.0
      %3722 = vmatprep.subr.mxu0 0.0
      %3723 = vmatpush1.msra.mxu0 0.0
      %3724 = vmatprep.subr.mxu0 0.0
      %3725 = vmatpush1.msra.mxu0 0.0
      %3726 = vmatprep.subr.mxu0 0.0
      %3727 = vmatpush1.msra.mxu0 0.0
      %3728 = vmatprep.subr.mxu0 0.0
      %3729 = vmatpush1.msra.mxu0 0.0
      %3730 = vmatprep.subr.mxu0 0.0
      %3731 = vmatpush1.msra.mxu0 0.0
      %3732 = vmatprep.subr.mxu0 0.0
      %3733 = vmatpush1.msra.mxu0 0.0
      %3734 = vmatprep.subr.mxu0 0.0
      %3735 = vmatpush1.msra.mxu0 0.0
      %3736 = vmatprep.subr.mxu0 0.0
      %3737 = vmatpush1.msra.mxu0 0.0
      %3738 = vmatprep.mubr.f32.mxu0 0.0
      %3739 = vmatmul.mubr.f32.gmra.mrb[0].mxu0 %v3654
      %v3740 = vpop.f32.mrb[0].mxu0
      %v3741 = vadd.f32 0.0, %v3740
      %v3742 = vpop.f32.mrb[0].mxu0
      %3743 = vmatprep.mubr.f32.mxu0 0.0
      %3744 = vmatmul.mubr.f32.gmra.mrb[0].mxu0 %v3657
      %v3745 = vpop.f32.mrb[0].mxu0
      %v3746 = vadd.f32 0.0, %v3745
      %v3747 = vpop.f32.mrb[0].mxu0
      %3748 = vmatprep.mubr.f32.mxu0 0.0
      %3749 = vmatmul.mubr.f32.gmra.mrb[0].mxu0 %v3660
      %v3750 = vpop.f32.mrb[0].mxu0
      %v3751 = vadd.f32 0.0, %v3750
      %v3752 = vpop.f32.mrb[0].mxu0
      %3753 = vmatprep.mubr.f32.mxu0 0.0
      %3754 = vmatmul.mubr.f32.gmra.mrb[0].mxu0 %v3663
      %v3755 = vpop.f32.mrb[0].mxu0
      %v3756 = vadd.f32 0.0, %v3755
      %v3757 = vpop.f32.mrb[0].mxu0
      %3758 = vmatprep.mubr.f32.mxu0 0.0
      %3759 = vmatmul.mubr.f32.gmra.mrb[0].mxu0 %v3666
      %v3760 = vpop.f32.mrb[0].mxu0
      %v3761 = vadd.f32 0.0, %v3760
      %v3762 = vpop.f32.mrb[0].mxu0
      %3763 = vmatprep.mubr.f32.mxu0 0.0
      %3764 = vmatmul.mubr.f32.gmra.mrb[0].mxu0 %v3669
      %v3765 = vpop.f32.mrb[0].mxu0
      %v3766 = vadd.f32 0.0, %v3765
      %v3767 = vpop.f32.mrb[0].mxu0
      %3768 = vmatprep.mubr.f32.mxu0 0.0
      %3769 = vmatmul.mubr.f32.gmra.mrb[0].mxu0 %v3672
      %v3770 = vpop.f32.mrb[0].mxu0
      %v3771 = vadd.f32 0.0, %v3770
      %v3772 = vpop.f32.mrb[0].mxu0
      %3773 = vdwg.mxu0
      %v3774 = vadd.f32 %v3606, %v3741
      %v3775 = vadd.f32 %v3611, %v3746
      %v3776 = vadd.f32 %v3616, %v3751
      %v3777 = vadd.f32 %v3621, %v3756
      %v3778 = vadd.f32 %v3626, %v3761
      %v3779 = vadd.f32 %v3631, %v3766
      %v3780 = vadd.f32 %v3636, %v3771
      %s3781 = scalar_lea.vmem %s10, 168
      %v3782 = vld [vmem:[%s3781] sm:$0xff]
      %v3783 = vld [vmem:[%s3781 + $0x8] sm:$0xff]
      %v3784 = vld [vmem:[%s3781 + $0x10] sm:$0xff]
      %v3785 = vld [vmem:[%s3781 + $0x18] sm:$0xff]
      %v3786 = vld [vmem:[%s3781 + $0x20] sm:$0xff]
      %v3787 = vld [vmem:[%s3781 + $0x28] sm:$0xff]
      %v3788 = vld [vmem:[%s3781 + $0x30] sm:$0x1]
      %3789 = vrot.lane.b32.xlu0 %v3372, 104
      %v3790 = vpop.permute.xlu0 %3789
      %3791 = vrot.lane.b32.xlu0 %v3373, 104
      %v3792 = vpop.permute.xlu0 %3791
      %v3796 = vsel %vm891, %v3782, 0
      %v3799 = vsel %vm891, %v3783, 0
      %v3802 = vsel %vm891, %v3784, 0
      %v3805 = vsel %vm891, %v3785, 0
      %v3808 = vsel %vm891, %v3786, 0
      %v3811 = vsel %vm891, %v3787, 0
      %v3814 = vsel %vm891, %v3788, 0
      %3816 = vmatprep.subr.mxu0 0.0
      %3817 = vmatpush1.msra.mxu0 %v3790
      %3818 = vmatprep.subr.mxu0 0.0
      %3819 = vmatpush1.msra.mxu0 %v3792
      %3820 = vmatprep.subr.mxu0 0.0
      %3821 = vmatpush1.msra.mxu0 0.0
      %3822 = vmatprep.subr.mxu0 0.0
      %3823 = vmatpush1.msra.mxu0 0.0
      %3824 = vmatprep.subr.mxu0 0.0
      %3825 = vmatpush1.msra.mxu0 0.0
      %3826 = vmatprep.subr.mxu0 0.0
      %3827 = vmatpush1.msra.mxu0 0.0
      %3828 = vmatprep.subr.mxu0 0.0
      %3829 = vmatpush1.msra.mxu0 0.0
      %3830 = vmatprep.subr.mxu0 0.0
      %3831 = vmatpush1.msra.mxu0 0.0
      %3832 = vmatprep.subr.mxu0 0.0
      %3833 = vmatpush1.msra.mxu0 0.0
      %3834 = vmatprep.subr.mxu0 0.0
      %3835 = vmatpush1.msra.mxu0 0.0
      %3836 = vmatprep.subr.mxu0 0.0
      %3837 = vmatpush1.msra.mxu0 0.0
      %3838 = vmatprep.subr.mxu0 0.0
      %3839 = vmatpush1.msra.mxu0 0.0
      %3840 = vmatprep.subr.mxu0 0.0
      %3841 = vmatpush1.msra.mxu0 0.0
      %3842 = vmatprep.subr.mxu0 0.0
      %3843 = vmatpush1.msra.mxu0 0.0
      %3844 = vmatprep.subr.mxu0 0.0
      %3845 = vmatpush1.msra.mxu0 0.0
      %3846 = vmatprep.subr.mxu0 0.0
      %3847 = vmatpush1.msra.mxu0 0.0
      %3848 = vmatprep.subr.mxu0 0.0
      %3849 = vmatpush1.msra.mxu0 0.0
      %3850 = vmatprep.subr.mxu0 0.0
      %3851 = vmatpush1.msra.mxu0 0.0
      %3852 = vmatprep.subr.mxu0 0.0
      %3853 = vmatpush1.msra.mxu0 0.0
      %3854 = vmatprep.subr.mxu0 0.0
      %3855 = vmatpush1.msra.mxu0 0.0
      %3856 = vmatprep.subr.mxu0 0.0
      %3857 = vmatpush1.msra.mxu0 0.0
      %3858 = vmatprep.subr.mxu0 0.0
      %3859 = vmatpush1.msra.mxu0 0.0
      %3860 = vmatprep.subr.mxu0 0.0
      %3861 = vmatpush1.msra.mxu0 0.0
      %3862 = vmatprep.subr.mxu0 0.0
      %3863 = vmatpush1.msra.mxu0 0.0
      %3864 = vmatprep.subr.mxu0 0.0
      %3865 = vmatpush1.msra.mxu0 0.0
      %3866 = vmatprep.subr.mxu0 0.0
      %3867 = vmatpush1.msra.mxu0 0.0
      %3868 = vmatprep.subr.mxu0 0.0
      %3869 = vmatpush1.msra.mxu0 0.0
      %3870 = vmatprep.subr.mxu0 0.0
      %3871 = vmatpush1.msra.mxu0 0.0
      %3872 = vmatprep.subr.mxu0 0.0
      %3873 = vmatpush1.msra.mxu0 0.0
      %3874 = vmatprep.subr.mxu0 0.0
      %3875 = vmatpush1.msra.mxu0 0.0
      %3876 = vmatprep.subr.mxu0 0.0
      %3877 = vmatpush1.msra.mxu0 0.0
      %3878 = vmatprep.subr.mxu0 0.0
      %3879 = vmatpush1.msra.mxu0 0.0
      %3880 = vmatprep.mubr.f32.mxu0 0.0
      %3881 = vmatmul.mubr.f32.gmra.mrb[0].mxu0 %v3796
      %v3882 = vpop.f32.mrb[0].mxu0
      %v3883 = vadd.f32 0.0, %v3882
      %v3884 = vpop.f32.mrb[0].mxu0
      %3885 = vmatprep.mubr.f32.mxu0 0.0
      %3886 = vmatmul.mubr.f32.gmra.mrb[0].mxu0 %v3799
      %v3887 = vpop.f32.mrb[0].mxu0
      %v3888 = vadd.f32 0.0, %v3887
      %v3889 = vpop.f32.mrb[0].mxu0
      %3890 = vmatprep.mubr.f32.mxu0 0.0
      %3891 = vmatmul.mubr.f32.gmra.mrb[0].mxu0 %v3802
      %v3892 = vpop.f32.mrb[0].mxu0
      %v3893 = vadd.f32 0.0, %v3892
      %v3894 = vpop.f32.mrb[0].mxu0
      %3895 = vmatprep.mubr.f32.mxu0 0.0
      %3896 = vmatmul.mubr.f32.gmra.mrb[0].mxu0 %v3805
      %v3897 = vpop.f32.mrb[0].mxu0
      %v3898 = vadd.f32 0.0, %v3897
      %v3899 = vpop.f32.mrb[0].mxu0
      %3900 = vmatprep.mubr.f32.mxu0 0.0
      %3901 = vmatmul.mubr.f32.gmra.mrb[0].mxu0 %v3808
      %v3902 = vpop.f32.mrb[0].mxu0
      %v3903 = vadd.f32 0.0, %v3902
      %v3904 = vpop.f32.mrb[0].mxu0
      %3905 = vmatprep.mubr.f32.mxu0 0.0
      %3906 = vmatmul.mubr.f32.gmra.mrb[0].mxu0 %v3811
      %v3907 = vpop.f32.mrb[0].mxu0
      %v3908 = vadd.f32 0.0, %v3907
      %v3909 = vpop.f32.mrb[0].mxu0
      %3910 = vmatprep.mubr.f32.mxu0 0.0
      %3911 = vmatmul.mubr.f32.gmra.mrb[0].mxu0 %v3814
      %v3912 = vpop.f32.mrb[0].mxu0
      %v3913 = vadd.f32 0.0, %v3912
      %v3914 = vpop.f32.mrb[0].mxu0
      %3915 = vdwg.mxu0
      %v3916 = vadd.f32 %v3774, %v3883
      %v3917 = vadd.f32 %v3775, %v3888
      %v3918 = vadd.f32 %v3776, %v3893
      %v3919 = vadd.f32 %v3777, %v3898
      %v3920 = vadd.f32 %v3778, %v3903
      %v3921 = vadd.f32 %v3779, %v3908
      %v3922 = vadd.f32 %v3780, %v3913
      %v3923 = vld [vmem:[%s14] sm:$0xff]
      %v3924 = vld [vmem:[%s14 + $0x8] sm:$0xff]
      %v3925 = vld [vmem:[%s14 + $0x10] sm:$0xff]
      %v3926 = vld [vmem:[%s14 + $0x18] sm:$0xff]
      %v3927 = vld [vmem:[%s14 + $0x20] sm:$0xff]
      %v3928 = vld [vmem:[%s14 + $0x28] sm:$0xff]
      %v3929 = vld [vmem:[%s14 + $0x30] sm:$0x1]
      %v3931 = vsel %vm891, %v3923, 0
      %v3934 = vsel %vm891, %v3924, 0
      %v3937 = vsel %vm891, %v3925, 0
      %v3940 = vsel %vm891, %v3926, 0
      %v3943 = vsel %vm891, %v3927, 0
      %v3946 = vsel %vm891, %v3928, 0
      %v3949 = vsel %vm891, %v3929, 0
      %3951 = vmatprep.subr.mxu0 0.0
      %3952 = vmatpush1.msra.mxu0 %v3372
      %3953 = vmatprep.subr.mxu0 0.0
      %3954 = vmatpush1.msra.mxu0 %v3373
      %3955 = vmatprep.subr.mxu0 0.0
      %3956 = vmatpush1.msra.mxu0 0.0
      %3957 = vmatprep.subr.mxu0 0.0
      %3958 = vmatpush1.msra.mxu0 0.0
      %3959 = vmatprep.subr.mxu0 0.0
      %3960 = vmatpush1.msra.mxu0 0.0
      %3961 = vmatprep.subr.mxu0 0.0
      %3962 = vmatpush1.msra.mxu0 0.0
      %3963 = vmatprep.subr.mxu0 0.0
      %3964 = vmatpush1.msra.mxu0 0.0
      %3965 = vmatprep.subr.mxu0 0.0
      %3966 = vmatpush1.msra.mxu0 0.0
      %3967 = vmatprep.subr.mxu0 0.0
      %3968 = vmatpush1.msra.mxu0 0.0
      %3969 = vmatprep.subr.mxu0 0.0
      %3970 = vmatpush1.msra.mxu0 0.0
      %3971 = vmatprep.subr.mxu0 0.0
      %3972 = vmatpush1.msra.mxu0 0.0
      %3973 = vmatprep.subr.mxu0 0.0
      %3974 = vmatpush1.msra.mxu0 0.0
      %3975 = vmatprep.subr.mxu0 0.0
      %3976 = vmatpush1.msra.mxu0 0.0
      %3977 = vmatprep.subr.mxu0 0.0
      %3978 = vmatpush1.msra.mxu0 0.0
      %3979 = vmatprep.subr.mxu0 0.0
      %3980 = vmatpush1.msra.mxu0 0.0
      %3981 = vmatprep.subr.mxu0 0.0
      %3982 = vmatpush1.msra.mxu0 0.0
      %3983 = vmatprep.subr.mxu0 0.0
      %3984 = vmatpush1.msra.mxu0 0.0
      %3985 = vmatprep.subr.mxu0 0.0
      %3986 = vmatpush1.msra.mxu0 0.0
      %3987 = vmatprep.subr.mxu0 0.0
      %3988 = vmatpush1.msra.mxu0 0.0
      %3989 = vmatprep.subr.mxu0 0.0
      %3990 = vmatpush1.msra.mxu0 0.0
      %3991 = vmatprep.subr.mxu0 0.0
      %3992 = vmatpush1.msra.mxu0 0.0
      %3993 = vmatprep.subr.mxu0 0.0
      %3994 = vmatpush1.msra.mxu0 0.0
      %3995 = vmatprep.subr.mxu0 0.0
      %3996 = vmatpush1.msra.mxu0 0.0
      %3997 = vmatprep.subr.mxu0 0.0
      %3998 = vmatpush1.msra.mxu0 0.0
      %3999 = vmatprep.subr.mxu0 0.0
      %4000 = vmatpush1.msra.mxu0 0.0
      %4001 = vmatprep.subr.mxu0 0.0
      %4002 = vmatpush1.msra.mxu0 0.0
      %4003 = vmatprep.subr.mxu0 0.0
      %4004 = vmatpush1.msra.mxu0 0.0
      %4005 = vmatprep.subr.mxu0 0.0
      %4006 = vmatpush1.msra.mxu0 0.0
      %4007 = vmatprep.subr.mxu0 0.0
      %4008 = vmatpush1.msra.mxu0 0.0
      %4009 = vmatprep.subr.mxu0 0.0
      %4010 = vmatpush1.msra.mxu0 0.0
      %4011 = vmatprep.subr.mxu0 0.0
      %4012 = vmatpush1.msra.mxu0 0.0
      %4013 = vmatprep.subr.mxu0 0.0
      %4014 = vmatpush1.msra.mxu0 0.0
      %4015 = vmatprep.mubr.f32.mxu0 0.0
      %4016 = vmatmul.mubr.f32.gmra.mrb[0].mxu0 %v3931
      %v4017 = vpop.f32.mrb[0].mxu0
      %v4018 = vadd.f32 0.0, %v4017
      %v4019 = vpop.f32.mrb[0].mxu0
      %4020 = vmatprep.mubr.f32.mxu0 0.0
      %4021 = vmatmul.mubr.f32.gmra.mrb[0].mxu0 %v3934
      %v4022 = vpop.f32.mrb[0].mxu0
      %v4023 = vadd.f32 0.0, %v4022
      %v4024 = vpop.f32.mrb[0].mxu0
      %4025 = vmatprep.mubr.f32.mxu0 0.0
      %4026 = vmatmul.mubr.f32.gmra.mrb[0].mxu0 %v3937
      %v4027 = vpop.f32.mrb[0].mxu0
      %v4028 = vadd.f32 0.0, %v4027
      %v4029 = vpop.f32.mrb[0].mxu0
      %4030 = vmatprep.mubr.f32.mxu0 0.0
      %4031 = vmatmul.mubr.f32.gmra.mrb[0].mxu0 %v3940
      %v4032 = vpop.f32.mrb[0].mxu0
      %v4033 = vadd.f32 0.0, %v4032
      %v4034 = vpop.f32.mrb[0].mxu0
      %4035 = vmatprep.mubr.f32.mxu0 0.0
      %4036 = vmatmul.mubr.f32.gmra.mrb[0].mxu0 %v3943
      %v4037 = vpop.f32.mrb[0].mxu0
      %v4038 = vadd.f32 0.0, %v4037
      %v4039 = vpop.f32.mrb[0].mxu0
      %4040 = vmatprep.mubr.f32.mxu0 0.0
      %4041 = vmatmul.mubr.f32.gmra.mrb[0].mxu0 %v3946
      %v4042 = vpop.f32.mrb[0].mxu0
      %v4043 = vadd.f32 0.0, %v4042
      %v4044 = vpop.f32.mrb[0].mxu0
      %4045 = vmatprep.mubr.f32.mxu0 0.0
      %4046 = vmatmul.mubr.f32.gmra.mrb[0].mxu0 %v3949
      %v4047 = vpop.f32.mrb[0].mxu0
      %v4048 = vadd.f32 0.0, %v4047
      %v4049 = vpop.f32.mrb[0].mxu0
      %4050 = vdwg.mxu0
      %s4051 = scalar_lea.vmem %s5, 32
      %v4052 = vld [vmem:[%s4051] sm:$0xff]
      %v4053 = vld [vmem:[%s4051 + $0x8] sm:$0xff]
      %v4054 = vld [vmem:[%s4051 + $0x10] sm:$0xff]
      %v4055 = vld [vmem:[%s4051 + $0x18] sm:$0xff]
      %s4056 = scalar_lea.vmem %s6, 1
      %v4057 = vld [vmem:[%s4056] sm:$0x1]
      %s4058 = scalar_lea.vmem %s2, 56
      %v4059 = vld [vmem:[%s4058] sm:$0xff]
      %v4060 = vld [vmem:[%s4058 + $0x8] sm:$0xff]
      %v4061 = vld [vmem:[%s4058 + $0x10] sm:$0xff]
      %v4062 = vld [vmem:[%s4058 + $0x18] sm:$0xff]
      %v4063 = vld [vmem:[%s4058 + $0x20] sm:$0xff]
      %v4064 = vld [vmem:[%s4058 + $0x28] sm:$0xff]
      %v4065 = vld [vmem:[%s4058 + $0x30] sm:$0x1]
      %v4067 = vlaneseq
      %v4068 = vshrl.u32 %v4067, 7
      %v4069 = vsub.s32 0, %v4068
      %v4070 = vrot.slane %v4057, %v4069
      %v4073 = vsel %vm769, %v4018, 0
      %v4076 = vsel %vm769, %v4023, 0
      %v4079 = vsel %vm769, %v4028, 0
      %v4082 = vsel %vm769, %v4033, 0
      %v4085 = vsel %vm769, %v4038, 0
      %v4088 = vsel %vm769, %v4043, 0
      %v4091 = vsel %vm769, %v4048, 0
      %4093 = vmatprep.subr.mxu0 0.0
      %4094 = vmatpush1.msra.mxu0 %v4052
      %4095 = vmatprep.subr.mxu0 0.0
      %4096 = vmatpush1.msra.mxu0 %v4053
      %4097 = vmatprep.subr.mxu0 0.0
      %4098 = vmatpush1.msra.mxu0 %v4054
      %4099 = vmatprep.subr.mxu0 0.0
      %4100 = vmatpush1.msra.mxu0 %v4055
      %4101 = vmatprep.subr.mxu0 0.0
      %4102 = vmatpush1.msra.mxu0 0.0
      %4103 = vmatprep.subr.mxu0 0.0
      %4104 = vmatpush1.msra.mxu0 0.0
      %4105 = vmatprep.subr.mxu0 0.0
      %4106 = vmatpush1.msra.mxu0 0.0
      %4107 = vmatprep.subr.mxu0 0.0
      %4108 = vmatpush1.msra.mxu0 0.0
      %4109 = vmatprep.subr.mxu0 0.0
      %4110 = vmatpush1.msra.mxu0 0.0
      %4111 = vmatprep.subr.mxu0 0.0
      %4112 = vmatpush1.msra.mxu0 0.0
      %4113 = vmatprep.subr.mxu0 0.0
      %4114 = vmatpush1.msra.mxu0 0.0
      %4115 = vmatprep.subr.mxu0 0.0
      %4116 = vmatpush1.msra.mxu0 0.0
      %4117 = vmatprep.subr.mxu0 0.0
      %4118 = vmatpush1.msra.mxu0 0.0
      %4119 = vmatprep.subr.mxu0 0.0
      %4120 = vmatpush1.msra.mxu0 0.0
      %4121 = vmatprep.subr.mxu0 0.0
      %4122 = vmatpush1.msra.mxu0 0.0
      %4123 = vmatprep.subr.mxu0 0.0
      %4124 = vmatpush1.msra.mxu0 0.0
      %4125 = vmatprep.subr.mxu0 0.0
      %4126 = vmatpush1.msra.mxu0 0.0
      %4127 = vmatprep.subr.mxu0 0.0
      %4128 = vmatpush1.msra.mxu0 0.0
      %4129 = vmatprep.subr.mxu0 0.0
      %4130 = vmatpush1.msra.mxu0 0.0
      %4131 = vmatprep.subr.mxu0 0.0
      %4132 = vmatpush1.msra.mxu0 0.0
      %4133 = vmatprep.subr.mxu0 0.0
      %4134 = vmatpush1.msra.mxu0 0.0
      %4135 = vmatprep.subr.mxu0 0.0
      %4136 = vmatpush1.msra.mxu0 0.0
      %4137 = vmatprep.subr.mxu0 0.0
      %4138 = vmatpush1.msra.mxu0 0.0
      %4139 = vmatprep.subr.mxu0 0.0
      %4140 = vmatpush1.msra.mxu0 0.0
      %4141 = vmatprep.subr.mxu0 0.0
      %4142 = vmatpush1.msra.mxu0 0.0
      %4143 = vmatprep.subr.mxu0 0.0
      %4144 = vmatpush1.msra.mxu0 0.0
      %4145 = vmatprep.subr.mxu0 0.0
      %4146 = vmatpush1.msra.mxu0 0.0
      %4147 = vmatprep.subr.mxu0 0.0
      %4148 = vmatpush1.msra.mxu0 0.0
      %4149 = vmatprep.subr.mxu0 0.0
      %4150 = vmatpush1.msra.mxu0 0.0
      %4151 = vmatprep.subr.mxu0 0.0
      %4152 = vmatpush1.msra.mxu0 0.0
      %4153 = vmatprep.subr.mxu0 0.0
      %4154 = vmatpush1.msra.mxu0 0.0
      %4155 = vmatprep.subr.mxu0 0.0
      %4156 = vmatpush1.msra.mxu0 0.0
      %4157 = vmatprep.mubr.f32.mxu0 0.0
      %4158 = vmatmul.mubr.f32.gmra.mrb[0].mxu0 %v4073
      %v4159 = vpop.f32.mrb[0].mxu0
      %v4160 = vadd.f32 %v4070, %v4159
      %v4161 = vpop.f32.mrb[0].mxu0
      %4162 = vmatprep.mubr.f32.mxu0 0.0
      %4163 = vmatmul.mubr.f32.gmra.mrb[0].mxu0 %v4076
      %v4164 = vpop.f32.mrb[0].mxu0
      %v4165 = vadd.f32 %v4070, %v4164
      %v4166 = vpop.f32.mrb[0].mxu0
      %4167 = vmatprep.mubr.f32.mxu0 0.0
      %4168 = vmatmul.mubr.f32.gmra.mrb[0].mxu0 %v4079
      %v4169 = vpop.f32.mrb[0].mxu0
      %v4170 = vadd.f32 %v4070, %v4169
      %v4171 = vpop.f32.mrb[0].mxu0
      %4172 = vmatprep.mubr.f32.mxu0 0.0
      %4173 = vmatmul.mubr.f32.gmra.mrb[0].mxu0 %v4082
      %v4174 = vpop.f32.mrb[0].mxu0
      %v4175 = vadd.f32 %v4070, %v4174
      %v4176 = vpop.f32.mrb[0].mxu0
      %4177 = vmatprep.mubr.f32.mxu0 0.0
      %4178 = vmatmul.mubr.f32.gmra.mrb[0].mxu0 %v4085
      %v4179 = vpop.f32.mrb[0].mxu0
      %v4180 = vadd.f32 %v4070, %v4179
      %v4181 = vpop.f32.mrb[0].mxu0
      %4182 = vmatprep.mubr.f32.mxu0 0.0
      %4183 = vmatmul.mubr.f32.gmra.mrb[0].mxu0 %v4088
      %v4184 = vpop.f32.mrb[0].mxu0
      %v4185 = vadd.f32 %v4070, %v4184
      %v4186 = vpop.f32.mrb[0].mxu0
      %4187 = vmatprep.mubr.f32.mxu0 0.0
      %4188 = vmatmul.mubr.f32.gmra.mrb[0].mxu0 %v4091
      %v4189 = vpop.f32.mrb[0].mxu0
      %v4190 = vadd.f32 %v4070, %v4189
      %v4191 = vpop.f32.mrb[0].mxu0
      %4192 = vdwg.mxu0
      %v4194 = vsel %vm891, %v4160, 0
      %v4197 = vsel %vm891, %v4165, 0
      %v4200 = vsel %vm891, %v4170, 0
      %v4203 = vsel %vm891, %v4175, 0
      %v4206 = vsel %vm891, %v4180, 0
      %v4209 = vsel %vm891, %v4185, 0
      %v4212 = vsel %vm891, %v4190, 0
      %4214 = vmatprep.subr.mxu0 0.0
      %4215 = vmatpush1.xpose.msra.mxu0 %v4194
      %4216 = vmatprep.subr.mxu0 0.0
      %4217 = vmatpush1.xpose.msra.mxu0 %v4197
      %4218 = vmatprep.subr.mxu0 0.0
      %4219 = vmatpush1.xpose.msra.mxu0 %v4200
      %4220 = vmatprep.subr.mxu0 0.0
      %4221 = vmatpush1.xpose.msra.mxu0 %v4203
      %4222 = vmatprep.subr.mxu0 0.0
      %4223 = vmatpush1.xpose.msra.mxu0 %v4206
      %4224 = vmatprep.subr.mxu0 0.0
      %4225 = vmatpush1.xpose.msra.mxu0 %v4209
      %4226 = vmatprep.subr.mxu0 0.0
      %4227 = vmatpush1.xpose.msra.mxu0 %v4212
      %4228 = vmatprep.subr.mxu0 0.0
      %4229 = vmatpush1.xpose.msra.mxu0 0.0
      %4230 = vmatprep.subr.mxu0 0.0
      %4231 = vmatpush1.xpose.msra.mxu0 0.0
      %4232 = vmatprep.subr.mxu0 0.0
      %4233 = vmatpush1.xpose.msra.mxu0 0.0
      %4234 = vmatprep.subr.mxu0 0.0
      %4235 = vmatpush1.xpose.msra.mxu0 0.0
      %4236 = vmatprep.subr.mxu0 0.0
      %4237 = vmatpush1.xpose.msra.mxu0 0.0
      %4238 = vmatprep.subr.mxu0 0.0
      %4239 = vmatpush1.xpose.msra.mxu0 0.0
      %4240 = vmatprep.subr.mxu0 0.0
      %4241 = vmatpush1.xpose.msra.mxu0 0.0
      %4242 = vmatprep.subr.mxu0 0.0
      %4243 = vmatpush1.xpose.msra.mxu0 0.0
      %4244 = vmatprep.subr.mxu0 0.0
      %4245 = vmatpush1.xpose.msra.mxu0 0.0
      %4246 = vmatprep.subr.mxu0 0.0
      %4247 = vmatpush1.xpose.msra.mxu0 0.0
      %4248 = vmatprep.subr.mxu0 0.0
      %4249 = vmatpush1.xpose.msra.mxu0 0.0
      %4250 = vmatprep.subr.mxu0 0.0
      %4251 = vmatpush1.xpose.msra.mxu0 0.0
      %4252 = vmatprep.subr.mxu0 0.0
      %4253 = vmatpush1.xpose.msra.mxu0 0.0
      %4254 = vmatprep.subr.mxu0 0.0
      %4255 = vmatpush1.xpose.msra.mxu0 0.0
      %4256 = vmatprep.subr.mxu0 0.0
      %4257 = vmatpush1.xpose.msra.mxu0 0.0
      %4258 = vmatprep.subr.mxu0 0.0
      %4259 = vmatpush1.xpose.msra.mxu0 0.0
      %4260 = vmatprep.subr.mxu0 0.0
      %4261 = vmatpush1.xpose.msra.mxu0 0.0
      %4262 = vmatprep.subr.mxu0 0.0
      %4263 = vmatpush1.xpose.msra.mxu0 0.0
      %4264 = vmatprep.subr.mxu0 0.0
      %4265 = vmatpush1.xpose.msra.mxu0 0.0
      %4266 = vmatprep.subr.mxu0 0.0
      %4267 = vmatpush1.xpose.msra.mxu0 0.0
      %4268 = vmatprep.subr.mxu0 0.0
      %4269 = vmatpush1.xpose.msra.mxu0 0.0
      %4270 = vmatprep.subr.mxu0 0.0
      %4271 = vmatpush1.xpose.msra.mxu0 0.0
      %4272 = vmatprep.subr.mxu0 0.0
      %4273 = vmatpush1.xpose.msra.mxu0 0.0
      %4274 = vmatprep.subr.mxu0 0.0
      %4275 = vmatpush1.xpose.msra.mxu0 0.0
      %4276 = vmatprep.subr.mxu0 0.0
      %4277 = vmatpush1.xpose.msra.mxu0 0.0
      %4278 = vmatprep.mubr.f32.mxu0 0.0
      %4279 = vmatmul.mubr.f32.gmra.mrb[0].mxu0 %v893
      %v4280 = vpop.f32.mrb[0].mxu0
      %v4281 = vadd.f32 0.0, %v4280
      %v4282 = vpop.f32.mrb[0].mxu0
      %4283 = vmatprep.mubr.f32.mxu0 0.0
      %4284 = vmatmul.mubr.f32.gmra.mrb[0].mxu0 %v896
      %v4285 = vpop.f32.mrb[0].mxu0
      %v4286 = vadd.f32 0.0, %v4285
      %v4287 = vpop.f32.mrb[0].mxu0
      %4288 = vmatprep.mubr.f32.mxu0 0.0
      %4289 = vmatmul.mubr.f32.gmra.mrb[0].mxu0 %v899
      %v4290 = vpop.f32.mrb[0].mxu0
      %v4291 = vadd.f32 0.0, %v4290
      %v4292 = vpop.f32.mrb[0].mxu0
      %4293 = vmatprep.mubr.f32.mxu0 0.0
      %4294 = vmatmul.mubr.f32.gmra.mrb[0].mxu0 %v902
      %v4295 = vpop.f32.mrb[0].mxu0
      %v4296 = vadd.f32 0.0, %v4295
      %v4297 = vpop.f32.mrb[0].mxu0
      %4298 = vmatprep.mubr.f32.mxu0 0.0
      %4299 = vmatmul.mubr.f32.gmra.mrb[0].mxu0 %v905
      %v4300 = vpop.f32.mrb[0].mxu0
      %v4301 = vadd.f32 0.0, %v4300
      %v4302 = vpop.f32.mrb[0].mxu0
      %4303 = vmatprep.mubr.f32.mxu0 0.0
      %4304 = vmatmul.mubr.f32.gmra.mrb[0].mxu0 %v908
      %v4305 = vpop.f32.mrb[0].mxu0
      %v4306 = vadd.f32 0.0, %v4305
      %v4307 = vpop.f32.mrb[0].mxu0
      %4308 = vmatprep.mubr.f32.mxu0 0.0
      %4309 = vmatmul.mubr.f32.gmra.mrb[0].mxu0 %v911
      %v4310 = vpop.f32.mrb[0].mxu0
      %v4311 = vadd.f32 0.0, %v4310
      %v4312 = vpop.f32.mrb[0].mxu0
      %4313 = vdwg.mxu0
      %v4314 = vmul.f32 %v4281, 0.25
      %v4315 = vmul.f32 %v4286, 0.25
      %v4316 = vmul.f32 %v4291, 0.25
      %v4317 = vmul.f32 %v4296, 0.25
      %v4318 = vmul.f32 %v4301, 0.25
      %v4319 = vmul.f32 %v4306, 0.25
      %v4320 = vmul.f32 %v4311, 0.25
      %v4321 = vadd.f32 %v4314, %v4059
      %v4322 = vadd.f32 %v4315, %v4060
      %v4323 = vadd.f32 %v4316, %v4061
      %v4324 = vadd.f32 %v4317, %v4062
      %v4325 = vadd.f32 %v4318, %v4063
      %v4326 = vadd.f32 %v4319, %v4064
      %v4327 = vadd.f32 %v4320, %v4065
      %v4328 = vsel %vm1048, %v4321, -inf
      %4329 = vmax.xlane.f32.xlu0 %v4328
      %v4330 = vpop.xlane.xlu0 %4329
      %v4331 = vsel %vm1048, %v4322, -inf
      %4332 = vmax.xlane.f32.xlu0 %v4331
      %v4333 = vpop.xlane.xlu0 %4332
      %v4334 = vsel %vm1048, %v4323, -inf
      %4335 = vmax.xlane.f32.xlu0 %v4334
      %v4336 = vpop.xlane.xlu0 %4335
      %v4337 = vsel %vm1048, %v4324, -inf
      %4338 = vmax.xlane.f32.xlu0 %v4337
      %v4339 = vpop.xlane.xlu0 %4338
      %v4340 = vsel %vm1048, %v4325, -inf
      %4341 = vmax.xlane.f32.xlu0 %v4340
      %v4342 = vpop.xlane.xlu0 %4341
      %v4343 = vsel %vm1048, %v4326, -inf
      %4344 = vmax.xlane.f32.xlu0 %v4343
      %v4345 = vpop.xlane.xlu0 %4344
      %v4346 = vsel %vm1067, %v4327, -inf
      %4347 = vmax.xlane.f32.xlu0 %v4346
      %v4348 = vpop.xlane.xlu0 %4347
      %v4349 = vsub.f32 %v4321, %v4330
      %v4350 = vsub.f32 %v4322, %v4333
      %v4351 = vsub.f32 %v4323, %v4336
      %v4352 = vsub.f32 %v4324, %v4339
      %v4353 = vsub.f32 %v4325, %v4342
      %v4354 = vsub.f32 %v4326, %v4345
      %v4355 = vsub.f32 %v4327, %v4348
      %v4356 = vmul.f32 %v4349, 1.442695
      %v4357 = vpow.pop %v4356
      %v4358 = vmul.f32 %v4350, 1.442695
      %v4359 = vpow.pop %v4358
      %v4360 = vmul.f32 %v4351, 1.442695
      %v4361 = vpow.pop %v4360
      %v4362 = vmul.f32 %v4352, 1.442695
      %v4363 = vpow.pop %v4362
      %v4364 = vmul.f32 %v4353, 1.442695
      %v4365 = vpow.pop %v4364
      %v4366 = vmul.f32 %v4354, 1.442695
      %v4367 = vpow.pop %v4366
      %v4368 = vmul.f32 %v4355, 1.442695
      %v4369 = vpow.pop %v4368
      %v4370 = vsel %vm1048, %v4357, 0.0
      %4371 = vadd.xlane.f32.xlu0 %v4370
      %v4372 = vpop.xlane.xlu0 %4371
      %v4373 = vsel %vm1048, %v4359, 0.0
      %4374 = vadd.xlane.f32.xlu0 %v4373
      %v4375 = vpop.xlane.xlu0 %4374
      %v4376 = vsel %vm1048, %v4361, 0.0
      %4377 = vadd.xlane.f32.xlu0 %v4376
      %v4378 = vpop.xlane.xlu0 %4377
      %v4379 = vsel %vm1048, %v4363, 0.0
      %4380 = vadd.xlane.f32.xlu0 %v4379
      %v4381 = vpop.xlane.xlu0 %4380
      %v4382 = vsel %vm1048, %v4365, 0.0
      %4383 = vadd.xlane.f32.xlu0 %v4382
      %v4384 = vpop.xlane.xlu0 %4383
      %v4385 = vsel %vm1048, %v4367, 0.0
      %4386 = vadd.xlane.f32.xlu0 %v4385
      %v4387 = vpop.xlane.xlu0 %4386
      %v4388 = vsel %vm1067, %v4369, 0.0
      %4389 = vadd.xlane.f32.xlu0 %v4388
      %v4390 = vpop.xlane.xlu0 %4389
      %v4391 = vrcp.pop %v4372
      %v4392 = vrcp.pop %v4375
      %v4393 = vrcp.pop %v4378
      %v4394 = vrcp.pop %v4381
      %v4395 = vrcp.pop %v4384
      %v4396 = vrcp.pop %v4387
      %v4397 = vrcp.pop %v4390
      %v4398 = vmul.f32 %v4357, %v4391
      %v4399 = vmul.f32 %v4359, %v4392
      %v4400 = vmul.f32 %v4361, %v4393
      %v4401 = vmul.f32 %v4363, %v4394
      %v4402 = vmul.f32 %v4365, %v4395
      %v4403 = vmul.f32 %v4367, %v4396
      %v4404 = vmul.f32 %v4369, %v4397
      %v4405 = vlaneseq
      %v4406 = vshrl.u32 %v4405, 7
      %v4407 = vsub.s32 1, %v4406
      %v4408 = vrot.slane %v627, %v4407
      %4409 = vrot.lane.b32.xlu0 %v4160, 112
      %v4410 = vpop.permute.xlu0 %4409
      %4411 = vrot.lane.b32.xlu0 %v4165, 112
      %v4412 = vpop.permute.xlu0 %4411
      %4413 = vrot.lane.b32.xlu0 %v4170, 112
      %v4414 = vpop.permute.xlu0 %4413
      %4415 = vrot.lane.b32.xlu0 %v4175, 112
      %v4416 = vpop.permute.xlu0 %4415
      %4417 = vrot.lane.b32.xlu0 %v4180, 112
      %v4418 = vpop.permute.xlu0 %4417
      %4419 = vrot.lane.b32.xlu0 %v4185, 112
      %v4420 = vpop.permute.xlu0 %4419
      %4421 = vrot.lane.b32.xlu0 %v4190, 112
      %v4422 = vpop.permute.xlu0 %4421
      %v4430 = vmul.f32 %v4408, %v4410
      %v4431 = vmul.f32 %v4408, %v4412
      %v4432 = vmul.f32 %v4408, %v4414
      %v4433 = vmul.f32 %v4408, %v4416
      %v4434 = vmul.f32 %v4408, %v4418
      %v4435 = vmul.f32 %v4408, %v4420
      %v4436 = vmul.f32 %v4408, %v4422
      %v4438 = vsel %vm1048, %v4398, 0
      %v4441 = vsel %vm1048, %v4399, 0
      %v4444 = vsel %vm1048, %v4400, 0
      %v4447 = vsel %vm1048, %v4401, 0
      %v4450 = vsel %vm1048, %v4402, 0
      %v4453 = vsel %vm1048, %v4403, 0
      %v4456 = vsel %vm1048, %v4404, 0
      %v4459 = vsel %vm1180, %v4436, 0
      %4461 = vmatprep.subr.mxu0 0.0
      %4462 = vmatpush1.msra.mxu0 %v4430
      %4463 = vmatprep.subr.mxu0 0.0
      %4464 = vmatpush1.msra.mxu0 %v4431
      %4465 = vmatprep.subr.mxu0 0.0
      %4466 = vmatpush1.msra.mxu0 %v4432
      %4467 = vmatprep.subr.mxu0 0.0
      %4468 = vmatpush1.msra.mxu0 %v4433
      %4469 = vmatprep.subr.mxu0 0.0
      %4470 = vmatpush1.msra.mxu0 %v4434
      %4471 = vmatprep.subr.mxu0 0.0
      %4472 = vmatpush1.msra.mxu0 %v4435
      %4473 = vmatprep.subr.mxu0 0.0
      %4474 = vmatpush1.msra.mxu0 %v4459
      %4475 = vmatprep.subr.mxu0 0.0
      %4476 = vmatpush1.msra.mxu0 0.0
      %4477 = vmatprep.subr.mxu0 0.0
      %4478 = vmatpush1.msra.mxu0 0.0
      %4479 = vmatprep.subr.mxu0 0.0
      %4480 = vmatpush1.msra.mxu0 0.0
      %4481 = vmatprep.subr.mxu0 0.0
      %4482 = vmatpush1.msra.mxu0 0.0
      %4483 = vmatprep.subr.mxu0 0.0
      %4484 = vmatpush1.msra.mxu0 0.0
      %4485 = vmatprep.subr.mxu0 0.0
      %4486 = vmatpush1.msra.mxu0 0.0
      %4487 = vmatprep.subr.mxu0 0.0
      %4488 = vmatpush1.msra.mxu0 0.0
      %4489 = vmatprep.subr.mxu0 0.0
      %4490 = vmatpush1.msra.mxu0 0.0
      %4491 = vmatprep.subr.mxu0 0.0
      %4492 = vmatpush1.msra.mxu0 0.0
      %4493 = vmatprep.subr.mxu0 0.0
      %4494 = vmatpush1.msra.mxu0 0.0
      %4495 = vmatprep.subr.mxu0 0.0
      %4496 = vmatpush1.msra.mxu0 0.0
      %4497 = vmatprep.subr.mxu0 0.0
      %4498 = vmatpush1.msra.mxu0 0.0
      %4499 = vmatprep.subr.mxu0 0.0
      %4500 = vmatpush1.msra.mxu0 0.0
      %4501 = vmatprep.subr.mxu0 0.0
      %4502 = vmatpush1.msra.mxu0 0.0
      %4503 = vmatprep.subr.mxu0 0.0
      %4504 = vmatpush1.msra.mxu0 0.0
      %4505 = vmatprep.subr.mxu0 0.0
      %4506 = vmatpush1.msra.mxu0 0.0
      %4507 = vmatprep.subr.mxu0 0.0
      %4508 = vmatpush1.msra.mxu0 0.0
      %4509 = vmatprep.subr.mxu0 0.0
      %4510 = vmatpush1.msra.mxu0 0.0
      %4511 = vmatprep.subr.mxu0 0.0
      %4512 = vmatpush1.msra.mxu0 0.0
      %4513 = vmatprep.subr.mxu0 0.0
      %4514 = vmatpush1.msra.mxu0 0.0
      %4515 = vmatprep.subr.mxu0 0.0
      %4516 = vmatpush1.msra.mxu0 0.0
      %4517 = vmatprep.subr.mxu0 0.0
      %4518 = vmatpush1.msra.mxu0 0.0
      %4519 = vmatprep.subr.mxu0 0.0
      %4520 = vmatpush1.msra.mxu0 0.0
      %4521 = vmatprep.subr.mxu0 0.0
      %4522 = vmatpush1.msra.mxu0 0.0
      %4523 = vmatprep.subr.mxu0 0.0
      %4524 = vmatpush1.msra.mxu0 0.0
      %4525 = vmatprep.mubr.f32.mxu0 0.0
      %4526 = vmatmul.mubr.f32.gmra.mrb[0].mxu0 %v4438
      %v4527 = vpop.f32.mrb[0].mxu0
      %v4528 = vadd.f32 0.0, %v4527
      %v4529 = vpop.f32.mrb[0].mxu0
      %4530 = vmatprep.mubr.f32.mxu0 0.0
      %4531 = vmatmul.mubr.f32.gmra.mrb[0].mxu0 %v4441
      %v4532 = vpop.f32.mrb[0].mxu0
      %v4533 = vadd.f32 0.0, %v4532
      %v4534 = vpop.f32.mrb[0].mxu0
      %4535 = vmatprep.mubr.f32.mxu0 0.0
      %4536 = vmatmul.mubr.f32.gmra.mrb[0].mxu0 %v4444
      %v4537 = vpop.f32.mrb[0].mxu0
      %v4538 = vadd.f32 0.0, %v4537
      %v4539 = vpop.f32.mrb[0].mxu0
      %4540 = vmatprep.mubr.f32.mxu0 0.0
      %4541 = vmatmul.mubr.f32.gmra.mrb[0].mxu0 %v4447
      %v4542 = vpop.f32.mrb[0].mxu0
      %v4543 = vadd.f32 0.0, %v4542
      %v4544 = vpop.f32.mrb[0].mxu0
      %4545 = vmatprep.mubr.f32.mxu0 0.0
      %4546 = vmatmul.mubr.f32.gmra.mrb[0].mxu0 %v4450
      %v4547 = vpop.f32.mrb[0].mxu0
      %v4548 = vadd.f32 0.0, %v4547
      %v4549 = vpop.f32.mrb[0].mxu0
      %4550 = vmatprep.mubr.f32.mxu0 0.0
      %4551 = vmatmul.mubr.f32.gmra.mrb[0].mxu0 %v4453
      %v4552 = vpop.f32.mrb[0].mxu0
      %v4553 = vadd.f32 0.0, %v4552
      %v4554 = vpop.f32.mrb[0].mxu0
      %4555 = vmatprep.mubr.f32.mxu0 0.0
      %4556 = vmatmul.mubr.f32.gmra.mrb[0].mxu0 %v4456
      %v4557 = vpop.f32.mrb[0].mxu0
      %v4558 = vadd.f32 0.0, %v4557
      %v4559 = vpop.f32.mrb[0].mxu0
      %4560 = vdwg.mxu0
      %v4561 = vld [vmem:[%s15] sm:$0xff]
      %v4562 = vld [vmem:[%s15 + $0x8] sm:$0xff]
      %v4563 = vld [vmem:[%s15 + $0x10] sm:$0xff]
      %v4564 = vld [vmem:[%s15 + $0x18] sm:$0xff]
      %v4565 = vld [vmem:[%s15 + $0x20] sm:$0xff]
      %v4566 = vmax.f32 %v4528, 0.0
      %v4567 = vmax.f32 %v4533, 0.0
      %v4568 = vmax.f32 %v4538, 0.0
      %v4569 = vmax.f32 %v4543, 0.0
      %v4570 = vmax.f32 %v4548, 0.0
      %v4571 = vmax.f32 %v4553, 0.0
      %v4572 = vmax.f32 %v4558, 0.0
      %v4573 = vmax.f32 %v3916, 0.0
      %v4574 = vmax.f32 %v3917, 0.0
      %v4575 = vmax.f32 %v3918, 0.0
      %v4576 = vmax.f32 %v3919, 0.0
      %v4577 = vmax.f32 %v3920, 0.0
      %v4578 = vmax.f32 %v3921, 0.0
      %v4579 = vmax.f32 %v3922, 0.0
      %v4581 = vsel %vm1813, %v4573, 0
      %v4584 = vsel %vm1813, %v4574, 0
      %v4587 = vsel %vm1813, %v4575, 0
      %v4590 = vsel %vm1813, %v4576, 0
      %v4593 = vsel %vm1813, %v4577, 0
      %v4596 = vsel %vm1813, %v4578, 0
      %v4599 = vsel %vm1813, %v4579, 0
      %4601 = vmatprep.subr.mxu0 0.0
      %4602 = vmatpush1.msra.mxu0 %v4565
      %4603 = vmatprep.subr.mxu0 0.0
      %4604 = vmatpush1.msra.mxu0 0.0
      %4605 = vmatprep.subr.mxu0 0.0
      %4606 = vmatpush1.msra.mxu0 0.0
      %4607 = vmatprep.subr.mxu0 0.0
      %4608 = vmatpush1.msra.mxu0 0.0
      %4609 = vmatprep.subr.mxu0 0.0
      %4610 = vmatpush1.msra.mxu0 0.0
      %4611 = vmatprep.subr.mxu0 0.0
      %4612 = vmatpush1.msra.mxu0 0.0
      %4613 = vmatprep.subr.mxu0 0.0
      %4614 = vmatpush1.msra.mxu0 0.0
      %4615 = vmatprep.subr.mxu0 0.0
      %4616 = vmatpush1.msra.mxu0 0.0
      %4617 = vmatprep.subr.mxu0 0.0
      %4618 = vmatpush1.msra.mxu0 0.0
      %4619 = vmatprep.subr.mxu0 0.0
      %4620 = vmatpush1.msra.mxu0 0.0
      %4621 = vmatprep.subr.mxu0 0.0
      %4622 = vmatpush1.msra.mxu0 0.0
      %4623 = vmatprep.subr.mxu0 0.0
      %4624 = vmatpush1.msra.mxu0 0.0
      %4625 = vmatprep.subr.mxu0 0.0
      %4626 = vmatpush1.msra.mxu0 0.0
      %4627 = vmatprep.subr.mxu0 0.0
      %4628 = vmatpush1.msra.mxu0 0.0
      %4629 = vmatprep.subr.mxu0 0.0
      %4630 = vmatpush1.msra.mxu0 0.0
      %4631 = vmatprep.subr.mxu0 0.0
      %4632 = vmatpush1.msra.mxu0 0.0
      %4633 = vmatprep.subr.mxu0 0.0
      %4634 = vmatpush1.msra.mxu0 0.0
      %4635 = vmatprep.subr.mxu0 0.0
      %4636 = vmatpush1.msra.mxu0 0.0
      %4637 = vmatprep.subr.mxu0 0.0
      %4638 = vmatpush1.msra.mxu0 0.0
      %4639 = vmatprep.subr.mxu0 0.0
      %4640 = vmatpush1.msra.mxu0 0.0
      %4641 = vmatprep.subr.mxu0 0.0
      %4642 = vmatpush1.msra.mxu0 0.0
      %4643 = vmatprep.subr.mxu0 0.0
      %4644 = vmatpush1.msra.mxu0 0.0
      %4645 = vmatprep.subr.mxu0 0.0
      %4646 = vmatpush1.msra.mxu0 0.0
      %4647 = vmatprep.subr.mxu0 0.0
      %4648 = vmatpush1.msra.mxu0 0.0
      %4649 = vmatprep.subr.mxu0 0.0
      %4650 = vmatpush1.msra.mxu0 0.0
      %4651 = vmatprep.subr.mxu0 0.0
      %4652 = vmatpush1.msra.mxu0 0.0
      %4653 = vmatprep.subr.mxu0 0.0
      %4654 = vmatpush1.msra.mxu0 0.0
      %4655 = vmatprep.subr.mxu0 0.0
      %4656 = vmatpush1.msra.mxu0 0.0
      %4657 = vmatprep.subr.mxu0 0.0
      %4658 = vmatpush1.msra.mxu0 0.0
      %4659 = vmatprep.subr.mxu0 0.0
      %4660 = vmatpush1.msra.mxu0 0.0
      %4661 = vmatprep.subr.mxu0 0.0
      %4662 = vmatpush1.msra.mxu0 0.0
      %4663 = vmatprep.subr.mxu0 0.0
      %4664 = vmatpush1.msra.mxu0 0.0
      %4665 = vmatprep.mubr.f32.mxu0 0.0
      %4666 = vmatmul.mubr.f32.gmra.mrb[0].mxu0 %v4581
      %v4667 = vpop.f32.mrb[0].mxu0
      %v4668 = vadd.f32 0.0, %v4667
      %v4669 = vpop.f32.mrb[0].mxu0
      %4670 = vmatprep.mubr.f32.mxu0 0.0
      %4671 = vmatmul.mubr.f32.gmra.mrb[0].mxu0 %v4584
      %v4672 = vpop.f32.mrb[0].mxu0
      %v4673 = vadd.f32 0.0, %v4672
      %v4674 = vpop.f32.mrb[0].mxu0
      %4675 = vmatprep.mubr.f32.mxu0 0.0
      %4676 = vmatmul.mubr.f32.gmra.mrb[0].mxu0 %v4587
      %v4677 = vpop.f32.mrb[0].mxu0
      %v4678 = vadd.f32 0.0, %v4677
      %v4679 = vpop.f32.mrb[0].mxu0
      %4680 = vmatprep.mubr.f32.mxu0 0.0
      %4681 = vmatmul.mubr.f32.gmra.mrb[0].mxu0 %v4590
      %v4682 = vpop.f32.mrb[0].mxu0
      %v4683 = vadd.f32 0.0, %v4682
      %v4684 = vpop.f32.mrb[0].mxu0
      %4685 = vmatprep.mubr.f32.mxu0 0.0
      %4686 = vmatmul.mubr.f32.gmra.mrb[0].mxu0 %v4593
      %v4687 = vpop.f32.mrb[0].mxu0
      %v4688 = vadd.f32 0.0, %v4687
      %v4689 = vpop.f32.mrb[0].mxu0
      %4690 = vmatprep.mubr.f32.mxu0 0.0
      %4691 = vmatmul.mubr.f32.gmra.mrb[0].mxu0 %v4596
      %v4692 = vpop.f32.mrb[0].mxu0
      %v4693 = vadd.f32 0.0, %v4692
      %v4694 = vpop.f32.mrb[0].mxu0
      %4695 = vmatprep.mubr.f32.mxu0 0.0
      %4696 = vmatmul.mubr.f32.gmra.mrb[0].mxu0 %v4599
      %v4697 = vpop.f32.mrb[0].mxu0
      %v4698 = vadd.f32 0.0, %v4697
      %v4699 = vpop.f32.mrb[0].mxu0
      %4700 = vdwg.mxu0
      %v4702 = vsel %vm769, %v4566, 0
      %v4705 = vsel %vm769, %v4567, 0
      %v4708 = vsel %vm769, %v4568, 0
      %v4711 = vsel %vm769, %v4569, 0
      %v4714 = vsel %vm769, %v4570, 0
      %v4717 = vsel %vm769, %v4571, 0
      %v4720 = vsel %vm769, %v4572, 0
      %4722 = vmatprep.subr.mxu0 0.0
      %4723 = vmatpush1.msra.mxu0 %v4561
      %4724 = vmatprep.subr.mxu0 0.0
      %4725 = vmatpush1.msra.mxu0 %v4562
      %4726 = vmatprep.subr.mxu0 0.0
      %4727 = vmatpush1.msra.mxu0 %v4563
      %4728 = vmatprep.subr.mxu0 0.0
      %4729 = vmatpush1.msra.mxu0 %v4564
      %4730 = vmatprep.subr.mxu0 0.0
      %4731 = vmatpush1.msra.mxu0 0.0
      %4732 = vmatprep.subr.mxu0 0.0
      %4733 = vmatpush1.msra.mxu0 0.0
      %4734 = vmatprep.subr.mxu0 0.0
      %4735 = vmatpush1.msra.mxu0 0.0
      %4736 = vmatprep.subr.mxu0 0.0
      %4737 = vmatpush1.msra.mxu0 0.0
      %4738 = vmatprep.subr.mxu0 0.0
      %4739 = vmatpush1.msra.mxu0 0.0
      %4740 = vmatprep.subr.mxu0 0.0
      %4741 = vmatpush1.msra.mxu0 0.0
      %4742 = vmatprep.subr.mxu0 0.0
      %4743 = vmatpush1.msra.mxu0 0.0
      %4744 = vmatprep.subr.mxu0 0.0
      %4745 = vmatpush1.msra.mxu0 0.0
      %4746 = vmatprep.subr.mxu0 0.0
      %4747 = vmatpush1.msra.mxu0 0.0
      %4748 = vmatprep.subr.mxu0 0.0
      %4749 = vmatpush1.msra.mxu0 0.0
      %4750 = vmatprep.subr.mxu0 0.0
      %4751 = vmatpush1.msra.mxu0 0.0
      %4752 = vmatprep.subr.mxu0 0.0
      %4753 = vmatpush1.msra.mxu0 0.0
      %4754 = vmatprep.subr.mxu0 0.0
      %4755 = vmatpush1.msra.mxu0 0.0
      %4756 = vmatprep.subr.mxu0 0.0
      %4757 = vmatpush1.msra.mxu0 0.0
      %4758 = vmatprep.subr.mxu0 0.0
      %4759 = vmatpush1.msra.mxu0 0.0
      %4760 = vmatprep.subr.mxu0 0.0
      %4761 = vmatpush1.msra.mxu0 0.0
      %4762 = vmatprep.subr.mxu0 0.0
      %4763 = vmatpush1.msra.mxu0 0.0
      %4764 = vmatprep.subr.mxu0 0.0
      %4765 = vmatpush1.msra.mxu0 0.0
      %4766 = vmatprep.subr.mxu0 0.0
      %4767 = vmatpush1.msra.mxu0 0.0
      %4768 = vmatprep.subr.mxu0 0.0
      %4769 = vmatpush1.msra.mxu0 0.0
      %4770 = vmatprep.subr.mxu0 0.0
      %4771 = vmatpush1.msra.mxu0 0.0
      %4772 = vmatprep.subr.mxu0 0.0
      %4773 = vmatpush1.msra.mxu0 0.0
      %4774 = vmatprep.subr.mxu0 0.0
      %4775 = vmatpush1.msra.mxu0 0.0
      %4776 = vmatprep.subr.mxu0 0.0
      %4777 = vmatpush1.msra.mxu0 0.0
      %4778 = vmatprep.subr.mxu0 0.0
      %4779 = vmatpush1.msra.mxu0 0.0
      %4780 = vmatprep.subr.mxu0 0.0
      %4781 = vmatpush1.msra.mxu0 0.0
      %4782 = vmatprep.subr.mxu0 0.0
      %4783 = vmatpush1.msra.mxu0 0.0
      %4784 = vmatprep.subr.mxu0 0.0
      %4785 = vmatpush1.msra.mxu0 0.0
      %4786 = vmatprep.mubr.f32.mxu0 0.0
      %4787 = vmatmul.mubr.f32.gmra.mrb[0].mxu0 %v4702
      %v4788 = vpop.f32.mrb[0].mxu0
      %v4789 = vadd.f32 %v4668, %v4788
      %v4790 = vpop.f32.mrb[0].mxu0
      %4791 = vmatprep.mubr.f32.mxu0 0.0
      %4792 = vmatmul.mubr.f32.gmra.mrb[0].mxu0 %v4705
      %v4793 = vpop.f32.mrb[0].mxu0
      %v4794 = vadd.f32 %v4673, %v4793
      %v4795 = vpop.f32.mrb[0].mxu0
      %4796 = vmatprep.mubr.f32.mxu0 0.0
      %4797 = vmatmul.mubr.f32.gmra.mrb[0].mxu0 %v4708
      %v4798 = vpop.f32.mrb[0].mxu0
      %v4799 = vadd.f32 %v4678, %v4798
      %v4800 = vpop.f32.mrb[0].mxu0
      %4801 = vmatprep.mubr.f32.mxu0 0.0
      %4802 = vmatmul.mubr.f32.gmra.mrb[0].mxu0 %v4711
      %v4803 = vpop.f32.mrb[0].mxu0
      %v4804 = vadd.f32 %v4683, %v4803
      %v4805 = vpop.f32.mrb[0].mxu0
      %4806 = vmatprep.mubr.f32.mxu0 0.0
      %4807 = vmatmul.mubr.f32.gmra.mrb[0].mxu0 %v4714
      %v4808 = vpop.f32.mrb[0].mxu0
      %v4809 = vadd.f32 %v4688, %v4808
      %v4810 = vpop.f32.mrb[0].mxu0
      %4811 = vmatprep.mubr.f32.mxu0 0.0
      %4812 = vmatmul.mubr.f32.gmra.mrb[0].mxu0 %v4717
      %v4813 = vpop.f32.mrb[0].mxu0
      %v4814 = vadd.f32 %v4693, %v4813
      %v4815 = vpop.f32.mrb[0].mxu0
      %4816 = vmatprep.mubr.f32.mxu0 0.0
      %4817 = vmatmul.mubr.f32.gmra.mrb[0].mxu0 %v4720
      %v4818 = vpop.f32.mrb[0].mxu0
      %v4819 = vadd.f32 %v4698, %v4818
      %v4820 = vpop.f32.mrb[0].mxu0
      %4821 = vdwg.mxu0
      %v4822 = vld [vmem:[%s16] sm:$0x1]
      %v4824 = vlaneseq
      %v4825 = vshrl.u32 %v4824, 7
      %v4826 = vsub.s32 0, %v4825
      %v4827 = vrot.slane %v4822, %v4826
      %v4829 = vadd.f32 %v4789, %v4827
      %v4830 = vadd.f32 %v4794, %v4827
      %v4831 = vadd.f32 %v4799, %v4827
      %v4832 = vadd.f32 %v4804, %v4827
      %v4833 = vadd.f32 %v4809, %v4827
      %v4834 = vadd.f32 %v4814, %v4827
      %v4835 = vadd.f32 %v4819, %v4827
      %4836 = vrot.lane.b32.xlu0 %v620, 64
      %v4837 = vpop.permute.xlu0 %4836
      %4838 = vrot.lane.b32.xlu0 %v621, 64
      %v4839 = vpop.permute.xlu0 %4838
      %4840 = vrot.lane.b32.xlu0 %v622, 64
      %v4841 = vpop.permute.xlu0 %4840
      %4842 = vrot.lane.b32.xlu0 %v623, 64
      %v4843 = vpop.permute.xlu0 %4842
      %4844 = vrot.lane.b32.xlu0 %v624, 64
      %v4845 = vpop.permute.xlu0 %4844
      %4846 = vrot.lane.b32.xlu0 %v625, 64
      %v4847 = vpop.permute.xlu0 %4846
      %4848 = vrot.lane.b32.xlu0 %v626, 64
      %v4849 = vpop.permute.xlu0 %4848
      %v4857 = vadd.f32 %v4528, %v4837
      %v4858 = vadd.f32 %v4533, %v4839
      %v4859 = vadd.f32 %v4538, %v4841
      %v4860 = vadd.f32 %v4543, %v4843
      %v4861 = vadd.f32 %v4548, %v4845
      %v4862 = vadd.f32 %v4553, %v4847
      %v4863 = vadd.f32 %v4558, %v4849
      %s4864 = scalar_lea.vmem %s5, 64
      %v4865 = vld [vmem:[%s4864] sm:$0xff]
      %v4866 = vld [vmem:[%s4864 + $0x8] sm:$0xff]
      %v4867 = vld [vmem:[%s4864 + $0x10] sm:$0xff]
      %v4868 = vld [vmem:[%s4864 + $0x18] sm:$0xff]
      %s4869 = scalar_lea.vmem %s6, 2
      %v4870 = vld [vmem:[%s4869] sm:$0x1]
      %s4871 = scalar_lea.vmem %s2, 112
      %v4872 = vld [vmem:[%s4871] sm:$0xff]
      %v4873 = vld [vmem:[%s4871 + $0x8] sm:$0xff]
      %v4874 = vld [vmem:[%s4871 + $0x10] sm:$0xff]
      %v4875 = vld [vmem:[%s4871 + $0x18] sm:$0xff]
      %v4876 = vld [vmem:[%s4871 + $0x20] sm:$0xff]
      %v4877 = vld [vmem:[%s4871 + $0x28] sm:$0xff]
      %v4878 = vld [vmem:[%s4871 + $0x30] sm:$0x1]
      %v4880 = vlaneseq
      %v4881 = vshrl.u32 %v4880, 7
      %v4882 = vsub.s32 0, %v4881
      %v4883 = vrot.slane %v4870, %v4882
      %v4886 = vsel %vm769, %v4857, 0
      %v4889 = vsel %vm769, %v4858, 0
      %v4892 = vsel %vm769, %v4859, 0
      %v4895 = vsel %vm769, %v4860, 0
      %v4898 = vsel %vm769, %v4861, 0
      %v4901 = vsel %vm769, %v4862, 0
      %v4904 = vsel %vm769, %v4863, 0
      %4906 = vmatprep.subr.mxu0 0.0
      %4907 = vmatpush1.msra.mxu0 %v4865
      %4908 = vmatprep.subr.mxu0 0.0
      %4909 = vmatpush1.msra.mxu0 %v4866
      %4910 = vmatprep.subr.mxu0 0.0
      %4911 = vmatpush1.msra.mxu0 %v4867
      %4912 = vmatprep.subr.mxu0 0.0
      %4913 = vmatpush1.msra.mxu0 %v4868
      %4914 = vmatprep.subr.mxu0 0.0
      %4915 = vmatpush1.msra.mxu0 0.0
      %4916 = vmatprep.subr.mxu0 0.0
      %4917 = vmatpush1.msra.mxu0 0.0
      %4918 = vmatprep.subr.mxu0 0.0
      %4919 = vmatpush1.msra.mxu0 0.0
      %4920 = vmatprep.subr.mxu0 0.0
      %4921 = vmatpush1.msra.mxu0 0.0
      %4922 = vmatprep.subr.mxu0 0.0
      %4923 = vmatpush1.msra.mxu0 0.0
      %4924 = vmatprep.subr.mxu0 0.0
      %4925 = vmatpush1.msra.mxu0 0.0
      %4926 = vmatprep.subr.mxu0 0.0
      %4927 = vmatpush1.msra.mxu0 0.0
      %4928 = vmatprep.subr.mxu0 0.0
      %4929 = vmatpush1.msra.mxu0 0.0
      %4930 = vmatprep.subr.mxu0 0.0
      %4931 = vmatpush1.msra.mxu0 0.0
      %4932 = vmatprep.subr.mxu0 0.0
      %4933 = vmatpush1.msra.mxu0 0.0
      %4934 = vmatprep.subr.mxu0 0.0
      %4935 = vmatpush1.msra.mxu0 0.0
      %4936 = vmatprep.subr.mxu0 0.0
      %4937 = vmatpush1.msra.mxu0 0.0
      %4938 = vmatprep.subr.mxu0 0.0
      %4939 = vmatpush1.msra.mxu0 0.0
      %4940 = vmatprep.subr.mxu0 0.0
      %4941 = vmatpush1.msra.mxu0 0.0
      %4942 = vmatprep.subr.mxu0 0.0
      %4943 = vmatpush1.msra.mxu0 0.0
      %4944 = vmatprep.subr.mxu0 0.0
      %4945 = vmatpush1.msra.mxu0 0.0
      %4946 = vmatprep.subr.mxu0 0.0
      %4947 = vmatpush1.msra.mxu0 0.0
      %4948 = vmatprep.subr.mxu0 0.0
      %4949 = vmatpush1.msra.mxu0 0.0
      %4950 = vmatprep.subr.mxu0 0.0
      %4951 = vmatpush1.msra.mxu0 0.0
      %4952 = vmatprep.subr.mxu0 0.0
      %4953 = vmatpush1.msra.mxu0 0.0
      %4954 = vmatprep.subr.mxu0 0.0
      %4955 = vmatpush1.msra.mxu0 0.0
      %4956 = vmatprep.subr.mxu0 0.0
      %4957 = vmatpush1.msra.mxu0 0.0
      %4958 = vmatprep.subr.mxu0 0.0
      %4959 = vmatpush1.msra.mxu0 0.0
      %4960 = vmatprep.subr.mxu0 0.0
      %4961 = vmatpush1.msra.mxu0 0.0
      %4962 = vmatprep.subr.mxu0 0.0
      %4963 = vmatpush1.msra.mxu0 0.0
      %4964 = vmatprep.subr.mxu0 0.0
      %4965 = vmatpush1.msra.mxu0 0.0
      %4966 = vmatprep.subr.mxu0 0.0
      %4967 = vmatpush1.msra.mxu0 0.0
      %4968 = vmatprep.subr.mxu0 0.0
      %4969 = vmatpush1.msra.mxu0 0.0
      %4970 = vmatprep.mubr.f32.mxu0 0.0
      %4971 = vmatmul.mubr.f32.gmra.mrb[0].mxu0 %v4886
      %v4972 = vpop.f32.mrb[0].mxu0
      %v4973 = vadd.f32 %v4883, %v4972
      %v4974 = vpop.f32.mrb[0].mxu0
      %4975 = vmatprep.mubr.f32.mxu0 0.0
      %4976 = vmatmul.mubr.f32.gmra.mrb[0].mxu0 %v4889
      %v4977 = vpop.f32.mrb[0].mxu0
      %v4978 = vadd.f32 %v4883, %v4977
      %v4979 = vpop.f32.mrb[0].mxu0
      %4980 = vmatprep.mubr.f32.mxu0 0.0
      %4981 = vmatmul.mubr.f32.gmra.mrb[0].mxu0 %v4892
      %v4982 = vpop.f32.mrb[0].mxu0
      %v4983 = vadd.f32 %v4883, %v4982
      %v4984 = vpop.f32.mrb[0].mxu0
      %4985 = vmatprep.mubr.f32.mxu0 0.0
      %4986 = vmatmul.mubr.f32.gmra.mrb[0].mxu0 %v4895
      %v4987 = vpop.f32.mrb[0].mxu0
      %v4988 = vadd.f32 %v4883, %v4987
      %v4989 = vpop.f32.mrb[0].mxu0
      %4990 = vmatprep.mubr.f32.mxu0 0.0
      %4991 = vmatmul.mubr.f32.gmra.mrb[0].mxu0 %v4898
      %v4992 = vpop.f32.mrb[0].mxu0
      %v4993 = vadd.f32 %v4883, %v4992
      %v4994 = vpop.f32.mrb[0].mxu0
      %4995 = vmatprep.mubr.f32.mxu0 0.0
      %4996 = vmatmul.mubr.f32.gmra.mrb[0].mxu0 %v4901
      %v4997 = vpop.f32.mrb[0].mxu0
      %v4998 = vadd.f32 %v4883, %v4997
      %v4999 = vpop.f32.mrb[0].mxu0
      %5000 = vmatprep.mubr.f32.mxu0 0.0
      %5001 = vmatmul.mubr.f32.gmra.mrb[0].mxu0 %v4904
      %v5002 = vpop.f32.mrb[0].mxu0
      %v5003 = vadd.f32 %v4883, %v5002
      %v5004 = vpop.f32.mrb[0].mxu0
      %5005 = vdwg.mxu0
      %v5007 = vsel %vm891, %v4973, 0
      %v5010 = vsel %vm891, %v4978, 0
      %v5013 = vsel %vm891, %v4983, 0
      %v5016 = vsel %vm891, %v4988, 0
      %v5019 = vsel %vm891, %v4993, 0
      %v5022 = vsel %vm891, %v4998, 0
      %v5025 = vsel %vm891, %v5003, 0
      %5027 = vmatprep.subr.mxu0 0.0
      %5028 = vmatpush1.xpose.msra.mxu0 %v5007
      %5029 = vmatprep.subr.mxu0 0.0
      %5030 = vmatpush1.xpose.msra.mxu0 %v5010
      %5031 = vmatprep.subr.mxu0 0.0
      %5032 = vmatpush1.xpose.msra.mxu0 %v5013
      %5033 = vmatprep.subr.mxu0 0.0
      %5034 = vmatpush1.xpose.msra.mxu0 %v5016
      %5035 = vmatprep.subr.mxu0 0.0
      %5036 = vmatpush1.xpose.msra.mxu0 %v5019
      %5037 = vmatprep.subr.mxu0 0.0
      %5038 = vmatpush1.xpose.msra.mxu0 %v5022
      %5039 = vmatprep.subr.mxu0 0.0
      %5040 = vmatpush1.xpose.msra.mxu0 %v5025
      %5041 = vmatprep.subr.mxu0 0.0
      %5042 = vmatpush1.xpose.msra.mxu0 0.0
      %5043 = vmatprep.subr.mxu0 0.0
      %5044 = vmatpush1.xpose.msra.mxu0 0.0
      %5045 = vmatprep.subr.mxu0 0.0
      %5046 = vmatpush1.xpose.msra.mxu0 0.0
      %5047 = vmatprep.subr.mxu0 0.0
      %5048 = vmatpush1.xpose.msra.mxu0 0.0
      %5049 = vmatprep.subr.mxu0 0.0
      %5050 = vmatpush1.xpose.msra.mxu0 0.0
      %5051 = vmatprep.subr.mxu0 0.0
      %5052 = vmatpush1.xpose.msra.mxu0 0.0
      %5053 = vmatprep.subr.mxu0 0.0
      %5054 = vmatpush1.xpose.msra.mxu0 0.0
      %5055 = vmatprep.subr.mxu0 0.0
      %5056 = vmatpush1.xpose.msra.mxu0 0.0
      %5057 = vmatprep.subr.mxu0 0.0
      %5058 = vmatpush1.xpose.msra.mxu0 0.0
      %5059 = vmatprep.subr.mxu0 0.0
      %5060 = vmatpush1.xpose.msra.mxu0 0.0
      %5061 = vmatprep.subr.mxu0 0.0
      %5062 = vmatpush1.xpose.msra.mxu0 0.0
      %5063 = vmatprep.subr.mxu0 0.0
      %5064 = vmatpush1.xpose.msra.mxu0 0.0
      %5065 = vmatprep.subr.mxu0 0.0
      %5066 = vmatpush1.xpose.msra.mxu0 0.0
      %5067 = vmatprep.subr.mxu0 0.0
      %5068 = vmatpush1.xpose.msra.mxu0 0.0
      %5069 = vmatprep.subr.mxu0 0.0
      %5070 = vmatpush1.xpose.msra.mxu0 0.0
      %5071 = vmatprep.subr.mxu0 0.0
      %5072 = vmatpush1.xpose.msra.mxu0 0.0
      %5073 = vmatprep.subr.mxu0 0.0
      %5074 = vmatpush1.xpose.msra.mxu0 0.0
      %5075 = vmatprep.subr.mxu0 0.0
      %5076 = vmatpush1.xpose.msra.mxu0 0.0
      %5077 = vmatprep.subr.mxu0 0.0
      %5078 = vmatpush1.xpose.msra.mxu0 0.0
      %5079 = vmatprep.subr.mxu0 0.0
      %5080 = vmatpush1.xpose.msra.mxu0 0.0
      %5081 = vmatprep.subr.mxu0 0.0
      %5082 = vmatpush1.xpose.msra.mxu0 0.0
      %5083 = vmatprep.subr.mxu0 0.0
      %5084 = vmatpush1.xpose.msra.mxu0 0.0
      %5085 = vmatprep.subr.mxu0 0.0
      %5086 = vmatpush1.xpose.msra.mxu0 0.0
      %5087 = vmatprep.subr.mxu0 0.0
      %5088 = vmatpush1.xpose.msra.mxu0 0.0
      %5089 = vmatprep.subr.mxu0 0.0
      %5090 = vmatpush1.xpose.msra.mxu0 0.0
      %5091 = vmatprep.mubr.f32.mxu0 0.0
      %5092 = vmatmul.mubr.f32.gmra.mrb[0].mxu0 %v893
      %v5093 = vpop.f32.mrb[0].mxu0
      %v5094 = vadd.f32 0.0, %v5093
      %v5095 = vpop.f32.mrb[0].mxu0
      %5096 = vmatprep.mubr.f32.mxu0 0.0
      %5097 = vmatmul.mubr.f32.gmra.mrb[0].mxu0 %v896
      %v5098 = vpop.f32.mrb[0].mxu0
      %v5099 = vadd.f32 0.0, %v5098
      %v5100 = vpop.f32.mrb[0].mxu0
      %5101 = vmatprep.mubr.f32.mxu0 0.0
      %5102 = vmatmul.mubr.f32.gmra.mrb[0].mxu0 %v899
      %v5103 = vpop.f32.mrb[0].mxu0
      %v5104 = vadd.f32 0.0, %v5103
      %v5105 = vpop.f32.mrb[0].mxu0
      %5106 = vmatprep.mubr.f32.mxu0 0.0
      %5107 = vmatmul.mubr.f32.gmra.mrb[0].mxu0 %v902
      %v5108 = vpop.f32.mrb[0].mxu0
      %v5109 = vadd.f32 0.0, %v5108
      %v5110 = vpop.f32.mrb[0].mxu0
      %5111 = vmatprep.mubr.f32.mxu0 0.0
      %5112 = vmatmul.mubr.f32.gmra.mrb[0].mxu0 %v905
      %v5113 = vpop.f32.mrb[0].mxu0
      %v5114 = vadd.f32 0.0, %v5113
      %v5115 = vpop.f32.mrb[0].mxu0
      %5116 = vmatprep.mubr.f32.mxu0 0.0
      %5117 = vmatmul.mubr.f32.gmra.mrb[0].mxu0 %v908
      %v5118 = vpop.f32.mrb[0].mxu0
      %v5119 = vadd.f32 0.0, %v5118
      %v5120 = vpop.f32.mrb[0].mxu0
      %5121 = vmatprep.mubr.f32.mxu0 0.0
      %5122 = vmatmul.mubr.f32.gmra.mrb[0].mxu0 %v911
      %v5123 = vpop.f32.mrb[0].mxu0
      %v5124 = vadd.f32 0.0, %v5123
      %v5125 = vpop.f32.mrb[0].mxu0
      %5126 = vdwg.mxu0
      %v5127 = vmul.f32 %v5094, 0.25
      %v5128 = vmul.f32 %v5099, 0.25
      %v5129 = vmul.f32 %v5104, 0.25
      %v5130 = vmul.f32 %v5109, 0.25
      %v5131 = vmul.f32 %v5114, 0.25
      %v5132 = vmul.f32 %v5119, 0.25
      %v5133 = vmul.f32 %v5124, 0.25
      %v5134 = vadd.f32 %v5127, %v4872
      %v5135 = vadd.f32 %v5128, %v4873
      %v5136 = vadd.f32 %v5129, %v4874
      %v5137 = vadd.f32 %v5130, %v4875
      %v5138 = vadd.f32 %v5131, %v4876
      %v5139 = vadd.f32 %v5132, %v4877
      %v5140 = vadd.f32 %v5133, %v4878
      %v5141 = vsel %vm1048, %v5134, -inf
      %5142 = vmax.xlane.f32.xlu0 %v5141
      %v5143 = vpop.xlane.xlu0 %5142
      %v5144 = vsel %vm1048, %v5135, -inf
      %5145 = vmax.xlane.f32.xlu0 %v5144
      %v5146 = vpop.xlane.xlu0 %5145
      %v5147 = vsel %vm1048, %v5136, -inf
      %5148 = vmax.xlane.f32.xlu0 %v5147
      %v5149 = vpop.xlane.xlu0 %5148
      %v5150 = vsel %vm1048, %v5137, -inf
      %5151 = vmax.xlane.f32.xlu0 %v5150
      %v5152 = vpop.xlane.xlu0 %5151
      %v5153 = vsel %vm1048, %v5138, -inf
      %5154 = vmax.xlane.f32.xlu0 %v5153
      %v5155 = vpop.xlane.xlu0 %5154
      %v5156 = vsel %vm1048, %v5139, -inf
      %5157 = vmax.xlane.f32.xlu0 %v5156
      %v5158 = vpop.xlane.xlu0 %5157
      %v5159 = vsel %vm1067, %v5140, -inf
      %5160 = vmax.xlane.f32.xlu0 %v5159
      %v5161 = vpop.xlane.xlu0 %5160
      %v5162 = vsub.f32 %v5134, %v5143
      %v5163 = vsub.f32 %v5135, %v5146
      %v5164 = vsub.f32 %v5136, %v5149
      %v5165 = vsub.f32 %v5137, %v5152
      %v5166 = vsub.f32 %v5138, %v5155
      %v5167 = vsub.f32 %v5139, %v5158
      %v5168 = vsub.f32 %v5140, %v5161
      %v5169 = vmul.f32 %v5162, 1.442695
      %v5170 = vpow.pop %v5169
      %v5171 = vmul.f32 %v5163, 1.442695
      %v5172 = vpow.pop %v5171
      %v5173 = vmul.f32 %v5164, 1.442695
      %v5174 = vpow.pop %v5173
      %v5175 = vmul.f32 %v5165, 1.442695
      %v5176 = vpow.pop %v5175
      %v5177 = vmul.f32 %v5166, 1.442695
      %v5178 = vpow.pop %v5177
      %v5179 = vmul.f32 %v5167, 1.442695
      %v5180 = vpow.pop %v5179
      %v5181 = vmul.f32 %v5168, 1.442695
      %v5182 = vpow.pop %v5181
      %v5183 = vsel %vm1048, %v5170, 0.0
      %5184 = vadd.xlane.f32.xlu0 %v5183
      %v5185 = vpop.xlane.xlu0 %5184
      %v5186 = vsel %vm1048, %v5172, 0.0
      %5187 = vadd.xlane.f32.xlu0 %v5186
      %v5188 = vpop.xlane.xlu0 %5187
      %v5189 = vsel %vm1048, %v5174, 0.0
      %5190 = vadd.xlane.f32.xlu0 %v5189
      %v5191 = vpop.xlane.xlu0 %5190
      %v5192 = vsel %vm1048, %v5176, 0.0
      %5193 = vadd.xlane.f32.xlu0 %v5192
      %v5194 = vpop.xlane.xlu0 %5193
      %v5195 = vsel %vm1048, %v5178, 0.0
      %5196 = vadd.xlane.f32.xlu0 %v5195
      %v5197 = vpop.xlane.xlu0 %5196
      %v5198 = vsel %vm1048, %v5180, 0.0
      %5199 = vadd.xlane.f32.xlu0 %v5198
      %v5200 = vpop.xlane.xlu0 %5199
      %v5201 = vsel %vm1067, %v5182, 0.0
      %5202 = vadd.xlane.f32.xlu0 %v5201
      %v5203 = vpop.xlane.xlu0 %5202
      %v5204 = vrcp.pop %v5185
      %v5205 = vrcp.pop %v5188
      %v5206 = vrcp.pop %v5191
      %v5207 = vrcp.pop %v5194
      %v5208 = vrcp.pop %v5197
      %v5209 = vrcp.pop %v5200
      %v5210 = vrcp.pop %v5203
      %v5211 = vmul.f32 %v5170, %v5204
      %v5212 = vmul.f32 %v5172, %v5205
      %v5213 = vmul.f32 %v5174, %v5206
      %v5214 = vmul.f32 %v5176, %v5207
      %v5215 = vmul.f32 %v5178, %v5208
      %v5216 = vmul.f32 %v5180, %v5209
      %v5217 = vmul.f32 %v5182, %v5210
      %5218 = vrot.lane.b32.xlu0 %v4973, 112
      %v5219 = vpop.permute.xlu0 %5218
      %5220 = vrot.lane.b32.xlu0 %v4978, 112
      %v5221 = vpop.permute.xlu0 %5220
      %5222 = vrot.lane.b32.xlu0 %v4983, 112
      %v5223 = vpop.permute.xlu0 %5222
      %5224 = vrot.lane.b32.xlu0 %v4988, 112
      %v5225 = vpop.permute.xlu0 %5224
      %5226 = vrot.lane.b32.xlu0 %v4993, 112
      %v5227 = vpop.permute.xlu0 %5226
      %5228 = vrot.lane.b32.xlu0 %v4998, 112
      %v5229 = vpop.permute.xlu0 %5228
      %5230 = vrot.lane.b32.xlu0 %v5003, 112
      %v5231 = vpop.permute.xlu0 %5230
      %v5239 = vmul.f32 %v1130, %v5219
      %v5240 = vmul.f32 %v1130, %v5221
      %v5241 = vmul.f32 %v1130, %v5223
      %v5242 = vmul.f32 %v1130, %v5225
      %v5243 = vmul.f32 %v1130, %v5227
      %v5244 = vmul.f32 %v1130, %v5229
      %v5245 = vmul.f32 %v1130, %v5231
      %v5247 = vsel %vm1048, %v5211, 0
      %v5250 = vsel %vm1048, %v5212, 0
      %v5253 = vsel %vm1048, %v5213, 0
      %v5256 = vsel %vm1048, %v5214, 0
      %v5259 = vsel %vm1048, %v5215, 0
      %v5262 = vsel %vm1048, %v5216, 0
      %v5265 = vsel %vm1048, %v5217, 0
      %v5268 = vsel %vm1180, %v5245, 0
      %5270 = vmatprep.subr.mxu0 0.0
      %5271 = vmatpush1.msra.mxu0 %v5239
      %5272 = vmatprep.subr.mxu0 0.0
      %5273 = vmatpush1.msra.mxu0 %v5240
      %5274 = vmatprep.subr.mxu0 0.0
      %5275 = vmatpush1.msra.mxu0 %v5241
      %5276 = vmatprep.subr.mxu0 0.0
      %5277 = vmatpush1.msra.mxu0 %v5242
      %5278 = vmatprep.subr.mxu0 0.0
      %5279 = vmatpush1.msra.mxu0 %v5243
      %5280 = vmatprep.subr.mxu0 0.0
      %5281 = vmatpush1.msra.mxu0 %v5244
      %5282 = vmatprep.subr.mxu0 0.0
      %5283 = vmatpush1.msra.mxu0 %v5268
      %5284 = vmatprep.subr.mxu0 0.0
      %5285 = vmatpush1.msra.mxu0 0.0
      %5286 = vmatprep.subr.mxu0 0.0
      %5287 = vmatpush1.msra.mxu0 0.0
      %5288 = vmatprep.subr.mxu0 0.0
      %5289 = vmatpush1.msra.mxu0 0.0
      %5290 = vmatprep.subr.mxu0 0.0
      %5291 = vmatpush1.msra.mxu0 0.0
      %5292 = vmatprep.subr.mxu0 0.0
      %5293 = vmatpush1.msra.mxu0 0.0
      %5294 = vmatprep.subr.mxu0 0.0
      %5295 = vmatpush1.msra.mxu0 0.0
      %5296 = vmatprep.subr.mxu0 0.0
      %5297 = vmatpush1.msra.mxu0 0.0
      %5298 = vmatprep.subr.mxu0 0.0
      %5299 = vmatpush1.msra.mxu0 0.0
      %5300 = vmatprep.subr.mxu0 0.0
      %5301 = vmatpush1.msra.mxu0 0.0
      %5302 = vmatprep.subr.mxu0 0.0
      %5303 = vmatpush1.msra.mxu0 0.0
      %5304 = vmatprep.subr.mxu0 0.0
      %5305 = vmatpush1.msra.mxu0 0.0
      %5306 = vmatprep.subr.mxu0 0.0
      %5307 = vmatpush1.msra.mxu0 0.0
      %5308 = vmatprep.subr.mxu0 0.0
      %5309 = vmatpush1.msra.mxu0 0.0
      %5310 = vmatprep.subr.mxu0 0.0
      %5311 = vmatpush1.msra.mxu0 0.0
      %5312 = vmatprep.subr.mxu0 0.0
      %5313 = vmatpush1.msra.mxu0 0.0
      %5314 = vmatprep.subr.mxu0 0.0
      %5315 = vmatpush1.msra.mxu0 0.0
      %5316 = vmatprep.subr.mxu0 0.0
      %5317 = vmatpush1.msra.mxu0 0.0
      %5318 = vmatprep.subr.mxu0 0.0
      %5319 = vmatpush1.msra.mxu0 0.0
      %5320 = vmatprep.subr.mxu0 0.0
      %5321 = vmatpush1.msra.mxu0 0.0
      %5322 = vmatprep.subr.mxu0 0.0
      %5323 = vmatpush1.msra.mxu0 0.0
      %5324 = vmatprep.subr.mxu0 0.0
      %5325 = vmatpush1.msra.mxu0 0.0
      %5326 = vmatprep.subr.mxu0 0.0
      %5327 = vmatpush1.msra.mxu0 0.0
      %5328 = vmatprep.subr.mxu0 0.0
      %5329 = vmatpush1.msra.mxu0 0.0
      %5330 = vmatprep.subr.mxu0 0.0
      %5331 = vmatpush1.msra.mxu0 0.0
      %5332 = vmatprep.subr.mxu0 0.0
      %5333 = vmatpush1.msra.mxu0 0.0
      %5334 = vmatprep.mubr.f32.mxu0 0.0
      %5335 = vmatmul.mubr.f32.gmra.mrb[0].mxu0 %v5247
      %v5336 = vpop.f32.mrb[0].mxu0
      %v5337 = vadd.f32 0.0, %v5336
      %v5338 = vpop.f32.mrb[0].mxu0
      %5339 = vmatprep.mubr.f32.mxu0 0.0
      %5340 = vmatmul.mubr.f32.gmra.mrb[0].mxu0 %v5250
      %v5341 = vpop.f32.mrb[0].mxu0
      %v5342 = vadd.f32 0.0, %v5341
      %v5343 = vpop.f32.mrb[0].mxu0
      %5344 = vmatprep.mubr.f32.mxu0 0.0
      %5345 = vmatmul.mubr.f32.gmra.mrb[0].mxu0 %v5253
      %v5346 = vpop.f32.mrb[0].mxu0
      %v5347 = vadd.f32 0.0, %v5346
      %v5348 = vpop.f32.mrb[0].mxu0
      %5349 = vmatprep.mubr.f32.mxu0 0.0
      %5350 = vmatmul.mubr.f32.gmra.mrb[0].mxu0 %v5256
      %v5351 = vpop.f32.mrb[0].mxu0
      %v5352 = vadd.f32 0.0, %v5351
      %v5353 = vpop.f32.mrb[0].mxu0
      %5354 = vmatprep.mubr.f32.mxu0 0.0
      %5355 = vmatmul.mubr.f32.gmra.mrb[0].mxu0 %v5259
      %v5356 = vpop.f32.mrb[0].mxu0
      %v5357 = vadd.f32 0.0, %v5356
      %v5358 = vpop.f32.mrb[0].mxu0
      %5359 = vmatprep.mubr.f32.mxu0 0.0
      %5360 = vmatmul.mubr.f32.gmra.mrb[0].mxu0 %v5262
      %v5361 = vpop.f32.mrb[0].mxu0
      %v5362 = vadd.f32 0.0, %v5361
      %v5363 = vpop.f32.mrb[0].mxu0
      %5364 = vmatprep.mubr.f32.mxu0 0.0
      %5365 = vmatmul.mubr.f32.gmra.mrb[0].mxu0 %v5265
      %v5366 = vpop.f32.mrb[0].mxu0
      %v5367 = vadd.f32 0.0, %v5366
      %v5368 = vpop.f32.mrb[0].mxu0
      %5369 = vdwg.mxu0
      %5370 = vrot.lane.b32.xlu0 %v620, 32
      %v5371 = vpop.permute.xlu0 %5370
      %5372 = vrot.lane.b32.xlu0 %v621, 32
      %v5373 = vpop.permute.xlu0 %5372
      %5374 = vrot.lane.b32.xlu0 %v622, 32
      %v5375 = vpop.permute.xlu0 %5374
      %5376 = vrot.lane.b32.xlu0 %v623, 32
      %v5377 = vpop.permute.xlu0 %5376
      %5378 = vrot.lane.b32.xlu0 %v624, 32
      %v5379 = vpop.permute.xlu0 %5378
      %5380 = vrot.lane.b32.xlu0 %v625, 32
      %v5381 = vpop.permute.xlu0 %5380
      %5382 = vrot.lane.b32.xlu0 %v626, 32
      %v5383 = vpop.permute.xlu0 %5382
      %v5391 = vadd.f32 %v5337, %v5371
      %v5392 = vadd.f32 %v5342, %v5373
      %v5393 = vadd.f32 %v5347, %v5375
      %v5394 = vadd.f32 %v5352, %v5377
      %v5395 = vadd.f32 %v5357, %v5379
      %v5396 = vadd.f32 %v5362, %v5381
      %v5397 = vadd.f32 %v5367, %v5383
      %s5398 = scalar_lea.vmem %s7, 32
      %v5399 = vld [vmem:[%s5398] sm:$0xff]
      %v5400 = vld [vmem:[%s5398 + $0x8] sm:$0xff]
      %v5401 = vld [vmem:[%s5398 + $0x10] sm:$0xff]
      %v5402 = vld [vmem:[%s5398 + $0x18] sm:$0xff]
      %s5403 = scalar_lea.vmem %s8, 1
      %v5404 = vld [vmem:[%s5403] sm:$0x1]
      %v5406 = vlaneseq
      %v5407 = vshrl.u32 %v5406, 7
      %v5408 = vsub.s32 0, %v5407
      %v5409 = vrot.slane %v5404, %v5408
      %v5412 = vsel %vm769, %v5391, 0
      %v5415 = vsel %vm769, %v5392, 0
      %v5418 = vsel %vm769, %v5393, 0
      %v5421 = vsel %vm769, %v5394, 0
      %v5424 = vsel %vm769, %v5395, 0
      %v5427 = vsel %vm769, %v5396, 0
      %v5430 = vsel %vm769, %v5397, 0
      %5432 = vmatprep.subr.mxu0 0.0
      %5433 = vmatpush1.msra.mxu0 %v5399
      %5434 = vmatprep.subr.mxu0 0.0
      %5435 = vmatpush1.msra.mxu0 %v5400
      %5436 = vmatprep.subr.mxu0 0.0
      %5437 = vmatpush1.msra.mxu0 %v5401
      %5438 = vmatprep.subr.mxu0 0.0
      %5439 = vmatpush1.msra.mxu0 %v5402
      %5440 = vmatprep.subr.mxu0 0.0
      %5441 = vmatpush1.msra.mxu0 0.0
      %5442 = vmatprep.subr.mxu0 0.0
      %5443 = vmatpush1.msra.mxu0 0.0
      %5444 = vmatprep.subr.mxu0 0.0
      %5445 = vmatpush1.msra.mxu0 0.0
      %5446 = vmatprep.subr.mxu0 0.0
      %5447 = vmatpush1.msra.mxu0 0.0
      %5448 = vmatprep.subr.mxu0 0.0
      %5449 = vmatpush1.msra.mxu0 0.0
      %5450 = vmatprep.subr.mxu0 0.0
      %5451 = vmatpush1.msra.mxu0 0.0
      %5452 = vmatprep.subr.mxu0 0.0
      %5453 = vmatpush1.msra.mxu0 0.0
      %5454 = vmatprep.subr.mxu0 0.0
      %5455 = vmatpush1.msra.mxu0 0.0
      %5456 = vmatprep.subr.mxu0 0.0
      %5457 = vmatpush1.msra.mxu0 0.0
      %5458 = vmatprep.subr.mxu0 0.0
      %5459 = vmatpush1.msra.mxu0 0.0
      %5460 = vmatprep.subr.mxu0 0.0
      %5461 = vmatpush1.msra.mxu0 0.0
      %5462 = vmatprep.subr.mxu0 0.0
      %5463 = vmatpush1.msra.mxu0 0.0
      %5464 = vmatprep.subr.mxu0 0.0
      %5465 = vmatpush1.msra.mxu0 0.0
      %5466 = vmatprep.subr.mxu0 0.0
      %5467 = vmatpush1.msra.mxu0 0.0
      %5468 = vmatprep.subr.mxu0 0.0
      %5469 = vmatpush1.msra.mxu0 0.0
      %5470 = vmatprep.subr.mxu0 0.0
      %5471 = vmatpush1.msra.mxu0 0.0
      %5472 = vmatprep.subr.mxu0 0.0
      %5473 = vmatpush1.msra.mxu0 0.0
      %5474 = vmatprep.subr.mxu0 0.0
      %5475 = vmatpush1.msra.mxu0 0.0
      %5476 = vmatprep.subr.mxu0 0.0
      %5477 = vmatpush1.msra.mxu0 0.0
      %5478 = vmatprep.subr.mxu0 0.0
      %5479 = vmatpush1.msra.mxu0 0.0
      %5480 = vmatprep.subr.mxu0 0.0
      %5481 = vmatpush1.msra.mxu0 0.0
      %5482 = vmatprep.subr.mxu0 0.0
      %5483 = vmatpush1.msra.mxu0 0.0
      %5484 = vmatprep.subr.mxu0 0.0
      %5485 = vmatpush1.msra.mxu0 0.0
      %5486 = vmatprep.subr.mxu0 0.0
      %5487 = vmatpush1.msra.mxu0 0.0
      %5488 = vmatprep.subr.mxu0 0.0
      %5489 = vmatpush1.msra.mxu0 0.0
      %5490 = vmatprep.subr.mxu0 0.0
      %5491 = vmatpush1.msra.mxu0 0.0
      %5492 = vmatprep.subr.mxu0 0.0
      %5493 = vmatpush1.msra.mxu0 0.0
      %5494 = vmatprep.subr.mxu0 0.0
      %5495 = vmatpush1.msra.mxu0 0.0
      %5496 = vmatprep.mubr.f32.mxu0 0.0
      %5497 = vmatmul.mubr.f32.gmra.mrb[0].mxu0 %v5412
      %v5498 = vpop.f32.mrb[0].mxu0
      %v5499 = vadd.f32 %v5409, %v5498
      %v5500 = vpop.f32.mrb[0].mxu0
      %5501 = vmatprep.mubr.f32.mxu0 0.0
      %5502 = vmatmul.mubr.f32.gmra.mrb[0].mxu0 %v5415
      %v5503 = vpop.f32.mrb[0].mxu0
      %v5504 = vadd.f32 %v5409, %v5503
      %v5505 = vpop.f32.mrb[0].mxu0
      %5506 = vmatprep.mubr.f32.mxu0 0.0
      %5507 = vmatmul.mubr.f32.gmra.mrb[0].mxu0 %v5418
      %v5508 = vpop.f32.mrb[0].mxu0
      %v5509 = vadd.f32 %v5409, %v5508
      %v5510 = vpop.f32.mrb[0].mxu0
      %5511 = vmatprep.mubr.f32.mxu0 0.0
      %5512 = vmatmul.mubr.f32.gmra.mrb[0].mxu0 %v5421
      %v5513 = vpop.f32.mrb[0].mxu0
      %v5514 = vadd.f32 %v5409, %v5513
      %v5515 = vpop.f32.mrb[0].mxu0
      %5516 = vmatprep.mubr.f32.mxu0 0.0
      %5517 = vmatmul.mubr.f32.gmra.mrb[0].mxu0 %v5424
      %v5518 = vpop.f32.mrb[0].mxu0
      %v5519 = vadd.f32 %v5409, %v5518
      %v5520 = vpop.f32.mrb[0].mxu0
      %5521 = vmatprep.mubr.f32.mxu0 0.0
      %5522 = vmatmul.mubr.f32.gmra.mrb[0].mxu0 %v5427
      %v5523 = vpop.f32.mrb[0].mxu0
      %v5524 = vadd.f32 %v5409, %v5523
      %v5525 = vpop.f32.mrb[0].mxu0
      %5526 = vmatprep.mubr.f32.mxu0 0.0
      %5527 = vmatmul.mubr.f32.gmra.mrb[0].mxu0 %v5430
      %v5528 = vpop.f32.mrb[0].mxu0
      %v5529 = vadd.f32 %v5409, %v5528
      %v5530 = vpop.f32.mrb[0].mxu0
      %5531 = vdwg.mxu0
      %v5532 = vmax.f32 %v5499, 0.0
      %v5533 = vmax.f32 %v5504, 0.0
      %v5534 = vmax.f32 %v5509, 0.0
      %v5535 = vmax.f32 %v5514, 0.0
      %v5536 = vmax.f32 %v5519, 0.0
      %v5537 = vmax.f32 %v5524, 0.0
      %v5538 = vmax.f32 %v5529, 0.0
      %v5539 = vld [vmem:[%s9] sm:$0xff]
      %v5540 = vld [vmem:[%s9 + $0x8] sm:$0xff]
      %v5542 = vsel %vm1048, %v5539, 0
      %v5545 = vsel %vm1048, %v5540, 0
      %v5548 = vsel %vm1180, %v5538, 0
      %5550 = vmatprep.subr.mxu0 0.0
      %5551 = vmatpush1.msra.mxu0 %v5532
      %5552 = vmatprep.subr.mxu0 0.0
      %5553 = vmatpush1.msra.mxu0 %v5533
      %5554 = vmatprep.subr.mxu0 0.0
      %5555 = vmatpush1.msra.mxu0 %v5534
      %5556 = vmatprep.subr.mxu0 0.0
      %5557 = vmatpush1.msra.mxu0 %v5535
      %5558 = vmatprep.subr.mxu0 0.0
      %5559 = vmatpush1.msra.mxu0 %v5536
      %5560 = vmatprep.subr.mxu0 0.0
      %5561 = vmatpush1.msra.mxu0 %v5537
      %5562 = vmatprep.subr.mxu0 0.0
      %5563 = vmatpush1.msra.mxu0 %v5548
      %5564 = vmatprep.subr.mxu0 0.0
      %5565 = vmatpush1.msra.mxu0 0.0
      %5566 = vmatprep.subr.mxu0 0.0
      %5567 = vmatpush1.msra.mxu0 0.0
      %5568 = vmatprep.subr.mxu0 0.0
      %5569 = vmatpush1.msra.mxu0 0.0
      %5570 = vmatprep.subr.mxu0 0.0
      %5571 = vmatpush1.msra.mxu0 0.0
      %5572 = vmatprep.subr.mxu0 0.0
      %5573 = vmatpush1.msra.mxu0 0.0
      %5574 = vmatprep.subr.mxu0 0.0
      %5575 = vmatpush1.msra.mxu0 0.0
      %5576 = vmatprep.subr.mxu0 0.0
      %5577 = vmatpush1.msra.mxu0 0.0
      %5578 = vmatprep.subr.mxu0 0.0
      %5579 = vmatpush1.msra.mxu0 0.0
      %5580 = vmatprep.subr.mxu0 0.0
      %5581 = vmatpush1.msra.mxu0 0.0
      %5582 = vmatprep.subr.mxu0 0.0
      %5583 = vmatpush1.msra.mxu0 0.0
      %5584 = vmatprep.subr.mxu0 0.0
      %5585 = vmatpush1.msra.mxu0 0.0
      %5586 = vmatprep.subr.mxu0 0.0
      %5587 = vmatpush1.msra.mxu0 0.0
      %5588 = vmatprep.subr.mxu0 0.0
      %5589 = vmatpush1.msra.mxu0 0.0
      %5590 = vmatprep.subr.mxu0 0.0
      %5591 = vmatpush1.msra.mxu0 0.0
      %5592 = vmatprep.subr.mxu0 0.0
      %5593 = vmatpush1.msra.mxu0 0.0
      %5594 = vmatprep.subr.mxu0 0.0
      %5595 = vmatpush1.msra.mxu0 0.0
      %5596 = vmatprep.subr.mxu0 0.0
      %5597 = vmatpush1.msra.mxu0 0.0
      %5598 = vmatprep.subr.mxu0 0.0
      %5599 = vmatpush1.msra.mxu0 0.0
      %5600 = vmatprep.subr.mxu0 0.0
      %5601 = vmatpush1.msra.mxu0 0.0
      %5602 = vmatprep.subr.mxu0 0.0
      %5603 = vmatpush1.msra.mxu0 0.0
      %5604 = vmatprep.subr.mxu0 0.0
      %5605 = vmatpush1.msra.mxu0 0.0
      %5606 = vmatprep.subr.mxu0 0.0
      %5607 = vmatpush1.msra.mxu0 0.0
      %5608 = vmatprep.subr.mxu0 0.0
      %5609 = vmatpush1.msra.mxu0 0.0
      %5610 = vmatprep.subr.mxu0 0.0
      %5611 = vmatpush1.msra.mxu0 0.0
      %5612 = vmatprep.subr.mxu0 0.0
      %5613 = vmatpush1.msra.mxu0 0.0
      %5614 = vmatprep.mubr.f32.mxu0 0.0
      %5615 = vmatmul.mubr.f32.gmra.mrb[0].mxu0 %v5542
      %v5616 = vpop.f32.mrb[0].mxu0
      %v5617 = vadd.f32 0.0, %v5616
      %v5618 = vpop.f32.mrb[0].mxu0
      %5619 = vmatprep.mubr.f32.mxu0 0.0
      %5620 = vmatmul.mubr.f32.gmra.mrb[0].mxu0 %v5545
      %v5621 = vpop.f32.mrb[0].mxu0
      %v5622 = vadd.f32 0.0, %v5621
      %v5623 = vpop.f32.mrb[0].mxu0
      %5624 = vdwg.mxu0
      %v5625 = vld [vmem:[%s1537] sm:$0xff]
      %v5626 = vld [vmem:[%s1537 + $0x8] sm:$0xff]
      %v5628 = vsel %vm1048, %v5625, 0
      %v5631 = vsel %vm1048, %v5626, 0
      %5633 = vmatprep.subr.mxu0 0.0
      %5634 = vmatpush1.msra.mxu0 %v5532
      %5635 = vmatprep.subr.mxu0 0.0
      %5636 = vmatpush1.msra.mxu0 %v5533
      %5637 = vmatprep.subr.mxu0 0.0
      %5638 = vmatpush1.msra.mxu0 %v5534
      %5639 = vmatprep.subr.mxu0 0.0
      %5640 = vmatpush1.msra.mxu0 %v5535
      %5641 = vmatprep.subr.mxu0 0.0
      %5642 = vmatpush1.msra.mxu0 %v5536
      %5643 = vmatprep.subr.mxu0 0.0
      %5644 = vmatpush1.msra.mxu0 %v5537
      %5645 = vmatprep.subr.mxu0 0.0
      %5646 = vmatpush1.msra.mxu0 %v5548
      %5647 = vmatprep.subr.mxu0 0.0
      %5648 = vmatpush1.msra.mxu0 0.0
      %5649 = vmatprep.subr.mxu0 0.0
      %5650 = vmatpush1.msra.mxu0 0.0
      %5651 = vmatprep.subr.mxu0 0.0
      %5652 = vmatpush1.msra.mxu0 0.0
      %5653 = vmatprep.subr.mxu0 0.0
      %5654 = vmatpush1.msra.mxu0 0.0
      %5655 = vmatprep.subr.mxu0 0.0
      %5656 = vmatpush1.msra.mxu0 0.0
      %5657 = vmatprep.subr.mxu0 0.0
      %5658 = vmatpush1.msra.mxu0 0.0
      %5659 = vmatprep.subr.mxu0 0.0
      %5660 = vmatpush1.msra.mxu0 0.0
      %5661 = vmatprep.subr.mxu0 0.0
      %5662 = vmatpush1.msra.mxu0 0.0
      %5663 = vmatprep.subr.mxu0 0.0
      %5664 = vmatpush1.msra.mxu0 0.0
      %5665 = vmatprep.subr.mxu0 0.0
      %5666 = vmatpush1.msra.mxu0 0.0
      %5667 = vmatprep.subr.mxu0 0.0
      %5668 = vmatpush1.msra.mxu0 0.0
      %5669 = vmatprep.subr.mxu0 0.0
      %5670 = vmatpush1.msra.mxu0 0.0
      %5671 = vmatprep.subr.mxu0 0.0
      %5672 = vmatpush1.msra.mxu0 0.0
      %5673 = vmatprep.subr.mxu0 0.0
      %5674 = vmatpush1.msra.mxu0 0.0
      %5675 = vmatprep.subr.mxu0 0.0
      %5676 = vmatpush1.msra.mxu0 0.0
      %5677 = vmatprep.subr.mxu0 0.0
      %5678 = vmatpush1.msra.mxu0 0.0
      %5679 = vmatprep.subr.mxu0 0.0
      %5680 = vmatpush1.msra.mxu0 0.0
      %5681 = vmatprep.subr.mxu0 0.0
      %5682 = vmatpush1.msra.mxu0 0.0
      %5683 = vmatprep.subr.mxu0 0.0
      %5684 = vmatpush1.msra.mxu0 0.0
      %5685 = vmatprep.subr.mxu0 0.0
      %5686 = vmatpush1.msra.mxu0 0.0
      %5687 = vmatprep.subr.mxu0 0.0
      %5688 = vmatpush1.msra.mxu0 0.0
      %5689 = vmatprep.subr.mxu0 0.0
      %5690 = vmatpush1.msra.mxu0 0.0
      %5691 = vmatprep.subr.mxu0 0.0
      %5692 = vmatpush1.msra.mxu0 0.0
      %5693 = vmatprep.subr.mxu0 0.0
      %5694 = vmatpush1.msra.mxu0 0.0
      %5695 = vmatprep.subr.mxu0 0.0
      %5696 = vmatpush1.msra.mxu0 0.0
      %5697 = vmatprep.mubr.f32.mxu0 0.0
      %5698 = vmatmul.mubr.f32.gmra.mrb[0].mxu0 %v5628
      %v5699 = vpop.f32.mrb[0].mxu0
      %v5700 = vadd.f32 0.0, %v5699
      %v5701 = vpop.f32.mrb[0].mxu0
      %5702 = vmatprep.mubr.f32.mxu0 0.0
      %5703 = vmatmul.mubr.f32.gmra.mrb[0].mxu0 %v5631
      %v5704 = vpop.f32.mrb[0].mxu0
      %v5705 = vadd.f32 0.0, %v5704
      %v5706 = vpop.f32.mrb[0].mxu0
      %5707 = vdwg.mxu0
      %v5708 = vld [vmem:[%s1621] sm:$0xff]
      %v5709 = vld [vmem:[%s1621 + $0x8] sm:$0xff]
      %v5711 = vsel %vm1048, %v5708, 0
      %v5714 = vsel %vm1048, %v5709, 0
      %5716 = vmatprep.subr.mxu0 0.0
      %5717 = vmatpush1.msra.mxu0 %v5532
      %5718 = vmatprep.subr.mxu0 0.0
      %5719 = vmatpush1.msra.mxu0 %v5533
      %5720 = vmatprep.subr.mxu0 0.0
      %5721 = vmatpush1.msra.mxu0 %v5534
      %5722 = vmatprep.subr.mxu0 0.0
      %5723 = vmatpush1.msra.mxu0 %v5535
      %5724 = vmatprep.subr.mxu0 0.0
      %5725 = vmatpush1.msra.mxu0 %v5536
      %5726 = vmatprep.subr.mxu0 0.0
      %5727 = vmatpush1.msra.mxu0 %v5537
      %5728 = vmatprep.subr.mxu0 0.0
      %5729 = vmatpush1.msra.mxu0 %v5548
      %5730 = vmatprep.subr.mxu0 0.0
      %5731 = vmatpush1.msra.mxu0 0.0
      %5732 = vmatprep.subr.mxu0 0.0
      %5733 = vmatpush1.msra.mxu0 0.0
      %5734 = vmatprep.subr.mxu0 0.0
      %5735 = vmatpush1.msra.mxu0 0.0
      %5736 = vmatprep.subr.mxu0 0.0
      %5737 = vmatpush1.msra.mxu0 0.0
      %5738 = vmatprep.subr.mxu0 0.0
      %5739 = vmatpush1.msra.mxu0 0.0
      %5740 = vmatprep.subr.mxu0 0.0
      %5741 = vmatpush1.msra.mxu0 0.0
      %5742 = vmatprep.subr.mxu0 0.0
      %5743 = vmatpush1.msra.mxu0 0.0
      %5744 = vmatprep.subr.mxu0 0.0
      %5745 = vmatpush1.msra.mxu0 0.0
      %5746 = vmatprep.subr.mxu0 0.0
      %5747 = vmatpush1.msra.mxu0 0.0
      %5748 = vmatprep.subr.mxu0 0.0
      %5749 = vmatpush1.msra.mxu0 0.0
      %5750 = vmatprep.subr.mxu0 0.0
      %5751 = vmatpush1.msra.mxu0 0.0
      %5752 = vmatprep.subr.mxu0 0.0
      %5753 = vmatpush1.msra.mxu0 0.0
      %5754 = vmatprep.subr.mxu0 0.0
      %5755 = vmatpush1.msra.mxu0 0.0
      %5756 = vmatprep.subr.mxu0 0.0
      %5757 = vmatpush1.msra.mxu0 0.0
      %5758 = vmatprep.subr.mxu0 0.0
      %5759 = vmatpush1.msra.mxu0 0.0
      %5760 = vmatprep.subr.mxu0 0.0
      %5761 = vmatpush1.msra.mxu0 0.0
      %5762 = vmatprep.subr.mxu0 0.0
      %5763 = vmatpush1.msra.mxu0 0.0
      %5764 = vmatprep.subr.mxu0 0.0
      %5765 = vmatpush1.msra.mxu0 0.0
      %5766 = vmatprep.subr.mxu0 0.0
      %5767 = vmatpush1.msra.mxu0 0.0
      %5768 = vmatprep.subr.mxu0 0.0
      %5769 = vmatpush1.msra.mxu0 0.0
      %5770 = vmatprep.subr.mxu0 0.0
      %5771 = vmatpush1.msra.mxu0 0.0
      %5772 = vmatprep.subr.mxu0 0.0
      %5773 = vmatpush1.msra.mxu0 0.0
      %5774 = vmatprep.subr.mxu0 0.0
      %5775 = vmatpush1.msra.mxu0 0.0
      %5776 = vmatprep.subr.mxu0 0.0
      %5777 = vmatpush1.msra.mxu0 0.0
      %5778 = vmatprep.subr.mxu0 0.0
      %5779 = vmatpush1.msra.mxu0 0.0
      %5780 = vmatprep.mubr.f32.mxu0 0.0
      %5781 = vmatmul.mubr.f32.gmra.mrb[0].mxu0 %v5711
      %v5782 = vpop.f32.mrb[0].mxu0
      %v5783 = vadd.f32 0.0, %v5782
      %v5784 = vpop.f32.mrb[0].mxu0
      %5785 = vmatprep.mubr.f32.mxu0 0.0
      %5786 = vmatmul.mubr.f32.gmra.mrb[0].mxu0 %v5714
      %v5787 = vpop.f32.mrb[0].mxu0
      %v5788 = vadd.f32 0.0, %v5787
      %v5789 = vpop.f32.mrb[0].mxu0
      %5790 = vdwg.mxu0
      %v5791 = vld [vmem:[%s1705] sm:$0xff]
      %v5792 = vld [vmem:[%s1705 + $0x8] sm:$0xff]
      %v5794 = vsel %vm1048, %v5791, 0
      %v5797 = vsel %vm1048, %v5792, 0
      %5799 = vmatprep.subr.mxu0 0.0
      %5800 = vmatpush1.msra.mxu0 %v5532
      %5801 = vmatprep.subr.mxu0 0.0
      %5802 = vmatpush1.msra.mxu0 %v5533
      %5803 = vmatprep.subr.mxu0 0.0
      %5804 = vmatpush1.msra.mxu0 %v5534
      %5805 = vmatprep.subr.mxu0 0.0
      %5806 = vmatpush1.msra.mxu0 %v5535
      %5807 = vmatprep.subr.mxu0 0.0
      %5808 = vmatpush1.msra.mxu0 %v5536
      %5809 = vmatprep.subr.mxu0 0.0
      %5810 = vmatpush1.msra.mxu0 %v5537
      %5811 = vmatprep.subr.mxu0 0.0
      %5812 = vmatpush1.msra.mxu0 %v5548
      %5813 = vmatprep.subr.mxu0 0.0
      %5814 = vmatpush1.msra.mxu0 0.0
      %5815 = vmatprep.subr.mxu0 0.0
      %5816 = vmatpush1.msra.mxu0 0.0
      %5817 = vmatprep.subr.mxu0 0.0
      %5818 = vmatpush1.msra.mxu0 0.0
      %5819 = vmatprep.subr.mxu0 0.0
      %5820 = vmatpush1.msra.mxu0 0.0
      %5821 = vmatprep.subr.mxu0 0.0
      %5822 = vmatpush1.msra.mxu0 0.0
      %5823 = vmatprep.subr.mxu0 0.0
      %5824 = vmatpush1.msra.mxu0 0.0
      %5825 = vmatprep.subr.mxu0 0.0
      %5826 = vmatpush1.msra.mxu0 0.0
      %5827 = vmatprep.subr.mxu0 0.0
      %5828 = vmatpush1.msra.mxu0 0.0
      %5829 = vmatprep.subr.mxu0 0.0
      %5830 = vmatpush1.msra.mxu0 0.0
      %5831 = vmatprep.subr.mxu0 0.0
      %5832 = vmatpush1.msra.mxu0 0.0
      %5833 = vmatprep.subr.mxu0 0.0
      %5834 = vmatpush1.msra.mxu0 0.0
      %5835 = vmatprep.subr.mxu0 0.0
      %5836 = vmatpush1.msra.mxu0 0.0
      %5837 = vmatprep.subr.mxu0 0.0
      %5838 = vmatpush1.msra.mxu0 0.0
      %5839 = vmatprep.subr.mxu0 0.0
      %5840 = vmatpush1.msra.mxu0 0.0
      %5841 = vmatprep.subr.mxu0 0.0
      %5842 = vmatpush1.msra.mxu0 0.0
      %5843 = vmatprep.subr.mxu0 0.0
      %5844 = vmatpush1.msra.mxu0 0.0
      %5845 = vmatprep.subr.mxu0 0.0
      %5846 = vmatpush1.msra.mxu0 0.0
      %5847 = vmatprep.subr.mxu0 0.0
      %5848 = vmatpush1.msra.mxu0 0.0
      %5849 = vmatprep.subr.mxu0 0.0
      %5850 = vmatpush1.msra.mxu0 0.0
      %5851 = vmatprep.subr.mxu0 0.0
      %5852 = vmatpush1.msra.mxu0 0.0
      %5853 = vmatprep.subr.mxu0 0.0
      %5854 = vmatpush1.msra.mxu0 0.0
      %5855 = vmatprep.subr.mxu0 0.0
      %5856 = vmatpush1.msra.mxu0 0.0
      %5857 = vmatprep.subr.mxu0 0.0
      %5858 = vmatpush1.msra.mxu0 0.0
      %5859 = vmatprep.subr.mxu0 0.0
      %5860 = vmatpush1.msra.mxu0 0.0
      %5861 = vmatprep.subr.mxu0 0.0
      %5862 = vmatpush1.msra.mxu0 0.0
      %5863 = vmatprep.mubr.f32.mxu0 0.0
      %5864 = vmatmul.mubr.f32.gmra.mrb[0].mxu0 %v5794
      %v5865 = vpop.f32.mrb[0].mxu0
      %v5866 = vadd.f32 0.0, %v5865
      %v5867 = vpop.f32.mrb[0].mxu0
      %5868 = vmatprep.mubr.f32.mxu0 0.0
      %5869 = vmatmul.mubr.f32.gmra.mrb[0].mxu0 %v5797
      %v5870 = vpop.f32.mrb[0].mxu0
      %v5871 = vadd.f32 0.0, %v5870
      %v5872 = vpop.f32.mrb[0].mxu0
      %5873 = vdwg.mxu0
      %5876 = vrot.lane.b32.xlu0 %v5700, 8
      %v5877 = vpop.permute.xlu0 %5876
      %5878 = vrot.lane.b32.xlu0 %v5705, 8
      %v5879 = vpop.permute.xlu0 %5878
      %5884 = vrot.lane.b32.xlu0 %v5783, 16
      %v5885 = vpop.permute.xlu0 %5884
      %5886 = vrot.lane.b32.xlu0 %v5788, 16
      %v5887 = vpop.permute.xlu0 %5886
      %5892 = vrot.lane.b32.xlu0 %v5866, 24
      %v5893 = vpop.permute.xlu0 %5892
      %5894 = vrot.lane.b32.xlu0 %v5871, 24
      %v5895 = vpop.permute.xlu0 %5894
      %v5898 = vsel %vm1813, %v5617, %v5877
      %v5899 = vsel %vm1813, %v5622, %v5879
      %v5900 = vsel %vm891, %v5898, %v5885
      %v5901 = vsel %vm891, %v5899, %v5887
      %v5902 = vsel %vm1818, %v5900, %v5893
      %v5903 = vsel %vm1818, %v5901, %v5895
      %v5904 = vld [vmem:[%s11] sm:$0xff]
      %v5905 = vld [vmem:[%s11 + $0x8] sm:$0xff]
      %v5907 = vsel %vm891, %v5904, 0
      %v5910 = vsel %vm891, %v5905, 0
      %5912 = vmatprep.subr.mxu0 0.0
      %5913 = vmatpush1.msra.mxu0 %v5902
      %5914 = vmatprep.subr.mxu0 0.0
      %5915 = vmatpush1.msra.mxu0 %v5903
      %5916 = vmatprep.subr.mxu0 0.0
      %5917 = vmatpush1.msra.mxu0 0.0
      %5918 = vmatprep.subr.mxu0 0.0
      %5919 = vmatpush1.msra.mxu0 0.0
      %5920 = vmatprep.subr.mxu0 0.0
      %5921 = vmatpush1.msra.mxu0 0.0
      %5922 = vmatprep.subr.mxu0 0.0
      %5923 = vmatpush1.msra.mxu0 0.0
      %5924 = vmatprep.subr.mxu0 0.0
      %5925 = vmatpush1.msra.mxu0 0.0
      %5926 = vmatprep.subr.mxu0 0.0
      %5927 = vmatpush1.msra.mxu0 0.0
      %5928 = vmatprep.subr.mxu0 0.0
      %5929 = vmatpush1.msra.mxu0 0.0
      %5930 = vmatprep.subr.mxu0 0.0
      %5931 = vmatpush1.msra.mxu0 0.0
      %5932 = vmatprep.subr.mxu0 0.0
      %5933 = vmatpush1.msra.mxu0 0.0
      %5934 = vmatprep.subr.mxu0 0.0
      %5935 = vmatpush1.msra.mxu0 0.0
      %5936 = vmatprep.subr.mxu0 0.0
      %5937 = vmatpush1.msra.mxu0 0.0
      %5938 = vmatprep.subr.mxu0 0.0
      %5939 = vmatpush1.msra.mxu0 0.0
      %5940 = vmatprep.subr.mxu0 0.0
      %5941 = vmatpush1.msra.mxu0 0.0
      %5942 = vmatprep.subr.mxu0 0.0
      %5943 = vmatpush1.msra.mxu0 0.0
      %5944 = vmatprep.subr.mxu0 0.0
      %5945 = vmatpush1.msra.mxu0 0.0
      %5946 = vmatprep.subr.mxu0 0.0
      %5947 = vmatpush1.msra.mxu0 0.0
      %5948 = vmatprep.subr.mxu0 0.0
      %5949 = vmatpush1.msra.mxu0 0.0
      %5950 = vmatprep.subr.mxu0 0.0
      %5951 = vmatpush1.msra.mxu0 0.0
      %5952 = vmatprep.subr.mxu0 0.0
      %5953 = vmatpush1.msra.mxu0 0.0
      %5954 = vmatprep.subr.mxu0 0.0
      %5955 = vmatpush1.msra.mxu0 0.0
      %5956 = vmatprep.subr.mxu0 0.0
      %5957 = vmatpush1.msra.mxu0 0.0
      %5958 = vmatprep.subr.mxu0 0.0
      %5959 = vmatpush1.msra.mxu0 0.0
      %5960 = vmatprep.subr.mxu0 0.0
      %5961 = vmatpush1.msra.mxu0 0.0
      %5962 = vmatprep.subr.mxu0 0.0
      %5963 = vmatpush1.msra.mxu0 0.0
      %5964 = vmatprep.subr.mxu0 0.0
      %5965 = vmatpush1.msra.mxu0 0.0
      %5966 = vmatprep.subr.mxu0 0.0
      %5967 = vmatpush1.msra.mxu0 0.0
      %5968 = vmatprep.subr.mxu0 0.0
      %5969 = vmatpush1.msra.mxu0 0.0
      %5970 = vmatprep.subr.mxu0 0.0
      %5971 = vmatpush1.msra.mxu0 0.0
      %5972 = vmatprep.subr.mxu0 0.0
      %5973 = vmatpush1.msra.mxu0 0.0
      %5974 = vmatprep.subr.mxu0 0.0
      %5975 = vmatpush1.msra.mxu0 0.0
      %5976 = vmatprep.mubr.f32.mxu0 0.0
      %5977 = vmatmul.mubr.f32.gmra.mrb[0].mxu0 %v5907
      %v5978 = vpop.f32.mrb[0].mxu0
      %v5979 = vadd.f32 0.0, %v5978
      %v5980 = vpop.f32.mrb[0].mxu0
      %5981 = vmatprep.mubr.f32.mxu0 0.0
      %5982 = vmatmul.mubr.f32.gmra.mrb[0].mxu0 %v5910
      %v5983 = vpop.f32.mrb[0].mxu0
      %v5984 = vadd.f32 0.0, %v5983
      %v5985 = vpop.f32.mrb[0].mxu0
      %5986 = vdwg.mxu0
      %s5987 = scalar_lea.vmem %s12, 288
      %v5988 = vld [vmem:[%s5987] sm:$0xff]
      %v5989 = vld [vmem:[%s5987 + $0x8] sm:$0xff]
      %v5990 = vld [vmem:[%s5987 + $0x10] sm:$0xff]
      %v5991 = vld [vmem:[%s5987 + $0x18] sm:$0xff]
      %v5992 = vld [vmem:[%s1908] sm:$0xff]
      %v5993 = vld [vmem:[%s1908 + $0x8] sm:$0xff]
      %v5995 = vsel %vm891, %v5992, 0
      %v5998 = vsel %vm891, %v5993, 0
      %6000 = vmatprep.subr.mxu0 0.0
      %6001 = vmatpush1.msra.mxu0 %v5902
      %6002 = vmatprep.subr.mxu0 0.0
      %6003 = vmatpush1.msra.mxu0 %v5903
      %6004 = vmatprep.subr.mxu0 0.0
      %6005 = vmatpush1.msra.mxu0 0.0
      %6006 = vmatprep.subr.mxu0 0.0
      %6007 = vmatpush1.msra.mxu0 0.0
      %6008 = vmatprep.subr.mxu0 0.0
      %6009 = vmatpush1.msra.mxu0 0.0
      %6010 = vmatprep.subr.mxu0 0.0
      %6011 = vmatpush1.msra.mxu0 0.0
      %6012 = vmatprep.subr.mxu0 0.0
      %6013 = vmatpush1.msra.mxu0 0.0
      %6014 = vmatprep.subr.mxu0 0.0
      %6015 = vmatpush1.msra.mxu0 0.0
      %6016 = vmatprep.subr.mxu0 0.0
      %6017 = vmatpush1.msra.mxu0 0.0
      %6018 = vmatprep.subr.mxu0 0.0
      %6019 = vmatpush1.msra.mxu0 0.0
      %6020 = vmatprep.subr.mxu0 0.0
      %6021 = vmatpush1.msra.mxu0 0.0
      %6022 = vmatprep.subr.mxu0 0.0
      %6023 = vmatpush1.msra.mxu0 0.0
      %6024 = vmatprep.subr.mxu0 0.0
      %6025 = vmatpush1.msra.mxu0 0.0
      %6026 = vmatprep.subr.mxu0 0.0
      %6027 = vmatpush1.msra.mxu0 0.0
      %6028 = vmatprep.subr.mxu0 0.0
      %6029 = vmatpush1.msra.mxu0 0.0
      %6030 = vmatprep.subr.mxu0 0.0
      %6031 = vmatpush1.msra.mxu0 0.0
      %6032 = vmatprep.subr.mxu0 0.0
      %6033 = vmatpush1.msra.mxu0 0.0
      %6034 = vmatprep.subr.mxu0 0.0
      %6035 = vmatpush1.msra.mxu0 0.0
      %6036 = vmatprep.subr.mxu0 0.0
      %6037 = vmatpush1.msra.mxu0 0.0
      %6038 = vmatprep.subr.mxu0 0.0
      %6039 = vmatpush1.msra.mxu0 0.0
      %6040 = vmatprep.subr.mxu0 0.0
      %6041 = vmatpush1.msra.mxu0 0.0
      %6042 = vmatprep.subr.mxu0 0.0
      %6043 = vmatpush1.msra.mxu0 0.0
      %6044 = vmatprep.subr.mxu0 0.0
      %6045 = vmatpush1.msra.mxu0 0.0
      %6046 = vmatprep.subr.mxu0 0.0
      %6047 = vmatpush1.msra.mxu0 0.0
      %6048 = vmatprep.subr.mxu0 0.0
      %6049 = vmatpush1.msra.mxu0 0.0
      %6050 = vmatprep.subr.mxu0 0.0
      %6051 = vmatpush1.msra.mxu0 0.0
      %6052 = vmatprep.subr.mxu0 0.0
      %6053 = vmatpush1.msra.mxu0 0.0
      %6054 = vmatprep.subr.mxu0 0.0
      %6055 = vmatpush1.msra.mxu0 0.0
      %6056 = vmatprep.subr.mxu0 0.0
      %6057 = vmatpush1.msra.mxu0 0.0
      %6058 = vmatprep.subr.mxu0 0.0
      %6059 = vmatpush1.msra.mxu0 0.0
      %6060 = vmatprep.subr.mxu0 0.0
      %6061 = vmatpush1.msra.mxu0 0.0
      %6062 = vmatprep.subr.mxu0 0.0
      %6063 = vmatpush1.msra.mxu0 0.0
      %6064 = vmatprep.mubr.f32.mxu0 0.0
      %6065 = vmatmul.mubr.f32.gmra.mrb[0].mxu0 %v5995
      %v6066 = vpop.f32.mrb[0].mxu0
      %v6067 = vadd.f32 0.0, %v6066
      %v6068 = vpop.f32.mrb[0].mxu0
      %6069 = vmatprep.mubr.f32.mxu0 0.0
      %6070 = vmatmul.mubr.f32.gmra.mrb[0].mxu0 %v5998
      %v6071 = vpop.f32.mrb[0].mxu0
      %v6072 = vadd.f32 0.0, %v6071
      %v6073 = vpop.f32.mrb[0].mxu0
      %6074 = vdwg.mxu0
      %s6075 = scalar_lea.vmem %s12, 320
      %v6076 = vld [vmem:[%s6075] sm:$0xff]
      %v6077 = vld [vmem:[%s6075 + $0x8] sm:$0xff]
      %v6078 = vld [vmem:[%s6075 + $0x10] sm:$0xff]
      %v6079 = vld [vmem:[%s6075 + $0x18] sm:$0xff]
      %v6081 = vsel %vm769, %v6067, 0
      %v6084 = vsel %vm769, %v6072, 0
      %6086 = vmatprep.subr.mxu0 0.0
      %6087 = vmatpush1.msra.mxu0 %v6076
      %6088 = vmatprep.subr.mxu0 0.0
      %6089 = vmatpush1.msra.mxu0 %v6077
      %6090 = vmatprep.subr.mxu0 0.0
      %6091 = vmatpush1.msra.mxu0 %v6078
      %6092 = vmatprep.subr.mxu0 0.0
      %6093 = vmatpush1.msra.mxu0 %v6079
      %6094 = vmatprep.subr.mxu0 0.0
      %6095 = vmatpush1.msra.mxu0 0.0
      %6096 = vmatprep.subr.mxu0 0.0
      %6097 = vmatpush1.msra.mxu0 0.0
      %6098 = vmatprep.subr.mxu0 0.0
      %6099 = vmatpush1.msra.mxu0 0.0
      %6100 = vmatprep.subr.mxu0 0.0
      %6101 = vmatpush1.msra.mxu0 0.0
      %6102 = vmatprep.subr.mxu0 0.0
      %6103 = vmatpush1.msra.mxu0 0.0
      %6104 = vmatprep.subr.mxu0 0.0
      %6105 = vmatpush1.msra.mxu0 0.0
      %6106 = vmatprep.subr.mxu0 0.0
      %6107 = vmatpush1.msra.mxu0 0.0
      %6108 = vmatprep.subr.mxu0 0.0
      %6109 = vmatpush1.msra.mxu0 0.0
      %6110 = vmatprep.subr.mxu0 0.0
      %6111 = vmatpush1.msra.mxu0 0.0
      %6112 = vmatprep.subr.mxu0 0.0
      %6113 = vmatpush1.msra.mxu0 0.0
      %6114 = vmatprep.subr.mxu0 0.0
      %6115 = vmatpush1.msra.mxu0 0.0
      %6116 = vmatprep.subr.mxu0 0.0
      %6117 = vmatpush1.msra.mxu0 0.0
      %6118 = vmatprep.subr.mxu0 0.0
      %6119 = vmatpush1.msra.mxu0 0.0
      %6120 = vmatprep.subr.mxu0 0.0
      %6121 = vmatpush1.msra.mxu0 0.0
      %6122 = vmatprep.subr.mxu0 0.0
      %6123 = vmatpush1.msra.mxu0 0.0
      %6124 = vmatprep.subr.mxu0 0.0
      %6125 = vmatpush1.msra.mxu0 0.0
      %6126 = vmatprep.subr.mxu0 0.0
      %6127 = vmatpush1.msra.mxu0 0.0
      %6128 = vmatprep.subr.mxu0 0.0
      %6129 = vmatpush1.msra.mxu0 0.0
      %6130 = vmatprep.subr.mxu0 0.0
      %6131 = vmatpush1.msra.mxu0 0.0
      %6132 = vmatprep.subr.mxu0 0.0
      %6133 = vmatpush1.msra.mxu0 0.0
      %6134 = vmatprep.subr.mxu0 0.0
      %6135 = vmatpush1.msra.mxu0 0.0
      %6136 = vmatprep.subr.mxu0 0.0
      %6137 = vmatpush1.msra.mxu0 0.0
      %6138 = vmatprep.subr.mxu0 0.0
      %6139 = vmatpush1.msra.mxu0 0.0
      %6140 = vmatprep.subr.mxu0 0.0
      %6141 = vmatpush1.msra.mxu0 0.0
      %6142 = vmatprep.subr.mxu0 0.0
      %6143 = vmatpush1.msra.mxu0 0.0
      %6144 = vmatprep.subr.mxu0 0.0
      %6145 = vmatpush1.msra.mxu0 0.0
      %6146 = vmatprep.subr.mxu0 0.0
      %6147 = vmatpush1.msra.mxu0 0.0
      %6148 = vmatprep.subr.mxu0 0.0
      %6149 = vmatpush1.msra.mxu0 0.0
      %6150 = vmatprep.mubr.f32.mxu0 0.0
      %6151 = vmatmul.mubr.f32.gmra.mrb[0].mxu0 %v6081
      %v6152 = vpop.f32.mrb[0].mxu0
      %v6153 = vadd.f32 0.0, %v6152
      %v6154 = vpop.f32.mrb[0].mxu0
      %6155 = vmatprep.mubr.f32.mxu0 0.0
      %6156 = vmatmul.mubr.f32.gmra.mrb[0].mxu0 %v6084
      %v6157 = vpop.f32.mrb[0].mxu0
      %v6158 = vadd.f32 0.0, %v6157
      %v6159 = vpop.f32.mrb[0].mxu0
      %6160 = vdwg.mxu0
      %v6162 = vsel %vm769, %v5979, 0
      %v6165 = vsel %vm769, %v5984, 0
      %6167 = vmatprep.subr.mxu0 0.0
      %6168 = vmatpush1.msra.mxu0 %v5988
      %6169 = vmatprep.subr.mxu0 0.0
      %6170 = vmatpush1.msra.mxu0 %v5989
      %6171 = vmatprep.subr.mxu0 0.0
      %6172 = vmatpush1.msra.mxu0 %v5990
      %6173 = vmatprep.subr.mxu0 0.0
      %6174 = vmatpush1.msra.mxu0 %v5991
      %6175 = vmatprep.subr.mxu0 0.0
      %6176 = vmatpush1.msra.mxu0 0.0
      %6177 = vmatprep.subr.mxu0 0.0
      %6178 = vmatpush1.msra.mxu0 0.0
      %6179 = vmatprep.subr.mxu0 0.0
      %6180 = vmatpush1.msra.mxu0 0.0
      %6181 = vmatprep.subr.mxu0 0.0
      %6182 = vmatpush1.msra.mxu0 0.0
      %6183 = vmatprep.subr.mxu0 0.0
      %6184 = vmatpush1.msra.mxu0 0.0
      %6185 = vmatprep.subr.mxu0 0.0
      %6186 = vmatpush1.msra.mxu0 0.0
      %6187 = vmatprep.subr.mxu0 0.0
      %6188 = vmatpush1.msra.mxu0 0.0
      %6189 = vmatprep.subr.mxu0 0.0
      %6190 = vmatpush1.msra.mxu0 0.0
      %6191 = vmatprep.subr.mxu0 0.0
      %6192 = vmatpush1.msra.mxu0 0.0
      %6193 = vmatprep.subr.mxu0 0.0
      %6194 = vmatpush1.msra.mxu0 0.0
      %6195 = vmatprep.subr.mxu0 0.0
      %6196 = vmatpush1.msra.mxu0 0.0
      %6197 = vmatprep.subr.mxu0 0.0
      %6198 = vmatpush1.msra.mxu0 0.0
      %6199 = vmatprep.subr.mxu0 0.0
      %6200 = vmatpush1.msra.mxu0 0.0
      %6201 = vmatprep.subr.mxu0 0.0
      %6202 = vmatpush1.msra.mxu0 0.0
      %6203 = vmatprep.subr.mxu0 0.0
      %6204 = vmatpush1.msra.mxu0 0.0
      %6205 = vmatprep.subr.mxu0 0.0
      %6206 = vmatpush1.msra.mxu0 0.0
      %6207 = vmatprep.subr.mxu0 0.0
      %6208 = vmatpush1.msra.mxu0 0.0
      %6209 = vmatprep.subr.mxu0 0.0
      %6210 = vmatpush1.msra.mxu0 0.0
      %6211 = vmatprep.subr.mxu0 0.0
      %6212 = vmatpush1.msra.mxu0 0.0
      %6213 = vmatprep.subr.mxu0 0.0
      %6214 = vmatpush1.msra.mxu0 0.0
      %6215 = vmatprep.subr.mxu0 0.0
      %6216 = vmatpush1.msra.mxu0 0.0
      %6217 = vmatprep.subr.mxu0 0.0
      %6218 = vmatpush1.msra.mxu0 0.0
      %6219 = vmatprep.subr.mxu0 0.0
      %6220 = vmatpush1.msra.mxu0 0.0
      %6221 = vmatprep.subr.mxu0 0.0
      %6222 = vmatpush1.msra.mxu0 0.0
      %6223 = vmatprep.subr.mxu0 0.0
      %6224 = vmatpush1.msra.mxu0 0.0
      %6225 = vmatprep.subr.mxu0 0.0
      %6226 = vmatpush1.msra.mxu0 0.0
      %6227 = vmatprep.subr.mxu0 0.0
      %6228 = vmatpush1.msra.mxu0 0.0
      %6229 = vmatprep.subr.mxu0 0.0
      %6230 = vmatpush1.msra.mxu0 0.0
      %6231 = vmatprep.mubr.f32.mxu0 0.0
      %6232 = vmatmul.mubr.f32.gmra.mrb[0].mxu0 %v6162
      %v6233 = vpop.f32.mrb[0].mxu0
      %v6234 = vadd.f32 %v6153, %v6233
      %v6235 = vpop.f32.mrb[0].mxu0
      %6236 = vmatprep.mubr.f32.mxu0 0.0
      %6237 = vmatmul.mubr.f32.gmra.mrb[0].mxu0 %v6165
      %v6238 = vpop.f32.mrb[0].mxu0
      %v6239 = vadd.f32 %v6158, %v6238
      %v6240 = vpop.f32.mrb[0].mxu0
      %6241 = vdwg.mxu0
      %v6242 = vld [vmem:[%s2159] sm:$0xff]
      %v6243 = vld [vmem:[%s2159 + $0x8] sm:$0xff]
      %v6245 = vsel %vm891, %v6242, 0
      %v6248 = vsel %vm891, %v6243, 0
      %6250 = vmatprep.subr.mxu0 0.0
      %6251 = vmatpush1.msra.mxu0 %v5902
      %6252 = vmatprep.subr.mxu0 0.0
      %6253 = vmatpush1.msra.mxu0 %v5903
      %6254 = vmatprep.subr.mxu0 0.0
      %6255 = vmatpush1.msra.mxu0 0.0
      %6256 = vmatprep.subr.mxu0 0.0
      %6257 = vmatpush1.msra.mxu0 0.0
      %6258 = vmatprep.subr.mxu0 0.0
      %6259 = vmatpush1.msra.mxu0 0.0
      %6260 = vmatprep.subr.mxu0 0.0
      %6261 = vmatpush1.msra.mxu0 0.0
      %6262 = vmatprep.subr.mxu0 0.0
      %6263 = vmatpush1.msra.mxu0 0.0
      %6264 = vmatprep.subr.mxu0 0.0
      %6265 = vmatpush1.msra.mxu0 0.0
      %6266 = vmatprep.subr.mxu0 0.0
      %6267 = vmatpush1.msra.mxu0 0.0
      %6268 = vmatprep.subr.mxu0 0.0
      %6269 = vmatpush1.msra.mxu0 0.0
      %6270 = vmatprep.subr.mxu0 0.0
      %6271 = vmatpush1.msra.mxu0 0.0
      %6272 = vmatprep.subr.mxu0 0.0
      %6273 = vmatpush1.msra.mxu0 0.0
      %6274 = vmatprep.subr.mxu0 0.0
      %6275 = vmatpush1.msra.mxu0 0.0
      %6276 = vmatprep.subr.mxu0 0.0
      %6277 = vmatpush1.msra.mxu0 0.0
      %6278 = vmatprep.subr.mxu0 0.0
      %6279 = vmatpush1.msra.mxu0 0.0
      %6280 = vmatprep.subr.mxu0 0.0
      %6281 = vmatpush1.msra.mxu0 0.0
      %6282 = vmatprep.subr.mxu0 0.0
      %6283 = vmatpush1.msra.mxu0 0.0
      %6284 = vmatprep.subr.mxu0 0.0
      %6285 = vmatpush1.msra.mxu0 0.0
      %6286 = vmatprep.subr.mxu0 0.0
      %6287 = vmatpush1.msra.mxu0 0.0
      %6288 = vmatprep.subr.mxu0 0.0
      %6289 = vmatpush1.msra.mxu0 0.0
      %6290 = vmatprep.subr.mxu0 0.0
      %6291 = vmatpush1.msra.mxu0 0.0
      %6292 = vmatprep.subr.mxu0 0.0
      %6293 = vmatpush1.msra.mxu0 0.0
      %6294 = vmatprep.subr.mxu0 0.0
      %6295 = vmatpush1.msra.mxu0 0.0
      %6296 = vmatprep.subr.mxu0 0.0
      %6297 = vmatpush1.msra.mxu0 0.0
      %6298 = vmatprep.subr.mxu0 0.0
      %6299 = vmatpush1.msra.mxu0 0.0
      %6300 = vmatprep.subr.mxu0 0.0
      %6301 = vmatpush1.msra.mxu0 0.0
      %6302 = vmatprep.subr.mxu0 0.0
      %6303 = vmatpush1.msra.mxu0 0.0
      %6304 = vmatprep.subr.mxu0 0.0
      %6305 = vmatpush1.msra.mxu0 0.0
      %6306 = vmatprep.subr.mxu0 0.0
      %6307 = vmatpush1.msra.mxu0 0.0
      %6308 = vmatprep.subr.mxu0 0.0
      %6309 = vmatpush1.msra.mxu0 0.0
      %6310 = vmatprep.subr.mxu0 0.0
      %6311 = vmatpush1.msra.mxu0 0.0
      %6312 = vmatprep.subr.mxu0 0.0
      %6313 = vmatpush1.msra.mxu0 0.0
      %6314 = vmatprep.mubr.f32.mxu0 0.0
      %6315 = vmatmul.mubr.f32.gmra.mrb[0].mxu0 %v6245
      %v6316 = vpop.f32.mrb[0].mxu0
      %v6317 = vadd.f32 0.0, %v6316
      %v6318 = vpop.f32.mrb[0].mxu0
      %6319 = vmatprep.mubr.f32.mxu0 0.0
      %6320 = vmatmul.mubr.f32.gmra.mrb[0].mxu0 %v6248
      %v6321 = vpop.f32.mrb[0].mxu0
      %v6322 = vadd.f32 0.0, %v6321
      %v6323 = vpop.f32.mrb[0].mxu0
      %6324 = vdwg.mxu0
      %s6325 = scalar_lea.vmem %s12, 352
      %v6326 = vld [vmem:[%s6325] sm:$0xff]
      %v6327 = vld [vmem:[%s6325 + $0x8] sm:$0xff]
      %v6328 = vld [vmem:[%s6325 + $0x10] sm:$0xff]
      %v6329 = vld [vmem:[%s6325 + $0x18] sm:$0xff]
      %v6331 = vsel %vm769, %v6317, 0
      %v6334 = vsel %vm769, %v6322, 0
      %6336 = vmatprep.subr.mxu0 0.0
      %6337 = vmatpush1.msra.mxu0 %v6326
      %6338 = vmatprep.subr.mxu0 0.0
      %6339 = vmatpush1.msra.mxu0 %v6327
      %6340 = vmatprep.subr.mxu0 0.0
      %6341 = vmatpush1.msra.mxu0 %v6328
      %6342 = vmatprep.subr.mxu0 0.0
      %6343 = vmatpush1.msra.mxu0 %v6329
      %6344 = vmatprep.subr.mxu0 0.0
      %6345 = vmatpush1.msra.mxu0 0.0
      %6346 = vmatprep.subr.mxu0 0.0
      %6347 = vmatpush1.msra.mxu0 0.0
      %6348 = vmatprep.subr.mxu0 0.0
      %6349 = vmatpush1.msra.mxu0 0.0
      %6350 = vmatprep.subr.mxu0 0.0
      %6351 = vmatpush1.msra.mxu0 0.0
      %6352 = vmatprep.subr.mxu0 0.0
      %6353 = vmatpush1.msra.mxu0 0.0
      %6354 = vmatprep.subr.mxu0 0.0
      %6355 = vmatpush1.msra.mxu0 0.0
      %6356 = vmatprep.subr.mxu0 0.0
      %6357 = vmatpush1.msra.mxu0 0.0
      %6358 = vmatprep.subr.mxu0 0.0
      %6359 = vmatpush1.msra.mxu0 0.0
      %6360 = vmatprep.subr.mxu0 0.0
      %6361 = vmatpush1.msra.mxu0 0.0
      %6362 = vmatprep.subr.mxu0 0.0
      %6363 = vmatpush1.msra.mxu0 0.0
      %6364 = vmatprep.subr.mxu0 0.0
      %6365 = vmatpush1.msra.mxu0 0.0
      %6366 = vmatprep.subr.mxu0 0.0
      %6367 = vmatpush1.msra.mxu0 0.0
      %6368 = vmatprep.subr.mxu0 0.0
      %6369 = vmatpush1.msra.mxu0 0.0
      %6370 = vmatprep.subr.mxu0 0.0
      %6371 = vmatpush1.msra.mxu0 0.0
      %6372 = vmatprep.subr.mxu0 0.0
      %6373 = vmatpush1.msra.mxu0 0.0
      %6374 = vmatprep.subr.mxu0 0.0
      %6375 = vmatpush1.msra.mxu0 0.0
      %6376 = vmatprep.subr.mxu0 0.0
      %6377 = vmatpush1.msra.mxu0 0.0
      %6378 = vmatprep.subr.mxu0 0.0
      %6379 = vmatpush1.msra.mxu0 0.0
      %6380 = vmatprep.subr.mxu0 0.0
      %6381 = vmatpush1.msra.mxu0 0.0
      %6382 = vmatprep.subr.mxu0 0.0
      %6383 = vmatpush1.msra.mxu0 0.0
      %6384 = vmatprep.subr.mxu0 0.0
      %6385 = vmatpush1.msra.mxu0 0.0
      %6386 = vmatprep.subr.mxu0 0.0
      %6387 = vmatpush1.msra.mxu0 0.0
      %6388 = vmatprep.subr.mxu0 0.0
      %6389 = vmatpush1.msra.mxu0 0.0
      %6390 = vmatprep.subr.mxu0 0.0
      %6391 = vmatpush1.msra.mxu0 0.0
      %6392 = vmatprep.subr.mxu0 0.0
      %6393 = vmatpush1.msra.mxu0 0.0
      %6394 = vmatprep.subr.mxu0 0.0
      %6395 = vmatpush1.msra.mxu0 0.0
      %6396 = vmatprep.subr.mxu0 0.0
      %6397 = vmatpush1.msra.mxu0 0.0
      %6398 = vmatprep.subr.mxu0 0.0
      %6399 = vmatpush1.msra.mxu0 0.0
      %6400 = vmatprep.mubr.f32.mxu0 0.0
      %6401 = vmatmul.mubr.f32.gmra.mrb[0].mxu0 %v6331
      %v6402 = vpop.f32.mrb[0].mxu0
      %v6403 = vadd.f32 0.0, %v6402
      %v6404 = vpop.f32.mrb[0].mxu0
      %6405 = vmatprep.mubr.f32.mxu0 0.0
      %6406 = vmatmul.mubr.f32.gmra.mrb[0].mxu0 %v6334
      %v6407 = vpop.f32.mrb[0].mxu0
      %v6408 = vadd.f32 0.0, %v6407
      %v6409 = vpop.f32.mrb[0].mxu0
      %6410 = vdwg.mxu0
      %v6411 = vadd.f32 %v6234, %v6403
      %v6412 = vadd.f32 %v6239, %v6408
      %v6413 = vld [vmem:[%s2331] sm:$0xff]
      %v6414 = vld [vmem:[%s2331 + $0x8] sm:$0xff]
      %v6416 = vsel %vm891, %v6413, 0
      %v6419 = vsel %vm891, %v6414, 0
      %6421 = vmatprep.subr.mxu0 0.0
      %6422 = vmatpush1.msra.mxu0 %v5902
      %6423 = vmatprep.subr.mxu0 0.0
      %6424 = vmatpush1.msra.mxu0 %v5903
      %6425 = vmatprep.subr.mxu0 0.0
      %6426 = vmatpush1.msra.mxu0 0.0
      %6427 = vmatprep.subr.mxu0 0.0
      %6428 = vmatpush1.msra.mxu0 0.0
      %6429 = vmatprep.subr.mxu0 0.0
      %6430 = vmatpush1.msra.mxu0 0.0
      %6431 = vmatprep.subr.mxu0 0.0
      %6432 = vmatpush1.msra.mxu0 0.0
      %6433 = vmatprep.subr.mxu0 0.0
      %6434 = vmatpush1.msra.mxu0 0.0
      %6435 = vmatprep.subr.mxu0 0.0
      %6436 = vmatpush1.msra.mxu0 0.0
      %6437 = vmatprep.subr.mxu0 0.0
      %6438 = vmatpush1.msra.mxu0 0.0
      %6439 = vmatprep.subr.mxu0 0.0
      %6440 = vmatpush1.msra.mxu0 0.0
      %6441 = vmatprep.subr.mxu0 0.0
      %6442 = vmatpush1.msra.mxu0 0.0
      %6443 = vmatprep.subr.mxu0 0.0
      %6444 = vmatpush1.msra.mxu0 0.0
      %6445 = vmatprep.subr.mxu0 0.0
      %6446 = vmatpush1.msra.mxu0 0.0
      %6447 = vmatprep.subr.mxu0 0.0
      %6448 = vmatpush1.msra.mxu0 0.0
      %6449 = vmatprep.subr.mxu0 0.0
      %6450 = vmatpush1.msra.mxu0 0.0
      %6451 = vmatprep.subr.mxu0 0.0
      %6452 = vmatpush1.msra.mxu0 0.0
      %6453 = vmatprep.subr.mxu0 0.0
      %6454 = vmatpush1.msra.mxu0 0.0
      %6455 = vmatprep.subr.mxu0 0.0
      %6456 = vmatpush1.msra.mxu0 0.0
      %6457 = vmatprep.subr.mxu0 0.0
      %6458 = vmatpush1.msra.mxu0 0.0
      %6459 = vmatprep.subr.mxu0 0.0
      %6460 = vmatpush1.msra.mxu0 0.0
      %6461 = vmatprep.subr.mxu0 0.0
      %6462 = vmatpush1.msra.mxu0 0.0
      %6463 = vmatprep.subr.mxu0 0.0
      %6464 = vmatpush1.msra.mxu0 0.0
      %6465 = vmatprep.subr.mxu0 0.0
      %6466 = vmatpush1.msra.mxu0 0.0
      %6467 = vmatprep.subr.mxu0 0.0
      %6468 = vmatpush1.msra.mxu0 0.0
      %6469 = vmatprep.subr.mxu0 0.0
      %6470 = vmatpush1.msra.mxu0 0.0
      %6471 = vmatprep.subr.mxu0 0.0
      %6472 = vmatpush1.msra.mxu0 0.0
      %6473 = vmatprep.subr.mxu0 0.0
      %6474 = vmatpush1.msra.mxu0 0.0
      %6475 = vmatprep.subr.mxu0 0.0
      %6476 = vmatpush1.msra.mxu0 0.0
      %6477 = vmatprep.subr.mxu0 0.0
      %6478 = vmatpush1.msra.mxu0 0.0
      %6479 = vmatprep.subr.mxu0 0.0
      %6480 = vmatpush1.msra.mxu0 0.0
      %6481 = vmatprep.subr.mxu0 0.0
      %6482 = vmatpush1.msra.mxu0 0.0
      %6483 = vmatprep.subr.mxu0 0.0
      %6484 = vmatpush1.msra.mxu0 0.0
      %6485 = vmatprep.mubr.f32.mxu0 0.0
      %6486 = vmatmul.mubr.f32.gmra.mrb[0].mxu0 %v6416
      %v6487 = vpop.f32.mrb[0].mxu0
      %v6488 = vadd.f32 0.0, %v6487
      %v6489 = vpop.f32.mrb[0].mxu0
      %6490 = vmatprep.mubr.f32.mxu0 0.0
      %6491 = vmatmul.mubr.f32.gmra.mrb[0].mxu0 %v6419
      %v6492 = vpop.f32.mrb[0].mxu0
      %v6493 = vadd.f32 0.0, %v6492
      %v6494 = vpop.f32.mrb[0].mxu0
      %6495 = vdwg.mxu0
      %s6496 = scalar_lea.vmem %s12, 384
      %v6497 = vld [vmem:[%s6496] sm:$0xff]
      %v6498 = vld [vmem:[%s6496 + $0x8] sm:$0xff]
      %v6499 = vld [vmem:[%s6496 + $0x10] sm:$0xff]
      %v6500 = vld [vmem:[%s6496 + $0x18] sm:$0xff]
      %v6502 = vsel %vm769, %v6488, 0
      %v6505 = vsel %vm769, %v6493, 0
      %6507 = vmatprep.subr.mxu0 0.0
      %6508 = vmatpush1.msra.mxu0 %v6497
      %6509 = vmatprep.subr.mxu0 0.0
      %6510 = vmatpush1.msra.mxu0 %v6498
      %6511 = vmatprep.subr.mxu0 0.0
      %6512 = vmatpush1.msra.mxu0 %v6499
      %6513 = vmatprep.subr.mxu0 0.0
      %6514 = vmatpush1.msra.mxu0 %v6500
      %6515 = vmatprep.subr.mxu0 0.0
      %6516 = vmatpush1.msra.mxu0 0.0
      %6517 = vmatprep.subr.mxu0 0.0
      %6518 = vmatpush1.msra.mxu0 0.0
      %6519 = vmatprep.subr.mxu0 0.0
      %6520 = vmatpush1.msra.mxu0 0.0
      %6521 = vmatprep.subr.mxu0 0.0
      %6522 = vmatpush1.msra.mxu0 0.0
      %6523 = vmatprep.subr.mxu0 0.0
      %6524 = vmatpush1.msra.mxu0 0.0
      %6525 = vmatprep.subr.mxu0 0.0
      %6526 = vmatpush1.msra.mxu0 0.0
      %6527 = vmatprep.subr.mxu0 0.0
      %6528 = vmatpush1.msra.mxu0 0.0
      %6529 = vmatprep.subr.mxu0 0.0
      %6530 = vmatpush1.msra.mxu0 0.0
      %6531 = vmatprep.subr.mxu0 0.0
      %6532 = vmatpush1.msra.mxu0 0.0
      %6533 = vmatprep.subr.mxu0 0.0
      %6534 = vmatpush1.msra.mxu0 0.0
      %6535 = vmatprep.subr.mxu0 0.0
      %6536 = vmatpush1.msra.mxu0 0.0
      %6537 = vmatprep.subr.mxu0 0.0
      %6538 = vmatpush1.msra.mxu0 0.0
      %6539 = vmatprep.subr.mxu0 0.0
      %6540 = vmatpush1.msra.mxu0 0.0
      %6541 = vmatprep.subr.mxu0 0.0
      %6542 = vmatpush1.msra.mxu0 0.0
      %6543 = vmatprep.subr.mxu0 0.0
      %6544 = vmatpush1.msra.mxu0 0.0
      %6545 = vmatprep.subr.mxu0 0.0
      %6546 = vmatpush1.msra.mxu0 0.0
      %6547 = vmatprep.subr.mxu0 0.0
      %6548 = vmatpush1.msra.mxu0 0.0
      %6549 = vmatprep.subr.mxu0 0.0
      %6550 = vmatpush1.msra.mxu0 0.0
      %6551 = vmatprep.subr.mxu0 0.0
      %6552 = vmatpush1.msra.mxu0 0.0
      %6553 = vmatprep.subr.mxu0 0.0
      %6554 = vmatpush1.msra.mxu0 0.0
      %6555 = vmatprep.subr.mxu0 0.0
      %6556 = vmatpush1.msra.mxu0 0.0
      %6557 = vmatprep.subr.mxu0 0.0
      %6558 = vmatpush1.msra.mxu0 0.0
      %6559 = vmatprep.subr.mxu0 0.0
      %6560 = vmatpush1.msra.mxu0 0.0
      %6561 = vmatprep.subr.mxu0 0.0
      %6562 = vmatpush1.msra.mxu0 0.0
      %6563 = vmatprep.subr.mxu0 0.0
      %6564 = vmatpush1.msra.mxu0 0.0
      %6565 = vmatprep.subr.mxu0 0.0
      %6566 = vmatpush1.msra.mxu0 0.0
      %6567 = vmatprep.subr.mxu0 0.0
      %6568 = vmatpush1.msra.mxu0 0.0
      %6569 = vmatprep.subr.mxu0 0.0
      %6570 = vmatpush1.msra.mxu0 0.0
      %6571 = vmatprep.mubr.f32.mxu0 0.0
      %6572 = vmatmul.mubr.f32.gmra.mrb[0].mxu0 %v6502
      %v6573 = vpop.f32.mrb[0].mxu0
      %v6574 = vadd.f32 0.0, %v6573
      %v6575 = vpop.f32.mrb[0].mxu0
      %6576 = vmatprep.mubr.f32.mxu0 0.0
      %6577 = vmatmul.mubr.f32.gmra.mrb[0].mxu0 %v6505
      %v6578 = vpop.f32.mrb[0].mxu0
      %v6579 = vadd.f32 0.0, %v6578
      %v6580 = vpop.f32.mrb[0].mxu0
      %6581 = vdwg.mxu0
      %v6582 = vadd.f32 %v6411, %v6574
      %v6583 = vadd.f32 %v6412, %v6579
      %v6584 = vld [vmem:[%s2503] sm:$0xff]
      %v6585 = vld [vmem:[%s2503 + $0x8] sm:$0xff]
      %v6587 = vsel %vm891, %v6584, 0
      %v6590 = vsel %vm891, %v6585, 0
      %6592 = vmatprep.subr.mxu0 0.0
      %6593 = vmatpush1.msra.mxu0 %v5902
      %6594 = vmatprep.subr.mxu0 0.0
      %6595 = vmatpush1.msra.mxu0 %v5903
      %6596 = vmatprep.subr.mxu0 0.0
      %6597 = vmatpush1.msra.mxu0 0.0
      %6598 = vmatprep.subr.mxu0 0.0
      %6599 = vmatpush1.msra.mxu0 0.0
      %6600 = vmatprep.subr.mxu0 0.0
      %6601 = vmatpush1.msra.mxu0 0.0
      %6602 = vmatprep.subr.mxu0 0.0
      %6603 = vmatpush1.msra.mxu0 0.0
      %6604 = vmatprep.subr.mxu0 0.0
      %6605 = vmatpush1.msra.mxu0 0.0
      %6606 = vmatprep.subr.mxu0 0.0
      %6607 = vmatpush1.msra.mxu0 0.0
      %6608 = vmatprep.subr.mxu0 0.0
      %6609 = vmatpush1.msra.mxu0 0.0
      %6610 = vmatprep.subr.mxu0 0.0
      %6611 = vmatpush1.msra.mxu0 0.0
      %6612 = vmatprep.subr.mxu0 0.0
      %6613 = vmatpush1.msra.mxu0 0.0
      %6614 = vmatprep.subr.mxu0 0.0
      %6615 = vmatpush1.msra.mxu0 0.0
      %6616 = vmatprep.subr.mxu0 0.0
      %6617 = vmatpush1.msra.mxu0 0.0
      %6618 = vmatprep.subr.mxu0 0.0
      %6619 = vmatpush1.msra.mxu0 0.0
      %6620 = vmatprep.subr.mxu0 0.0
      %6621 = vmatpush1.msra.mxu0 0.0
      %6622 = vmatprep.subr.mxu0 0.0
      %6623 = vmatpush1.msra.mxu0 0.0
      %6624 = vmatprep.subr.mxu0 0.0
      %6625 = vmatpush1.msra.mxu0 0.0
      %6626 = vmatprep.subr.mxu0 0.0
      %6627 = vmatpush1.msra.mxu0 0.0
      %6628 = vmatprep.subr.mxu0 0.0
      %6629 = vmatpush1.msra.mxu0 0.0
      %6630 = vmatprep.subr.mxu0 0.0
      %6631 = vmatpush1.msra.mxu0 0.0
      %6632 = vmatprep.subr.mxu0 0.0
      %6633 = vmatpush1.msra.mxu0 0.0
      %6634 = vmatprep.subr.mxu0 0.0
      %6635 = vmatpush1.msra.mxu0 0.0
      %6636 = vmatprep.subr.mxu0 0.0
      %6637 = vmatpush1.msra.mxu0 0.0
      %6638 = vmatprep.subr.mxu0 0.0
      %6639 = vmatpush1.msra.mxu0 0.0
      %6640 = vmatprep.subr.mxu0 0.0
      %6641 = vmatpush1.msra.mxu0 0.0
      %6642 = vmatprep.subr.mxu0 0.0
      %6643 = vmatpush1.msra.mxu0 0.0
      %6644 = vmatprep.subr.mxu0 0.0
      %6645 = vmatpush1.msra.mxu0 0.0
      %6646 = vmatprep.subr.mxu0 0.0
      %6647 = vmatpush1.msra.mxu0 0.0
      %6648 = vmatprep.subr.mxu0 0.0
      %6649 = vmatpush1.msra.mxu0 0.0
      %6650 = vmatprep.subr.mxu0 0.0
      %6651 = vmatpush1.msra.mxu0 0.0
      %6652 = vmatprep.subr.mxu0 0.0
      %6653 = vmatpush1.msra.mxu0 0.0
      %6654 = vmatprep.subr.mxu0 0.0
      %6655 = vmatpush1.msra.mxu0 0.0
      %6656 = vmatprep.mubr.f32.mxu0 0.0
      %6657 = vmatmul.mubr.f32.gmra.mrb[0].mxu0 %v6587
      %v6658 = vpop.f32.mrb[0].mxu0
      %v6659 = vadd.f32 0.0, %v6658
      %v6660 = vpop.f32.mrb[0].mxu0
      %6661 = vmatprep.mubr.f32.mxu0 0.0
      %6662 = vmatmul.mubr.f32.gmra.mrb[0].mxu0 %v6590
      %v6663 = vpop.f32.mrb[0].mxu0
      %v6664 = vadd.f32 0.0, %v6663
      %v6665 = vpop.f32.mrb[0].mxu0
      %6666 = vdwg.mxu0
      %s6667 = scalar_lea.vmem %s12, 416
      %v6668 = vld [vmem:[%s6667] sm:$0xff]
      %v6669 = vld [vmem:[%s6667 + $0x8] sm:$0xff]
      %v6670 = vld [vmem:[%s6667 + $0x10] sm:$0xff]
      %v6671 = vld [vmem:[%s6667 + $0x18] sm:$0xff]
      %v6673 = vsel %vm769, %v6659, 0
      %v6676 = vsel %vm769, %v6664, 0
      %6678 = vmatprep.subr.mxu0 0.0
      %6679 = vmatpush1.msra.mxu0 %v6668
      %6680 = vmatprep.subr.mxu0 0.0
      %6681 = vmatpush1.msra.mxu0 %v6669
      %6682 = vmatprep.subr.mxu0 0.0
      %6683 = vmatpush1.msra.mxu0 %v6670
      %6684 = vmatprep.subr.mxu0 0.0
      %6685 = vmatpush1.msra.mxu0 %v6671
      %6686 = vmatprep.subr.mxu0 0.0
      %6687 = vmatpush1.msra.mxu0 0.0
      %6688 = vmatprep.subr.mxu0 0.0
      %6689 = vmatpush1.msra.mxu0 0.0
      %6690 = vmatprep.subr.mxu0 0.0
      %6691 = vmatpush1.msra.mxu0 0.0
      %6692 = vmatprep.subr.mxu0 0.0
      %6693 = vmatpush1.msra.mxu0 0.0
      %6694 = vmatprep.subr.mxu0 0.0
      %6695 = vmatpush1.msra.mxu0 0.0
      %6696 = vmatprep.subr.mxu0 0.0
      %6697 = vmatpush1.msra.mxu0 0.0
      %6698 = vmatprep.subr.mxu0 0.0
      %6699 = vmatpush1.msra.mxu0 0.0
      %6700 = vmatprep.subr.mxu0 0.0
      %6701 = vmatpush1.msra.mxu0 0.0
      %6702 = vmatprep.subr.mxu0 0.0
      %6703 = vmatpush1.msra.mxu0 0.0
      %6704 = vmatprep.subr.mxu0 0.0
      %6705 = vmatpush1.msra.mxu0 0.0
      %6706 = vmatprep.subr.mxu0 0.0
      %6707 = vmatpush1.msra.mxu0 0.0
      %6708 = vmatprep.subr.mxu0 0.0
      %6709 = vmatpush1.msra.mxu0 0.0
      %6710 = vmatprep.subr.mxu0 0.0
      %6711 = vmatpush1.msra.mxu0 0.0
      %6712 = vmatprep.subr.mxu0 0.0
      %6713 = vmatpush1.msra.mxu0 0.0
      %6714 = vmatprep.subr.mxu0 0.0
      %6715 = vmatpush1.msra.mxu0 0.0
      %6716 = vmatprep.subr.mxu0 0.0
      %6717 = vmatpush1.msra.mxu0 0.0
      %6718 = vmatprep.subr.mxu0 0.0
      %6719 = vmatpush1.msra.mxu0 0.0
      %6720 = vmatprep.subr.mxu0 0.0
      %6721 = vmatpush1.msra.mxu0 0.0
      %6722 = vmatprep.subr.mxu0 0.0
      %6723 = vmatpush1.msra.mxu0 0.0
      %6724 = vmatprep.subr.mxu0 0.0
      %6725 = vmatpush1.msra.mxu0 0.0
      %6726 = vmatprep.subr.mxu0 0.0
      %6727 = vmatpush1.msra.mxu0 0.0
      %6728 = vmatprep.subr.mxu0 0.0
      %6729 = vmatpush1.msra.mxu0 0.0
      %6730 = vmatprep.subr.mxu0 0.0
      %6731 = vmatpush1.msra.mxu0 0.0
      %6732 = vmatprep.subr.mxu0 0.0
      %6733 = vmatpush1.msra.mxu0 0.0
      %6734 = vmatprep.subr.mxu0 0.0
      %6735 = vmatpush1.msra.mxu0 0.0
      %6736 = vmatprep.subr.mxu0 0.0
      %6737 = vmatpush1.msra.mxu0 0.0
      %6738 = vmatprep.subr.mxu0 0.0
      %6739 = vmatpush1.msra.mxu0 0.0
      %6740 = vmatprep.subr.mxu0 0.0
      %6741 = vmatpush1.msra.mxu0 0.0
      %6742 = vmatprep.mubr.f32.mxu0 0.0
      %6743 = vmatmul.mubr.f32.gmra.mrb[0].mxu0 %v6673
      %v6744 = vpop.f32.mrb[0].mxu0
      %v6745 = vadd.f32 0.0, %v6744
      %v6746 = vpop.f32.mrb[0].mxu0
      %6747 = vmatprep.mubr.f32.mxu0 0.0
      %6748 = vmatmul.mubr.f32.gmra.mrb[0].mxu0 %v6676
      %v6749 = vpop.f32.mrb[0].mxu0
      %v6750 = vadd.f32 0.0, %v6749
      %v6751 = vpop.f32.mrb[0].mxu0
      %6752 = vdwg.mxu0
      %v6753 = vadd.f32 %v6582, %v6745
      %v6754 = vadd.f32 %v6583, %v6750
      %v6755 = vld [vmem:[%s2675] sm:$0xff]
      %v6756 = vld [vmem:[%s2675 + $0x8] sm:$0xff]
      %v6758 = vsel %vm891, %v6755, 0
      %v6761 = vsel %vm891, %v6756, 0
      %6763 = vmatprep.subr.mxu0 0.0
      %6764 = vmatpush1.msra.mxu0 %v5902
      %6765 = vmatprep.subr.mxu0 0.0
      %6766 = vmatpush1.msra.mxu0 %v5903
      %6767 = vmatprep.subr.mxu0 0.0
      %6768 = vmatpush1.msra.mxu0 0.0
      %6769 = vmatprep.subr.mxu0 0.0
      %6770 = vmatpush1.msra.mxu0 0.0
      %6771 = vmatprep.subr.mxu0 0.0
      %6772 = vmatpush1.msra.mxu0 0.0
      %6773 = vmatprep.subr.mxu0 0.0
      %6774 = vmatpush1.msra.mxu0 0.0
      %6775 = vmatprep.subr.mxu0 0.0
      %6776 = vmatpush1.msra.mxu0 0.0
      %6777 = vmatprep.subr.mxu0 0.0
      %6778 = vmatpush1.msra.mxu0 0.0
      %6779 = vmatprep.subr.mxu0 0.0
      %6780 = vmatpush1.msra.mxu0 0.0
      %6781 = vmatprep.subr.mxu0 0.0
      %6782 = vmatpush1.msra.mxu0 0.0
      %6783 = vmatprep.subr.mxu0 0.0
      %6784 = vmatpush1.msra.mxu0 0.0
      %6785 = vmatprep.subr.mxu0 0.0
      %6786 = vmatpush1.msra.mxu0 0.0
      %6787 = vmatprep.subr.mxu0 0.0
      %6788 = vmatpush1.msra.mxu0 0.0
      %6789 = vmatprep.subr.mxu0 0.0
      %6790 = vmatpush1.msra.mxu0 0.0
      %6791 = vmatprep.subr.mxu0 0.0
      %6792 = vmatpush1.msra.mxu0 0.0
      %6793 = vmatprep.subr.mxu0 0.0
      %6794 = vmatpush1.msra.mxu0 0.0
      %6795 = vmatprep.subr.mxu0 0.0
      %6796 = vmatpush1.msra.mxu0 0.0
      %6797 = vmatprep.subr.mxu0 0.0
      %6798 = vmatpush1.msra.mxu0 0.0
      %6799 = vmatprep.subr.mxu0 0.0
      %6800 = vmatpush1.msra.mxu0 0.0
      %6801 = vmatprep.subr.mxu0 0.0
      %6802 = vmatpush1.msra.mxu0 0.0
      %6803 = vmatprep.subr.mxu0 0.0
      %6804 = vmatpush1.msra.mxu0 0.0
      %6805 = vmatprep.subr.mxu0 0.0
      %6806 = vmatpush1.msra.mxu0 0.0
      %6807 = vmatprep.subr.mxu0 0.0
      %6808 = vmatpush1.msra.mxu0 0.0
      %6809 = vmatprep.subr.mxu0 0.0
      %6810 = vmatpush1.msra.mxu0 0.0
      %6811 = vmatprep.subr.mxu0 0.0
      %6812 = vmatpush1.msra.mxu0 0.0
      %6813 = vmatprep.subr.mxu0 0.0
      %6814 = vmatpush1.msra.mxu0 0.0
      %6815 = vmatprep.subr.mxu0 0.0
      %6816 = vmatpush1.msra.mxu0 0.0
      %6817 = vmatprep.subr.mxu0 0.0
      %6818 = vmatpush1.msra.mxu0 0.0
      %6819 = vmatprep.subr.mxu0 0.0
      %6820 = vmatpush1.msra.mxu0 0.0
      %6821 = vmatprep.subr.mxu0 0.0
      %6822 = vmatpush1.msra.mxu0 0.0
      %6823 = vmatprep.subr.mxu0 0.0
      %6824 = vmatpush1.msra.mxu0 0.0
      %6825 = vmatprep.subr.mxu0 0.0
      %6826 = vmatpush1.msra.mxu0 0.0
      %6827 = vmatprep.mubr.f32.mxu0 0.0
      %6828 = vmatmul.mubr.f32.gmra.mrb[0].mxu0 %v6758
      %v6829 = vpop.f32.mrb[0].mxu0
      %v6830 = vadd.f32 0.0, %v6829
      %v6831 = vpop.f32.mrb[0].mxu0
      %6832 = vmatprep.mubr.f32.mxu0 0.0
      %6833 = vmatmul.mubr.f32.gmra.mrb[0].mxu0 %v6761
      %v6834 = vpop.f32.mrb[0].mxu0
      %v6835 = vadd.f32 0.0, %v6834
      %v6836 = vpop.f32.mrb[0].mxu0
      %6837 = vdwg.mxu0
      %s6838 = scalar_lea.vmem %s12, 448
      %v6839 = vld [vmem:[%s6838] sm:$0xff]
      %v6840 = vld [vmem:[%s6838 + $0x8] sm:$0xff]
      %v6841 = vld [vmem:[%s6838 + $0x10] sm:$0xff]
      %v6842 = vld [vmem:[%s6838 + $0x18] sm:$0xff]
      %v6844 = vsel %vm769, %v6830, 0
      %v6847 = vsel %vm769, %v6835, 0
      %6849 = vmatprep.subr.mxu0 0.0
      %6850 = vmatpush1.msra.mxu0 %v6839
      %6851 = vmatprep.subr.mxu0 0.0
      %6852 = vmatpush1.msra.mxu0 %v6840
      %6853 = vmatprep.subr.mxu0 0.0
      %6854 = vmatpush1.msra.mxu0 %v6841
      %6855 = vmatprep.subr.mxu0 0.0
      %6856 = vmatpush1.msra.mxu0 %v6842
      %6857 = vmatprep.subr.mxu0 0.0
      %6858 = vmatpush1.msra.mxu0 0.0
      %6859 = vmatprep.subr.mxu0 0.0
      %6860 = vmatpush1.msra.mxu0 0.0
      %6861 = vmatprep.subr.mxu0 0.0
      %6862 = vmatpush1.msra.mxu0 0.0
      %6863 = vmatprep.subr.mxu0 0.0
      %6864 = vmatpush1.msra.mxu0 0.0
      %6865 = vmatprep.subr.mxu0 0.0
      %6866 = vmatpush1.msra.mxu0 0.0
      %6867 = vmatprep.subr.mxu0 0.0
      %6868 = vmatpush1.msra.mxu0 0.0
      %6869 = vmatprep.subr.mxu0 0.0
      %6870 = vmatpush1.msra.mxu0 0.0
      %6871 = vmatprep.subr.mxu0 0.0
      %6872 = vmatpush1.msra.mxu0 0.0
      %6873 = vmatprep.subr.mxu0 0.0
      %6874 = vmatpush1.msra.mxu0 0.0
      %6875 = vmatprep.subr.mxu0 0.0
      %6876 = vmatpush1.msra.mxu0 0.0
      %6877 = vmatprep.subr.mxu0 0.0
      %6878 = vmatpush1.msra.mxu0 0.0
      %6879 = vmatprep.subr.mxu0 0.0
      %6880 = vmatpush1.msra.mxu0 0.0
      %6881 = vmatprep.subr.mxu0 0.0
      %6882 = vmatpush1.msra.mxu0 0.0
      %6883 = vmatprep.subr.mxu0 0.0
      %6884 = vmatpush1.msra.mxu0 0.0
      %6885 = vmatprep.subr.mxu0 0.0
      %6886 = vmatpush1.msra.mxu0 0.0
      %6887 = vmatprep.subr.mxu0 0.0
      %6888 = vmatpush1.msra.mxu0 0.0
      %6889 = vmatprep.subr.mxu0 0.0
      %6890 = vmatpush1.msra.mxu0 0.0
      %6891 = vmatprep.subr.mxu0 0.0
      %6892 = vmatpush1.msra.mxu0 0.0
      %6893 = vmatprep.subr.mxu0 0.0
      %6894 = vmatpush1.msra.mxu0 0.0
      %6895 = vmatprep.subr.mxu0 0.0
      %6896 = vmatpush1.msra.mxu0 0.0
      %6897 = vmatprep.subr.mxu0 0.0
      %6898 = vmatpush1.msra.mxu0 0.0
      %6899 = vmatprep.subr.mxu0 0.0
      %6900 = vmatpush1.msra.mxu0 0.0
      %6901 = vmatprep.subr.mxu0 0.0
      %6902 = vmatpush1.msra.mxu0 0.0
      %6903 = vmatprep.subr.mxu0 0.0
      %6904 = vmatpush1.msra.mxu0 0.0
      %6905 = vmatprep.subr.mxu0 0.0
      %6906 = vmatpush1.msra.mxu0 0.0
      %6907 = vmatprep.subr.mxu0 0.0
      %6908 = vmatpush1.msra.mxu0 0.0
      %6909 = vmatprep.subr.mxu0 0.0
      %6910 = vmatpush1.msra.mxu0 0.0
      %6911 = vmatprep.subr.mxu0 0.0
      %6912 = vmatpush1.msra.mxu0 0.0
      %6913 = vmatprep.mubr.f32.mxu0 0.0
      %6914 = vmatmul.mubr.f32.gmra.mrb[0].mxu0 %v6844
      %v6915 = vpop.f32.mrb[0].mxu0
      %v6916 = vadd.f32 0.0, %v6915
      %v6917 = vpop.f32.mrb[0].mxu0
      %6918 = vmatprep.mubr.f32.mxu0 0.0
      %6919 = vmatmul.mubr.f32.gmra.mrb[0].mxu0 %v6847
      %v6920 = vpop.f32.mrb[0].mxu0
      %v6921 = vadd.f32 0.0, %v6920
      %v6922 = vpop.f32.mrb[0].mxu0
      %6923 = vdwg.mxu0
      %v6924 = vadd.f32 %v6753, %v6916
      %v6925 = vadd.f32 %v6754, %v6921
      %v6926 = vld [vmem:[%s2847] sm:$0xff]
      %v6927 = vld [vmem:[%s2847 + $0x8] sm:$0xff]
      %v6929 = vsel %vm891, %v6926, 0
      %v6932 = vsel %vm891, %v6927, 0
      %6934 = vmatprep.subr.mxu0 0.0
      %6935 = vmatpush1.msra.mxu0 %v5902
      %6936 = vmatprep.subr.mxu0 0.0
      %6937 = vmatpush1.msra.mxu0 %v5903
      %6938 = vmatprep.subr.mxu0 0.0
      %6939 = vmatpush1.msra.mxu0 0.0
      %6940 = vmatprep.subr.mxu0 0.0
      %6941 = vmatpush1.msra.mxu0 0.0
      %6942 = vmatprep.subr.mxu0 0.0
      %6943 = vmatpush1.msra.mxu0 0.0
      %6944 = vmatprep.subr.mxu0 0.0
      %6945 = vmatpush1.msra.mxu0 0.0
      %6946 = vmatprep.subr.mxu0 0.0
      %6947 = vmatpush1.msra.mxu0 0.0
      %6948 = vmatprep.subr.mxu0 0.0
      %6949 = vmatpush1.msra.mxu0 0.0
      %6950 = vmatprep.subr.mxu0 0.0
      %6951 = vmatpush1.msra.mxu0 0.0
      %6952 = vmatprep.subr.mxu0 0.0
      %6953 = vmatpush1.msra.mxu0 0.0
      %6954 = vmatprep.subr.mxu0 0.0
      %6955 = vmatpush1.msra.mxu0 0.0
      %6956 = vmatprep.subr.mxu0 0.0
      %6957 = vmatpush1.msra.mxu0 0.0
      %6958 = vmatprep.subr.mxu0 0.0
      %6959 = vmatpush1.msra.mxu0 0.0
      %6960 = vmatprep.subr.mxu0 0.0
      %6961 = vmatpush1.msra.mxu0 0.0
      %6962 = vmatprep.subr.mxu0 0.0
      %6963 = vmatpush1.msra.mxu0 0.0
      %6964 = vmatprep.subr.mxu0 0.0
      %6965 = vmatpush1.msra.mxu0 0.0
      %6966 = vmatprep.subr.mxu0 0.0
      %6967 = vmatpush1.msra.mxu0 0.0
      %6968 = vmatprep.subr.mxu0 0.0
      %6969 = vmatpush1.msra.mxu0 0.0
      %6970 = vmatprep.subr.mxu0 0.0
      %6971 = vmatpush1.msra.mxu0 0.0
      %6972 = vmatprep.subr.mxu0 0.0
      %6973 = vmatpush1.msra.mxu0 0.0
      %6974 = vmatprep.subr.mxu0 0.0
      %6975 = vmatpush1.msra.mxu0 0.0
      %6976 = vmatprep.subr.mxu0 0.0
      %6977 = vmatpush1.msra.mxu0 0.0
      %6978 = vmatprep.subr.mxu0 0.0
      %6979 = vmatpush1.msra.mxu0 0.0
      %6980 = vmatprep.subr.mxu0 0.0
      %6981 = vmatpush1.msra.mxu0 0.0
      %6982 = vmatprep.subr.mxu0 0.0
      %6983 = vmatpush1.msra.mxu0 0.0
      %6984 = vmatprep.subr.mxu0 0.0
      %6985 = vmatpush1.msra.mxu0 0.0
      %6986 = vmatprep.subr.mxu0 0.0
      %6987 = vmatpush1.msra.mxu0 0.0
      %6988 = vmatprep.subr.mxu0 0.0
      %6989 = vmatpush1.msra.mxu0 0.0
      %6990 = vmatprep.subr.mxu0 0.0
      %6991 = vmatpush1.msra.mxu0 0.0
      %6992 = vmatprep.subr.mxu0 0.0
      %6993 = vmatpush1.msra.mxu0 0.0
      %6994 = vmatprep.subr.mxu0 0.0
      %6995 = vmatpush1.msra.mxu0 0.0
      %6996 = vmatprep.subr.mxu0 0.0
      %6997 = vmatpush1.msra.mxu0 0.0
      %6998 = vmatprep.mubr.f32.mxu0 0.0
      %6999 = vmatmul.mubr.f32.gmra.mrb[0].mxu0 %v6929
      %v7000 = vpop.f32.mrb[0].mxu0
      %v7001 = vadd.f32 0.0, %v7000
      %v7002 = vpop.f32.mrb[0].mxu0
      %7003 = vmatprep.mubr.f32.mxu0 0.0
      %7004 = vmatmul.mubr.f32.gmra.mrb[0].mxu0 %v6932
      %v7005 = vpop.f32.mrb[0].mxu0
      %v7006 = vadd.f32 0.0, %v7005
      %v7007 = vpop.f32.mrb[0].mxu0
      %7008 = vdwg.mxu0
      %s7009 = scalar_lea.vmem %s12, 480
      %v7010 = vld [vmem:[%s7009] sm:$0xff]
      %v7011 = vld [vmem:[%s7009 + $0x8] sm:$0xff]
      %v7012 = vld [vmem:[%s7009 + $0x10] sm:$0xff]
      %v7013 = vld [vmem:[%s7009 + $0x18] sm:$0xff]
      %v7015 = vsel %vm769, %v7001, 0
      %v7018 = vsel %vm769, %v7006, 0
      %7020 = vmatprep.subr.mxu0 0.0
      %7021 = vmatpush1.msra.mxu0 %v7010
      %7022 = vmatprep.subr.mxu0 0.0
      %7023 = vmatpush1.msra.mxu0 %v7011
      %7024 = vmatprep.subr.mxu0 0.0
      %7025 = vmatpush1.msra.mxu0 %v7012
      %7026 = vmatprep.subr.mxu0 0.0
      %7027 = vmatpush1.msra.mxu0 %v7013
      %7028 = vmatprep.subr.mxu0 0.0
      %7029 = vmatpush1.msra.mxu0 0.0
      %7030 = vmatprep.subr.mxu0 0.0
      %7031 = vmatpush1.msra.mxu0 0.0
      %7032 = vmatprep.subr.mxu0 0.0
      %7033 = vmatpush1.msra.mxu0 0.0
      %7034 = vmatprep.subr.mxu0 0.0
      %7035 = vmatpush1.msra.mxu0 0.0
      %7036 = vmatprep.subr.mxu0 0.0
      %7037 = vmatpush1.msra.mxu0 0.0
      %7038 = vmatprep.subr.mxu0 0.0
      %7039 = vmatpush1.msra.mxu0 0.0
      %7040 = vmatprep.subr.mxu0 0.0
      %7041 = vmatpush1.msra.mxu0 0.0
      %7042 = vmatprep.subr.mxu0 0.0
      %7043 = vmatpush1.msra.mxu0 0.0
      %7044 = vmatprep.subr.mxu0 0.0
      %7045 = vmatpush1.msra.mxu0 0.0
      %7046 = vmatprep.subr.mxu0 0.0
      %7047 = vmatpush1.msra.mxu0 0.0
      %7048 = vmatprep.subr.mxu0 0.0
      %7049 = vmatpush1.msra.mxu0 0.0
      %7050 = vmatprep.subr.mxu0 0.0
      %7051 = vmatpush1.msra.mxu0 0.0
      %7052 = vmatprep.subr.mxu0 0.0
      %7053 = vmatpush1.msra.mxu0 0.0
      %7054 = vmatprep.subr.mxu0 0.0
      %7055 = vmatpush1.msra.mxu0 0.0
      %7056 = vmatprep.subr.mxu0 0.0
      %7057 = vmatpush1.msra.mxu0 0.0
      %7058 = vmatprep.subr.mxu0 0.0
      %7059 = vmatpush1.msra.mxu0 0.0
      %7060 = vmatprep.subr.mxu0 0.0
      %7061 = vmatpush1.msra.mxu0 0.0
      %7062 = vmatprep.subr.mxu0 0.0
      %7063 = vmatpush1.msra.mxu0 0.0
      %7064 = vmatprep.subr.mxu0 0.0
      %7065 = vmatpush1.msra.mxu0 0.0
      %7066 = vmatprep.subr.mxu0 0.0
      %7067 = vmatpush1.msra.mxu0 0.0
      %7068 = vmatprep.subr.mxu0 0.0
      %7069 = vmatpush1.msra.mxu0 0.0
      %7070 = vmatprep.subr.mxu0 0.0
      %7071 = vmatpush1.msra.mxu0 0.0
      %7072 = vmatprep.subr.mxu0 0.0
      %7073 = vmatpush1.msra.mxu0 0.0
      %7074 = vmatprep.subr.mxu0 0.0
      %7075 = vmatpush1.msra.mxu0 0.0
      %7076 = vmatprep.subr.mxu0 0.0
      %7077 = vmatpush1.msra.mxu0 0.0
      %7078 = vmatprep.subr.mxu0 0.0
      %7079 = vmatpush1.msra.mxu0 0.0
      %7080 = vmatprep.subr.mxu0 0.0
      %7081 = vmatpush1.msra.mxu0 0.0
      %7082 = vmatprep.subr.mxu0 0.0
      %7083 = vmatpush1.msra.mxu0 0.0
      %7084 = vmatprep.mubr.f32.mxu0 0.0
      %7085 = vmatmul.mubr.f32.gmra.mrb[0].mxu0 %v7015
      %v7086 = vpop.f32.mrb[0].mxu0
      %v7087 = vadd.f32 0.0, %v7086
      %v7088 = vpop.f32.mrb[0].mxu0
      %7089 = vmatprep.mubr.f32.mxu0 0.0
      %7090 = vmatmul.mubr.f32.gmra.mrb[0].mxu0 %v7018
      %v7091 = vpop.f32.mrb[0].mxu0
      %v7092 = vadd.f32 0.0, %v7091
      %v7093 = vpop.f32.mrb[0].mxu0
      %7094 = vdwg.mxu0
      %v7095 = vadd.f32 %v6924, %v7087
      %v7096 = vadd.f32 %v6925, %v7092
      %v7097 = vld [vmem:[%s3019] sm:$0xff]
      %v7098 = vld [vmem:[%s3019 + $0x8] sm:$0xff]
      %v7100 = vsel %vm891, %v7097, 0
      %v7103 = vsel %vm891, %v7098, 0
      %7105 = vmatprep.subr.mxu0 0.0
      %7106 = vmatpush1.msra.mxu0 %v5902
      %7107 = vmatprep.subr.mxu0 0.0
      %7108 = vmatpush1.msra.mxu0 %v5903
      %7109 = vmatprep.subr.mxu0 0.0
      %7110 = vmatpush1.msra.mxu0 0.0
      %7111 = vmatprep.subr.mxu0 0.0
      %7112 = vmatpush1.msra.mxu0 0.0
      %7113 = vmatprep.subr.mxu0 0.0
      %7114 = vmatpush1.msra.mxu0 0.0
      %7115 = vmatprep.subr.mxu0 0.0
      %7116 = vmatpush1.msra.mxu0 0.0
      %7117 = vmatprep.subr.mxu0 0.0
      %7118 = vmatpush1.msra.mxu0 0.0
      %7119 = vmatprep.subr.mxu0 0.0
      %7120 = vmatpush1.msra.mxu0 0.0
      %7121 = vmatprep.subr.mxu0 0.0
      %7122 = vmatpush1.msra.mxu0 0.0
      %7123 = vmatprep.subr.mxu0 0.0
      %7124 = vmatpush1.msra.mxu0 0.0
      %7125 = vmatprep.subr.mxu0 0.0
      %7126 = vmatpush1.msra.mxu0 0.0
      %7127 = vmatprep.subr.mxu0 0.0
      %7128 = vmatpush1.msra.mxu0 0.0
      %7129 = vmatprep.subr.mxu0 0.0
      %7130 = vmatpush1.msra.mxu0 0.0
      %7131 = vmatprep.subr.mxu0 0.0
      %7132 = vmatpush1.msra.mxu0 0.0
      %7133 = vmatprep.subr.mxu0 0.0
      %7134 = vmatpush1.msra.mxu0 0.0
      %7135 = vmatprep.subr.mxu0 0.0
      %7136 = vmatpush1.msra.mxu0 0.0
      %7137 = vmatprep.subr.mxu0 0.0
      %7138 = vmatpush1.msra.mxu0 0.0
      %7139 = vmatprep.subr.mxu0 0.0
      %7140 = vmatpush1.msra.mxu0 0.0
      %7141 = vmatprep.subr.mxu0 0.0
      %7142 = vmatpush1.msra.mxu0 0.0
      %7143 = vmatprep.subr.mxu0 0.0
      %7144 = vmatpush1.msra.mxu0 0.0
      %7145 = vmatprep.subr.mxu0 0.0
      %7146 = vmatpush1.msra.mxu0 0.0
      %7147 = vmatprep.subr.mxu0 0.0
      %7148 = vmatpush1.msra.mxu0 0.0
      %7149 = vmatprep.subr.mxu0 0.0
      %7150 = vmatpush1.msra.mxu0 0.0
      %7151 = vmatprep.subr.mxu0 0.0
      %7152 = vmatpush1.msra.mxu0 0.0
      %7153 = vmatprep.subr.mxu0 0.0
      %7154 = vmatpush1.msra.mxu0 0.0
      %7155 = vmatprep.subr.mxu0 0.0
      %7156 = vmatpush1.msra.mxu0 0.0
      %7157 = vmatprep.subr.mxu0 0.0
      %7158 = vmatpush1.msra.mxu0 0.0
      %7159 = vmatprep.subr.mxu0 0.0
      %7160 = vmatpush1.msra.mxu0 0.0
      %7161 = vmatprep.subr.mxu0 0.0
      %7162 = vmatpush1.msra.mxu0 0.0
      %7163 = vmatprep.subr.mxu0 0.0
      %7164 = vmatpush1.msra.mxu0 0.0
      %7165 = vmatprep.subr.mxu0 0.0
      %7166 = vmatpush1.msra.mxu0 0.0
      %7167 = vmatprep.subr.mxu0 0.0
      %7168 = vmatpush1.msra.mxu0 0.0
      %7169 = vmatprep.mubr.f32.mxu0 0.0
      %7170 = vmatmul.mubr.f32.gmra.mrb[0].mxu0 %v7100
      %v7171 = vpop.f32.mrb[0].mxu0
      %v7172 = vadd.f32 0.0, %v7171
      %v7173 = vpop.f32.mrb[0].mxu0
      %7174 = vmatprep.mubr.f32.mxu0 0.0
      %7175 = vmatmul.mubr.f32.gmra.mrb[0].mxu0 %v7103
      %v7176 = vpop.f32.mrb[0].mxu0
      %v7177 = vadd.f32 0.0, %v7176
      %v7178 = vpop.f32.mrb[0].mxu0
      %7179 = vdwg.mxu0
      %s7180 = scalar_lea.vmem %s12, 512
      %v7181 = vld [vmem:[%s7180] sm:$0xff]
      %v7182 = vld [vmem:[%s7180 + $0x8] sm:$0xff]
      %v7183 = vld [vmem:[%s7180 + $0x10] sm:$0xff]
      %v7184 = vld [vmem:[%s7180 + $0x18] sm:$0xff]
      %v7186 = vsel %vm769, %v7172, 0
      %v7189 = vsel %vm769, %v7177, 0
      %7191 = vmatprep.subr.mxu0 0.0
      %7192 = vmatpush1.msra.mxu0 %v7181
      %7193 = vmatprep.subr.mxu0 0.0
      %7194 = vmatpush1.msra.mxu0 %v7182
      %7195 = vmatprep.subr.mxu0 0.0
      %7196 = vmatpush1.msra.mxu0 %v7183
      %7197 = vmatprep.subr.mxu0 0.0
      %7198 = vmatpush1.msra.mxu0 %v7184
      %7199 = vmatprep.subr.mxu0 0.0
      %7200 = vmatpush1.msra.mxu0 0.0
      %7201 = vmatprep.subr.mxu0 0.0
      %7202 = vmatpush1.msra.mxu0 0.0
      %7203 = vmatprep.subr.mxu0 0.0
      %7204 = vmatpush1.msra.mxu0 0.0
      %7205 = vmatprep.subr.mxu0 0.0
      %7206 = vmatpush1.msra.mxu0 0.0
      %7207 = vmatprep.subr.mxu0 0.0
      %7208 = vmatpush1.msra.mxu0 0.0
      %7209 = vmatprep.subr.mxu0 0.0
      %7210 = vmatpush1.msra.mxu0 0.0
      %7211 = vmatprep.subr.mxu0 0.0
      %7212 = vmatpush1.msra.mxu0 0.0
      %7213 = vmatprep.subr.mxu0 0.0
      %7214 = vmatpush1.msra.mxu0 0.0
      %7215 = vmatprep.subr.mxu0 0.0
      %7216 = vmatpush1.msra.mxu0 0.0
      %7217 = vmatprep.subr.mxu0 0.0
      %7218 = vmatpush1.msra.mxu0 0.0
      %7219 = vmatprep.subr.mxu0 0.0
      %7220 = vmatpush1.msra.mxu0 0.0
      %7221 = vmatprep.subr.mxu0 0.0
      %7222 = vmatpush1.msra.mxu0 0.0
      %7223 = vmatprep.subr.mxu0 0.0
      %7224 = vmatpush1.msra.mxu0 0.0
      %7225 = vmatprep.subr.mxu0 0.0
      %7226 = vmatpush1.msra.mxu0 0.0
      %7227 = vmatprep.subr.mxu0 0.0
      %7228 = vmatpush1.msra.mxu0 0.0
      %7229 = vmatprep.subr.mxu0 0.0
      %7230 = vmatpush1.msra.mxu0 0.0
      %7231 = vmatprep.subr.mxu0 0.0
      %7232 = vmatpush1.msra.mxu0 0.0
      %7233 = vmatprep.subr.mxu0 0.0
      %7234 = vmatpush1.msra.mxu0 0.0
      %7235 = vmatprep.subr.mxu0 0.0
      %7236 = vmatpush1.msra.mxu0 0.0
      %7237 = vmatprep.subr.mxu0 0.0
      %7238 = vmatpush1.msra.mxu0 0.0
      %7239 = vmatprep.subr.mxu0 0.0
      %7240 = vmatpush1.msra.mxu0 0.0
      %7241 = vmatprep.subr.mxu0 0.0
      %7242 = vmatpush1.msra.mxu0 0.0
      %7243 = vmatprep.subr.mxu0 0.0
      %7244 = vmatpush1.msra.mxu0 0.0
      %7245 = vmatprep.subr.mxu0 0.0
      %7246 = vmatpush1.msra.mxu0 0.0
      %7247 = vmatprep.subr.mxu0 0.0
      %7248 = vmatpush1.msra.mxu0 0.0
      %7249 = vmatprep.subr.mxu0 0.0
      %7250 = vmatpush1.msra.mxu0 0.0
      %7251 = vmatprep.subr.mxu0 0.0
      %7252 = vmatpush1.msra.mxu0 0.0
      %7253 = vmatprep.subr.mxu0 0.0
      %7254 = vmatpush1.msra.mxu0 0.0
      %7255 = vmatprep.mubr.f32.mxu0 0.0
      %7256 = vmatmul.mubr.f32.gmra.mrb[0].mxu0 %v7186
      %v7257 = vpop.f32.mrb[0].mxu0
      %v7258 = vadd.f32 0.0, %v7257
      %v7259 = vpop.f32.mrb[0].mxu0
      %7260 = vmatprep.mubr.f32.mxu0 0.0
      %7261 = vmatmul.mubr.f32.gmra.mrb[0].mxu0 %v7189
      %v7262 = vpop.f32.mrb[0].mxu0
      %v7263 = vadd.f32 0.0, %v7262
      %v7264 = vpop.f32.mrb[0].mxu0
      %7265 = vdwg.mxu0
      %v7266 = vadd.f32 %v7095, %v7258
      %v7267 = vadd.f32 %v7096, %v7263
      %v7268 = vld [vmem:[%s3191] sm:$0xff]
      %v7269 = vld [vmem:[%s3191 + $0x8] sm:$0xff]
      %v7271 = vsel %vm891, %v7268, 0
      %v7274 = vsel %vm891, %v7269, 0
      %7276 = vmatprep.subr.mxu0 0.0
      %7277 = vmatpush1.msra.mxu0 %v5902
      %7278 = vmatprep.subr.mxu0 0.0
      %7279 = vmatpush1.msra.mxu0 %v5903
      %7280 = vmatprep.subr.mxu0 0.0
      %7281 = vmatpush1.msra.mxu0 0.0
      %7282 = vmatprep.subr.mxu0 0.0
      %7283 = vmatpush1.msra.mxu0 0.0
      %7284 = vmatprep.subr.mxu0 0.0
      %7285 = vmatpush1.msra.mxu0 0.0
      %7286 = vmatprep.subr.mxu0 0.0
      %7287 = vmatpush1.msra.mxu0 0.0
      %7288 = vmatprep.subr.mxu0 0.0
      %7289 = vmatpush1.msra.mxu0 0.0
      %7290 = vmatprep.subr.mxu0 0.0
      %7291 = vmatpush1.msra.mxu0 0.0
      %7292 = vmatprep.subr.mxu0 0.0
      %7293 = vmatpush1.msra.mxu0 0.0
      %7294 = vmatprep.subr.mxu0 0.0
      %7295 = vmatpush1.msra.mxu0 0.0
      %7296 = vmatprep.subr.mxu0 0.0
      %7297 = vmatpush1.msra.mxu0 0.0
      %7298 = vmatprep.subr.mxu0 0.0
      %7299 = vmatpush1.msra.mxu0 0.0
      %7300 = vmatprep.subr.mxu0 0.0
      %7301 = vmatpush1.msra.mxu0 0.0
      %7302 = vmatprep.subr.mxu0 0.0
      %7303 = vmatpush1.msra.mxu0 0.0
      %7304 = vmatprep.subr.mxu0 0.0
      %7305 = vmatpush1.msra.mxu0 0.0
      %7306 = vmatprep.subr.mxu0 0.0
      %7307 = vmatpush1.msra.mxu0 0.0
      %7308 = vmatprep.subr.mxu0 0.0
      %7309 = vmatpush1.msra.mxu0 0.0
      %7310 = vmatprep.subr.mxu0 0.0
      %7311 = vmatpush1.msra.mxu0 0.0
      %7312 = vmatprep.subr.mxu0 0.0
      %7313 = vmatpush1.msra.mxu0 0.0
      %7314 = vmatprep.subr.mxu0 0.0
      %7315 = vmatpush1.msra.mxu0 0.0
      %7316 = vmatprep.subr.mxu0 0.0
      %7317 = vmatpush1.msra.mxu0 0.0
      %7318 = vmatprep.subr.mxu0 0.0
      %7319 = vmatpush1.msra.mxu0 0.0
      %7320 = vmatprep.subr.mxu0 0.0
      %7321 = vmatpush1.msra.mxu0 0.0
      %7322 = vmatprep.subr.mxu0 0.0
      %7323 = vmatpush1.msra.mxu0 0.0
      %7324 = vmatprep.subr.mxu0 0.0
      %7325 = vmatpush1.msra.mxu0 0.0
      %7326 = vmatprep.subr.mxu0 0.0
      %7327 = vmatpush1.msra.mxu0 0.0
      %7328 = vmatprep.subr.mxu0 0.0
      %7329 = vmatpush1.msra.mxu0 0.0
      %7330 = vmatprep.subr.mxu0 0.0
      %7331 = vmatpush1.msra.mxu0 0.0
      %7332 = vmatprep.subr.mxu0 0.0
      %7333 = vmatpush1.msra.mxu0 0.0
      %7334 = vmatprep.subr.mxu0 0.0
      %7335 = vmatpush1.msra.mxu0 0.0
      %7336 = vmatprep.subr.mxu0 0.0
      %7337 = vmatpush1.msra.mxu0 0.0
      %7338 = vmatprep.subr.mxu0 0.0
      %7339 = vmatpush1.msra.mxu0 0.0
      %7340 = vmatprep.mubr.f32.mxu0 0.0
      %7341 = vmatmul.mubr.f32.gmra.mrb[0].mxu0 %v7271
      %v7342 = vpop.f32.mrb[0].mxu0
      %v7343 = vadd.f32 0.0, %v7342
      %v7344 = vpop.f32.mrb[0].mxu0
      %7345 = vmatprep.mubr.f32.mxu0 0.0
      %7346 = vmatmul.mubr.f32.gmra.mrb[0].mxu0 %v7274
      %v7347 = vpop.f32.mrb[0].mxu0
      %v7348 = vadd.f32 0.0, %v7347
      %v7349 = vpop.f32.mrb[0].mxu0
      %7350 = vdwg.mxu0
      %s7351 = scalar_lea.vmem %s12, 544
      %v7352 = vld [vmem:[%s7351] sm:$0xff]
      %v7353 = vld [vmem:[%s7351 + $0x8] sm:$0xff]
      %v7354 = vld [vmem:[%s7351 + $0x10] sm:$0xff]
      %v7355 = vld [vmem:[%s7351 + $0x18] sm:$0xff]
      %v7357 = vsel %vm769, %v7343, 0
      %v7360 = vsel %vm769, %v7348, 0
      %7362 = vmatprep.subr.mxu0 0.0
      %7363 = vmatpush1.msra.mxu0 %v7352
      %7364 = vmatprep.subr.mxu0 0.0
      %7365 = vmatpush1.msra.mxu0 %v7353
      %7366 = vmatprep.subr.mxu0 0.0
      %7367 = vmatpush1.msra.mxu0 %v7354
      %7368 = vmatprep.subr.mxu0 0.0
      %7369 = vmatpush1.msra.mxu0 %v7355
      %7370 = vmatprep.subr.mxu0 0.0
      %7371 = vmatpush1.msra.mxu0 0.0
      %7372 = vmatprep.subr.mxu0 0.0
      %7373 = vmatpush1.msra.mxu0 0.0
      %7374 = vmatprep.subr.mxu0 0.0
      %7375 = vmatpush1.msra.mxu0 0.0
      %7376 = vmatprep.subr.mxu0 0.0
      %7377 = vmatpush1.msra.mxu0 0.0
      %7378 = vmatprep.subr.mxu0 0.0
      %7379 = vmatpush1.msra.mxu0 0.0
      %7380 = vmatprep.subr.mxu0 0.0
      %7381 = vmatpush1.msra.mxu0 0.0
      %7382 = vmatprep.subr.mxu0 0.0
      %7383 = vmatpush1.msra.mxu0 0.0
      %7384 = vmatprep.subr.mxu0 0.0
      %7385 = vmatpush1.msra.mxu0 0.0
      %7386 = vmatprep.subr.mxu0 0.0
      %7387 = vmatpush1.msra.mxu0 0.0
      %7388 = vmatprep.subr.mxu0 0.0
      %7389 = vmatpush1.msra.mxu0 0.0
      %7390 = vmatprep.subr.mxu0 0.0
      %7391 = vmatpush1.msra.mxu0 0.0
      %7392 = vmatprep.subr.mxu0 0.0
      %7393 = vmatpush1.msra.mxu0 0.0
      %7394 = vmatprep.subr.mxu0 0.0
      %7395 = vmatpush1.msra.mxu0 0.0
      %7396 = vmatprep.subr.mxu0 0.0
      %7397 = vmatpush1.msra.mxu0 0.0
      %7398 = vmatprep.subr.mxu0 0.0
      %7399 = vmatpush1.msra.mxu0 0.0
      %7400 = vmatprep.subr.mxu0 0.0
      %7401 = vmatpush1.msra.mxu0 0.0
      %7402 = vmatprep.subr.mxu0 0.0
      %7403 = vmatpush1.msra.mxu0 0.0
      %7404 = vmatprep.subr.mxu0 0.0
      %7405 = vmatpush1.msra.mxu0 0.0
      %7406 = vmatprep.subr.mxu0 0.0
      %7407 = vmatpush1.msra.mxu0 0.0
      %7408 = vmatprep.subr.mxu0 0.0
      %7409 = vmatpush1.msra.mxu0 0.0
      %7410 = vmatprep.subr.mxu0 0.0
      %7411 = vmatpush1.msra.mxu0 0.0
      %7412 = vmatprep.subr.mxu0 0.0
      %7413 = vmatpush1.msra.mxu0 0.0
      %7414 = vmatprep.subr.mxu0 0.0
      %7415 = vmatpush1.msra.mxu0 0.0
      %7416 = vmatprep.subr.mxu0 0.0
      %7417 = vmatpush1.msra.mxu0 0.0
      %7418 = vmatprep.subr.mxu0 0.0
      %7419 = vmatpush1.msra.mxu0 0.0
      %7420 = vmatprep.subr.mxu0 0.0
      %7421 = vmatpush1.msra.mxu0 0.0
      %7422 = vmatprep.subr.mxu0 0.0
      %7423 = vmatpush1.msra.mxu0 0.0
      %7424 = vmatprep.subr.mxu0 0.0
      %7425 = vmatpush1.msra.mxu0 0.0
      %7426 = vmatprep.mubr.f32.mxu0 0.0
      %7427 = vmatmul.mubr.f32.gmra.mrb[0].mxu0 %v7357
      %v7428 = vpop.f32.mrb[0].mxu0
      %v7429 = vadd.f32 0.0, %v7428
      %v7430 = vpop.f32.mrb[0].mxu0
      %7431 = vmatprep.mubr.f32.mxu0 0.0
      %7432 = vmatmul.mubr.f32.gmra.mrb[0].mxu0 %v7360
      %v7433 = vpop.f32.mrb[0].mxu0
      %v7434 = vadd.f32 0.0, %v7433
      %v7435 = vpop.f32.mrb[0].mxu0
      %7436 = vdwg.mxu0
      %v7437 = vadd.f32 %v7266, %v7429
      %v7438 = vadd.f32 %v7267, %v7434
      %s7439 = scalar_lea.vmem %s13, 1
      %v7440 = vld [vmem:[%s7439] sm:$0x1]
      %v7442 = vlaneseq
      %v7443 = vshrl.u32 %v7442, 7
      %v7444 = vsub.s32 0, %v7443
      %v7445 = vrot.slane %v7440, %v7444
      %v7447 = vadd.f32 %v7437, %v7445
      %v7448 = vadd.f32 %v7438, %v7445
      %v7449 = vmax.f32 %v7447, 0.0
      %v7450 = vmax.f32 %v7448, 0.0
      %v7451 = vld [vmem:[%s10] sm:$0xff]
      %v7452 = vld [vmem:[%s10 + $0x8] sm:$0xff]
      %v7453 = vld [vmem:[%s10 + $0x10] sm:$0xff]
      %v7454 = vld [vmem:[%s10 + $0x18] sm:$0xff]
      %v7455 = vld [vmem:[%s10 + $0x20] sm:$0xff]
      %v7456 = vld [vmem:[%s10 + $0x28] sm:$0xff]
      %v7457 = vld [vmem:[%s10 + $0x30] sm:$0x1]
      %v7458 = vld [vmem:[%s3381] sm:$0xff]
      %v7459 = vld [vmem:[%s3381 + $0x8] sm:$0xff]
      %v7460 = vld [vmem:[%s3381 + $0x10] sm:$0xff]
      %v7461 = vld [vmem:[%s3381 + $0x18] sm:$0xff]
      %v7462 = vld [vmem:[%s3381 + $0x20] sm:$0xff]
      %v7463 = vld [vmem:[%s3381 + $0x28] sm:$0xff]
      %v7464 = vld [vmem:[%s3381 + $0x30] sm:$0x1]
      %7467 = vrot.lane.b32.xlu0 %v7449, 120
      %v7468 = vpop.permute.xlu0 %7467
      %7469 = vrot.lane.b32.xlu0 %v7450, 120
      %v7470 = vpop.permute.xlu0 %7469
      %v7474 = vsel %vm891, %v7458, 0
      %v7477 = vsel %vm891, %v7459, 0
      %v7480 = vsel %vm891, %v7460, 0
      %v7483 = vsel %vm891, %v7461, 0
      %v7486 = vsel %vm891, %v7462, 0
      %v7489 = vsel %vm891, %v7463, 0
      %v7492 = vsel %vm891, %v7464, 0
      %7494 = vmatprep.subr.mxu0 0.0
      %7495 = vmatpush1.msra.mxu0 %v7468
      %7496 = vmatprep.subr.mxu0 0.0
      %7497 = vmatpush1.msra.mxu0 %v7470
      %7498 = vmatprep.subr.mxu0 0.0
      %7499 = vmatpush1.msra.mxu0 0.0
      %7500 = vmatprep.subr.mxu0 0.0
      %7501 = vmatpush1.msra.mxu0 0.0
      %7502 = vmatprep.subr.mxu0 0.0
      %7503 = vmatpush1.msra.mxu0 0.0
      %7504 = vmatprep.subr.mxu0 0.0
      %7505 = vmatpush1.msra.mxu0 0.0
      %7506 = vmatprep.subr.mxu0 0.0
      %7507 = vmatpush1.msra.mxu0 0.0
      %7508 = vmatprep.subr.mxu0 0.0
      %7509 = vmatpush1.msra.mxu0 0.0
      %7510 = vmatprep.subr.mxu0 0.0
      %7511 = vmatpush1.msra.mxu0 0.0
      %7512 = vmatprep.subr.mxu0 0.0
      %7513 = vmatpush1.msra.mxu0 0.0
      %7514 = vmatprep.subr.mxu0 0.0
      %7515 = vmatpush1.msra.mxu0 0.0
      %7516 = vmatprep.subr.mxu0 0.0
      %7517 = vmatpush1.msra.mxu0 0.0
      %7518 = vmatprep.subr.mxu0 0.0
      %7519 = vmatpush1.msra.mxu0 0.0
      %7520 = vmatprep.subr.mxu0 0.0
      %7521 = vmatpush1.msra.mxu0 0.0
      %7522 = vmatprep.subr.mxu0 0.0
      %7523 = vmatpush1.msra.mxu0 0.0
      %7524 = vmatprep.subr.mxu0 0.0
      %7525 = vmatpush1.msra.mxu0 0.0
      %7526 = vmatprep.subr.mxu0 0.0
      %7527 = vmatpush1.msra.mxu0 0.0
      %7528 = vmatprep.subr.mxu0 0.0
      %7529 = vmatpush1.msra.mxu0 0.0
      %7530 = vmatprep.subr.mxu0 0.0
      %7531 = vmatpush1.msra.mxu0 0.0
      %7532 = vmatprep.subr.mxu0 0.0
      %7533 = vmatpush1.msra.mxu0 0.0
      %7534 = vmatprep.subr.mxu0 0.0
      %7535 = vmatpush1.msra.mxu0 0.0
      %7536 = vmatprep.subr.mxu0 0.0
      %7537 = vmatpush1.msra.mxu0 0.0
      %7538 = vmatprep.subr.mxu0 0.0
      %7539 = vmatpush1.msra.mxu0 0.0
      %7540 = vmatprep.subr.mxu0 0.0
      %7541 = vmatpush1.msra.mxu0 0.0
      %7542 = vmatprep.subr.mxu0 0.0
      %7543 = vmatpush1.msra.mxu0 0.0
      %7544 = vmatprep.subr.mxu0 0.0
      %7545 = vmatpush1.msra.mxu0 0.0
      %7546 = vmatprep.subr.mxu0 0.0
      %7547 = vmatpush1.msra.mxu0 0.0
      %7548 = vmatprep.subr.mxu0 0.0
      %7549 = vmatpush1.msra.mxu0 0.0
      %7550 = vmatprep.subr.mxu0 0.0
      %7551 = vmatpush1.msra.mxu0 0.0
      %7552 = vmatprep.subr.mxu0 0.0
      %7553 = vmatpush1.msra.mxu0 0.0
      %7554 = vmatprep.subr.mxu0 0.0
      %7555 = vmatpush1.msra.mxu0 0.0
      %7556 = vmatprep.subr.mxu0 0.0
      %7557 = vmatpush1.msra.mxu0 0.0
      %7558 = vmatprep.mubr.f32.mxu0 0.0
      %7559 = vmatmul.mubr.f32.gmra.mrb[0].mxu0 %v7474
      %v7560 = vpop.f32.mrb[0].mxu0
      %v7561 = vadd.f32 0.0, %v7560
      %v7562 = vpop.f32.mrb[0].mxu0
      %7563 = vmatprep.mubr.f32.mxu0 0.0
      %7564 = vmatmul.mubr.f32.gmra.mrb[0].mxu0 %v7477
      %v7565 = vpop.f32.mrb[0].mxu0
      %v7566 = vadd.f32 0.0, %v7565
      %v7567 = vpop.f32.mrb[0].mxu0
      %7568 = vmatprep.mubr.f32.mxu0 0.0
      %7569 = vmatmul.mubr.f32.gmra.mrb[0].mxu0 %v7480
      %v7570 = vpop.f32.mrb[0].mxu0
      %v7571 = vadd.f32 0.0, %v7570
      %v7572 = vpop.f32.mrb[0].mxu0
      %7573 = vmatprep.mubr.f32.mxu0 0.0
      %7574 = vmatmul.mubr.f32.gmra.mrb[0].mxu0 %v7483
      %v7575 = vpop.f32.mrb[0].mxu0
      %v7576 = vadd.f32 0.0, %v7575
      %v7577 = vpop.f32.mrb[0].mxu0
      %7578 = vmatprep.mubr.f32.mxu0 0.0
      %7579 = vmatmul.mubr.f32.gmra.mrb[0].mxu0 %v7486
      %v7580 = vpop.f32.mrb[0].mxu0
      %v7581 = vadd.f32 0.0, %v7580
      %v7582 = vpop.f32.mrb[0].mxu0
      %7583 = vmatprep.mubr.f32.mxu0 0.0
      %7584 = vmatmul.mubr.f32.gmra.mrb[0].mxu0 %v7489
      %v7585 = vpop.f32.mrb[0].mxu0
      %v7586 = vadd.f32 0.0, %v7585
      %v7587 = vpop.f32.mrb[0].mxu0
      %7588 = vmatprep.mubr.f32.mxu0 0.0
      %7589 = vmatmul.mubr.f32.gmra.mrb[0].mxu0 %v7492
      %v7590 = vpop.f32.mrb[0].mxu0
      %v7591 = vadd.f32 0.0, %v7590
      %v7592 = vpop.f32.mrb[0].mxu0
      %7593 = vdwg.mxu0
      %v7595 = vsel %vm891, %v7451, 0
      %v7598 = vsel %vm891, %v7452, 0
      %v7601 = vsel %vm891, %v7453, 0
      %v7604 = vsel %vm891, %v7454, 0
      %v7607 = vsel %vm891, %v7455, 0
      %v7610 = vsel %vm891, %v7456, 0
      %v7613 = vsel %vm891, %v7457, 0
      %7615 = vmatprep.subr.mxu0 0.0
      %7616 = vmatpush1.msra.mxu0 %v7449
      %7617 = vmatprep.subr.mxu0 0.0
      %7618 = vmatpush1.msra.mxu0 %v7450
      %7619 = vmatprep.subr.mxu0 0.0
      %7620 = vmatpush1.msra.mxu0 0.0
      %7621 = vmatprep.subr.mxu0 0.0
      %7622 = vmatpush1.msra.mxu0 0.0
      %7623 = vmatprep.subr.mxu0 0.0
      %7624 = vmatpush1.msra.mxu0 0.0
      %7625 = vmatprep.subr.mxu0 0.0
      %7626 = vmatpush1.msra.mxu0 0.0
      %7627 = vmatprep.subr.mxu0 0.0
      %7628 = vmatpush1.msra.mxu0 0.0
      %7629 = vmatprep.subr.mxu0 0.0
      %7630 = vmatpush1.msra.mxu0 0.0
      %7631 = vmatprep.subr.mxu0 0.0
      %7632 = vmatpush1.msra.mxu0 0.0
      %7633 = vmatprep.subr.mxu0 0.0
      %7634 = vmatpush1.msra.mxu0 0.0
      %7635 = vmatprep.subr.mxu0 0.0
      %7636 = vmatpush1.msra.mxu0 0.0
      %7637 = vmatprep.subr.mxu0 0.0
      %7638 = vmatpush1.msra.mxu0 0.0
      %7639 = vmatprep.subr.mxu0 0.0
      %7640 = vmatpush1.msra.mxu0 0.0
      %7641 = vmatprep.subr.mxu0 0.0
      %7642 = vmatpush1.msra.mxu0 0.0
      %7643 = vmatprep.subr.mxu0 0.0
      %7644 = vmatpush1.msra.mxu0 0.0
      %7645 = vmatprep.subr.mxu0 0.0
      %7646 = vmatpush1.msra.mxu0 0.0
      %7647 = vmatprep.subr.mxu0 0.0
      %7648 = vmatpush1.msra.mxu0 0.0
      %7649 = vmatprep.subr.mxu0 0.0
      %7650 = vmatpush1.msra.mxu0 0.0
      %7651 = vmatprep.subr.mxu0 0.0
      %7652 = vmatpush1.msra.mxu0 0.0
      %7653 = vmatprep.subr.mxu0 0.0
      %7654 = vmatpush1.msra.mxu0 0.0
      %7655 = vmatprep.subr.mxu0 0.0
      %7656 = vmatpush1.msra.mxu0 0.0
      %7657 = vmatprep.subr.mxu0 0.0
      %7658 = vmatpush1.msra.mxu0 0.0
      %7659 = vmatprep.subr.mxu0 0.0
      %7660 = vmatpush1.msra.mxu0 0.0
      %7661 = vmatprep.subr.mxu0 0.0
      %7662 = vmatpush1.msra.mxu0 0.0
      %7663 = vmatprep.subr.mxu0 0.0
      %7664 = vmatpush1.msra.mxu0 0.0
      %7665 = vmatprep.subr.mxu0 0.0
      %7666 = vmatpush1.msra.mxu0 0.0
      %7667 = vmatprep.subr.mxu0 0.0
      %7668 = vmatpush1.msra.mxu0 0.0
      %7669 = vmatprep.subr.mxu0 0.0
      %7670 = vmatpush1.msra.mxu0 0.0
      %7671 = vmatprep.subr.mxu0 0.0
      %7672 = vmatpush1.msra.mxu0 0.0
      %7673 = vmatprep.subr.mxu0 0.0
      %7674 = vmatpush1.msra.mxu0 0.0
      %7675 = vmatprep.subr.mxu0 0.0
      %7676 = vmatpush1.msra.mxu0 0.0
      %7677 = vmatprep.subr.mxu0 0.0
      %7678 = vmatpush1.msra.mxu0 0.0
      %7679 = vmatprep.mubr.f32.mxu0 0.0
      %7680 = vmatmul.mubr.f32.gmra.mrb[0].mxu0 %v7595
      %v7681 = vpop.f32.mrb[0].mxu0
      %v7682 = vadd.f32 %v7561, %v7681
      %v7683 = vpop.f32.mrb[0].mxu0
      %7684 = vmatprep.mubr.f32.mxu0 0.0
      %7685 = vmatmul.mubr.f32.gmra.mrb[0].mxu0 %v7598
      %v7686 = vpop.f32.mrb[0].mxu0
      %v7687 = vadd.f32 %v7566, %v7686
      %v7688 = vpop.f32.mrb[0].mxu0
      %7689 = vmatprep.mubr.f32.mxu0 0.0
      %7690 = vmatmul.mubr.f32.gmra.mrb[0].mxu0 %v7601
      %v7691 = vpop.f32.mrb[0].mxu0
      %v7692 = vadd.f32 %v7571, %v7691
      %v7693 = vpop.f32.mrb[0].mxu0
      %7694 = vmatprep.mubr.f32.mxu0 0.0
      %7695 = vmatmul.mubr.f32.gmra.mrb[0].mxu0 %v7604
      %v7696 = vpop.f32.mrb[0].mxu0
      %v7697 = vadd.f32 %v7576, %v7696
      %v7698 = vpop.f32.mrb[0].mxu0
      %7699 = vmatprep.mubr.f32.mxu0 0.0
      %7700 = vmatmul.mubr.f32.gmra.mrb[0].mxu0 %v7607
      %v7701 = vpop.f32.mrb[0].mxu0
      %v7702 = vadd.f32 %v7581, %v7701
      %v7703 = vpop.f32.mrb[0].mxu0
      %7704 = vmatprep.mubr.f32.mxu0 0.0
      %7705 = vmatmul.mubr.f32.gmra.mrb[0].mxu0 %v7610
      %v7706 = vpop.f32.mrb[0].mxu0
      %v7707 = vadd.f32 %v7586, %v7706
      %v7708 = vpop.f32.mrb[0].mxu0
      %7709 = vmatprep.mubr.f32.mxu0 0.0
      %7710 = vmatmul.mubr.f32.gmra.mrb[0].mxu0 %v7613
      %v7711 = vpop.f32.mrb[0].mxu0
      %v7712 = vadd.f32 %v7591, %v7711
      %v7713 = vpop.f32.mrb[0].mxu0
      %7714 = vdwg.mxu0
      %v7715 = vld [vmem:[%s3639] sm:$0xff]
      %v7716 = vld [vmem:[%s3639 + $0x8] sm:$0xff]
      %v7717 = vld [vmem:[%s3639 + $0x10] sm:$0xff]
      %v7718 = vld [vmem:[%s3639 + $0x18] sm:$0xff]
      %v7719 = vld [vmem:[%s3639 + $0x20] sm:$0xff]
      %v7720 = vld [vmem:[%s3639 + $0x28] sm:$0xff]
      %v7721 = vld [vmem:[%s3639 + $0x30] sm:$0x1]
      %7722 = vrot.lane.b32.xlu0 %v7449, 112
      %v7723 = vpop.permute.xlu0 %7722
      %7724 = vrot.lane.b32.xlu0 %v7450, 112
      %v7725 = vpop.permute.xlu0 %7724
      %v7729 = vsel %vm891, %v7715, 0
      %v7732 = vsel %vm891, %v7716, 0
      %v7735 = vsel %vm891, %v7717, 0
      %v7738 = vsel %vm891, %v7718, 0
      %v7741 = vsel %vm891, %v7719, 0
      %v7744 = vsel %vm891, %v7720, 0
      %v7747 = vsel %vm891, %v7721, 0
      %7749 = vmatprep.subr.mxu0 0.0
      %7750 = vmatpush1.msra.mxu0 %v7723
      %7751 = vmatprep.subr.mxu0 0.0
      %7752 = vmatpush1.msra.mxu0 %v7725
      %7753 = vmatprep.subr.mxu0 0.0
      %7754 = vmatpush1.msra.mxu0 0.0
      %7755 = vmatprep.subr.mxu0 0.0
      %7756 = vmatpush1.msra.mxu0 0.0
      %7757 = vmatprep.subr.mxu0 0.0
      %7758 = vmatpush1.msra.mxu0 0.0
      %7759 = vmatprep.subr.mxu0 0.0
      %7760 = vmatpush1.msra.mxu0 0.0
      %7761 = vmatprep.subr.mxu0 0.0
      %7762 = vmatpush1.msra.mxu0 0.0
      %7763 = vmatprep.subr.mxu0 0.0
      %7764 = vmatpush1.msra.mxu0 0.0
      %7765 = vmatprep.subr.mxu0 0.0
      %7766 = vmatpush1.msra.mxu0 0.0
      %7767 = vmatprep.subr.mxu0 0.0
      %7768 = vmatpush1.msra.mxu0 0.0
      %7769 = vmatprep.subr.mxu0 0.0
      %7770 = vmatpush1.msra.mxu0 0.0
      %7771 = vmatprep.subr.mxu0 0.0
      %7772 = vmatpush1.msra.mxu0 0.0
      %7773 = vmatprep.subr.mxu0 0.0
      %7774 = vmatpush1.msra.mxu0 0.0
      %7775 = vmatprep.subr.mxu0 0.0
      %7776 = vmatpush1.msra.mxu0 0.0
      %7777 = vmatprep.subr.mxu0 0.0
      %7778 = vmatpush1.msra.mxu0 0.0
      %7779 = vmatprep.subr.mxu0 0.0
      %7780 = vmatpush1.msra.mxu0 0.0
      %7781 = vmatprep.subr.mxu0 0.0
      %7782 = vmatpush1.msra.mxu0 0.0
      %7783 = vmatprep.subr.mxu0 0.0
      %7784 = vmatpush1.msra.mxu0 0.0
      %7785 = vmatprep.subr.mxu0 0.0
      %7786 = vmatpush1.msra.mxu0 0.0
      %7787 = vmatprep.subr.mxu0 0.0
      %7788 = vmatpush1.msra.mxu0 0.0
      %7789 = vmatprep.subr.mxu0 0.0
      %7790 = vmatpush1.msra.mxu0 0.0
      %7791 = vmatprep.subr.mxu0 0.0
      %7792 = vmatpush1.msra.mxu0 0.0
      %7793 = vmatprep.subr.mxu0 0.0
      %7794 = vmatpush1.msra.mxu0 0.0
      %7795 = vmatprep.subr.mxu0 0.0
      %7796 = vmatpush1.msra.mxu0 0.0
      %7797 = vmatprep.subr.mxu0 0.0
      %7798 = vmatpush1.msra.mxu0 0.0
      %7799 = vmatprep.subr.mxu0 0.0
      %7800 = vmatpush1.msra.mxu0 0.0
      %7801 = vmatprep.subr.mxu0 0.0
      %7802 = vmatpush1.msra.mxu0 0.0
      %7803 = vmatprep.subr.mxu0 0.0
      %7804 = vmatpush1.msra.mxu0 0.0
      %7805 = vmatprep.subr.mxu0 0.0
      %7806 = vmatpush1.msra.mxu0 0.0
      %7807 = vmatprep.subr.mxu0 0.0
      %7808 = vmatpush1.msra.mxu0 0.0
      %7809 = vmatprep.subr.mxu0 0.0
      %7810 = vmatpush1.msra.mxu0 0.0
      %7811 = vmatprep.subr.mxu0 0.0
      %7812 = vmatpush1.msra.mxu0 0.0
      %7813 = vmatprep.mubr.f32.mxu0 0.0
      %7814 = vmatmul.mubr.f32.gmra.mrb[0].mxu0 %v7729
      %v7815 = vpop.f32.mrb[0].mxu0
      %v7816 = vadd.f32 0.0, %v7815
      %v7817 = vpop.f32.mrb[0].mxu0
      %7818 = vmatprep.mubr.f32.mxu0 0.0
      %7819 = vmatmul.mubr.f32.gmra.mrb[0].mxu0 %v7732
      %v7820 = vpop.f32.mrb[0].mxu0
      %v7821 = vadd.f32 0.0, %v7820
      %v7822 = vpop.f32.mrb[0].mxu0
      %7823 = vmatprep.mubr.f32.mxu0 0.0
      %7824 = vmatmul.mubr.f32.gmra.mrb[0].mxu0 %v7735
      %v7825 = vpop.f32.mrb[0].mxu0
      %v7826 = vadd.f32 0.0, %v7825
      %v7827 = vpop.f32.mrb[0].mxu0
      %7828 = vmatprep.mubr.f32.mxu0 0.0
      %7829 = vmatmul.mubr.f32.gmra.mrb[0].mxu0 %v7738
      %v7830 = vpop.f32.mrb[0].mxu0
      %v7831 = vadd.f32 0.0, %v7830
      %v7832 = vpop.f32.mrb[0].mxu0
      %7833 = vmatprep.mubr.f32.mxu0 0.0
      %7834 = vmatmul.mubr.f32.gmra.mrb[0].mxu0 %v7741
      %v7835 = vpop.f32.mrb[0].mxu0
      %v7836 = vadd.f32 0.0, %v7835
      %v7837 = vpop.f32.mrb[0].mxu0
      %7838 = vmatprep.mubr.f32.mxu0 0.0
      %7839 = vmatmul.mubr.f32.gmra.mrb[0].mxu0 %v7744
      %v7840 = vpop.f32.mrb[0].mxu0
      %v7841 = vadd.f32 0.0, %v7840
      %v7842 = vpop.f32.mrb[0].mxu0
      %7843 = vmatprep.mubr.f32.mxu0 0.0
      %7844 = vmatmul.mubr.f32.gmra.mrb[0].mxu0 %v7747
      %v7845 = vpop.f32.mrb[0].mxu0
      %v7846 = vadd.f32 0.0, %v7845
      %v7847 = vpop.f32.mrb[0].mxu0
      %7848 = vdwg.mxu0
      %v7849 = vadd.f32 %v7682, %v7816
      %v7850 = vadd.f32 %v7687, %v7821
      %v7851 = vadd.f32 %v7692, %v7826
      %v7852 = vadd.f32 %v7697, %v7831
      %v7853 = vadd.f32 %v7702, %v7836
      %v7854 = vadd.f32 %v7707, %v7841
      %v7855 = vadd.f32 %v7712, %v7846
      %v7856 = vld [vmem:[%s3781] sm:$0xff]
      %v7857 = vld [vmem:[%s3781 + $0x8] sm:$0xff]
      %v7858 = vld [vmem:[%s3781 + $0x10] sm:$0xff]
      %v7859 = vld [vmem:[%s3781 + $0x18] sm:$0xff]
      %v7860 = vld [vmem:[%s3781 + $0x20] sm:$0xff]
      %v7861 = vld [vmem:[%s3781 + $0x28] sm:$0xff]
      %v7862 = vld [vmem:[%s3781 + $0x30] sm:$0x1]
      %7863 = vrot.lane.b32.xlu0 %v7449, 104
      %v7864 = vpop.permute.xlu0 %7863
      %7865 = vrot.lane.b32.xlu0 %v7450, 104
      %v7866 = vpop.permute.xlu0 %7865
      %v7870 = vsel %vm891, %v7856, 0
      %v7873 = vsel %vm891, %v7857, 0
      %v7876 = vsel %vm891, %v7858, 0
      %v7879 = vsel %vm891, %v7859, 0
      %v7882 = vsel %vm891, %v7860, 0
      %v7885 = vsel %vm891, %v7861, 0
      %v7888 = vsel %vm891, %v7862, 0
      %7890 = vmatprep.subr.mxu0 0.0
      %7891 = vmatpush1.msra.mxu0 %v7864
      %7892 = vmatprep.subr.mxu0 0.0
      %7893 = vmatpush1.msra.mxu0 %v7866
      %7894 = vmatprep.subr.mxu0 0.0
      %7895 = vmatpush1.msra.mxu0 0.0
      %7896 = vmatprep.subr.mxu0 0.0
      %7897 = vmatpush1.msra.mxu0 0.0
      %7898 = vmatprep.subr.mxu0 0.0
      %7899 = vmatpush1.msra.mxu0 0.0
      %7900 = vmatprep.subr.mxu0 0.0
      %7901 = vmatpush1.msra.mxu0 0.0
      %7902 = vmatprep.subr.mxu0 0.0
      %7903 = vmatpush1.msra.mxu0 0.0
      %7904 = vmatprep.subr.mxu0 0.0
      %7905 = vmatpush1.msra.mxu0 0.0
      %7906 = vmatprep.subr.mxu0 0.0
      %7907 = vmatpush1.msra.mxu0 0.0
      %7908 = vmatprep.subr.mxu0 0.0
      %7909 = vmatpush1.msra.mxu0 0.0
      %7910 = vmatprep.subr.mxu0 0.0
      %7911 = vmatpush1.msra.mxu0 0.0
      %7912 = vmatprep.subr.mxu0 0.0
      %7913 = vmatpush1.msra.mxu0 0.0
      %7914 = vmatprep.subr.mxu0 0.0
      %7915 = vmatpush1.msra.mxu0 0.0
      %7916 = vmatprep.subr.mxu0 0.0
      %7917 = vmatpush1.msra.mxu0 0.0
      %7918 = vmatprep.subr.mxu0 0.0
      %7919 = vmatpush1.msra.mxu0 0.0
      %7920 = vmatprep.subr.mxu0 0.0
      %7921 = vmatpush1.msra.mxu0 0.0
      %7922 = vmatprep.subr.mxu0 0.0
      %7923 = vmatpush1.msra.mxu0 0.0
      %7924 = vmatprep.subr.mxu0 0.0
      %7925 = vmatpush1.msra.mxu0 0.0
      %7926 = vmatprep.subr.mxu0 0.0
      %7927 = vmatpush1.msra.mxu0 0.0
      %7928 = vmatprep.subr.mxu0 0.0
      %7929 = vmatpush1.msra.mxu0 0.0
      %7930 = vmatprep.subr.mxu0 0.0
      %7931 = vmatpush1.msra.mxu0 0.0
      %7932 = vmatprep.subr.mxu0 0.0
      %7933 = vmatpush1.msra.mxu0 0.0
      %7934 = vmatprep.subr.mxu0 0.0
      %7935 = vmatpush1.msra.mxu0 0.0
      %7936 = vmatprep.subr.mxu0 0.0
      %7937 = vmatpush1.msra.mxu0 0.0
      %7938 = vmatprep.subr.mxu0 0.0
      %7939 = vmatpush1.msra.mxu0 0.0
      %7940 = vmatprep.subr.mxu0 0.0
      %7941 = vmatpush1.msra.mxu0 0.0
      %7942 = vmatprep.subr.mxu0 0.0
      %7943 = vmatpush1.msra.mxu0 0.0
      %7944 = vmatprep.subr.mxu0 0.0
      %7945 = vmatpush1.msra.mxu0 0.0
      %7946 = vmatprep.subr.mxu0 0.0
      %7947 = vmatpush1.msra.mxu0 0.0
      %7948 = vmatprep.subr.mxu0 0.0
      %7949 = vmatpush1.msra.mxu0 0.0
      %7950 = vmatprep.subr.mxu0 0.0
      %7951 = vmatpush1.msra.mxu0 0.0
      %7952 = vmatprep.subr.mxu0 0.0
      %7953 = vmatpush1.msra.mxu0 0.0
      %7954 = vmatprep.mubr.f32.mxu0 0.0
      %7955 = vmatmul.mubr.f32.gmra.mrb[0].mxu0 %v7870
      %v7956 = vpop.f32.mrb[0].mxu0
      %v7957 = vadd.f32 0.0, %v7956
      %v7958 = vpop.f32.mrb[0].mxu0
      %7959 = vmatprep.mubr.f32.mxu0 0.0
      %7960 = vmatmul.mubr.f32.gmra.mrb[0].mxu0 %v7873
      %v7961 = vpop.f32.mrb[0].mxu0
      %v7962 = vadd.f32 0.0, %v7961
      %v7963 = vpop.f32.mrb[0].mxu0
      %7964 = vmatprep.mubr.f32.mxu0 0.0
      %7965 = vmatmul.mubr.f32.gmra.mrb[0].mxu0 %v7876
      %v7966 = vpop.f32.mrb[0].mxu0
      %v7967 = vadd.f32 0.0, %v7966
      %v7968 = vpop.f32.mrb[0].mxu0
      %7969 = vmatprep.mubr.f32.mxu0 0.0
      %7970 = vmatmul.mubr.f32.gmra.mrb[0].mxu0 %v7879
      %v7971 = vpop.f32.mrb[0].mxu0
      %v7972 = vadd.f32 0.0, %v7971
      %v7973 = vpop.f32.mrb[0].mxu0
      %7974 = vmatprep.mubr.f32.mxu0 0.0
      %7975 = vmatmul.mubr.f32.gmra.mrb[0].mxu0 %v7882
      %v7976 = vpop.f32.mrb[0].mxu0
      %v7977 = vadd.f32 0.0, %v7976
      %v7978 = vpop.f32.mrb[0].mxu0
      %7979 = vmatprep.mubr.f32.mxu0 0.0
      %7980 = vmatmul.mubr.f32.gmra.mrb[0].mxu0 %v7885
      %v7981 = vpop.f32.mrb[0].mxu0
      %v7982 = vadd.f32 0.0, %v7981
      %v7983 = vpop.f32.mrb[0].mxu0
      %7984 = vmatprep.mubr.f32.mxu0 0.0
      %7985 = vmatmul.mubr.f32.gmra.mrb[0].mxu0 %v7888
      %v7986 = vpop.f32.mrb[0].mxu0
      %v7987 = vadd.f32 0.0, %v7986
      %v7988 = vpop.f32.mrb[0].mxu0
      %7989 = vdwg.mxu0
      %v7990 = vadd.f32 %v7849, %v7957
      %v7991 = vadd.f32 %v7850, %v7962
      %v7992 = vadd.f32 %v7851, %v7967
      %v7993 = vadd.f32 %v7852, %v7972
      %v7994 = vadd.f32 %v7853, %v7977
      %v7995 = vadd.f32 %v7854, %v7982
      %v7996 = vadd.f32 %v7855, %v7987
      %v7997 = vld [vmem:[%s14] sm:$0xff]
      %v7998 = vld [vmem:[%s14 + $0x8] sm:$0xff]
      %v7999 = vld [vmem:[%s14 + $0x10] sm:$0xff]
      %v8000 = vld [vmem:[%s14 + $0x18] sm:$0xff]
      %v8001 = vld [vmem:[%s14 + $0x20] sm:$0xff]
      %v8002 = vld [vmem:[%s14 + $0x28] sm:$0xff]
      %v8003 = vld [vmem:[%s14 + $0x30] sm:$0x1]
      %v8005 = vsel %vm891, %v7997, 0
      %v8008 = vsel %vm891, %v7998, 0
      %v8011 = vsel %vm891, %v7999, 0
      %v8014 = vsel %vm891, %v8000, 0
      %v8017 = vsel %vm891, %v8001, 0
      %v8020 = vsel %vm891, %v8002, 0
      %v8023 = vsel %vm891, %v8003, 0
      %8025 = vmatprep.subr.mxu0 0.0
      %8026 = vmatpush1.msra.mxu0 %v7449
      %8027 = vmatprep.subr.mxu0 0.0
      %8028 = vmatpush1.msra.mxu0 %v7450
      %8029 = vmatprep.subr.mxu0 0.0
      %8030 = vmatpush1.msra.mxu0 0.0
      %8031 = vmatprep.subr.mxu0 0.0
      %8032 = vmatpush1.msra.mxu0 0.0
      %8033 = vmatprep.subr.mxu0 0.0
      %8034 = vmatpush1.msra.mxu0 0.0
      %8035 = vmatprep.subr.mxu0 0.0
      %8036 = vmatpush1.msra.mxu0 0.0
      %8037 = vmatprep.subr.mxu0 0.0
      %8038 = vmatpush1.msra.mxu0 0.0
      %8039 = vmatprep.subr.mxu0 0.0
      %8040 = vmatpush1.msra.mxu0 0.0
      %8041 = vmatprep.subr.mxu0 0.0
      %8042 = vmatpush1.msra.mxu0 0.0
      %8043 = vmatprep.subr.mxu0 0.0
      %8044 = vmatpush1.msra.mxu0 0.0
      %8045 = vmatprep.subr.mxu0 0.0
      %8046 = vmatpush1.msra.mxu0 0.0
      %8047 = vmatprep.subr.mxu0 0.0
      %8048 = vmatpush1.msra.mxu0 0.0
      %8049 = vmatprep.subr.mxu0 0.0
      %8050 = vmatpush1.msra.mxu0 0.0
      %8051 = vmatprep.subr.mxu0 0.0
      %8052 = vmatpush1.msra.mxu0 0.0
      %8053 = vmatprep.subr.mxu0 0.0
      %8054 = vmatpush1.msra.mxu0 0.0
      %8055 = vmatprep.subr.mxu0 0.0
      %8056 = vmatpush1.msra.mxu0 0.0
      %8057 = vmatprep.subr.mxu0 0.0
      %8058 = vmatpush1.msra.mxu0 0.0
      %8059 = vmatprep.subr.mxu0 0.0
      %8060 = vmatpush1.msra.mxu0 0.0
      %8061 = vmatprep.subr.mxu0 0.0
      %8062 = vmatpush1.msra.mxu0 0.0
      %8063 = vmatprep.subr.mxu0 0.0
      %8064 = vmatpush1.msra.mxu0 0.0
      %8065 = vmatprep.subr.mxu0 0.0
      %8066 = vmatpush1.msra.mxu0 0.0
      %8067 = vmatprep.subr.mxu0 0.0
      %8068 = vmatpush1.msra.mxu0 0.0
      %8069 = vmatprep.subr.mxu0 0.0
      %8070 = vmatpush1.msra.mxu0 0.0
      %8071 = vmatprep.subr.mxu0 0.0
      %8072 = vmatpush1.msra.mxu0 0.0
      %8073 = vmatprep.subr.mxu0 0.0
      %8074 = vmatpush1.msra.mxu0 0.0
      %8075 = vmatprep.subr.mxu0 0.0
      %8076 = vmatpush1.msra.mxu0 0.0
      %8077 = vmatprep.subr.mxu0 0.0
      %8078 = vmatpush1.msra.mxu0 0.0
      %8079 = vmatprep.subr.mxu0 0.0
      %8080 = vmatpush1.msra.mxu0 0.0
      %8081 = vmatprep.subr.mxu0 0.0
      %8082 = vmatpush1.msra.mxu0 0.0
      %8083 = vmatprep.subr.mxu0 0.0
      %8084 = vmatpush1.msra.mxu0 0.0
      %8085 = vmatprep.subr.mxu0 0.0
      %8086 = vmatpush1.msra.mxu0 0.0
      %8087 = vmatprep.subr.mxu0 0.0
      %8088 = vmatpush1.msra.mxu0 0.0
      %8089 = vmatprep.mubr.f32.mxu0 0.0
      %8090 = vmatmul.mubr.f32.gmra.mrb[0].mxu0 %v8005
      %v8091 = vpop.f32.mrb[0].mxu0
      %v8092 = vadd.f32 0.0, %v8091
      %v8093 = vpop.f32.mrb[0].mxu0
      %8094 = vmatprep.mubr.f32.mxu0 0.0
      %8095 = vmatmul.mubr.f32.gmra.mrb[0].mxu0 %v8008
      %v8096 = vpop.f32.mrb[0].mxu0
      %v8097 = vadd.f32 0.0, %v8096
      %v8098 = vpop.f32.mrb[0].mxu0
      %8099 = vmatprep.mubr.f32.mxu0 0.0
      %8100 = vmatmul.mubr.f32.gmra.mrb[0].mxu0 %v8011
      %v8101 = vpop.f32.mrb[0].mxu0
      %v8102 = vadd.f32 0.0, %v8101
      %v8103 = vpop.f32.mrb[0].mxu0
      %8104 = vmatprep.mubr.f32.mxu0 0.0
      %8105 = vmatmul.mubr.f32.gmra.mrb[0].mxu0 %v8014
      %v8106 = vpop.f32.mrb[0].mxu0
      %v8107 = vadd.f32 0.0, %v8106
      %v8108 = vpop.f32.mrb[0].mxu0
      %8109 = vmatprep.mubr.f32.mxu0 0.0
      %8110 = vmatmul.mubr.f32.gmra.mrb[0].mxu0 %v8017
      %v8111 = vpop.f32.mrb[0].mxu0
      %v8112 = vadd.f32 0.0, %v8111
      %v8113 = vpop.f32.mrb[0].mxu0
      %8114 = vmatprep.mubr.f32.mxu0 0.0
      %8115 = vmatmul.mubr.f32.gmra.mrb[0].mxu0 %v8020
      %v8116 = vpop.f32.mrb[0].mxu0
      %v8117 = vadd.f32 0.0, %v8116
      %v8118 = vpop.f32.mrb[0].mxu0
      %8119 = vmatprep.mubr.f32.mxu0 0.0
      %8120 = vmatmul.mubr.f32.gmra.mrb[0].mxu0 %v8023
      %v8121 = vpop.f32.mrb[0].mxu0
      %v8122 = vadd.f32 0.0, %v8121
      %v8123 = vpop.f32.mrb[0].mxu0
      %8124 = vdwg.mxu0
      %s8125 = scalar_lea.vmem %s5, 96
      %v8126 = vld [vmem:[%s8125] sm:$0xff]
      %v8127 = vld [vmem:[%s8125 + $0x8] sm:$0xff]
      %v8128 = vld [vmem:[%s8125 + $0x10] sm:$0xff]
      %v8129 = vld [vmem:[%s8125 + $0x18] sm:$0xff]
      %s8130 = scalar_lea.vmem %s6, 3
      %v8131 = vld [vmem:[%s8130] sm:$0x1]
      %s8132 = scalar_lea.vmem %s2, 168
      %v8133 = vld [vmem:[%s8132] sm:$0xff]
      %v8134 = vld [vmem:[%s8132 + $0x8] sm:$0xff]
      %v8135 = vld [vmem:[%s8132 + $0x10] sm:$0xff]
      %v8136 = vld [vmem:[%s8132 + $0x18] sm:$0xff]
      %v8137 = vld [vmem:[%s8132 + $0x20] sm:$0xff]
      %v8138 = vld [vmem:[%s8132 + $0x28] sm:$0xff]
      %v8139 = vld [vmem:[%s8132 + $0x30] sm:$0x1]
      %v8141 = vlaneseq
      %v8142 = vshrl.u32 %v8141, 7
      %v8143 = vsub.s32 0, %v8142
      %v8144 = vrot.slane %v8131, %v8143
      %v8147 = vsel %vm769, %v8092, 0
      %v8150 = vsel %vm769, %v8097, 0
      %v8153 = vsel %vm769, %v8102, 0
      %v8156 = vsel %vm769, %v8107, 0
      %v8159 = vsel %vm769, %v8112, 0
      %v8162 = vsel %vm769, %v8117, 0
      %v8165 = vsel %vm769, %v8122, 0
      %8167 = vmatprep.subr.mxu0 0.0
      %8168 = vmatpush1.msra.mxu0 %v8126
      %8169 = vmatprep.subr.mxu0 0.0
      %8170 = vmatpush1.msra.mxu0 %v8127
      %8171 = vmatprep.subr.mxu0 0.0
      %8172 = vmatpush1.msra.mxu0 %v8128
      %8173 = vmatprep.subr.mxu0 0.0
      %8174 = vmatpush1.msra.mxu0 %v8129
      %8175 = vmatprep.subr.mxu0 0.0
      %8176 = vmatpush1.msra.mxu0 0.0
      %8177 = vmatprep.subr.mxu0 0.0
      %8178 = vmatpush1.msra.mxu0 0.0
      %8179 = vmatprep.subr.mxu0 0.0
      %8180 = vmatpush1.msra.mxu0 0.0
      %8181 = vmatprep.subr.mxu0 0.0
      %8182 = vmatpush1.msra.mxu0 0.0
      %8183 = vmatprep.subr.mxu0 0.0
      %8184 = vmatpush1.msra.mxu0 0.0
      %8185 = vmatprep.subr.mxu0 0.0
      %8186 = vmatpush1.msra.mxu0 0.0
      %8187 = vmatprep.subr.mxu0 0.0
      %8188 = vmatpush1.msra.mxu0 0.0
      %8189 = vmatprep.subr.mxu0 0.0
      %8190 = vmatpush1.msra.mxu0 0.0
      %8191 = vmatprep.subr.mxu0 0.0
      %8192 = vmatpush1.msra.mxu0 0.0
      %8193 = vmatprep.subr.mxu0 0.0
      %8194 = vmatpush1.msra.mxu0 0.0
      %8195 = vmatprep.subr.mxu0 0.0
      %8196 = vmatpush1.msra.mxu0 0.0
      %8197 = vmatprep.subr.mxu0 0.0
      %8198 = vmatpush1.msra.mxu0 0.0
      %8199 = vmatprep.subr.mxu0 0.0
      %8200 = vmatpush1.msra.mxu0 0.0
      %8201 = vmatprep.subr.mxu0 0.0
      %8202 = vmatpush1.msra.mxu0 0.0
      %8203 = vmatprep.subr.mxu0 0.0
      %8204 = vmatpush1.msra.mxu0 0.0
      %8205 = vmatprep.subr.mxu0 0.0
      %8206 = vmatpush1.msra.mxu0 0.0
      %8207 = vmatprep.subr.mxu0 0.0
      %8208 = vmatpush1.msra.mxu0 0.0
      %8209 = vmatprep.subr.mxu0 0.0
      %8210 = vmatpush1.msra.mxu0 0.0
      %8211 = vmatprep.subr.mxu0 0.0
      %8212 = vmatpush1.msra.mxu0 0.0
      %8213 = vmatprep.subr.mxu0 0.0
      %8214 = vmatpush1.msra.mxu0 0.0
      %8215 = vmatprep.subr.mxu0 0.0
      %8216 = vmatpush1.msra.mxu0 0.0
      %8217 = vmatprep.subr.mxu0 0.0
      %8218 = vmatpush1.msra.mxu0 0.0
      %8219 = vmatprep.subr.mxu0 0.0
      %8220 = vmatpush1.msra.mxu0 0.0
      %8221 = vmatprep.subr.mxu0 0.0
      %8222 = vmatpush1.msra.mxu0 0.0
      %8223 = vmatprep.subr.mxu0 0.0
      %8224 = vmatpush1.msra.mxu0 0.0
      %8225 = vmatprep.subr.mxu0 0.0
      %8226 = vmatpush1.msra.mxu0 0.0
      %8227 = vmatprep.subr.mxu0 0.0
      %8228 = vmatpush1.msra.mxu0 0.0
      %8229 = vmatprep.subr.mxu0 0.0
      %8230 = vmatpush1.msra.mxu0 0.0
      %8231 = vmatprep.mubr.f32.mxu0 0.0
      %8232 = vmatmul.mubr.f32.gmra.mrb[0].mxu0 %v8147
      %v8233 = vpop.f32.mrb[0].mxu0
      %v8234 = vadd.f32 %v8144, %v8233
      %v8235 = vpop.f32.mrb[0].mxu0
      %8236 = vmatprep.mubr.f32.mxu0 0.0
      %8237 = vmatmul.mubr.f32.gmra.mrb[0].mxu0 %v8150
      %v8238 = vpop.f32.mrb[0].mxu0
      %v8239 = vadd.f32 %v8144, %v8238
      %v8240 = vpop.f32.mrb[0].mxu0
      %8241 = vmatprep.mubr.f32.mxu0 0.0
      %8242 = vmatmul.mubr.f32.gmra.mrb[0].mxu0 %v8153
      %v8243 = vpop.f32.mrb[0].mxu0
      %v8244 = vadd.f32 %v8144, %v8243
      %v8245 = vpop.f32.mrb[0].mxu0
      %8246 = vmatprep.mubr.f32.mxu0 0.0
      %8247 = vmatmul.mubr.f32.gmra.mrb[0].mxu0 %v8156
      %v8248 = vpop.f32.mrb[0].mxu0
      %v8249 = vadd.f32 %v8144, %v8248
      %v8250 = vpop.f32.mrb[0].mxu0
      %8251 = vmatprep.mubr.f32.mxu0 0.0
      %8252 = vmatmul.mubr.f32.gmra.mrb[0].mxu0 %v8159
      %v8253 = vpop.f32.mrb[0].mxu0
      %v8254 = vadd.f32 %v8144, %v8253
      %v8255 = vpop.f32.mrb[0].mxu0
      %8256 = vmatprep.mubr.f32.mxu0 0.0
      %8257 = vmatmul.mubr.f32.gmra.mrb[0].mxu0 %v8162
      %v8258 = vpop.f32.mrb[0].mxu0
      %v8259 = vadd.f32 %v8144, %v8258
      %v8260 = vpop.f32.mrb[0].mxu0
      %8261 = vmatprep.mubr.f32.mxu0 0.0
      %8262 = vmatmul.mubr.f32.gmra.mrb[0].mxu0 %v8165
      %v8263 = vpop.f32.mrb[0].mxu0
      %v8264 = vadd.f32 %v8144, %v8263
      %v8265 = vpop.f32.mrb[0].mxu0
      %8266 = vdwg.mxu0
      %v8268 = vsel %vm891, %v8234, 0
      %v8271 = vsel %vm891, %v8239, 0
      %v8274 = vsel %vm891, %v8244, 0
      %v8277 = vsel %vm891, %v8249, 0
      %v8280 = vsel %vm891, %v8254, 0
      %v8283 = vsel %vm891, %v8259, 0
      %v8286 = vsel %vm891, %v8264, 0
      %8288 = vmatprep.subr.mxu0 0.0
      %8289 = vmatpush1.xpose.msra.mxu0 %v8268
      %8290 = vmatprep.subr.mxu0 0.0
      %8291 = vmatpush1.xpose.msra.mxu0 %v8271
      %8292 = vmatprep.subr.mxu0 0.0
      %8293 = vmatpush1.xpose.msra.mxu0 %v8274
      %8294 = vmatprep.subr.mxu0 0.0
      %8295 = vmatpush1.xpose.msra.mxu0 %v8277
      %8296 = vmatprep.subr.mxu0 0.0
      %8297 = vmatpush1.xpose.msra.mxu0 %v8280
      %8298 = vmatprep.subr.mxu0 0.0
      %8299 = vmatpush1.xpose.msra.mxu0 %v8283
      %8300 = vmatprep.subr.mxu0 0.0
      %8301 = vmatpush1.xpose.msra.mxu0 %v8286
      %8302 = vmatprep.subr.mxu0 0.0
      %8303 = vmatpush1.xpose.msra.mxu0 0.0
      %8304 = vmatprep.subr.mxu0 0.0
      %8305 = vmatpush1.xpose.msra.mxu0 0.0
      %8306 = vmatprep.subr.mxu0 0.0
      %8307 = vmatpush1.xpose.msra.mxu0 0.0
      %8308 = vmatprep.subr.mxu0 0.0
      %8309 = vmatpush1.xpose.msra.mxu0 0.0
      %8310 = vmatprep.subr.mxu0 0.0
      %8311 = vmatpush1.xpose.msra.mxu0 0.0
      %8312 = vmatprep.subr.mxu0 0.0
      %8313 = vmatpush1.xpose.msra.mxu0 0.0
      %8314 = vmatprep.subr.mxu0 0.0
      %8315 = vmatpush1.xpose.msra.mxu0 0.0
      %8316 = vmatprep.subr.mxu0 0.0
      %8317 = vmatpush1.xpose.msra.mxu0 0.0
      %8318 = vmatprep.subr.mxu0 0.0
      %8319 = vmatpush1.xpose.msra.mxu0 0.0
      %8320 = vmatprep.subr.mxu0 0.0
      %8321 = vmatpush1.xpose.msra.mxu0 0.0
      %8322 = vmatprep.subr.mxu0 0.0
      %8323 = vmatpush1.xpose.msra.mxu0 0.0
      %8324 = vmatprep.subr.mxu0 0.0
      %8325 = vmatpush1.xpose.msra.mxu0 0.0
      %8326 = vmatprep.subr.mxu0 0.0
      %8327 = vmatpush1.xpose.msra.mxu0 0.0
      %8328 = vmatprep.subr.mxu0 0.0
      %8329 = vmatpush1.xpose.msra.mxu0 0.0
      %8330 = vmatprep.subr.mxu0 0.0
      %8331 = vmatpush1.xpose.msra.mxu0 0.0
      %8332 = vmatprep.subr.mxu0 0.0
      %8333 = vmatpush1.xpose.msra.mxu0 0.0
      %8334 = vmatprep.subr.mxu0 0.0
      %8335 = vmatpush1.xpose.msra.mxu0 0.0
      %8336 = vmatprep.subr.mxu0 0.0
      %8337 = vmatpush1.xpose.msra.mxu0 0.0
      %8338 = vmatprep.subr.mxu0 0.0
      %8339 = vmatpush1.xpose.msra.mxu0 0.0
      %8340 = vmatprep.subr.mxu0 0.0
      %8341 = vmatpush1.xpose.msra.mxu0 0.0
      %8342 = vmatprep.subr.mxu0 0.0
      %8343 = vmatpush1.xpose.msra.mxu0 0.0
      %8344 = vmatprep.subr.mxu0 0.0
      %8345 = vmatpush1.xpose.msra.mxu0 0.0
      %8346 = vmatprep.subr.mxu0 0.0
      %8347 = vmatpush1.xpose.msra.mxu0 0.0
      %8348 = vmatprep.subr.mxu0 0.0
      %8349 = vmatpush1.xpose.msra.mxu0 0.0
      %8350 = vmatprep.subr.mxu0 0.0
      %8351 = vmatpush1.xpose.msra.mxu0 0.0
      %8352 = vmatprep.mubr.f32.mxu0 0.0
      %8353 = vmatmul.mubr.f32.gmra.mrb[0].mxu0 %v893
      %v8354 = vpop.f32.mrb[0].mxu0
      %v8355 = vadd.f32 0.0, %v8354
      %v8356 = vpop.f32.mrb[0].mxu0
      %8357 = vmatprep.mubr.f32.mxu0 0.0
      %8358 = vmatmul.mubr.f32.gmra.mrb[0].mxu0 %v896
      %v8359 = vpop.f32.mrb[0].mxu0
      %v8360 = vadd.f32 0.0, %v8359
      %v8361 = vpop.f32.mrb[0].mxu0
      %8362 = vmatprep.mubr.f32.mxu0 0.0
      %8363 = vmatmul.mubr.f32.gmra.mrb[0].mxu0 %v899
      %v8364 = vpop.f32.mrb[0].mxu0
      %v8365 = vadd.f32 0.0, %v8364
      %v8366 = vpop.f32.mrb[0].mxu0
      %8367 = vmatprep.mubr.f32.mxu0 0.0
      %8368 = vmatmul.mubr.f32.gmra.mrb[0].mxu0 %v902
      %v8369 = vpop.f32.mrb[0].mxu0
      %v8370 = vadd.f32 0.0, %v8369
      %v8371 = vpop.f32.mrb[0].mxu0
      %8372 = vmatprep.mubr.f32.mxu0 0.0
      %8373 = vmatmul.mubr.f32.gmra.mrb[0].mxu0 %v905
      %v8374 = vpop.f32.mrb[0].mxu0
      %v8375 = vadd.f32 0.0, %v8374
      %v8376 = vpop.f32.mrb[0].mxu0
      %8377 = vmatprep.mubr.f32.mxu0 0.0
      %8378 = vmatmul.mubr.f32.gmra.mrb[0].mxu0 %v908
      %v8379 = vpop.f32.mrb[0].mxu0
      %v8380 = vadd.f32 0.0, %v8379
      %v8381 = vpop.f32.mrb[0].mxu0
      %8382 = vmatprep.mubr.f32.mxu0 0.0
      %8383 = vmatmul.mubr.f32.gmra.mrb[0].mxu0 %v911
      %v8384 = vpop.f32.mrb[0].mxu0
      %v8385 = vadd.f32 0.0, %v8384
      %v8386 = vpop.f32.mrb[0].mxu0
      %8387 = vdwg.mxu0
      %v8388 = vmul.f32 %v8355, 0.25
      %v8389 = vmul.f32 %v8360, 0.25
      %v8390 = vmul.f32 %v8365, 0.25
      %v8391 = vmul.f32 %v8370, 0.25
      %v8392 = vmul.f32 %v8375, 0.25
      %v8393 = vmul.f32 %v8380, 0.25
      %v8394 = vmul.f32 %v8385, 0.25
      %v8395 = vadd.f32 %v8388, %v8133
      %v8396 = vadd.f32 %v8389, %v8134
      %v8397 = vadd.f32 %v8390, %v8135
      %v8398 = vadd.f32 %v8391, %v8136
      %v8399 = vadd.f32 %v8392, %v8137
      %v8400 = vadd.f32 %v8393, %v8138
      %v8401 = vadd.f32 %v8394, %v8139
      %v8402 = vsel %vm1048, %v8395, -inf
      %8403 = vmax.xlane.f32.xlu0 %v8402
      %v8404 = vpop.xlane.xlu0 %8403
      %v8405 = vsel %vm1048, %v8396, -inf
      %8406 = vmax.xlane.f32.xlu0 %v8405
      %v8407 = vpop.xlane.xlu0 %8406
      %v8408 = vsel %vm1048, %v8397, -inf
      %8409 = vmax.xlane.f32.xlu0 %v8408
      %v8410 = vpop.xlane.xlu0 %8409
      %v8411 = vsel %vm1048, %v8398, -inf
      %8412 = vmax.xlane.f32.xlu0 %v8411
      %v8413 = vpop.xlane.xlu0 %8412
      %v8414 = vsel %vm1048, %v8399, -inf
      %8415 = vmax.xlane.f32.xlu0 %v8414
      %v8416 = vpop.xlane.xlu0 %8415
      %v8417 = vsel %vm1048, %v8400, -inf
      %8418 = vmax.xlane.f32.xlu0 %v8417
      %v8419 = vpop.xlane.xlu0 %8418
      %v8420 = vsel %vm1067, %v8401, -inf
      %8421 = vmax.xlane.f32.xlu0 %v8420
      %v8422 = vpop.xlane.xlu0 %8421
      %v8423 = vsub.f32 %v8395, %v8404
      %v8424 = vsub.f32 %v8396, %v8407
      %v8425 = vsub.f32 %v8397, %v8410
      %v8426 = vsub.f32 %v8398, %v8413
      %v8427 = vsub.f32 %v8399, %v8416
      %v8428 = vsub.f32 %v8400, %v8419
      %v8429 = vsub.f32 %v8401, %v8422
      %v8430 = vmul.f32 %v8423, 1.442695
      %v8431 = vpow.pop %v8430
      %v8432 = vmul.f32 %v8424, 1.442695
      %v8433 = vpow.pop %v8432
      %v8434 = vmul.f32 %v8425, 1.442695
      %v8435 = vpow.pop %v8434
      %v8436 = vmul.f32 %v8426, 1.442695
      %v8437 = vpow.pop %v8436
      %v8438 = vmul.f32 %v8427, 1.442695
      %v8439 = vpow.pop %v8438
      %v8440 = vmul.f32 %v8428, 1.442695
      %v8441 = vpow.pop %v8440
      %v8442 = vmul.f32 %v8429, 1.442695
      %v8443 = vpow.pop %v8442
      %v8444 = vsel %vm1048, %v8431, 0.0
      %8445 = vadd.xlane.f32.xlu0 %v8444
      %v8446 = vpop.xlane.xlu0 %8445
      %v8447 = vsel %vm1048, %v8433, 0.0
      %8448 = vadd.xlane.f32.xlu0 %v8447
      %v8449 = vpop.xlane.xlu0 %8448
      %v8450 = vsel %vm1048, %v8435, 0.0
      %8451 = vadd.xlane.f32.xlu0 %v8450
      %v8452 = vpop.xlane.xlu0 %8451
      %v8453 = vsel %vm1048, %v8437, 0.0
      %8454 = vadd.xlane.f32.xlu0 %v8453
      %v8455 = vpop.xlane.xlu0 %8454
      %v8456 = vsel %vm1048, %v8439, 0.0
      %8457 = vadd.xlane.f32.xlu0 %v8456
      %v8458 = vpop.xlane.xlu0 %8457
      %v8459 = vsel %vm1048, %v8441, 0.0
      %8460 = vadd.xlane.f32.xlu0 %v8459
      %v8461 = vpop.xlane.xlu0 %8460
      %v8462 = vsel %vm1067, %v8443, 0.0
      %8463 = vadd.xlane.f32.xlu0 %v8462
      %v8464 = vpop.xlane.xlu0 %8463
      %v8465 = vrcp.pop %v8446
      %v8466 = vrcp.pop %v8449
      %v8467 = vrcp.pop %v8452
      %v8468 = vrcp.pop %v8455
      %v8469 = vrcp.pop %v8458
      %v8470 = vrcp.pop %v8461
      %v8471 = vrcp.pop %v8464
      %v8472 = vmul.f32 %v8431, %v8465
      %v8473 = vmul.f32 %v8433, %v8466
      %v8474 = vmul.f32 %v8435, %v8467
      %v8475 = vmul.f32 %v8437, %v8468
      %v8476 = vmul.f32 %v8439, %v8469
      %v8477 = vmul.f32 %v8441, %v8470
      %v8478 = vmul.f32 %v8443, %v8471
      %8479 = vrot.lane.b32.xlu0 %v8234, 112
      %v8480 = vpop.permute.xlu0 %8479
      %8481 = vrot.lane.b32.xlu0 %v8239, 112
      %v8482 = vpop.permute.xlu0 %8481
      %8483 = vrot.lane.b32.xlu0 %v8244, 112
      %v8484 = vpop.permute.xlu0 %8483
      %8485 = vrot.lane.b32.xlu0 %v8249, 112
      %v8486 = vpop.permute.xlu0 %8485
      %8487 = vrot.lane.b32.xlu0 %v8254, 112
      %v8488 = vpop.permute.xlu0 %8487
      %8489 = vrot.lane.b32.xlu0 %v8259, 112
      %v8490 = vpop.permute.xlu0 %8489
      %8491 = vrot.lane.b32.xlu0 %v8264, 112
      %v8492 = vpop.permute.xlu0 %8491
      %v8500 = vmul.f32 %v4408, %v8480
      %v8501 = vmul.f32 %v4408, %v8482
      %v8502 = vmul.f32 %v4408, %v8484
      %v8503 = vmul.f32 %v4408, %v8486
      %v8504 = vmul.f32 %v4408, %v8488
      %v8505 = vmul.f32 %v4408, %v8490
      %v8506 = vmul.f32 %v4408, %v8492
      %v8508 = vsel %vm1048, %v8472, 0
      %v8511 = vsel %vm1048, %v8473, 0
      %v8514 = vsel %vm1048, %v8474, 0
      %v8517 = vsel %vm1048, %v8475, 0
      %v8520 = vsel %vm1048, %v8476, 0
      %v8523 = vsel %vm1048, %v8477, 0
      %v8526 = vsel %vm1048, %v8478, 0
      %v8529 = vsel %vm1180, %v8506, 0
      %8531 = vmatprep.subr.mxu0 0.0
      %8532 = vmatpush1.msra.mxu0 %v8500
      %8533 = vmatprep.subr.mxu0 0.0
      %8534 = vmatpush1.msra.mxu0 %v8501
      %8535 = vmatprep.subr.mxu0 0.0
      %8536 = vmatpush1.msra.mxu0 %v8502
      %8537 = vmatprep.subr.mxu0 0.0
      %8538 = vmatpush1.msra.mxu0 %v8503
      %8539 = vmatprep.subr.mxu0 0.0
      %8540 = vmatpush1.msra.mxu0 %v8504
      %8541 = vmatprep.subr.mxu0 0.0
      %8542 = vmatpush1.msra.mxu0 %v8505
      %8543 = vmatprep.subr.mxu0 0.0
      %8544 = vmatpush1.msra.mxu0 %v8529
      %8545 = vmatprep.subr.mxu0 0.0
      %8546 = vmatpush1.msra.mxu0 0.0
      %8547 = vmatprep.subr.mxu0 0.0
      %8548 = vmatpush1.msra.mxu0 0.0
      %8549 = vmatprep.subr.mxu0 0.0
      %8550 = vmatpush1.msra.mxu0 0.0
      %8551 = vmatprep.subr.mxu0 0.0
      %8552 = vmatpush1.msra.mxu0 0.0
      %8553 = vmatprep.subr.mxu0 0.0
      %8554 = vmatpush1.msra.mxu0 0.0
      %8555 = vmatprep.subr.mxu0 0.0
      %8556 = vmatpush1.msra.mxu0 0.0
      %8557 = vmatprep.subr.mxu0 0.0
      %8558 = vmatpush1.msra.mxu0 0.0
      %8559 = vmatprep.subr.mxu0 0.0
      %8560 = vmatpush1.msra.mxu0 0.0
      %8561 = vmatprep.subr.mxu0 0.0
      %8562 = vmatpush1.msra.mxu0 0.0
      %8563 = vmatprep.subr.mxu0 0.0
      %8564 = vmatpush1.msra.mxu0 0.0
      %8565 = vmatprep.subr.mxu0 0.0
      %8566 = vmatpush1.msra.mxu0 0.0
      %8567 = vmatprep.subr.mxu0 0.0
      %8568 = vmatpush1.msra.mxu0 0.0
      %8569 = vmatprep.subr.mxu0 0.0
      %8570 = vmatpush1.msra.mxu0 0.0
      %8571 = vmatprep.subr.mxu0 0.0
      %8572 = vmatpush1.msra.mxu0 0.0
      %8573 = vmatprep.subr.mxu0 0.0
      %8574 = vmatpush1.msra.mxu0 0.0
      %8575 = vmatprep.subr.mxu0 0.0
      %8576 = vmatpush1.msra.mxu0 0.0
      %8577 = vmatprep.subr.mxu0 0.0
      %8578 = vmatpush1.msra.mxu0 0.0
      %8579 = vmatprep.subr.mxu0 0.0
      %8580 = vmatpush1.msra.mxu0 0.0
      %8581 = vmatprep.subr.mxu0 0.0
      %8582 = vmatpush1.msra.mxu0 0.0
      %8583 = vmatprep.subr.mxu0 0.0
      %8584 = vmatpush1.msra.mxu0 0.0
      %8585 = vmatprep.subr.mxu0 0.0
      %8586 = vmatpush1.msra.mxu0 0.0
      %8587 = vmatprep.subr.mxu0 0.0
      %8588 = vmatpush1.msra.mxu0 0.0
      %8589 = vmatprep.subr.mxu0 0.0
      %8590 = vmatpush1.msra.mxu0 0.0
      %8591 = vmatprep.subr.mxu0 0.0
      %8592 = vmatpush1.msra.mxu0 0.0
      %8593 = vmatprep.subr.mxu0 0.0
      %8594 = vmatpush1.msra.mxu0 0.0
      %8595 = vmatprep.mubr.f32.mxu0 0.0
      %8596 = vmatmul.mubr.f32.gmra.mrb[0].mxu0 %v8508
      %v8597 = vpop.f32.mrb[0].mxu0
      %v8598 = vadd.f32 0.0, %v8597
      %v8599 = vpop.f32.mrb[0].mxu0
      %8600 = vmatprep.mubr.f32.mxu0 0.0
      %8601 = vmatmul.mubr.f32.gmra.mrb[0].mxu0 %v8511
      %v8602 = vpop.f32.mrb[0].mxu0
      %v8603 = vadd.f32 0.0, %v8602
      %v8604 = vpop.f32.mrb[0].mxu0
      %8605 = vmatprep.mubr.f32.mxu0 0.0
      %8606 = vmatmul.mubr.f32.gmra.mrb[0].mxu0 %v8514
      %v8607 = vpop.f32.mrb[0].mxu0
      %v8608 = vadd.f32 0.0, %v8607
      %v8609 = vpop.f32.mrb[0].mxu0
      %8610 = vmatprep.mubr.f32.mxu0 0.0
      %8611 = vmatmul.mubr.f32.gmra.mrb[0].mxu0 %v8517
      %v8612 = vpop.f32.mrb[0].mxu0
      %v8613 = vadd.f32 0.0, %v8612
      %v8614 = vpop.f32.mrb[0].mxu0
      %8615 = vmatprep.mubr.f32.mxu0 0.0
      %8616 = vmatmul.mubr.f32.gmra.mrb[0].mxu0 %v8520
      %v8617 = vpop.f32.mrb[0].mxu0
      %v8618 = vadd.f32 0.0, %v8617
      %v8619 = vpop.f32.mrb[0].mxu0
      %8620 = vmatprep.mubr.f32.mxu0 0.0
      %8621 = vmatmul.mubr.f32.gmra.mrb[0].mxu0 %v8523
      %v8622 = vpop.f32.mrb[0].mxu0
      %v8623 = vadd.f32 0.0, %v8622
      %v8624 = vpop.f32.mrb[0].mxu0
      %8625 = vmatprep.mubr.f32.mxu0 0.0
      %8626 = vmatmul.mubr.f32.gmra.mrb[0].mxu0 %v8526
      %v8627 = vpop.f32.mrb[0].mxu0
      %v8628 = vadd.f32 0.0, %v8627
      %v8629 = vpop.f32.mrb[0].mxu0
      %8630 = vdwg.mxu0
      %s8631 = scalar_lea.vmem %s15, 40
      %v8632 = vld [vmem:[%s8631] sm:$0xff]
      %v8633 = vld [vmem:[%s8631 + $0x8] sm:$0xff]
      %v8634 = vld [vmem:[%s8631 + $0x10] sm:$0xff]
      %v8635 = vld [vmem:[%s8631 + $0x18] sm:$0xff]
      %v8636 = vld [vmem:[%s8631 + $0x20] sm:$0xff]
      %v8637 = vmax.f32 %v8598, 0.0
      %v8638 = vmax.f32 %v8603, 0.0
      %v8639 = vmax.f32 %v8608, 0.0
      %v8640 = vmax.f32 %v8613, 0.0
      %v8641 = vmax.f32 %v8618, 0.0
      %v8642 = vmax.f32 %v8623, 0.0
      %v8643 = vmax.f32 %v8628, 0.0
      %v8644 = vmax.f32 %v7990, 0.0
      %v8645 = vmax.f32 %v7991, 0.0
      %v8646 = vmax.f32 %v7992, 0.0
      %v8647 = vmax.f32 %v7993, 0.0
      %v8648 = vmax.f32 %v7994, 0.0
      %v8649 = vmax.f32 %v7995, 0.0
      %v8650 = vmax.f32 %v7996, 0.0
      %v8652 = vsel %vm1813, %v8644, 0
      %v8655 = vsel %vm1813, %v8645, 0
      %v8658 = vsel %vm1813, %v8646, 0
      %v8661 = vsel %vm1813, %v8647, 0
      %v8664 = vsel %vm1813, %v8648, 0
      %v8667 = vsel %vm1813, %v8649, 0
      %v8670 = vsel %vm1813, %v8650, 0
      %8672 = vmatprep.subr.mxu0 0.0
      %8673 = vmatpush1.msra.mxu0 %v8636
      %8674 = vmatprep.subr.mxu0 0.0
      %8675 = vmatpush1.msra.mxu0 0.0
      %8676 = vmatprep.subr.mxu0 0.0
      %8677 = vmatpush1.msra.mxu0 0.0
      %8678 = vmatprep.subr.mxu0 0.0
      %8679 = vmatpush1.msra.mxu0 0.0
      %8680 = vmatprep.subr.mxu0 0.0
      %8681 = vmatpush1.msra.mxu0 0.0
      %8682 = vmatprep.subr.mxu0 0.0
      %8683 = vmatpush1.msra.mxu0 0.0
      %8684 = vmatprep.subr.mxu0 0.0
      %8685 = vmatpush1.msra.mxu0 0.0
      %8686 = vmatprep.subr.mxu0 0.0
      %8687 = vmatpush1.msra.mxu0 0.0
      %8688 = vmatprep.subr.mxu0 0.0
      %8689 = vmatpush1.msra.mxu0 0.0
      %8690 = vmatprep.subr.mxu0 0.0
      %8691 = vmatpush1.msra.mxu0 0.0
      %8692 = vmatprep.subr.mxu0 0.0
      %8693 = vmatpush1.msra.mxu0 0.0
      %8694 = vmatprep.subr.mxu0 0.0
      %8695 = vmatpush1.msra.mxu0 0.0
      %8696 = vmatprep.subr.mxu0 0.0
      %8697 = vmatpush1.msra.mxu0 0.0
      %8698 = vmatprep.subr.mxu0 0.0
      %8699 = vmatpush1.msra.mxu0 0.0
      %8700 = vmatprep.subr.mxu0 0.0
      %8701 = vmatpush1.msra.mxu0 0.0
      %8702 = vmatprep.subr.mxu0 0.0
      %8703 = vmatpush1.msra.mxu0 0.0
      %8704 = vmatprep.subr.mxu0 0.0
      %8705 = vmatpush1.msra.mxu0 0.0
      %8706 = vmatprep.subr.mxu0 0.0
      %8707 = vmatpush1.msra.mxu0 0.0
      %8708 = vmatprep.subr.mxu0 0.0
      %8709 = vmatpush1.msra.mxu0 0.0
      %8710 = vmatprep.subr.mxu0 0.0
      %8711 = vmatpush1.msra.mxu0 0.0
      %8712 = vmatprep.subr.mxu0 0.0
      %8713 = vmatpush1.msra.mxu0 0.0
      %8714 = vmatprep.subr.mxu0 0.0
      %8715 = vmatpush1.msra.mxu0 0.0
      %8716 = vmatprep.subr.mxu0 0.0
      %8717 = vmatpush1.msra.mxu0 0.0
      %8718 = vmatprep.subr.mxu0 0.0
      %8719 = vmatpush1.msra.mxu0 0.0
      %8720 = vmatprep.subr.mxu0 0.0
      %8721 = vmatpush1.msra.mxu0 0.0
      %8722 = vmatprep.subr.mxu0 0.0
      %8723 = vmatpush1.msra.mxu0 0.0
      %8724 = vmatprep.subr.mxu0 0.0
      %8725 = vmatpush1.msra.mxu0 0.0
      %8726 = vmatprep.subr.mxu0 0.0
      %8727 = vmatpush1.msra.mxu0 0.0
      %8728 = vmatprep.subr.mxu0 0.0
      %8729 = vmatpush1.msra.mxu0 0.0
      %8730 = vmatprep.subr.mxu0 0.0
      %8731 = vmatpush1.msra.mxu0 0.0
      %8732 = vmatprep.subr.mxu0 0.0
      %8733 = vmatpush1.msra.mxu0 0.0
      %8734 = vmatprep.subr.mxu0 0.0
      %8735 = vmatpush1.msra.mxu0 0.0
      %8736 = vmatprep.mubr.f32.mxu0 0.0
      %8737 = vmatmul.mubr.f32.gmra.mrb[0].mxu0 %v8652
      %v8738 = vpop.f32.mrb[0].mxu0
      %v8739 = vadd.f32 0.0, %v8738
      %v8740 = vpop.f32.mrb[0].mxu0
      %8741 = vmatprep.mubr.f32.mxu0 0.0
      %8742 = vmatmul.mubr.f32.gmra.mrb[0].mxu0 %v8655
      %v8743 = vpop.f32.mrb[0].mxu0
      %v8744 = vadd.f32 0.0, %v8743
      %v8745 = vpop.f32.mrb[0].mxu0
      %8746 = vmatprep.mubr.f32.mxu0 0.0
      %8747 = vmatmul.mubr.f32.gmra.mrb[0].mxu0 %v8658
      %v8748 = vpop.f32.mrb[0].mxu0
      %v8749 = vadd.f32 0.0, %v8748
      %v8750 = vpop.f32.mrb[0].mxu0
      %8751 = vmatprep.mubr.f32.mxu0 0.0
      %8752 = vmatmul.mubr.f32.gmra.mrb[0].mxu0 %v8661
      %v8753 = vpop.f32.mrb[0].mxu0
      %v8754 = vadd.f32 0.0, %v8753
      %v8755 = vpop.f32.mrb[0].mxu0
      %8756 = vmatprep.mubr.f32.mxu0 0.0
      %8757 = vmatmul.mubr.f32.gmra.mrb[0].mxu0 %v8664
      %v8758 = vpop.f32.mrb[0].mxu0
      %v8759 = vadd.f32 0.0, %v8758
      %v8760 = vpop.f32.mrb[0].mxu0
      %8761 = vmatprep.mubr.f32.mxu0 0.0
      %8762 = vmatmul.mubr.f32.gmra.mrb[0].mxu0 %v8667
      %v8763 = vpop.f32.mrb[0].mxu0
      %v8764 = vadd.f32 0.0, %v8763
      %v8765 = vpop.f32.mrb[0].mxu0
      %8766 = vmatprep.mubr.f32.mxu0 0.0
      %8767 = vmatmul.mubr.f32.gmra.mrb[0].mxu0 %v8670
      %v8768 = vpop.f32.mrb[0].mxu0
      %v8769 = vadd.f32 0.0, %v8768
      %v8770 = vpop.f32.mrb[0].mxu0
      %8771 = vdwg.mxu0
      %v8773 = vsel %vm769, %v8637, 0
      %v8776 = vsel %vm769, %v8638, 0
      %v8779 = vsel %vm769, %v8639, 0
      %v8782 = vsel %vm769, %v8640, 0
      %v8785 = vsel %vm769, %v8641, 0
      %v8788 = vsel %vm769, %v8642, 0
      %v8791 = vsel %vm769, %v8643, 0
      %8793 = vmatprep.subr.mxu0 0.0
      %8794 = vmatpush1.msra.mxu0 %v8632
      %8795 = vmatprep.subr.mxu0 0.0
      %8796 = vmatpush1.msra.mxu0 %v8633
      %8797 = vmatprep.subr.mxu0 0.0
      %8798 = vmatpush1.msra.mxu0 %v8634
      %8799 = vmatprep.subr.mxu0 0.0
      %8800 = vmatpush1.msra.mxu0 %v8635
      %8801 = vmatprep.subr.mxu0 0.0
      %8802 = vmatpush1.msra.mxu0 0.0
      %8803 = vmatprep.subr.mxu0 0.0
      %8804 = vmatpush1.msra.mxu0 0.0
      %8805 = vmatprep.subr.mxu0 0.0
      %8806 = vmatpush1.msra.mxu0 0.0
      %8807 = vmatprep.subr.mxu0 0.0
      %8808 = vmatpush1.msra.mxu0 0.0
      %8809 = vmatprep.subr.mxu0 0.0
      %8810 = vmatpush1.msra.mxu0 0.0
      %8811 = vmatprep.subr.mxu0 0.0
      %8812 = vmatpush1.msra.mxu0 0.0
      %8813 = vmatprep.subr.mxu0 0.0
      %8814 = vmatpush1.msra.mxu0 0.0
      %8815 = vmatprep.subr.mxu0 0.0
      %8816 = vmatpush1.msra.mxu0 0.0
      %8817 = vmatprep.subr.mxu0 0.0
      %8818 = vmatpush1.msra.mxu0 0.0
      %8819 = vmatprep.subr.mxu0 0.0
      %8820 = vmatpush1.msra.mxu0 0.0
      %8821 = vmatprep.subr.mxu0 0.0
      %8822 = vmatpush1.msra.mxu0 0.0
      %8823 = vmatprep.subr.mxu0 0.0
      %8824 = vmatpush1.msra.mxu0 0.0
      %8825 = vmatprep.subr.mxu0 0.0
      %8826 = vmatpush1.msra.mxu0 0.0
      %8827 = vmatprep.subr.mxu0 0.0
      %8828 = vmatpush1.msra.mxu0 0.0
      %8829 = vmatprep.subr.mxu0 0.0
      %8830 = vmatpush1.msra.mxu0 0.0
      %8831 = vmatprep.subr.mxu0 0.0
      %8832 = vmatpush1.msra.mxu0 0.0
      %8833 = vmatprep.subr.mxu0 0.0
      %8834 = vmatpush1.msra.mxu0 0.0
      %8835 = vmatprep.subr.mxu0 0.0
      %8836 = vmatpush1.msra.mxu0 0.0
      %8837 = vmatprep.subr.mxu0 0.0
      %8838 = vmatpush1.msra.mxu0 0.0
      %8839 = vmatprep.subr.mxu0 0.0
      %8840 = vmatpush1.msra.mxu0 0.0
      %8841 = vmatprep.subr.mxu0 0.0
      %8842 = vmatpush1.msra.mxu0 0.0
      %8843 = vmatprep.subr.mxu0 0.0
      %8844 = vmatpush1.msra.mxu0 0.0
      %8845 = vmatprep.subr.mxu0 0.0
      %8846 = vmatpush1.msra.mxu0 0.0
      %8847 = vmatprep.subr.mxu0 0.0
      %8848 = vmatpush1.msra.mxu0 0.0
      %8849 = vmatprep.subr.mxu0 0.0
      %8850 = vmatpush1.msra.mxu0 0.0
      %8851 = vmatprep.subr.mxu0 0.0
      %8852 = vmatpush1.msra.mxu0 0.0
      %8853 = vmatprep.subr.mxu0 0.0
      %8854 = vmatpush1.msra.mxu0 0.0
      %8855 = vmatprep.subr.mxu0 0.0
      %8856 = vmatpush1.msra.mxu0 0.0
      %8857 = vmatprep.mubr.f32.mxu0 0.0
      %8858 = vmatmul.mubr.f32.gmra.mrb[0].mxu0 %v8773
      %v8859 = vpop.f32.mrb[0].mxu0
      %v8860 = vadd.f32 %v8739, %v8859
      %v8861 = vpop.f32.mrb[0].mxu0
      %8862 = vmatprep.mubr.f32.mxu0 0.0
      %8863 = vmatmul.mubr.f32.gmra.mrb[0].mxu0 %v8776
      %v8864 = vpop.f32.mrb[0].mxu0
      %v8865 = vadd.f32 %v8744, %v8864
      %v8866 = vpop.f32.mrb[0].mxu0
      %8867 = vmatprep.mubr.f32.mxu0 0.0
      %8868 = vmatmul.mubr.f32.gmra.mrb[0].mxu0 %v8779
      %v8869 = vpop.f32.mrb[0].mxu0
      %v8870 = vadd.f32 %v8749, %v8869
      %v8871 = vpop.f32.mrb[0].mxu0
      %8872 = vmatprep.mubr.f32.mxu0 0.0
      %8873 = vmatmul.mubr.f32.gmra.mrb[0].mxu0 %v8782
      %v8874 = vpop.f32.mrb[0].mxu0
      %v8875 = vadd.f32 %v8754, %v8874
      %v8876 = vpop.f32.mrb[0].mxu0
      %8877 = vmatprep.mubr.f32.mxu0 0.0
      %8878 = vmatmul.mubr.f32.gmra.mrb[0].mxu0 %v8785
      %v8879 = vpop.f32.mrb[0].mxu0
      %v8880 = vadd.f32 %v8759, %v8879
      %v8881 = vpop.f32.mrb[0].mxu0
      %8882 = vmatprep.mubr.f32.mxu0 0.0
      %8883 = vmatmul.mubr.f32.gmra.mrb[0].mxu0 %v8788
      %v8884 = vpop.f32.mrb[0].mxu0
      %v8885 = vadd.f32 %v8764, %v8884
      %v8886 = vpop.f32.mrb[0].mxu0
      %8887 = vmatprep.mubr.f32.mxu0 0.0
      %8888 = vmatmul.mubr.f32.gmra.mrb[0].mxu0 %v8791
      %v8889 = vpop.f32.mrb[0].mxu0
      %v8890 = vadd.f32 %v8769, %v8889
      %v8891 = vpop.f32.mrb[0].mxu0
      %8892 = vdwg.mxu0
      %s8893 = scalar_lea.vmem %s16, 1
      %v8894 = vld [vmem:[%s8893] sm:$0x1]
      %v8896 = vlaneseq
      %v8897 = vshrl.u32 %v8896, 7
      %v8898 = vsub.s32 0, %v8897
      %v8899 = vrot.slane %v8894, %v8898
      %v8901 = vadd.f32 %v8860, %v8899
      %v8902 = vadd.f32 %v8865, %v8899
      %v8903 = vadd.f32 %v8870, %v8899
      %v8904 = vadd.f32 %v8875, %v8899
      %v8905 = vadd.f32 %v8880, %v8899
      %v8906 = vadd.f32 %v8885, %v8899
      %v8907 = vadd.f32 %v8890, %v8899
      %8915 = vrot.lane.b32.xlu0 %v4829, 32
      %v8916 = vpop.permute.xlu0 %8915
      %8917 = vrot.lane.b32.xlu0 %v4830, 32
      %v8918 = vpop.permute.xlu0 %8917
      %8919 = vrot.lane.b32.xlu0 %v4831, 32
      %v8920 = vpop.permute.xlu0 %8919
      %8921 = vrot.lane.b32.xlu0 %v4832, 32
      %v8922 = vpop.permute.xlu0 %8921
      %8923 = vrot.lane.b32.xlu0 %v4833, 32
      %v8924 = vpop.permute.xlu0 %8923
      %8925 = vrot.lane.b32.xlu0 %v4834, 32
      %v8926 = vpop.permute.xlu0 %8925
      %8927 = vrot.lane.b32.xlu0 %v4835, 32
      %v8928 = vpop.permute.xlu0 %8927
      %8943 = vrot.lane.b32.xlu0 %v5337, 64
      %v8944 = vpop.permute.xlu0 %8943
      %8945 = vrot.lane.b32.xlu0 %v5342, 64
      %v8946 = vpop.permute.xlu0 %8945
      %8947 = vrot.lane.b32.xlu0 %v5347, 64
      %v8948 = vpop.permute.xlu0 %8947
      %8949 = vrot.lane.b32.xlu0 %v5352, 64
      %v8950 = vpop.permute.xlu0 %8949
      %8951 = vrot.lane.b32.xlu0 %v5357, 64
      %v8952 = vpop.permute.xlu0 %8951
      %8953 = vrot.lane.b32.xlu0 %v5362, 64
      %v8954 = vpop.permute.xlu0 %8953
      %8955 = vrot.lane.b32.xlu0 %v5367, 64
      %v8956 = vpop.permute.xlu0 %8955
      %8971 = vrot.lane.b32.xlu0 %v8901, 96
      %v8972 = vpop.permute.xlu0 %8971
      %8973 = vrot.lane.b32.xlu0 %v8902, 96
      %v8974 = vpop.permute.xlu0 %8973
      %8975 = vrot.lane.b32.xlu0 %v8903, 96
      %v8976 = vpop.permute.xlu0 %8975
      %8977 = vrot.lane.b32.xlu0 %v8904, 96
      %v8978 = vpop.permute.xlu0 %8977
      %8979 = vrot.lane.b32.xlu0 %v8905, 96
      %v8980 = vpop.permute.xlu0 %8979
      %8981 = vrot.lane.b32.xlu0 %v8906, 96
      %v8982 = vpop.permute.xlu0 %8981
      %8983 = vrot.lane.b32.xlu0 %v8907, 96
      %v8984 = vpop.permute.xlu0 %8983
      %v8992 = vsel %vm769, %v1251, %v8916
      %v8993 = vsel %vm769, %v1256, %v8918
      %v8994 = vsel %vm769, %v1261, %v8920
      %v8995 = vsel %vm769, %v1266, %v8922
      %v8996 = vsel %vm769, %v1271, %v8924
      %v8997 = vsel %vm769, %v1276, %v8926
      %v8998 = vsel %vm769, %v1281, %v8928
      %vm8999 = vcmask 523264
      %v9000 = vsel %vm8999, %v8992, %v8944
      %v9001 = vsel %vm8999, %v8993, %v8946
      %v9002 = vsel %vm8999, %v8994, %v8948
      %v9003 = vsel %vm8999, %v8995, %v8950
      %v9004 = vsel %vm8999, %v8996, %v8952
      %v9005 = vsel %vm8999, %v8997, %v8954
      %v9006 = vsel %vm8999, %v8998, %v8956
      %vm9007 = vcmask 785408
      %v9008 = vsel %vm9007, %v9000, %v8972
      %v9009 = vsel %vm9007, %v9001, %v8974
      %v9010 = vsel %vm9007, %v9002, %v8976
      %v9011 = vsel %vm9007, %v9003, %v8978
      %v9012 = vsel %vm9007, %v9004, %v8980
      %v9013 = vsel %vm9007, %v9005, %v8982
      %v9014 = vsel %vm9007, %v9006, %v8984
      %v9015 = vmax.f32 %v9008, 0.0
      %v9016 = vmax.f32 %v9009, 0.0
      %v9017 = vmax.f32 %v9010, 0.0
      %v9018 = vmax.f32 %v9011, 0.0
      %v9019 = vmax.f32 %v9012, 0.0
      %v9020 = vmax.f32 %v9013, 0.0
      %v9021 = vmax.f32 %v9014, 0.0
      %v9022 = vld [vmem:[%s17] sm:$0xff]
      %v9023 = vld [vmem:[%s17 + $0x8] sm:$0xff]
      %v9024 = vld [vmem:[%s17 + $0x10] sm:$0xff]
      %v9025 = vld [vmem:[%s17 + $0x18] sm:$0xff]
      %v9026 = vld [vmem:[%s17 + $0x20] sm:$0xff]
      %v9027 = vld [vmem:[%s17 + $0x28] sm:$0xff]
      %v9028 = vld [vmem:[%s17 + $0x30] sm:$0xff]
      %v9029 = vld [vmem:[%s17 + $0x38] sm:$0xff]
      %v9030 = vld [vmem:[%s17 + $0x40] sm:$0xff]
      %v9031 = vld [vmem:[%s17 + $0x48] sm:$0xff]
      %v9032 = vld [vmem:[%s17 + $0x50] sm:$0xff]
      %v9033 = vld [vmem:[%s17 + $0x58] sm:$0xff]
      %v9034 = vld [vmem:[%s17 + $0x60] sm:$0xff]
      %v9035 = vld [vmem:[%s17 + $0x68] sm:$0xff]
      %v9036 = vld [vmem:[%s17 + $0x70] sm:$0xff]
      %v9037 = vld [vmem:[%s17 + $0x78] sm:$0xff]
      %v9038 = vld [vmem:[%s18] sm:$0x1]
      %v9040 = vlaneseq
      %v9041 = vshrl.u32 %v9040, 7
      %v9042 = vsub.s32 0, %v9041
      %v9043 = vrot.slane %v9038, %v9042
      %9045 = vmatprep.subr.mxu0 0.0
      %9046 = vmatpush1.msra.mxu0 %v9022
      %9047 = vmatprep.subr.mxu0 0.0
      %9048 = vmatpush1.msra.mxu0 %v9023
      %9049 = vmatprep.subr.mxu0 0.0
      %9050 = vmatpush1.msra.mxu0 %v9024
      %9051 = vmatprep.subr.mxu0 0.0
      %9052 = vmatpush1.msra.mxu0 %v9025
      %9053 = vmatprep.subr.mxu0 0.0
      %9054 = vmatpush1.msra.mxu0 %v9026
      %9055 = vmatprep.subr.mxu0 0.0
      %9056 = vmatpush1.msra.mxu0 %v9027
      %9057 = vmatprep.subr.mxu0 0.0
      %9058 = vmatpush1.msra.mxu0 %v9028
      %9059 = vmatprep.subr.mxu0 0.0
      %9060 = vmatpush1.msra.mxu0 %v9029
      %9061 = vmatprep.subr.mxu0 0.0
      %9062 = vmatpush1.msra.mxu0 %v9030
      %9063 = vmatprep.subr.mxu0 0.0
      %9064 = vmatpush1.msra.mxu0 %v9031
      %9065 = vmatprep.subr.mxu0 0.0
      %9066 = vmatpush1.msra.mxu0 %v9032
      %9067 = vmatprep.subr.mxu0 0.0
      %9068 = vmatpush1.msra.mxu0 %v9033
      %9069 = vmatprep.subr.mxu0 0.0
      %9070 = vmatpush1.msra.mxu0 %v9034
      %9071 = vmatprep.subr.mxu0 0.0
      %9072 = vmatpush1.msra.mxu0 %v9035
      %9073 = vmatprep.subr.mxu0 0.0
      %9074 = vmatpush1.msra.mxu0 %v9036
      %9075 = vmatprep.subr.mxu0 0.0
      %9076 = vmatpush1.msra.mxu0 %v9037
      %9077 = vmatprep.subr.mxu0 0.0
      %9078 = vmatpush1.msra.mxu0 0.0
      %9079 = vmatprep.subr.mxu0 0.0
      %9080 = vmatpush1.msra.mxu0 0.0
      %9081 = vmatprep.subr.mxu0 0.0
      %9082 = vmatpush1.msra.mxu0 0.0
      %9083 = vmatprep.subr.mxu0 0.0
      %9084 = vmatpush1.msra.mxu0 0.0
      %9085 = vmatprep.subr.mxu0 0.0
      %9086 = vmatpush1.msra.mxu0 0.0
      %9087 = vmatprep.subr.mxu0 0.0
      %9088 = vmatpush1.msra.mxu0 0.0
      %9089 = vmatprep.subr.mxu0 0.0
      %9090 = vmatpush1.msra.mxu0 0.0
      %9091 = vmatprep.subr.mxu0 0.0
      %9092 = vmatpush1.msra.mxu0 0.0
      %9093 = vmatprep.subr.mxu0 0.0
      %9094 = vmatpush1.msra.mxu0 0.0
      %9095 = vmatprep.subr.mxu0 0.0
      %9096 = vmatpush1.msra.mxu0 0.0
      %9097 = vmatprep.subr.mxu0 0.0
      %9098 = vmatpush1.msra.mxu0 0.0
      %9099 = vmatprep.subr.mxu0 0.0
      %9100 = vmatpush1.msra.mxu0 0.0
      %9101 = vmatprep.subr.mxu0 0.0
      %9102 = vmatpush1.msra.mxu0 0.0
      %9103 = vmatprep.subr.mxu0 0.0
      %9104 = vmatpush1.msra.mxu0 0.0
      %9105 = vmatprep.subr.mxu0 0.0
      %9106 = vmatpush1.msra.mxu0 0.0
      %9107 = vmatprep.subr.mxu0 0.0
      %9108 = vmatpush1.msra.mxu0 0.0
      %9109 = vmatprep.mubr.f32.mxu0 0.0
      %9110 = vmatmul.mubr.f32.gmra.mrb[0].mxu0 %v9015
      %v9111 = vpop.f32.mrb[0].mxu0
      %v9112 = vadd.f32 %v9043, %v9111
      %v9113 = vpop.f32.mrb[0].mxu0
      %9114 = vmatprep.mubr.f32.mxu0 0.0
      %9115 = vmatmul.mubr.f32.gmra.mrb[0].mxu0 %v9016
      %v9116 = vpop.f32.mrb[0].mxu0
      %v9117 = vadd.f32 %v9043, %v9116
      %v9118 = vpop.f32.mrb[0].mxu0
      %9119 = vmatprep.mubr.f32.mxu0 0.0
      %9120 = vmatmul.mubr.f32.gmra.mrb[0].mxu0 %v9017
      %v9121 = vpop.f32.mrb[0].mxu0
      %v9122 = vadd.f32 %v9043, %v9121
      %v9123 = vpop.f32.mrb[0].mxu0
      %9124 = vmatprep.mubr.f32.mxu0 0.0
      %9125 = vmatmul.mubr.f32.gmra.mrb[0].mxu0 %v9018
      %v9126 = vpop.f32.mrb[0].mxu0
      %v9127 = vadd.f32 %v9043, %v9126
      %v9128 = vpop.f32.mrb[0].mxu0
      %9129 = vmatprep.mubr.f32.mxu0 0.0
      %9130 = vmatmul.mubr.f32.gmra.mrb[0].mxu0 %v9019
      %v9131 = vpop.f32.mrb[0].mxu0
      %v9132 = vadd.f32 %v9043, %v9131
      %v9133 = vpop.f32.mrb[0].mxu0
      %9134 = vmatprep.mubr.f32.mxu0 0.0
      %9135 = vmatmul.mubr.f32.gmra.mrb[0].mxu0 %v9020
      %v9136 = vpop.f32.mrb[0].mxu0
      %v9137 = vadd.f32 %v9043, %v9136
      %v9138 = vpop.f32.mrb[0].mxu0
      %9139 = vmatprep.mubr.f32.mxu0 0.0
      %9140 = vmatmul.mubr.f32.gmra.mrb[0].mxu0 %v9021
      %v9141 = vpop.f32.mrb[0].mxu0
      %v9142 = vadd.f32 %v9043, %v9141
      %v9143 = vpop.f32.mrb[0].mxu0
      %9144 = vdwg.mxu0
      %v9145 = vadd.f32 %v620, %v9112
      %v9146 = vadd.f32 %v621, %v9117
      %v9147 = vadd.f32 %v622, %v9122
      %v9148 = vadd.f32 %v623, %v9127
      %v9149 = vadd.f32 %v624, %v9132
      %v9150 = vadd.f32 %v625, %v9137
      %v9151 = vadd.f32 %v626, %v9142
      %9152 = vst [vmem:[%s619] sm:$0xff] %v9145
      %9153 = vst [vmem:[%s619 + $0x8] sm:$0xff] %v9146
      %9154 = vst [vmem:[%s619 + $0x10] sm:$0xff] %v9147
      %9155 = vst [vmem:[%s619 + $0x18] sm:$0xff] %v9148
      %9156 = vst [vmem:[%s619 + $0x20] sm:$0xff] %v9149
      %9157 = vst [vmem:[%s619 + $0x28] sm:$0xff] %v9150
      %9158 = vst [vmem:[%s619 + $0x30] sm:$0x1] %v9151
      %p9159 = scmp.lt.s32.totalorder %s30, 1
      %s9160 = scalar_select %p9159, %s30, 1
      %s9161 = smul.addr %s9160, 7
      %s9162 = smul.addr %s9161, 8
      %s9163 = scalar_lea.vmem %s19, %s9162
      // Predicated region
      $region97: #{residual_forward.1} parent=95 // pred_check
        %p9164 = pneg %p457
      $region98: #{residual_forward.1} parent=95 // pred_check_branch
        %9166 = sbr.rel (%p9164) target = $region100
      $region99: #{residual_forward.1} parent=95 // pred_region
        _
      $region100: #{residual_forward.1} parent=95 // pred_fallthru
        _
    $region96: #{residual_forward.1} parent=5 // pred_fallthru
      _
    %p9167 = scmp.le.s32.totalorder 2, %s25
    // Predicated region
    $region101: #{residual_forward.1} parent=5 // pred_check
      %p9168 = pneg %p9167
    $region102: #{residual_forward.1} parent=5 // pred_check_branch
      %9170 = sbr.rel (%p9168) target = $region104
    $region103: #{residual_forward.1} parent=5 // pred_region
      %s9171 = ssub.s32 %s25, 2
      // Predicated region
      $region105: #{residual_forward.1} parent=103 // pred_check
        %p9172 = pneg %p463
      $region106: #{residual_forward.1} parent=103 // pred_check_branch
        %9174 = sbr.rel (%p9172) target = $region108
      $region107: #{residual_forward.1} parent=103 // pred_region
        %p9175 = scmp.lt.s32.totalorder %s31, 1
        %s9176 = scalar_select %p9175, %s31, 1
        %s9177 = smul.addr %s9176, 7
        %s9178 = smul.addr %s9177, 8
        %s9179 = scalar_lea.vmem %s19, %s9178
      $region108: #{residual_forward.1} parent=103 // pred_fallthru
        _
    $region104: #{residual_forward.1} parent=5 // pred_fallthru
      _
  $region6: #{residual_forward.1} parent=0 // loop_footer
    %s29 = sadd.s32 1, %s25
  $region7: #{residual_forward.1} parent=0 // loop_footer_branch
    %24 = sbr.rel target = $region3
  $region8: #{residual_forward.1} parent=0 // loop_exit
    _

</llo_original>
